<compile_context>
chip_gen: v5e
topology: v5e:2x2
jax: 0.10.0
libtpu: 0.0.40
codegen_flags: <defaults>
</compile_context>

<pallas_src>
import numpy as np
import jax
import jax.numpy as jnp
from jax.experimental import pallas as pl
from jax.experimental.pallas import tpu as pltpu

NUM_CLASSES = 7          # DeepGlobe
CPAD = 128               # channel padding -> every matmul output is lane-dense (N = 128)
DTYPE = jnp.bfloat16     # MXU operand dtype; accumulation + bias/ReLU epilogue stay f32


# ----------------------------------------------------------------------------
# Synthetic DeepLab-v3+ style instance (deterministic init, same as before).
# The real PyTorch module is a container whose backbone/aspp/decoder are
# injected at construction time; this is a small representative instance.
# ----------------------------------------------------------------------------
def _init_conv(key, c_out, c_in, kh, kw):
    k1, k2 = jax.random.split(key)
    fan_in = c_in * kh * kw
    w = jax.random.normal(k1, (c_out, c_in, kh, kw), jnp.float32) / jnp.sqrt(float(fan_in))
    b = 0.01 * jax.random.normal(k2, (c_out,), jnp.float32)
    return w, b


def init_params(key):
    ks = jax.random.split(key, 10)
    return {
        "bb_conv1": _init_conv(ks[0], 8, 3, 3, 3),     # stride 2
        "bb_conv2": _init_conv(ks[1], 16, 8, 3, 3),    # stride 2
        "aspp_b0":  _init_conv(ks[2], 8, 16, 1, 1),
        "aspp_b1":  _init_conv(ks[3], 8, 16, 3, 3),    # dilation 1
        "aspp_b2":  _init_conv(ks[4], 8, 16, 3, 3),    # dilation 2
        "aspp_pool": _init_conv(ks[5], 8, 16, 1, 1),
        "aspp_proj": _init_conv(ks[6], 16, 32, 1, 1),
        "dec_low":  _init_conv(ks[7], 8, 8, 1, 1),
        "dec_fuse": _init_conv(ks[8], 16, 24, 3, 3),
        "dec_cls":  _init_conv(ks[9], NUM_CLASSES, 16, 1, 1),
    }
# TODO(synk): the real injected backbone/ASPP carry BatchNorm layers; omitted
# here since parameters are synthesized (eval-mode BN folds into conv anyway).


# ----------------------------------------------------------------------------
# Host-side constant construction (numpy, done once outside jit).
# ----------------------------------------------------------------------------
def _conv_gather(H, W, k, stride, pad, dil):
    """0/1 selection matrices: G[t] @ X gathers the tap-t input pixel for every
    output pixel (zero rows where the tap falls into zero-padding)."""
    Ho = (H + 2 * pad - dil * (k - 1) - 1) // stride + 1
    Wo = (W + 2 * pad - dil * (k - 1) - 1) // stride + 1
    G = np.zeros((k * k, Ho * Wo, H * W), np.float32)
    for i in range(k):
        for j in range(k):
            t = i * k + j
            for oh in range(Ho):
                ih = oh * stride - pad + i * dil
                if ih < 0 or ih >= H:
                    continue
                for ow in range(Wo):
                    iw = ow * stride - pad + j * dil
                    if iw < 0 or iw >= W:
                        continue
                    G[t, oh * Wo + ow, ih * W + iw] = 1.0
    return G, Ho, Wo


def _bilinear_1d(out_size, in_size):
    """Bilinear interpolation matrix, align_corners=False (PyTorch semantics)."""
    dst = np.arange(out_size, dtype=np.float64)
    src = np.clip((dst + 0.5) * (in_size / out_size) - 0.5, 0.0, in_size - 1)
    lo = np.floor(src).astype(np.int64)
    hi = np.minimum(lo + 1, in_size - 1)
    frac = (src - lo).astype(np.float32)
    M = np.zeros((out_size, in_size), np.float32)
    r = np.arange(out_size)
    np.add.at(M, (r, lo), 1.0 - frac)
    np.add.at(M, (r, hi), frac)
    return M


def _bilinear_mat(oh, ow, ih, iw):
    # Separable bilinear as one (oh*ow, ih*iw) matrix on flattened pixel indices.
    return np.kron(_bilinear_1d(oh, ih), _bilinear_1d(ow, iw)).astype(np.float32)


def _pack_w(w):
    """(Cout, Cin, kh, kw) torch layout -> zero-padded per-tap matrices:
    (kh*kw, 128, 128) (or (128,128) for 1x1); rows = in channels, cols = out."""
    w = np.asarray(w)
    c_out, c_in, kh, kw = w.shape
    out = np.zeros((kh * kw, CPAD, CPAD), np.float32)
    for i in range(kh):
        for j in range(kw):
            out[i * kw + j, :c_in, :c_out] = w[:, :, i, j].T
    return out[0] if kh * kw == 1 else out


def _pack_b(b):
    out = np.zeros((CPAD,), np.float32)
    b = np.asarray(b)
    out[: b.shape[0]] = b
    return out


def pack_model(params, H, W):
    """Pad weights to 128 channels and precompute the constant gather / pooling /
    bilinear matrices (per image; shared by every batch element / grid step)."""
    g_bb1, H2, W2 = _conv_gather(H, W, 3, 2, 1, 1)       # 16x16 -> 8x8
    g_bb2, H4, W4 = _conv_gather(H2, W2, 3, 2, 1, 1)     # 8x8  -> 4x4
    g_b1, _, _ = _conv_gather(H4, W4, 3, 1, 1, 1)        # ASPP 3x3 dilation 1
    g_b2, _, _ = _conv_gather(H4, W4, 3, 1, 2, 2)        # ASPP 3x3 dilation 2
    g_fuse, _, _ = _conv_gather(H2, W2, 3, 1, 1, 1)      # decoder 3x3
    size = H                                             # scalar F.interpolate size -> square

    # ASPP projection: split the (32 -> 16) 1x1 over the four 8-channel branches.
    wproj = np.asarray(params["aspp_proj"][0]).reshape(16, 32).T   # (Cin=32, Cout=16)
    w_proj = np.zeros((4, CPAD, CPAD), np.float32)
    for k in range(4):
        w_proj[k, :8, :16] = wproj[8 * k: 8 * (k + 1), :]

    # Decoder fuse: split the (24 -> 16) 3x3 over [feat_up(16 ch), low(8 ch)].
    wfuse = np.asarray(params["dec_fuse"][0])                      # (16, 24, 3, 3)
    w_fa = np.zeros((9, CPAD, CPAD), np.float32)
    w_fb = np.zeros((9, CPAD, CPAD), np.float32)
    for i in range(3):
        for j in range(3):
            t = i * 3 + j
            wt = wfuse[:, :, i, j].T                               # (24, 16)
            w_fa[t, :16, :16] = wt[:16, :]
            w_fb[t, :8, :16] = wt[16:, :]

    packed = {
        "g_bb1": g_bb1, "g_bb2": g_bb2, "g_b1": g_b1, "g_b2": g_b2, "g_fuse": g_fuse,
        "pool": np.full((H4 * W4, H4 * W4), 1.0 / (H4 * W4), np.float32),
        "up1": _bilinear_mat(H2, W2, H4, W4),
        "up2": _bilinear_mat(size, size, H2, W2),
        "w_bb1": _pack_w(params["bb_conv1"][0]),
        "w_bb2": _pack_w(params["bb_conv2"][0]),
        "w_b0": _pack_w(params["aspp_b0"][0]),
        "w_b1": _pack_w(params["aspp_b1"][0]),
        "w_b2": _pack_w(params["aspp_b2"][0]),
        "w_pool": _pack_w(params["aspp_pool"][0]),
        "w_proj": w_proj,
        "w_low": _pack_w(params["dec_low"][0]),
        "w_fa": w_fa, "w_fb": w_fb,
        "w_cls": _pack_w(params["dec_cls"][0]),
    }
    packed = {k: jnp.asarray(v, DTYPE) for k, v in packed.items()}
    packed["biases"] = jnp.asarray(np.stack([
        _pack_b(params["bb_conv1"][1]), _pack_b(params["bb_conv2"][1]),
        _pack_b(params["aspp_b0"][1]), _pack_b(params["aspp_b1"][1]),
        _pack_b(params["aspp_b2"][1]), _pack_b(params["aspp_pool"][1]),
        _pack_b(params["aspp_proj"][1]), _pack_b(params["dec_low"][1]),
        _pack_b(params["dec_fuse"][1]), _pack_b(params["dec_cls"][1]),
    ]), jnp.float32)
    return packed


# ----------------------------------------------------------------------------
# The single fused Pallas kernel: full forward pass for one image per grid step.
# ----------------------------------------------------------------------------
def _deeplab_kernel(x_ref,
                    g_bb1, g_bb2, g_b1, g_b2, g_fuse, pool_ref, up1_ref, up2_ref,
                    w_bb1, w_bb2, w_b0, w_b1, w_b2, w_pool, w_proj,
                    w_low, w_fa, w_fb, w_cls,
                    b_ref, o_ref):
    f32 = jnp.float32
    bias = b_ref[...]                                   # (10, 128) f32

    def mm(a, b):
        return jnp.dot(a, b, preferred_element_type=f32)

    def conv3x3(xb, g, w, bi, relu=True):
        acc = None
        for t in range(9):                              # statically unrolled taps
            gx = mm(g[t], xb).astype(DTYPE)             # in-kernel patch gather (MXU)
            part = mm(gx, w[t])                         # channel mix, f32 accumulation
            acc = part if acc is None else acc + part
        acc = acc + bias[bi:bi + 1, :]
        return jnp.maximum(acc, 0.0) if relu else acc

    def conv1x1(xb, w, bi, relu=True):
        acc = mm(xb, w[...]) + bias[bi:bi + 1, :]
        return jnp.maximum(acc, 0.0) if relu else acc

    x = x_ref[0]                                        # (H*W, 128) bf16

    # ---- backbone: two stride-2 3x3 convs ----
    low = conv3x3(x, g_bb1, w_bb1, 0)                   # (P1, 128) f32
    lowb = low.astype(DTYPE)
    feat = conv3x3(lowb, g_bb2, w_bb2, 1)               # (P2, 128)
    featb = feat.astype(DTYPE)

    # ---- ASPP: 4 branches + 1x1 projection (split-K, concat never built) ----
    a0 = conv1x1(featb, w_b0, 2).astype(DTYPE)
    a1 = conv3x3(featb, g_b1, w_b1, 3).astype(DTYPE)
    a2 = conv3x3(featb, g_b2, w_b2, 4).astype(DTYPE)
    gap = mm(pool_ref[...], featb).astype(DTYPE)        # global avg pool, pre-broadcast
    a3 = conv1x1(gap, w_pool, 5).astype(DTYPE)
    proj = (mm(a0, w_proj[0]) + mm(a1, w_proj[1]) +
            mm(a2, w_proj[2]) + mm(a3, w_proj[3]))
    proj = jnp.maximum(proj + bias[6:7, :], 0.0)
    projb = proj.astype(DTYPE)

    # ---- decoder: low-level fusion + classifier ----
    lowd = conv1x1(lowb, w_low, 7).astype(DTYPE)        # (P1, 128)
    feat_up = mm(up1_ref[...], projb).astype(DTYPE)     # bilinear x2 as one matmul
    acc = None
    for t in range(9):                                  # 3x3 fuse conv, split-K over sources
        g = g_fuse[t]
        part = (mm(mm(g, feat_up).astype(DTYPE), w_fa[t]) +
                mm(mm(g, lowd).astype(DTYPE), w_fb[t]))
        acc = part if acc is None else acc + part
    fuse = jnp.maximum(acc + bias[8:9, :], 0.0).astype(DTYPE)

    pred = (mm(fuse, w_cls[...]) + bias[9:10, :]).astype(DTYPE)   # classifier, no ReLU

    # ---- final bilinear resize to input resolution (align_corners=False) ----
    o_ref[0] = mm(up2_ref[...], pred).astype(o_ref.dtype)         # (H*H, 128) lane-dense


_CONST_KEYS = ("g_bb1", "g_bb2", "g_b1", "g_b2", "g_fuse", "pool", "up1", "up2",
               "w_bb1", "w_bb2", "w_b0", "w_b1", "w_b2", "w_pool", "w_proj",
               "w_low", "w_fa", "w_fb", "w_cls")


def deeplab_forward(packed, img):
    """img: (N, 3, H, W) f32 NCHW -> (N, NUM_CLASSES, H, H) f32 (PyTorch semantics)."""
    N, C, H, W = img.shape
    size = H                                   # F.interpolate(pred, img.shape[-2]) -> square
    # One-time boundary layout change: NCHW -> pixel-major rows, channels on lanes.
    x = jnp.transpose(img, (0, 2, 3, 1)).reshape(N, H * W, C)
    x = jnp.pad(x, ((0, 0), (0, 0), (0, CPAD - C))).astype(DTYPE)

    consts = [packed[k] for k in _CONST_KEYS]
    biases = packed["biases"]

    def bcast_spec(a):
        return pl.BlockSpec(a.shape, lambda n, _nd=a.ndim: (0,) * _nd)

    out = pl.pallas_call(
        _deeplab_kernel,
        out_shape=jax.ShapeDtypeStruct((N, size * size, CPAD), jnp.float32),
        grid=(N,),                                        # >= 2 parallel steps (v7x megacore)
        in_specs=([pl.BlockSpec((1, H * W, CPAD), lambda n: (n, 0, 0))]
                  + [bcast_spec(a) for a in consts]
                  + [bcast_spec(biases)]),
        out_specs=pl.BlockSpec((1, size * size, CPAD), lambda n: (n, 0, 0)),
        compiler_params=pltpu.CompilerParams(dimension_semantics=("parallel",)),
    )(x, *consts, biases)

    out = out[:, :, :NUM_CLASSES].reshape(N, size, size, NUM_CLASSES)
    return jnp.transpose(out, (0, 3, 1, 2))               # back to NCHW once


if __name__ == "__main__":
    key = jax.random.PRNGKey(0)
    pkey, xkey = jax.random.split(key)
    params = init_params(pkey)
    img = jax.random.normal(xkey, (2, 3, 16, 16), jnp.float32)

    packed = pack_model(params, 16, 16)
    fwd = jax.jit(deeplab_forward)
    out = jax.block_until_ready(fwd(packed, img))

    assert out.shape == (2, NUM_CLASSES, 16, 16), out.shape
    assert bool(jnp.all(jnp.isfinite(out)))
    print("KERNEL_OK")
</pallas_src>

<mosaic_0001>
module attributes {stable_mosaic.version = 11 : i64} {
  func.func @_deeplab_kernel(%arg0: i32, %arg1: memref<1x256x128xbf16, #tpu.memory_space<vmem>>, %arg2: memref<9x64x256xbf16, #tpu.memory_space<vmem>>, %arg3: memref<9x16x64xbf16, #tpu.memory_space<vmem>>, %arg4: memref<9x16x16xbf16, #tpu.memory_space<vmem>>, %arg5: memref<9x16x16xbf16, #tpu.memory_space<vmem>>, %arg6: memref<9x64x64xbf16, #tpu.memory_space<vmem>>, %arg7: memref<16x16xbf16, #tpu.memory_space<vmem>>, %arg8: memref<64x16xbf16, #tpu.memory_space<vmem>>, %arg9: memref<256x64xbf16, #tpu.memory_space<vmem>>, %arg10: memref<9x128x128xbf16, #tpu.memory_space<vmem>>, %arg11: memref<9x128x128xbf16, #tpu.memory_space<vmem>>, %arg12: memref<128x128xbf16, #tpu.memory_space<vmem>>, %arg13: memref<9x128x128xbf16, #tpu.memory_space<vmem>>, %arg14: memref<9x128x128xbf16, #tpu.memory_space<vmem>>, %arg15: memref<128x128xbf16, #tpu.memory_space<vmem>>, %arg16: memref<4x128x128xbf16, #tpu.memory_space<vmem>>, %arg17: memref<128x128xbf16, #tpu.memory_space<vmem>>, %arg18: memref<9x128x128xbf16, #tpu.memory_space<vmem>>, %arg19: memref<9x128x128xbf16, #tpu.memory_space<vmem>>, %arg20: memref<128x128xbf16, #tpu.memory_space<vmem>>, %arg21: memref<10x128xf32, #tpu.memory_space<vmem>>, %arg22: memref<1x256x128xf32, #tpu.memory_space<vmem>>) attributes {dimension_semantics = [#tpu.dimension_semantics<parallel>], iteration_bounds = array<i64: 2>, scalar_prefetch = 0 : i64, scratch_operands = 0 : i64, tpu.core_type = #tpu.core_type<tc>, window_params = [{transform_indices = @transform_0, window_bounds = array<i64: 1, 256, 128>}, {pipeline_mode = #tpu.pipeline_mode<synchronous>, transform_indices = @transform_1, window_bounds = array<i64: 9, 64, 256>}, {pipeline_mode = #tpu.pipeline_mode<synchronous>, transform_indices = @transform_2, window_bounds = array<i64: 9, 16, 64>}, {pipeline_mode = #tpu.pipeline_mode<synchronous>, transform_indices = @transform_3, window_bounds = array<i64: 9, 16, 16>}, {pipeline_mode = #tpu.pipeline_mode<synchronous>, transform_indices = @transform_4, window_bounds = array<i64: 9, 16, 16>}, {pipeline_mode = #tpu.pipeline_mode<synchronous>, transform_indices = @transform_5, window_bounds = array<i64: 9, 64, 64>}, {pipeline_mode = #tpu.pipeline_mode<synchronous>, transform_indices = @transform_6, window_bounds = array<i64: 16, 16>}, {pipeline_mode = #tpu.pipeline_mode<synchronous>, transform_indices = @transform_7, window_bounds = array<i64: 64, 16>}, {pipeline_mode = #tpu.pipeline_mode<synchronous>, transform_indices = @transform_8, window_bounds = array<i64: 256, 64>}, {pipeline_mode = #tpu.pipeline_mode<synchronous>, transform_indices = @transform_9, window_bounds = array<i64: 9, 128, 128>}, {pipeline_mode = #tpu.pipeline_mode<synchronous>, transform_indices = @transform_10, window_bounds = array<i64: 9, 128, 128>}, {pipeline_mode = #tpu.pipeline_mode<synchronous>, transform_indices = @transform_11, window_bounds = array<i64: 128, 128>}, {pipeline_mode = #tpu.pipeline_mode<synchronous>, transform_indices = @transform_12, window_bounds = array<i64: 9, 128, 128>}, {pipeline_mode = #tpu.pipeline_mode<synchronous>, transform_indices = @transform_13, window_bounds = array<i64: 9, 128, 128>}, {pipeline_mode = #tpu.pipeline_mode<synchronous>, transform_indices = @transform_14, window_bounds = array<i64: 128, 128>}, {pipeline_mode = #tpu.pipeline_mode<synchronous>, transform_indices = @transform_15, window_bounds = array<i64: 4, 128, 128>}, {pipeline_mode = #tpu.pipeline_mode<synchronous>, transform_indices = @transform_16, window_bounds = array<i64: 128, 128>}, {pipeline_mode = #tpu.pipeline_mode<synchronous>, transform_indices = @transform_17, window_bounds = array<i64: 9, 128, 128>}, {pipeline_mode = #tpu.pipeline_mode<synchronous>, transform_indices = @transform_18, window_bounds = array<i64: 9, 128, 128>}, {pipeline_mode = #tpu.pipeline_mode<synchronous>, transform_indices = @transform_19, window_bounds = array<i64: 128, 128>}, {pipeline_mode = #tpu.pipeline_mode<synchronous>, transform_indices = @transform_20, window_bounds = array<i64: 10, 128>}, {transform_indices = @transform_21, window_bounds = array<i64: 1, 256, 128>}]} {
    %c0 = arith.constant 0 : index
    %c0_0 = arith.constant 0 : index
    %0 = vector.load %arg21[%c0, %c0_0] : memref<10x128xf32, #tpu.memory_space<vmem>>, vector<10x128xf32>
    %c0_1 = arith.constant 0 : index
    %c0_2 = arith.constant 0 : index
    %c0_3 = arith.constant 0 : index
    %1 = vector.load %arg1[%c0_1, %c0_2, %c0_3] : memref<1x256x128xbf16, #tpu.memory_space<vmem>>, vector<1x256x128xbf16>
    %2 = vector.shape_cast %1 : vector<1x256x128xbf16> to vector<256x128xbf16>
    %c0_4 = arith.constant 0 : index
    %c0_5 = arith.constant 0 : index
    %c0_6 = arith.constant 0 : index
    %3 = vector.load %arg2[%c0_4, %c0_5, %c0_6] : memref<9x64x256xbf16, #tpu.memory_space<vmem>>, vector<1x64x256xbf16>
    %4 = vector.shape_cast %3 : vector<1x64x256xbf16> to vector<64x256xbf16>
    %cst = arith.constant dense<0.000000e+00> : vector<64x128xf32>
    %5 = tpu.matmul %4, %2, %cst {dimension_numbers = #tpu.dot_dimension_numbers<[1], [0], [0], [1], [0, 0, 1, 1], [], []>} : vector<64x256xbf16>, vector<256x128xbf16>, vector<64x128xf32> -> vector<64x128xf32>
    %6 = arith.truncf %5 : vector<64x128xf32> to vector<64x128xbf16>
    %c0_7 = arith.constant 0 : index
    %c0_8 = arith.constant 0 : index
    %c0_9 = arith.constant 0 : index
    %7 = vector.load %arg10[%c0_7, %c0_8, %c0_9] : memref<9x128x128xbf16, #tpu.memory_space<vmem>>, vector<1x128x128xbf16>
    %8 = vector.shape_cast %7 : vector<1x128x128xbf16> to vector<128x128xbf16>
    %cst_10 = arith.constant dense<0.000000e+00> : vector<64x128xf32>
    %9 = tpu.matmul %6, %8, %cst_10 {dimension_numbers = #tpu.dot_dimension_numbers<[1], [0], [0], [1], [0, 0, 1, 1], [], []>} : vector<64x128xbf16>, vector<128x128xbf16>, vector<64x128xf32> -> vector<64x128xf32>
    %c1 = arith.constant 1 : index
    %c0_11 = arith.constant 0 : index
    %c0_12 = arith.constant 0 : index
    %10 = vector.load %arg2[%c1, %c0_11, %c0_12] : memref<9x64x256xbf16, #tpu.memory_space<vmem>>, vector<1x64x256xbf16>
    %11 = vector.shape_cast %10 : vector<1x64x256xbf16> to vector<64x256xbf16>
    %cst_13 = arith.constant dense<0.000000e+00> : vector<64x128xf32>
    %12 = tpu.matmul %11, %2, %cst_13 {dimension_numbers = #tpu.dot_dimension_numbers<[1], [0], [0], [1], [0, 0, 1, 1], [], []>} : vector<64x256xbf16>, vector<256x128xbf16>, vector<64x128xf32> -> vector<64x128xf32>
    %13 = arith.truncf %12 : vector<64x128xf32> to vector<64x128xbf16>
    %c1_14 = arith.constant 1 : index
    %c0_15 = arith.constant 0 : index
    %c0_16 = arith.constant 0 : index
    %14 = vector.load %arg10[%c1_14, %c0_15, %c0_16] : memref<9x128x128xbf16, #tpu.memory_space<vmem>>, vector<1x128x128xbf16>
    %15 = vector.shape_cast %14 : vector<1x128x128xbf16> to vector<128x128xbf16>
    %cst_17 = arith.constant dense<0.000000e+00> : vector<64x128xf32>
    %16 = tpu.matmul %13, %15, %cst_17 {dimension_numbers = #tpu.dot_dimension_numbers<[1], [0], [0], [1], [0, 0, 1, 1], [], []>} : vector<64x128xbf16>, vector<128x128xbf16>, vector<64x128xf32> -> vector<64x128xf32>
    %17 = arith.addf %9, %16 : vector<64x128xf32>
    %c2 = arith.constant 2 : index
    %c0_18 = arith.constant 0 : index
    %c0_19 = arith.constant 0 : index
    %18 = vector.load %arg2[%c2, %c0_18, %c0_19] : memref<9x64x256xbf16, #tpu.memory_space<vmem>>, vector<1x64x256xbf16>
    %19 = vector.shape_cast %18 : vector<1x64x256xbf16> to vector<64x256xbf16>
    %cst_20 = arith.constant dense<0.000000e+00> : vector<64x128xf32>
    %20 = tpu.matmul %19, %2, %cst_20 {dimension_numbers = #tpu.dot_dimension_numbers<[1], [0], [0], [1], [0, 0, 1, 1], [], []>} : vector<64x256xbf16>, vector<256x128xbf16>, vector<64x128xf32> -> vector<64x128xf32>
    %21 = arith.truncf %20 : vector<64x128xf32> to vector<64x128xbf16>
    %c2_21 = arith.constant 2 : index
    %c0_22 = arith.constant 0 : index
    %c0_23 = arith.constant 0 : index
    %22 = vector.load %arg10[%c2_21, %c0_22, %c0_23] : memref<9x128x128xbf16, #tpu.memory_space<vmem>>, vector<1x128x128xbf16>
    %23 = vector.shape_cast %22 : vector<1x128x128xbf16> to vector<128x128xbf16>
    %cst_24 = arith.constant dense<0.000000e+00> : vector<64x128xf32>
    %24 = tpu.matmul %21, %23, %cst_24 {dimension_numbers = #tpu.dot_dimension_numbers<[1], [0], [0], [1], [0, 0, 1, 1], [], []>} : vector<64x128xbf16>, vector<128x128xbf16>, vector<64x128xf32> -> vector<64x128xf32>
    %25 = arith.addf %17, %24 : vector<64x128xf32>
    %c3 = arith.constant 3 : index
    %c0_25 = arith.constant 0 : index
    %c0_26 = arith.constant 0 : index
    %26 = vector.load %arg2[%c3, %c0_25, %c0_26] : memref<9x64x256xbf16, #tpu.memory_space<vmem>>, vector<1x64x256xbf16>
    %27 = vector.shape_cast %26 : vector<1x64x256xbf16> to vector<64x256xbf16>
    %cst_27 = arith.constant dense<0.000000e+00> : vector<64x128xf32>
    %28 = tpu.matmul %27, %2, %cst_27 {dimension_numbers = #tpu.dot_dimension_numbers<[1], [0], [0], [1], [0, 0, 1, 1], [], []>} : vector<64x256xbf16>, vector<256x128xbf16>, vector<64x128xf32> -> vector<64x128xf32>
    %29 = arith.truncf %28 : vector<64x128xf32> to vector<64x128xbf16>
    %c3_28 = arith.constant 3 : index
    %c0_29 = arith.constant 0 : index
    %c0_30 = arith.constant 0 : index
    %30 = vector.load %arg10[%c3_28, %c0_29, %c0_30] : memref<9x128x128xbf16, #tpu.memory_space<vmem>>, vector<1x128x128xbf16>
    %31 = vector.shape_cast %30 : vector<1x128x128xbf16> to vector<128x128xbf16>
    %cst_31 = arith.constant dense<0.000000e+00> : vector<64x128xf32>
    %32 = tpu.matmul %29, %31, %cst_31 {dimension_numbers = #tpu.dot_dimension_numbers<[1], [0], [0], [1], [0, 0, 1, 1], [], []>} : vector<64x128xbf16>, vector<128x128xbf16>, vector<64x128xf32> -> vector<64x128xf32>
    %33 = arith.addf %25, %32 : vector<64x128xf32>
    %c4 = arith.constant 4 : index
    %c0_32 = arith.constant 0 : index
    %c0_33 = arith.constant 0 : index
    %34 = vector.load %arg2[%c4, %c0_32, %c0_33] : memref<9x64x256xbf16, #tpu.memory_space<vmem>>, vector<1x64x256xbf16>
    %35 = vector.shape_cast %34 : vector<1x64x256xbf16> to vector<64x256xbf16>
    %cst_34 = arith.constant dense<0.000000e+00> : vector<64x128xf32>
    %36 = tpu.matmul %35, %2, %cst_34 {dimension_numbers = #tpu.dot_dimension_numbers<[1], [0], [0], [1], [0, 0, 1, 1], [], []>} : vector<64x256xbf16>, vector<256x128xbf16>, vector<64x128xf32> -> vector<64x128xf32>
    %37 = arith.truncf %36 : vector<64x128xf32> to vector<64x128xbf16>
    %c4_35 = arith.constant 4 : index
    %c0_36 = arith.constant 0 : index
    %c0_37 = arith.constant 0 : index
    %38 = vector.load %arg10[%c4_35, %c0_36, %c0_37] : memref<9x128x128xbf16, #tpu.memory_space<vmem>>, vector<1x128x128xbf16>
    %39 = vector.shape_cast %38 : vector<1x128x128xbf16> to vector<128x128xbf16>
    %cst_38 = arith.constant dense<0.000000e+00> : vector<64x128xf32>
    %40 = tpu.matmul %37, %39, %cst_38 {dimension_numbers = #tpu.dot_dimension_numbers<[1], [0], [0], [1], [0, 0, 1, 1], [], []>} : vector<64x128xbf16>, vector<128x128xbf16>, vector<64x128xf32> -> vector<64x128xf32>
    %41 = arith.addf %33, %40 : vector<64x128xf32>
    %c5 = arith.constant 5 : index
    %c0_39 = arith.constant 0 : index
    %c0_40 = arith.constant 0 : index
    %42 = vector.load %arg2[%c5, %c0_39, %c0_40] : memref<9x64x256xbf16, #tpu.memory_space<vmem>>, vector<1x64x256xbf16>
    %43 = vector.shape_cast %42 : vector<1x64x256xbf16> to vector<64x256xbf16>
    %cst_41 = arith.constant dense<0.000000e+00> : vector<64x128xf32>
    %44 = tpu.matmul %43, %2, %cst_41 {dimension_numbers = #tpu.dot_dimension_numbers<[1], [0], [0], [1], [0, 0, 1, 1], [], []>} : vector<64x256xbf16>, vector<256x128xbf16>, vector<64x128xf32> -> vector<64x128xf32>
    %45 = arith.truncf %44 : vector<64x128xf32> to vector<64x128xbf16>
    %c5_42 = arith.constant 5 : index
    %c0_43 = arith.constant 0 : index
    %c0_44 = arith.constant 0 : index
    %46 = vector.load %arg10[%c5_42, %c0_43, %c0_44] : memref<9x128x128xbf16, #tpu.memory_space<vmem>>, vector<1x128x128xbf16>
    %47 = vector.shape_cast %46 : vector<1x128x128xbf16> to vector<128x128xbf16>
    %cst_45 = arith.constant dense<0.000000e+00> : vector<64x128xf32>
    %48 = tpu.matmul %45, %47, %cst_45 {dimension_numbers = #tpu.dot_dimension_numbers<[1], [0], [0], [1], [0, 0, 1, 1], [], []>} : vector<64x128xbf16>, vector<128x128xbf16>, vector<64x128xf32> -> vector<64x128xf32>
    %49 = arith.addf %41, %48 : vector<64x128xf32>
    %c6 = arith.constant 6 : index
    %c0_46 = arith.constant 0 : index
    %c0_47 = arith.constant 0 : index
    %50 = vector.load %arg2[%c6, %c0_46, %c0_47] : memref<9x64x256xbf16, #tpu.memory_space<vmem>>, vector<1x64x256xbf16>
    %51 = vector.shape_cast %50 : vector<1x64x256xbf16> to vector<64x256xbf16>
    %cst_48 = arith.constant dense<0.000000e+00> : vector<64x128xf32>
    %52 = tpu.matmul %51, %2, %cst_48 {dimension_numbers = #tpu.dot_dimension_numbers<[1], [0], [0], [1], [0, 0, 1, 1], [], []>} : vector<64x256xbf16>, vector<256x128xbf16>, vector<64x128xf32> -> vector<64x128xf32>
    %53 = arith.truncf %52 : vector<64x128xf32> to vector<64x128xbf16>
    %c6_49 = arith.constant 6 : index
    %c0_50 = arith.constant 0 : index
    %c0_51 = arith.constant 0 : index
    %54 = vector.load %arg10[%c6_49, %c0_50, %c0_51] : memref<9x128x128xbf16, #tpu.memory_space<vmem>>, vector<1x128x128xbf16>
    %55 = vector.shape_cast %54 : vector<1x128x128xbf16> to vector<128x128xbf16>
    %cst_52 = arith.constant dense<0.000000e+00> : vector<64x128xf32>
    %56 = tpu.matmul %53, %55, %cst_52 {dimension_numbers = #tpu.dot_dimension_numbers<[1], [0], [0], [1], [0, 0, 1, 1], [], []>} : vector<64x128xbf16>, vector<128x128xbf16>, vector<64x128xf32> -> vector<64x128xf32>
    %57 = arith.addf %49, %56 : vector<64x128xf32>
    %c7 = arith.constant 7 : index
    %c0_53 = arith.constant 0 : index
    %c0_54 = arith.constant 0 : index
    %58 = vector.load %arg2[%c7, %c0_53, %c0_54] : memref<9x64x256xbf16, #tpu.memory_space<vmem>>, vector<1x64x256xbf16>
    %59 = vector.shape_cast %58 : vector<1x64x256xbf16> to vector<64x256xbf16>
    %cst_55 = arith.constant dense<0.000000e+00> : vector<64x128xf32>
    %60 = tpu.matmul %59, %2, %cst_55 {dimension_numbers = #tpu.dot_dimension_numbers<[1], [0], [0], [1], [0, 0, 1, 1], [], []>} : vector<64x256xbf16>, vector<256x128xbf16>, vector<64x128xf32> -> vector<64x128xf32>
    %61 = arith.truncf %60 : vector<64x128xf32> to vector<64x128xbf16>
    %c7_56 = arith.constant 7 : index
    %c0_57 = arith.constant 0 : index
    %c0_58 = arith.constant 0 : index
    %62 = vector.load %arg10[%c7_56, %c0_57, %c0_58] : memref<9x128x128xbf16, #tpu.memory_space<vmem>>, vector<1x128x128xbf16>
    %63 = vector.shape_cast %62 : vector<1x128x128xbf16> to vector<128x128xbf16>
    %cst_59 = arith.constant dense<0.000000e+00> : vector<64x128xf32>
    %64 = tpu.matmul %61, %63, %cst_59 {dimension_numbers = #tpu.dot_dimension_numbers<[1], [0], [0], [1], [0, 0, 1, 1], [], []>} : vector<64x128xbf16>, vector<128x128xbf16>, vector<64x128xf32> -> vector<64x128xf32>
    %65 = arith.addf %57, %64 : vector<64x128xf32>
    %c8 = arith.constant 8 : index
    %c0_60 = arith.constant 0 : index
    %c0_61 = arith.constant 0 : index
    %66 = vector.load %arg2[%c8, %c0_60, %c0_61] : memref<9x64x256xbf16, #tpu.memory_space<vmem>>, vector<1x64x256xbf16>
    %67 = vector.shape_cast %66 : vector<1x64x256xbf16> to vector<64x256xbf16>
    %cst_62 = arith.constant dense<0.000000e+00> : vector<64x128xf32>
    %68 = tpu.matmul %67, %2, %cst_62 {dimension_numbers = #tpu.dot_dimension_numbers<[1], [0], [0], [1], [0, 0, 1, 1], [], []>} : vector<64x256xbf16>, vector<256x128xbf16>, vector<64x128xf32> -> vector<64x128xf32>
    %69 = arith.truncf %68 : vector<64x128xf32> to vector<64x128xbf16>
    %c8_63 = arith.constant 8 : index
    %c0_64 = arith.constant 0 : index
    %c0_65 = arith.constant 0 : index
    %70 = vector.load %arg10[%c8_63, %c0_64, %c0_65] : memref<9x128x128xbf16, #tpu.memory_space<vmem>>, vector<1x128x128xbf16>
    %71 = vector.shape_cast %70 : vector<1x128x128xbf16> to vector<128x128xbf16>
    %cst_66 = arith.constant dense<0.000000e+00> : vector<64x128xf32>
    %72 = tpu.matmul %69, %71, %cst_66 {dimension_numbers = #tpu.dot_dimension_numbers<[1], [0], [0], [1], [0, 0, 1, 1], [], []>} : vector<64x128xbf16>, vector<128x128xbf16>, vector<64x128xf32> -> vector<64x128xf32>
    %73 = arith.addf %65, %72 : vector<64x128xf32>
    %74 = vector.extract_strided_slice %0 {offsets = [0, 0], sizes = [1, 128], strides = [1, 1]} : vector<10x128xf32> to vector<1x128xf32>
    %75 = vector.broadcast %74 : vector<1x128xf32> to vector<64x128xf32>
    %76 = arith.addf %73, %75 : vector<64x128xf32>
    %cst_67 = arith.constant 0.000000e+00 : f32
    %77 = vector.broadcast %cst_67 : f32 to vector<64x128xf32>
    %78 = arith.maximumf %76, %77 : vector<64x128xf32>
    %79 = arith.truncf %78 : vector<64x128xf32> to vector<64x128xbf16>
    %c0_68 = arith.constant 0 : index
    %c0_69 = arith.constant 0 : index
    %c0_70 = arith.constant 0 : index
    %80 = vector.load %arg3[%c0_68, %c0_69, %c0_70] : memref<9x16x64xbf16, #tpu.memory_space<vmem>>, vector<1x16x64xbf16>
    %81 = vector.shape_cast %80 : vector<1x16x64xbf16> to vector<16x64xbf16>
    %cst_71 = arith.constant dense<0.000000e+00> : vector<16x128xf32>
    %82 = tpu.matmul %81, %79, %cst_71 {dimension_numbers = #tpu.dot_dimension_numbers<[1], [0], [0], [1], [0, 0, 1, 1], [], []>} : vector<16x64xbf16>, vector<64x128xbf16>, vector<16x128xf32> -> vector<16x128xf32>
    %83 = arith.truncf %82 : vector<16x128xf32> to vector<16x128xbf16>
    %c0_72 = arith.constant 0 : index
    %c0_73 = arith.constant 0 : index
    %c0_74 = arith.constant 0 : index
    %84 = vector.load %arg11[%c0_72, %c0_73, %c0_74] : memref<9x128x128xbf16, #tpu.memory_space<vmem>>, vector<1x128x128xbf16>
    %85 = vector.shape_cast %84 : vector<1x128x128xbf16> to vector<128x128xbf16>
    %cst_75 = arith.constant dense<0.000000e+00> : vector<16x128xf32>
    %86 = tpu.matmul %83, %85, %cst_75 {dimension_numbers = #tpu.dot_dimension_numbers<[1], [0], [0], [1], [0, 0, 1, 1], [], []>} : vector<16x128xbf16>, vector<128x128xbf16>, vector<16x128xf32> -> vector<16x128xf32>
    %c1_76 = arith.constant 1 : index
    %c0_77 = arith.constant 0 : index
    %c0_78 = arith.constant 0 : index
    %87 = vector.load %arg3[%c1_76, %c0_77, %c0_78] : memref<9x16x64xbf16, #tpu.memory_space<vmem>>, vector<1x16x64xbf16>
    %88 = vector.shape_cast %87 : vector<1x16x64xbf16> to vector<16x64xbf16>
    %cst_79 = arith.constant dense<0.000000e+00> : vector<16x128xf32>
    %89 = tpu.matmul %88, %79, %cst_79 {dimension_numbers = #tpu.dot_dimension_numbers<[1], [0], [0], [1], [0, 0, 1, 1], [], []>} : vector<16x64xbf16>, vector<64x128xbf16>, vector<16x128xf32> -> vector<16x128xf32>
    %90 = arith.truncf %89 : vector<16x128xf32> to vector<16x128xbf16>
    %c1_80 = arith.constant 1 : index
    %c0_81 = arith.constant 0 : index
    %c0_82 = arith.constant 0 : index
    %91 = vector.load %arg11[%c1_80, %c0_81, %c0_82] : memref<9x128x128xbf16, #tpu.memory_space<vmem>>, vector<1x128x128xbf16>
    %92 = vector.shape_cast %91 : vector<1x128x128xbf16> to vector<128x128xbf16>
    %cst_83 = arith.constant dense<0.000000e+00> : vector<16x128xf32>
    %93 = tpu.matmul %90, %92, %cst_83 {dimension_numbers = #tpu.dot_dimension_numbers<[1], [0], [0], [1], [0, 0, 1, 1], [], []>} : vector<16x128xbf16>, vector<128x128xbf16>, vector<16x128xf32> -> vector<16x128xf32>
    %94 = arith.addf %86, %93 : vector<16x128xf32>
    %c2_84 = arith.constant 2 : index
    %c0_85 = arith.constant 0 : index
    %c0_86 = arith.constant 0 : index
    %95 = vector.load %arg3[%c2_84, %c0_85, %c0_86] : memref<9x16x64xbf16, #tpu.memory_space<vmem>>, vector<1x16x64xbf16>
    %96 = vector.shape_cast %95 : vector<1x16x64xbf16> to vector<16x64xbf16>
    %cst_87 = arith.constant dense<0.000000e+00> : vector<16x128xf32>
    %97 = tpu.matmul %96, %79, %cst_87 {dimension_numbers = #tpu.dot_dimension_numbers<[1], [0], [0], [1], [0, 0, 1, 1], [], []>} : vector<16x64xbf16>, vector<64x128xbf16>, vector<16x128xf32> -> vector<16x128xf32>
    %98 = arith.truncf %97 : vector<16x128xf32> to vector<16x128xbf16>
    %c2_88 = arith.constant 2 : index
    %c0_89 = arith.constant 0 : index
    %c0_90 = arith.constant 0 : index
    %99 = vector.load %arg11[%c2_88, %c0_89, %c0_90] : memref<9x128x128xbf16, #tpu.memory_space<vmem>>, vector<1x128x128xbf16>
    %100 = vector.shape_cast %99 : vector<1x128x128xbf16> to vector<128x128xbf16>
    %cst_91 = arith.constant dense<0.000000e+00> : vector<16x128xf32>
    %101 = tpu.matmul %98, %100, %cst_91 {dimension_numbers = #tpu.dot_dimension_numbers<[1], [0], [0], [1], [0, 0, 1, 1], [], []>} : vector<16x128xbf16>, vector<128x128xbf16>, vector<16x128xf32> -> vector<16x128xf32>
    %102 = arith.addf %94, %101 : vector<16x128xf32>
    %c3_92 = arith.constant 3 : index
    %c0_93 = arith.constant 0 : index
    %c0_94 = arith.constant 0 : index
    %103 = vector.load %arg3[%c3_92, %c0_93, %c0_94] : memref<9x16x64xbf16, #tpu.memory_space<vmem>>, vector<1x16x64xbf16>
    %104 = vector.shape_cast %103 : vector<1x16x64xbf16> to vector<16x64xbf16>
    %cst_95 = arith.constant dense<0.000000e+00> : vector<16x128xf32>
    %105 = tpu.matmul %104, %79, %cst_95 {dimension_numbers = #tpu.dot_dimension_numbers<[1], [0], [0], [1], [0, 0, 1, 1], [], []>} : vector<16x64xbf16>, vector<64x128xbf16>, vector<16x128xf32> -> vector<16x128xf32>
    %106 = arith.truncf %105 : vector<16x128xf32> to vector<16x128xbf16>
    %c3_96 = arith.constant 3 : index
    %c0_97 = arith.constant 0 : index
    %c0_98 = arith.constant 0 : index
    %107 = vector.load %arg11[%c3_96, %c0_97, %c0_98] : memref<9x128x128xbf16, #tpu.memory_space<vmem>>, vector<1x128x128xbf16>
    %108 = vector.shape_cast %107 : vector<1x128x128xbf16> to vector<128x128xbf16>
    %cst_99 = arith.constant dense<0.000000e+00> : vector<16x128xf32>
    %109 = tpu.matmul %106, %108, %cst_99 {dimension_numbers = #tpu.dot_dimension_numbers<[1], [0], [0], [1], [0, 0, 1, 1], [], []>} : vector<16x128xbf16>, vector<128x128xbf16>, vector<16x128xf32> -> vector<16x128xf32>
    %110 = arith.addf %102, %109 : vector<16x128xf32>
    %c4_100 = arith.constant 4 : index
    %c0_101 = arith.constant 0 : index
    %c0_102 = arith.constant 0 : index
    %111 = vector.load %arg3[%c4_100, %c0_101, %c0_102] : memref<9x16x64xbf16, #tpu.memory_space<vmem>>, vector<1x16x64xbf16>
    %112 = vector.shape_cast %111 : vector<1x16x64xbf16> to vector<16x64xbf16>
    %cst_103 = arith.constant dense<0.000000e+00> : vector<16x128xf32>
    %113 = tpu.matmul %112, %79, %cst_103 {dimension_numbers = #tpu.dot_dimension_numbers<[1], [0], [0], [1], [0, 0, 1, 1], [], []>} : vector<16x64xbf16>, vector<64x128xbf16>, vector<16x128xf32> -> vector<16x128xf32>
    %114 = arith.truncf %113 : vector<16x128xf32> to vector<16x128xbf16>
    %c4_104 = arith.constant 4 : index
    %c0_105 = arith.constant 0 : index
    %c0_106 = arith.constant 0 : index
    %115 = vector.load %arg11[%c4_104, %c0_105, %c0_106] : memref<9x128x128xbf16, #tpu.memory_space<vmem>>, vector<1x128x128xbf16>
    %116 = vector.shape_cast %115 : vector<1x128x128xbf16> to vector<128x128xbf16>
    %cst_107 = arith.constant dense<0.000000e+00> : vector<16x128xf32>
    %117 = tpu.matmul %114, %116, %cst_107 {dimension_numbers = #tpu.dot_dimension_numbers<[1], [0], [0], [1], [0, 0, 1, 1], [], []>} : vector<16x128xbf16>, vector<128x128xbf16>, vector<16x128xf32> -> vector<16x128xf32>
    %118 = arith.addf %110, %117 : vector<16x128xf32>
    %c5_108 = arith.constant 5 : index
    %c0_109 = arith.constant 0 : index
    %c0_110 = arith.constant 0 : index
    %119 = vector.load %arg3[%c5_108, %c0_109, %c0_110] : memref<9x16x64xbf16, #tpu.memory_space<vmem>>, vector<1x16x64xbf16>
    %120 = vector.shape_cast %119 : vector<1x16x64xbf16> to vector<16x64xbf16>
    %cst_111 = arith.constant dense<0.000000e+00> : vector<16x128xf32>
    %121 = tpu.matmul %120, %79, %cst_111 {dimension_numbers = #tpu.dot_dimension_numbers<[1], [0], [0], [1], [0, 0, 1, 1], [], []>} : vector<16x64xbf16>, vector<64x128xbf16>, vector<16x128xf32> -> vector<16x128xf32>
    %122 = arith.truncf %121 : vector<16x128xf32> to vector<16x128xbf16>
    %c5_112 = arith.constant 5 : index
    %c0_113 = arith.constant 0 : index
    %c0_114 = arith.constant 0 : index
    %123 = vector.load %arg11[%c5_112, %c0_113, %c0_114] : memref<9x128x128xbf16, #tpu.memory_space<vmem>>, vector<1x128x128xbf16>
    %124 = vector.shape_cast %123 : vector<1x128x128xbf16> to vector<128x128xbf16>
    %cst_115 = arith.constant dense<0.000000e+00> : vector<16x128xf32>
    %125 = tpu.matmul %122, %124, %cst_115 {dimension_numbers = #tpu.dot_dimension_numbers<[1], [0], [0], [1], [0, 0, 1, 1], [], []>} : vector<16x128xbf16>, vector<128x128xbf16>, vector<16x128xf32> -> vector<16x128xf32>
    %126 = arith.addf %118, %125 : vector<16x128xf32>
    %c6_116 = arith.constant 6 : index
    %c0_117 = arith.constant 0 : index
    %c0_118 = arith.constant 0 : index
    %127 = vector.load %arg3[%c6_116, %c0_117, %c0_118] : memref<9x16x64xbf16, #tpu.memory_space<vmem>>, vector<1x16x64xbf16>
    %128 = vector.shape_cast %127 : vector<1x16x64xbf16> to vector<16x64xbf16>
    %cst_119 = arith.constant dense<0.000000e+00> : vector<16x128xf32>
    %129 = tpu.matmul %128, %79, %cst_119 {dimension_numbers = #tpu.dot_dimension_numbers<[1], [0], [0], [1], [0, 0, 1, 1], [], []>} : vector<16x64xbf16>, vector<64x128xbf16>, vector<16x128xf32> -> vector<16x128xf32>
    %130 = arith.truncf %129 : vector<16x128xf32> to vector<16x128xbf16>
    %c6_120 = arith.constant 6 : index
    %c0_121 = arith.constant 0 : index
    %c0_122 = arith.constant 0 : index
    %131 = vector.load %arg11[%c6_120, %c0_121, %c0_122] : memref<9x128x128xbf16, #tpu.memory_space<vmem>>, vector<1x128x128xbf16>
    %132 = vector.shape_cast %131 : vector<1x128x128xbf16> to vector<128x128xbf16>
    %cst_123 = arith.constant dense<0.000000e+00> : vector<16x128xf32>
    %133 = tpu.matmul %130, %132, %cst_123 {dimension_numbers = #tpu.dot_dimension_numbers<[1], [0], [0], [1], [0, 0, 1, 1], [], []>} : vector<16x128xbf16>, vector<128x128xbf16>, vector<16x128xf32> -> vector<16x128xf32>
    %134 = arith.addf %126, %133 : vector<16x128xf32>
    %c7_124 = arith.constant 7 : index
    %c0_125 = arith.constant 0 : index
    %c0_126 = arith.constant 0 : index
    %135 = vector.load %arg3[%c7_124, %c0_125, %c0_126] : memref<9x16x64xbf16, #tpu.memory_space<vmem>>, vector<1x16x64xbf16>
    %136 = vector.shape_cast %135 : vector<1x16x64xbf16> to vector<16x64xbf16>
    %cst_127 = arith.constant dense<0.000000e+00> : vector<16x128xf32>
    %137 = tpu.matmul %136, %79, %cst_127 {dimension_numbers = #tpu.dot_dimension_numbers<[1], [0], [0], [1], [0, 0, 1, 1], [], []>} : vector<16x64xbf16>, vector<64x128xbf16>, vector<16x128xf32> -> vector<16x128xf32>
    %138 = arith.truncf %137 : vector<16x128xf32> to vector<16x128xbf16>
    %c7_128 = arith.constant 7 : index
    %c0_129 = arith.constant 0 : index
    %c0_130 = arith.constant 0 : index
    %139 = vector.load %arg11[%c7_128, %c0_129, %c0_130] : memref<9x128x128xbf16, #tpu.memory_space<vmem>>, vector<1x128x128xbf16>
    %140 = vector.shape_cast %139 : vector<1x128x128xbf16> to vector<128x128xbf16>
    %cst_131 = arith.constant dense<0.000000e+00> : vector<16x128xf32>
    %141 = tpu.matmul %138, %140, %cst_131 {dimension_numbers = #tpu.dot_dimension_numbers<[1], [0], [0], [1], [0, 0, 1, 1], [], []>} : vector<16x128xbf16>, vector<128x128xbf16>, vector<16x128xf32> -> vector<16x128xf32>
    %142 = arith.addf %134, %141 : vector<16x128xf32>
    %c8_132 = arith.constant 8 : index
    %c0_133 = arith.constant 0 : index
    %c0_134 = arith.constant 0 : index
    %143 = vector.load %arg3[%c8_132, %c0_133, %c0_134] : memref<9x16x64xbf16, #tpu.memory_space<vmem>>, vector<1x16x64xbf16>
    %144 = vector.shape_cast %143 : vector<1x16x64xbf16> to vector<16x64xbf16>
    %cst_135 = arith.constant dense<0.000000e+00> : vector<16x128xf32>
    %145 = tpu.matmul %144, %79, %cst_135 {dimension_numbers = #tpu.dot_dimension_numbers<[1], [0], [0], [1], [0, 0, 1, 1], [], []>} : vector<16x64xbf16>, vector<64x128xbf16>, vector<16x128xf32> -> vector<16x128xf32>
    %146 = arith.truncf %145 : vector<16x128xf32> to vector<16x128xbf16>
    %c8_136 = arith.constant 8 : index
    %c0_137 = arith.constant 0 : index
    %c0_138 = arith.constant 0 : index
    %147 = vector.load %arg11[%c8_136, %c0_137, %c0_138] : memref<9x128x128xbf16, #tpu.memory_space<vmem>>, vector<1x128x128xbf16>
    %148 = vector.shape_cast %147 : vector<1x128x128xbf16> to vector<128x128xbf16>
    %cst_139 = arith.constant dense<0.000000e+00> : vector<16x128xf32>
    %149 = tpu.matmul %146, %148, %cst_139 {dimension_numbers = #tpu.dot_dimension_numbers<[1], [0], [0], [1], [0, 0, 1, 1], [], []>} : vector<16x128xbf16>, vector<128x128xbf16>, vector<16x128xf32> -> vector<16x128xf32>
    %150 = arith.addf %142, %149 : vector<16x128xf32>
    %151 = vector.extract_strided_slice %0 {offsets = [1, 0], sizes = [1, 128], strides = [1, 1]} : vector<10x128xf32> to vector<1x128xf32>
    %152 = vector.broadcast %151 : vector<1x128xf32> to vector<16x128xf32>
    %153 = arith.addf %150, %152 : vector<16x128xf32>
    %cst_140 = arith.constant 0.000000e+00 : f32
    %154 = vector.broadcast %cst_140 : f32 to vector<16x128xf32>
    %155 = arith.maximumf %153, %154 : vector<16x128xf32>
    %156 = arith.truncf %155 : vector<16x128xf32> to vector<16x128xbf16>
    %c0_141 = arith.constant 0 : index
    %c0_142 = arith.constant 0 : index
    %157 = vector.load %arg12[%c0_141, %c0_142] : memref<128x128xbf16, #tpu.memory_space<vmem>>, vector<128x128xbf16>
    %cst_143 = arith.constant dense<0.000000e+00> : vector<16x128xf32>
    %158 = tpu.matmul %156, %157, %cst_143 {dimension_numbers = #tpu.dot_dimension_numbers<[1], [0], [0], [1], [0, 0, 1, 1], [], []>} : vector<16x128xbf16>, vector<128x128xbf16>, vector<16x128xf32> -> vector<16x128xf32>
    %159 = vector.extract_strided_slice %0 {offsets = [2, 0], sizes = [1, 128], strides = [1, 1]} : vector<10x128xf32> to vector<1x128xf32>
    %160 = vector.broadcast %159 : vector<1x128xf32> to vector<16x128xf32>
    %161 = arith.addf %158, %160 : vector<16x128xf32>
    %cst_144 = arith.constant 0.000000e+00 : f32
    %162 = vector.broadcast %cst_144 : f32 to vector<16x128xf32>
    %163 = arith.maximumf %161, %162 : vector<16x128xf32>
    %164 = arith.truncf %163 : vector<16x128xf32> to vector<16x128xbf16>
    %c0_145 = arith.constant 0 : index
    %c0_146 = arith.constant 0 : index
    %c0_147 = arith.constant 0 : index
    %165 = vector.load %arg4[%c0_145, %c0_146, %c0_147] : memref<9x16x16xbf16, #tpu.memory_space<vmem>>, vector<1x16x16xbf16>
    %166 = vector.shape_cast %165 : vector<1x16x16xbf16> to vector<16x16xbf16>
    %cst_148 = arith.constant dense<0.000000e+00> : vector<16x128xf32>
    %167 = tpu.matmul %166, %156, %cst_148 {dimension_numbers = #tpu.dot_dimension_numbers<[1], [0], [0], [1], [0, 0, 1, 1], [], []>} : vector<16x16xbf16>, vector<16x128xbf16>, vector<16x128xf32> -> vector<16x128xf32>
    %168 = arith.truncf %167 : vector<16x128xf32> to vector<16x128xbf16>
    %c0_149 = arith.constant 0 : index
    %c0_150 = arith.constant 0 : index
    %c0_151 = arith.constant 0 : index
    %169 = vector.load %arg13[%c0_149, %c0_150, %c0_151] : memref<9x128x128xbf16, #tpu.memory_space<vmem>>, vector<1x128x128xbf16>
    %170 = vector.shape_cast %169 : vector<1x128x128xbf16> to vector<128x128xbf16>
    %cst_152 = arith.constant dense<0.000000e+00> : vector<16x128xf32>
    %171 = tpu.matmul %168, %170, %cst_152 {dimension_numbers = #tpu.dot_dimension_numbers<[1], [0], [0], [1], [0, 0, 1, 1], [], []>} : vector<16x128xbf16>, vector<128x128xbf16>, vector<16x128xf32> -> vector<16x128xf32>
    %c1_153 = arith.constant 1 : index
    %c0_154 = arith.constant 0 : index
    %c0_155 = arith.constant 0 : index
    %172 = vector.load %arg4[%c1_153, %c0_154, %c0_155] : memref<9x16x16xbf16, #tpu.memory_space<vmem>>, vector<1x16x16xbf16>
    %173 = vector.shape_cast %172 : vector<1x16x16xbf16> to vector<16x16xbf16>
    %cst_156 = arith.constant dense<0.000000e+00> : vector<16x128xf32>
    %174 = tpu.matmul %173, %156, %cst_156 {dimension_numbers = #tpu.dot_dimension_numbers<[1], [0], [0], [1], [0, 0, 1, 1], [], []>} : vector<16x16xbf16>, vector<16x128xbf16>, vector<16x128xf32> -> vector<16x128xf32>
    %175 = arith.truncf %174 : vector<16x128xf32> to vector<16x128xbf16>
    %c1_157 = arith.constant 1 : index
    %c0_158 = arith.constant 0 : index
    %c0_159 = arith.constant 0 : index
    %176 = vector.load %arg13[%c1_157, %c0_158, %c0_159] : memref<9x128x128xbf16, #tpu.memory_space<vmem>>, vector<1x128x128xbf16>
    %177 = vector.shape_cast %176 : vector<1x128x128xbf16> to vector<128x128xbf16>
    %cst_160 = arith.constant dense<0.000000e+00> : vector<16x128xf32>
    %178 = tpu.matmul %175, %177, %cst_160 {dimension_numbers = #tpu.dot_dimension_numbers<[1], [0], [0], [1], [0, 0, 1, 1], [], []>} : vector<16x128xbf16>, vector<128x128xbf16>, vector<16x128xf32> -> vector<16x128xf32>
    %179 = arith.addf %171, %178 : vector<16x128xf32>
    %c2_161 = arith.constant 2 : index
    %c0_162 = arith.constant 0 : index
    %c0_163 = arith.constant 0 : index
    %180 = vector.load %arg4[%c2_161, %c0_162, %c0_163] : memref<9x16x16xbf16, #tpu.memory_space<vmem>>, vector<1x16x16xbf16>
    %181 = vector.shape_cast %180 : vector<1x16x16xbf16> to vector<16x16xbf16>
    %cst_164 = arith.constant dense<0.000000e+00> : vector<16x128xf32>
    %182 = tpu.matmul %181, %156, %cst_164 {dimension_numbers = #tpu.dot_dimension_numbers<[1], [0], [0], [1], [0, 0, 1, 1], [], []>} : vector<16x16xbf16>, vector<16x128xbf16>, vector<16x128xf32> -> vector<16x128xf32>
    %183 = arith.truncf %182 : vector<16x128xf32> to vector<16x128xbf16>
    %c2_165 = arith.constant 2 : index
    %c0_166 = arith.constant 0 : index
    %c0_167 = arith.constant 0 : index
    %184 = vector.load %arg13[%c2_165, %c0_166, %c0_167] : memref<9x128x128xbf16, #tpu.memory_space<vmem>>, vector<1x128x128xbf16>
    %185 = vector.shape_cast %184 : vector<1x128x128xbf16> to vector<128x128xbf16>
    %cst_168 = arith.constant dense<0.000000e+00> : vector<16x128xf32>
    %186 = tpu.matmul %183, %185, %cst_168 {dimension_numbers = #tpu.dot_dimension_numbers<[1], [0], [0], [1], [0, 0, 1, 1], [], []>} : vector<16x128xbf16>, vector<128x128xbf16>, vector<16x128xf32> -> vector<16x128xf32>
    %187 = arith.addf %179, %186 : vector<16x128xf32>
    %c3_169 = arith.constant 3 : index
    %c0_170 = arith.constant 0 : index
    %c0_171 = arith.constant 0 : index
    %188 = vector.load %arg4[%c3_169, %c0_170, %c0_171] : memref<9x16x16xbf16, #tpu.memory_space<vmem>>, vector<1x16x16xbf16>
    %189 = vector.shape_cast %188 : vector<1x16x16xbf16> to vector<16x16xbf16>
    %cst_172 = arith.constant dense<0.000000e+00> : vector<16x128xf32>
    %190 = tpu.matmul %189, %156, %cst_172 {dimension_numbers = #tpu.dot_dimension_numbers<[1], [0], [0], [1], [0, 0, 1, 1], [], []>} : vector<16x16xbf16>, vector<16x128xbf16>, vector<16x128xf32> -> vector<16x128xf32>
    %191 = arith.truncf %190 : vector<16x128xf32> to vector<16x128xbf16>
    %c3_173 = arith.constant 3 : index
    %c0_174 = arith.constant 0 : index
    %c0_175 = arith.constant 0 : index
    %192 = vector.load %arg13[%c3_173, %c0_174, %c0_175] : memref<9x128x128xbf16, #tpu.memory_space<vmem>>, vector<1x128x128xbf16>
    %193 = vector.shape_cast %192 : vector<1x128x128xbf16> to vector<128x128xbf16>
    %cst_176 = arith.constant dense<0.000000e+00> : vector<16x128xf32>
    %194 = tpu.matmul %191, %193, %cst_176 {dimension_numbers = #tpu.dot_dimension_numbers<[1], [0], [0], [1], [0, 0, 1, 1], [], []>} : vector<16x128xbf16>, vector<128x128xbf16>, vector<16x128xf32> -> vector<16x128xf32>
    %195 = arith.addf %187, %194 : vector<16x128xf32>
    %c4_177 = arith.constant 4 : index
    %c0_178 = arith.constant 0 : index
    %c0_179 = arith.constant 0 : index
    %196 = vector.load %arg4[%c4_177, %c0_178, %c0_179] : memref<9x16x16xbf16, #tpu.memory_space<vmem>>, vector<1x16x16xbf16>
    %197 = vector.shape_cast %196 : vector<1x16x16xbf16> to vector<16x16xbf16>
    %cst_180 = arith.constant dense<0.000000e+00> : vector<16x128xf32>
    %198 = tpu.matmul %197, %156, %cst_180 {dimension_numbers = #tpu.dot_dimension_numbers<[1], [0], [0], [1], [0, 0, 1, 1], [], []>} : vector<16x16xbf16>, vector<16x128xbf16>, vector<16x128xf32> -> vector<16x128xf32>
    %199 = arith.truncf %198 : vector<16x128xf32> to vector<16x128xbf16>
    %c4_181 = arith.constant 4 : index
    %c0_182 = arith.constant 0 : index
    %c0_183 = arith.constant 0 : index
    %200 = vector.load %arg13[%c4_181, %c0_182, %c0_183] : memref<9x128x128xbf16, #tpu.memory_space<vmem>>, vector<1x128x128xbf16>
    %201 = vector.shape_cast %200 : vector<1x128x128xbf16> to vector<128x128xbf16>
    %cst_184 = arith.constant dense<0.000000e+00> : vector<16x128xf32>
    %202 = tpu.matmul %199, %201, %cst_184 {dimension_numbers = #tpu.dot_dimension_numbers<[1], [0], [0], [1], [0, 0, 1, 1], [], []>} : vector<16x128xbf16>, vector<128x128xbf16>, vector<16x128xf32> -> vector<16x128xf32>
    %203 = arith.addf %195, %202 : vector<16x128xf32>
    %c5_185 = arith.constant 5 : index
    %c0_186 = arith.constant 0 : index
    %c0_187 = arith.constant 0 : index
    %204 = vector.load %arg4[%c5_185, %c0_186, %c0_187] : memref<9x16x16xbf16, #tpu.memory_space<vmem>>, vector<1x16x16xbf16>
    %205 = vector.shape_cast %204 : vector<1x16x16xbf16> to vector<16x16xbf16>
    %cst_188 = arith.constant dense<0.000000e+00> : vector<16x128xf32>
    %206 = tpu.matmul %205, %156, %cst_188 {dimension_numbers = #tpu.dot_dimension_numbers<[1], [0], [0], [1], [0, 0, 1, 1], [], []>} : vector<16x16xbf16>, vector<16x128xbf16>, vector<16x128xf32> -> vector<16x128xf32>
    %207 = arith.truncf %206 : vector<16x128xf32> to vector<16x128xbf16>
    %c5_189 = arith.constant 5 : index
    %c0_190 = arith.constant 0 : index
    %c0_191 = arith.constant 0 : index
    %208 = vector.load %arg13[%c5_189, %c0_190, %c0_191] : memref<9x128x128xbf16, #tpu.memory_space<vmem>>, vector<1x128x128xbf16>
    %209 = vector.shape_cast %208 : vector<1x128x128xbf16> to vector<128x128xbf16>
    %cst_192 = arith.constant dense<0.000000e+00> : vector<16x128xf32>
    %210 = tpu.matmul %207, %209, %cst_192 {dimension_numbers = #tpu.dot_dimension_numbers<[1], [0], [0], [1], [0, 0, 1, 1], [], []>} : vector<16x128xbf16>, vector<128x128xbf16>, vector<16x128xf32> -> vector<16x128xf32>
    %211 = arith.addf %203, %210 : vector<16x128xf32>
    %c6_193 = arith.constant 6 : index
    %c0_194 = arith.constant 0 : index
    %c0_195 = arith.constant 0 : index
    %212 = vector.load %arg4[%c6_193, %c0_194, %c0_195] : memref<9x16x16xbf16, #tpu.memory_space<vmem>>, vector<1x16x16xbf16>
    %213 = vector.shape_cast %212 : vector<1x16x16xbf16> to vector<16x16xbf16>
    %cst_196 = arith.constant dense<0.000000e+00> : vector<16x128xf32>
    %214 = tpu.matmul %213, %156, %cst_196 {dimension_numbers = #tpu.dot_dimension_numbers<[1], [0], [0], [1], [0, 0, 1, 1], [], []>} : vector<16x16xbf16>, vector<16x128xbf16>, vector<16x128xf32> -> vector<16x128xf32>
    %215 = arith.truncf %214 : vector<16x128xf32> to vector<16x128xbf16>
    %c6_197 = arith.constant 6 : index
    %c0_198 = arith.constant 0 : index
    %c0_199 = arith.constant 0 : index
    %216 = vector.load %arg13[%c6_197, %c0_198, %c0_199] : memref<9x128x128xbf16, #tpu.memory_space<vmem>>, vector<1x128x128xbf16>
    %217 = vector.shape_cast %216 : vector<1x128x128xbf16> to vector<128x128xbf16>
    %cst_200 = arith.constant dense<0.000000e+00> : vector<16x128xf32>
    %218 = tpu.matmul %215, %217, %cst_200 {dimension_numbers = #tpu.dot_dimension_numbers<[1], [0], [0], [1], [0, 0, 1, 1], [], []>} : vector<16x128xbf16>, vector<128x128xbf16>, vector<16x128xf32> -> vector<16x128xf32>
    %219 = arith.addf %211, %218 : vector<16x128xf32>
    %c7_201 = arith.constant 7 : index
    %c0_202 = arith.constant 0 : index
    %c0_203 = arith.constant 0 : index
    %220 = vector.load %arg4[%c7_201, %c0_202, %c0_203] : memref<9x16x16xbf16, #tpu.memory_space<vmem>>, vector<1x16x16xbf16>
    %221 = vector.shape_cast %220 : vector<1x16x16xbf16> to vector<16x16xbf16>
    %cst_204 = arith.constant dense<0.000000e+00> : vector<16x128xf32>
    %222 = tpu.matmul %221, %156, %cst_204 {dimension_numbers = #tpu.dot_dimension_numbers<[1], [0], [0], [1], [0, 0, 1, 1], [], []>} : vector<16x16xbf16>, vector<16x128xbf16>, vector<16x128xf32> -> vector<16x128xf32>
    %223 = arith.truncf %222 : vector<16x128xf32> to vector<16x128xbf16>
    %c7_205 = arith.constant 7 : index
    %c0_206 = arith.constant 0 : index
    %c0_207 = arith.constant 0 : index
    %224 = vector.load %arg13[%c7_205, %c0_206, %c0_207] : memref<9x128x128xbf16, #tpu.memory_space<vmem>>, vector<1x128x128xbf16>
    %225 = vector.shape_cast %224 : vector<1x128x128xbf16> to vector<128x128xbf16>
    %cst_208 = arith.constant dense<0.000000e+00> : vector<16x128xf32>
    %226 = tpu.matmul %223, %225, %cst_208 {dimension_numbers = #tpu.dot_dimension_numbers<[1], [0], [0], [1], [0, 0, 1, 1], [], []>} : vector<16x128xbf16>, vector<128x128xbf16>, vector<16x128xf32> -> vector<16x128xf32>
    %227 = arith.addf %219, %226 : vector<16x128xf32>
    %c8_209 = arith.constant 8 : index
    %c0_210 = arith.constant 0 : index
    %c0_211 = arith.constant 0 : index
    %228 = vector.load %arg4[%c8_209, %c0_210, %c0_211] : memref<9x16x16xbf16, #tpu.memory_space<vmem>>, vector<1x16x16xbf16>
    %229 = vector.shape_cast %228 : vector<1x16x16xbf16> to vector<16x16xbf16>
    %cst_212 = arith.constant dense<0.000000e+00> : vector<16x128xf32>
    %230 = tpu.matmul %229, %156, %cst_212 {dimension_numbers = #tpu.dot_dimension_numbers<[1], [0], [0], [1], [0, 0, 1, 1], [], []>} : vector<16x16xbf16>, vector<16x128xbf16>, vector<16x128xf32> -> vector<16x128xf32>
    %231 = arith.truncf %230 : vector<16x128xf32> to vector<16x128xbf16>
    %c8_213 = arith.constant 8 : index
    %c0_214 = arith.constant 0 : index
    %c0_215 = arith.constant 0 : index
    %232 = vector.load %arg13[%c8_213, %c0_214, %c0_215] : memref<9x128x128xbf16, #tpu.memory_space<vmem>>, vector<1x128x128xbf16>
    %233 = vector.shape_cast %232 : vector<1x128x128xbf16> to vector<128x128xbf16>
    %cst_216 = arith.constant dense<0.000000e+00> : vector<16x128xf32>
    %234 = tpu.matmul %231, %233, %cst_216 {dimension_numbers = #tpu.dot_dimension_numbers<[1], [0], [0], [1], [0, 0, 1, 1], [], []>} : vector<16x128xbf16>, vector<128x128xbf16>, vector<16x128xf32> -> vector<16x128xf32>
    %235 = arith.addf %227, %234 : vector<16x128xf32>
    %236 = vector.extract_strided_slice %0 {offsets = [3, 0], sizes = [1, 128], strides = [1, 1]} : vector<10x128xf32> to vector<1x128xf32>
    %237 = vector.broadcast %236 : vector<1x128xf32> to vector<16x128xf32>
    %238 = arith.addf %235, %237 : vector<16x128xf32>
    %cst_217 = arith.constant 0.000000e+00 : f32
    %239 = vector.broadcast %cst_217 : f32 to vector<16x128xf32>
    %240 = arith.maximumf %238, %239 : vector<16x128xf32>
    %241 = arith.truncf %240 : vector<16x128xf32> to vector<16x128xbf16>
    %c0_218 = arith.constant 0 : index
    %c0_219 = arith.constant 0 : index
    %c0_220 = arith.constant 0 : index
    %242 = vector.load %arg5[%c0_218, %c0_219, %c0_220] : memref<9x16x16xbf16, #tpu.memory_space<vmem>>, vector<1x16x16xbf16>
    %243 = vector.shape_cast %242 : vector<1x16x16xbf16> to vector<16x16xbf16>
    %cst_221 = arith.constant dense<0.000000e+00> : vector<16x128xf32>
    %244 = tpu.matmul %243, %156, %cst_221 {dimension_numbers = #tpu.dot_dimension_numbers<[1], [0], [0], [1], [0, 0, 1, 1], [], []>} : vector<16x16xbf16>, vector<16x128xbf16>, vector<16x128xf32> -> vector<16x128xf32>
    %245 = arith.truncf %244 : vector<16x128xf32> to vector<16x128xbf16>
    %c0_222 = arith.constant 0 : index
    %c0_223 = arith.constant 0 : index
    %c0_224 = arith.constant 0 : index
    %246 = vector.load %arg14[%c0_222, %c0_223, %c0_224] : memref<9x128x128xbf16, #tpu.memory_space<vmem>>, vector<1x128x128xbf16>
    %247 = vector.shape_cast %246 : vector<1x128x128xbf16> to vector<128x128xbf16>
    %cst_225 = arith.constant dense<0.000000e+00> : vector<16x128xf32>
    %248 = tpu.matmul %245, %247, %cst_225 {dimension_numbers = #tpu.dot_dimension_numbers<[1], [0], [0], [1], [0, 0, 1, 1], [], []>} : vector<16x128xbf16>, vector<128x128xbf16>, vector<16x128xf32> -> vector<16x128xf32>
    %c1_226 = arith.constant 1 : index
    %c0_227 = arith.constant 0 : index
    %c0_228 = arith.constant 0 : index
    %249 = vector.load %arg5[%c1_226, %c0_227, %c0_228] : memref<9x16x16xbf16, #tpu.memory_space<vmem>>, vector<1x16x16xbf16>
    %250 = vector.shape_cast %249 : vector<1x16x16xbf16> to vector<16x16xbf16>
    %cst_229 = arith.constant dense<0.000000e+00> : vector<16x128xf32>
    %251 = tpu.matmul %250, %156, %cst_229 {dimension_numbers = #tpu.dot_dimension_numbers<[1], [0], [0], [1], [0, 0, 1, 1], [], []>} : vector<16x16xbf16>, vector<16x128xbf16>, vector<16x128xf32> -> vector<16x128xf32>
    %252 = arith.truncf %251 : vector<16x128xf32> to vector<16x128xbf16>
    %c1_230 = arith.constant 1 : index
    %c0_231 = arith.constant 0 : index
    %c0_232 = arith.constant 0 : index
    %253 = vector.load %arg14[%c1_230, %c0_231, %c0_232] : memref<9x128x128xbf16, #tpu.memory_space<vmem>>, vector<1x128x128xbf16>
    %254 = vector.shape_cast %253 : vector<1x128x128xbf16> to vector<128x128xbf16>
    %cst_233 = arith.constant dense<0.000000e+00> : vector<16x128xf32>
    %255 = tpu.matmul %252, %254, %cst_233 {dimension_numbers = #tpu.dot_dimension_numbers<[1], [0], [0], [1], [0, 0, 1, 1], [], []>} : vector<16x128xbf16>, vector<128x128xbf16>, vector<16x128xf32> -> vector<16x128xf32>
    %256 = arith.addf %248, %255 : vector<16x128xf32>
    %c2_234 = arith.constant 2 : index
    %c0_235 = arith.constant 0 : index
    %c0_236 = arith.constant 0 : index
    %257 = vector.load %arg5[%c2_234, %c0_235, %c0_236] : memref<9x16x16xbf16, #tpu.memory_space<vmem>>, vector<1x16x16xbf16>
    %258 = vector.shape_cast %257 : vector<1x16x16xbf16> to vector<16x16xbf16>
    %cst_237 = arith.constant dense<0.000000e+00> : vector<16x128xf32>
    %259 = tpu.matmul %258, %156, %cst_237 {dimension_numbers = #tpu.dot_dimension_numbers<[1], [0], [0], [1], [0, 0, 1, 1], [], []>} : vector<16x16xbf16>, vector<16x128xbf16>, vector<16x128xf32> -> vector<16x128xf32>
    %260 = arith.truncf %259 : vector<16x128xf32> to vector<16x128xbf16>
    %c2_238 = arith.constant 2 : index
    %c0_239 = arith.constant 0 : index
    %c0_240 = arith.constant 0 : index
    %261 = vector.load %arg14[%c2_238, %c0_239, %c0_240] : memref<9x128x128xbf16, #tpu.memory_space<vmem>>, vector<1x128x128xbf16>
    %262 = vector.shape_cast %261 : vector<1x128x128xbf16> to vector<128x128xbf16>
    %cst_241 = arith.constant dense<0.000000e+00> : vector<16x128xf32>
    %263 = tpu.matmul %260, %262, %cst_241 {dimension_numbers = #tpu.dot_dimension_numbers<[1], [0], [0], [1], [0, 0, 1, 1], [], []>} : vector<16x128xbf16>, vector<128x128xbf16>, vector<16x128xf32> -> vector<16x128xf32>
    %264 = arith.addf %256, %263 : vector<16x128xf32>
    %c3_242 = arith.constant 3 : index
    %c0_243 = arith.constant 0 : index
    %c0_244 = arith.constant 0 : index
    %265 = vector.load %arg5[%c3_242, %c0_243, %c0_244] : memref<9x16x16xbf16, #tpu.memory_space<vmem>>, vector<1x16x16xbf16>
    %266 = vector.shape_cast %265 : vector<1x16x16xbf16> to vector<16x16xbf16>
    %cst_245 = arith.constant dense<0.000000e+00> : vector<16x128xf32>
    %267 = tpu.matmul %266, %156, %cst_245 {dimension_numbers = #tpu.dot_dimension_numbers<[1], [0], [0], [1], [0, 0, 1, 1], [], []>} : vector<16x16xbf16>, vector<16x128xbf16>, vector<16x128xf32> -> vector<16x128xf32>
    %268 = arith.truncf %267 : vector<16x128xf32> to vector<16x128xbf16>
    %c3_246 = arith.constant 3 : index
    %c0_247 = arith.constant 0 : index
    %c0_248 = arith.constant 0 : index
    %269 = vector.load %arg14[%c3_246, %c0_247, %c0_248] : memref<9x128x128xbf16, #tpu.memory_space<vmem>>, vector<1x128x128xbf16>
    %270 = vector.shape_cast %269 : vector<1x128x128xbf16> to vector<128x128xbf16>
    %cst_249 = arith.constant dense<0.000000e+00> : vector<16x128xf32>
    %271 = tpu.matmul %268, %270, %cst_249 {dimension_numbers = #tpu.dot_dimension_numbers<[1], [0], [0], [1], [0, 0, 1, 1], [], []>} : vector<16x128xbf16>, vector<128x128xbf16>, vector<16x128xf32> -> vector<16x128xf32>
    %272 = arith.addf %264, %271 : vector<16x128xf32>
    %c4_250 = arith.constant 4 : index
    %c0_251 = arith.constant 0 : index
    %c0_252 = arith.constant 0 : index
    %273 = vector.load %arg5[%c4_250, %c0_251, %c0_252] : memref<9x16x16xbf16, #tpu.memory_space<vmem>>, vector<1x16x16xbf16>
    %274 = vector.shape_cast %273 : vector<1x16x16xbf16> to vector<16x16xbf16>
    %cst_253 = arith.constant dense<0.000000e+00> : vector<16x128xf32>
    %275 = tpu.matmul %274, %156, %cst_253 {dimension_numbers = #tpu.dot_dimension_numbers<[1], [0], [0], [1], [0, 0, 1, 1], [], []>} : vector<16x16xbf16>, vector<16x128xbf16>, vector<16x128xf32> -> vector<16x128xf32>
    %276 = arith.truncf %275 : vector<16x128xf32> to vector<16x128xbf16>
    %c4_254 = arith.constant 4 : index
    %c0_255 = arith.constant 0 : index
    %c0_256 = arith.constant 0 : index
    %277 = vector.load %arg14[%c4_254, %c0_255, %c0_256] : memref<9x128x128xbf16, #tpu.memory_space<vmem>>, vector<1x128x128xbf16>
    %278 = vector.shape_cast %277 : vector<1x128x128xbf16> to vector<128x128xbf16>
    %cst_257 = arith.constant dense<0.000000e+00> : vector<16x128xf32>
    %279 = tpu.matmul %276, %278, %cst_257 {dimension_numbers = #tpu.dot_dimension_numbers<[1], [0], [0], [1], [0, 0, 1, 1], [], []>} : vector<16x128xbf16>, vector<128x128xbf16>, vector<16x128xf32> -> vector<16x128xf32>
    %280 = arith.addf %272, %279 : vector<16x128xf32>
    %c5_258 = arith.constant 5 : index
    %c0_259 = arith.constant 0 : index
    %c0_260 = arith.constant 0 : index
    %281 = vector.load %arg5[%c5_258, %c0_259, %c0_260] : memref<9x16x16xbf16, #tpu.memory_space<vmem>>, vector<1x16x16xbf16>
    %282 = vector.shape_cast %281 : vector<1x16x16xbf16> to vector<16x16xbf16>
    %cst_261 = arith.constant dense<0.000000e+00> : vector<16x128xf32>
    %283 = tpu.matmul %282, %156, %cst_261 {dimension_numbers = #tpu.dot_dimension_numbers<[1], [0], [0], [1], [0, 0, 1, 1], [], []>} : vector<16x16xbf16>, vector<16x128xbf16>, vector<16x128xf32> -> vector<16x128xf32>
    %284 = arith.truncf %283 : vector<16x128xf32> to vector<16x128xbf16>
    %c5_262 = arith.constant 5 : index
    %c0_263 = arith.constant 0 : index
    %c0_264 = arith.constant 0 : index
    %285 = vector.load %arg14[%c5_262, %c0_263, %c0_264] : memref<9x128x128xbf16, #tpu.memory_space<vmem>>, vector<1x128x128xbf16>
    %286 = vector.shape_cast %285 : vector<1x128x128xbf16> to vector<128x128xbf16>
    %cst_265 = arith.constant dense<0.000000e+00> : vector<16x128xf32>
    %287 = tpu.matmul %284, %286, %cst_265 {dimension_numbers = #tpu.dot_dimension_numbers<[1], [0], [0], [1], [0, 0, 1, 1], [], []>} : vector<16x128xbf16>, vector<128x128xbf16>, vector<16x128xf32> -> vector<16x128xf32>
    %288 = arith.addf %280, %287 : vector<16x128xf32>
    %c6_266 = arith.constant 6 : index
    %c0_267 = arith.constant 0 : index
    %c0_268 = arith.constant 0 : index
    %289 = vector.load %arg5[%c6_266, %c0_267, %c0_268] : memref<9x16x16xbf16, #tpu.memory_space<vmem>>, vector<1x16x16xbf16>
    %290 = vector.shape_cast %289 : vector<1x16x16xbf16> to vector<16x16xbf16>
    %cst_269 = arith.constant dense<0.000000e+00> : vector<16x128xf32>
    %291 = tpu.matmul %290, %156, %cst_269 {dimension_numbers = #tpu.dot_dimension_numbers<[1], [0], [0], [1], [0, 0, 1, 1], [], []>} : vector<16x16xbf16>, vector<16x128xbf16>, vector<16x128xf32> -> vector<16x128xf32>
    %292 = arith.truncf %291 : vector<16x128xf32> to vector<16x128xbf16>
    %c6_270 = arith.constant 6 : index
    %c0_271 = arith.constant 0 : index
    %c0_272 = arith.constant 0 : index
    %293 = vector.load %arg14[%c6_270, %c0_271, %c0_272] : memref<9x128x128xbf16, #tpu.memory_space<vmem>>, vector<1x128x128xbf16>
    %294 = vector.shape_cast %293 : vector<1x128x128xbf16> to vector<128x128xbf16>
    %cst_273 = arith.constant dense<0.000000e+00> : vector<16x128xf32>
    %295 = tpu.matmul %292, %294, %cst_273 {dimension_numbers = #tpu.dot_dimension_numbers<[1], [0], [0], [1], [0, 0, 1, 1], [], []>} : vector<16x128xbf16>, vector<128x128xbf16>, vector<16x128xf32> -> vector<16x128xf32>
    %296 = arith.addf %288, %295 : vector<16x128xf32>
    %c7_274 = arith.constant 7 : index
    %c0_275 = arith.constant 0 : index
    %c0_276 = arith.constant 0 : index
    %297 = vector.load %arg5[%c7_274, %c0_275, %c0_276] : memref<9x16x16xbf16, #tpu.memory_space<vmem>>, vector<1x16x16xbf16>
    %298 = vector.shape_cast %297 : vector<1x16x16xbf16> to vector<16x16xbf16>
    %cst_277 = arith.constant dense<0.000000e+00> : vector<16x128xf32>
    %299 = tpu.matmul %298, %156, %cst_277 {dimension_numbers = #tpu.dot_dimension_numbers<[1], [0], [0], [1], [0, 0, 1, 1], [], []>} : vector<16x16xbf16>, vector<16x128xbf16>, vector<16x128xf32> -> vector<16x128xf32>
    %300 = arith.truncf %299 : vector<16x128xf32> to vector<16x128xbf16>
    %c7_278 = arith.constant 7 : index
    %c0_279 = arith.constant 0 : index
    %c0_280 = arith.constant 0 : index
    %301 = vector.load %arg14[%c7_278, %c0_279, %c0_280] : memref<9x128x128xbf16, #tpu.memory_space<vmem>>, vector<1x128x128xbf16>
    %302 = vector.shape_cast %301 : vector<1x128x128xbf16> to vector<128x128xbf16>
    %cst_281 = arith.constant dense<0.000000e+00> : vector<16x128xf32>
    %303 = tpu.matmul %300, %302, %cst_281 {dimension_numbers = #tpu.dot_dimension_numbers<[1], [0], [0], [1], [0, 0, 1, 1], [], []>} : vector<16x128xbf16>, vector<128x128xbf16>, vector<16x128xf32> -> vector<16x128xf32>
    %304 = arith.addf %296, %303 : vector<16x128xf32>
    %c8_282 = arith.constant 8 : index
    %c0_283 = arith.constant 0 : index
    %c0_284 = arith.constant 0 : index
    %305 = vector.load %arg5[%c8_282, %c0_283, %c0_284] : memref<9x16x16xbf16, #tpu.memory_space<vmem>>, vector<1x16x16xbf16>
    %306 = vector.shape_cast %305 : vector<1x16x16xbf16> to vector<16x16xbf16>
    %cst_285 = arith.constant dense<0.000000e+00> : vector<16x128xf32>
    %307 = tpu.matmul %306, %156, %cst_285 {dimension_numbers = #tpu.dot_dimension_numbers<[1], [0], [0], [1], [0, 0, 1, 1], [], []>} : vector<16x16xbf16>, vector<16x128xbf16>, vector<16x128xf32> -> vector<16x128xf32>
    %308 = arith.truncf %307 : vector<16x128xf32> to vector<16x128xbf16>
    %c8_286 = arith.constant 8 : index
    %c0_287 = arith.constant 0 : index
    %c0_288 = arith.constant 0 : index
    %309 = vector.load %arg14[%c8_286, %c0_287, %c0_288] : memref<9x128x128xbf16, #tpu.memory_space<vmem>>, vector<1x128x128xbf16>
    %310 = vector.shape_cast %309 : vector<1x128x128xbf16> to vector<128x128xbf16>
    %cst_289 = arith.constant dense<0.000000e+00> : vector<16x128xf32>
    %311 = tpu.matmul %308, %310, %cst_289 {dimension_numbers = #tpu.dot_dimension_numbers<[1], [0], [0], [1], [0, 0, 1, 1], [], []>} : vector<16x128xbf16>, vector<128x128xbf16>, vector<16x128xf32> -> vector<16x128xf32>
    %312 = arith.addf %304, %311 : vector<16x128xf32>
    %313 = vector.extract_strided_slice %0 {offsets = [4, 0], sizes = [1, 128], strides = [1, 1]} : vector<10x128xf32> to vector<1x128xf32>
    %314 = vector.broadcast %313 : vector<1x128xf32> to vector<16x128xf32>
    %315 = arith.addf %312, %314 : vector<16x128xf32>
    %cst_290 = arith.constant 0.000000e+00 : f32
    %316 = vector.broadcast %cst_290 : f32 to vector<16x128xf32>
    %317 = arith.maximumf %315, %316 : vector<16x128xf32>
    %318 = arith.truncf %317 : vector<16x128xf32> to vector<16x128xbf16>
    %c0_291 = arith.constant 0 : index
    %c0_292 = arith.constant 0 : index
    %319 = vector.load %arg7[%c0_291, %c0_292] : memref<16x16xbf16, #tpu.memory_space<vmem>>, vector<16x16xbf16>
    %cst_293 = arith.constant dense<0.000000e+00> : vector<16x128xf32>
    %320 = tpu.matmul %319, %156, %cst_293 {dimension_numbers = #tpu.dot_dimension_numbers<[1], [0], [0], [1], [0, 0, 1, 1], [], []>} : vector<16x16xbf16>, vector<16x128xbf16>, vector<16x128xf32> -> vector<16x128xf32>
    %321 = arith.truncf %320 : vector<16x128xf32> to vector<16x128xbf16>
    %c0_294 = arith.constant 0 : index
    %c0_295 = arith.constant 0 : index
    %322 = vector.load %arg15[%c0_294, %c0_295] : memref<128x128xbf16, #tpu.memory_space<vmem>>, vector<128x128xbf16>
    %cst_296 = arith.constant dense<0.000000e+00> : vector<16x128xf32>
    %323 = tpu.matmul %321, %322, %cst_296 {dimension_numbers = #tpu.dot_dimension_numbers<[1], [0], [0], [1], [0, 0, 1, 1], [], []>} : vector<16x128xbf16>, vector<128x128xbf16>, vector<16x128xf32> -> vector<16x128xf32>
    %324 = vector.extract_strided_slice %0 {offsets = [5, 0], sizes = [1, 128], strides = [1, 1]} : vector<10x128xf32> to vector<1x128xf32>
    %325 = vector.broadcast %324 : vector<1x128xf32> to vector<16x128xf32>
    %326 = arith.addf %323, %325 : vector<16x128xf32>
    %cst_297 = arith.constant 0.000000e+00 : f32
    %327 = vector.broadcast %cst_297 : f32 to vector<16x128xf32>
    %328 = arith.maximumf %326, %327 : vector<16x128xf32>
    %329 = arith.truncf %328 : vector<16x128xf32> to vector<16x128xbf16>
    %c0_298 = arith.constant 0 : index
    %c0_299 = arith.constant 0 : index
    %c0_300 = arith.constant 0 : index
    %330 = vector.load %arg16[%c0_298, %c0_299, %c0_300] : memref<4x128x128xbf16, #tpu.memory_space<vmem>>, vector<1x128x128xbf16>
    %331 = vector.shape_cast %330 : vector<1x128x128xbf16> to vector<128x128xbf16>
    %cst_301 = arith.constant dense<0.000000e+00> : vector<16x128xf32>
    %332 = tpu.matmul %164, %331, %cst_301 {dimension_numbers = #tpu.dot_dimension_numbers<[1], [0], [0], [1], [0, 0, 1, 1], [], []>} : vector<16x128xbf16>, vector<128x128xbf16>, vector<16x128xf32> -> vector<16x128xf32>
    %c1_302 = arith.constant 1 : index
    %c0_303 = arith.constant 0 : index
    %c0_304 = arith.constant 0 : index
    %333 = vector.load %arg16[%c1_302, %c0_303, %c0_304] : memref<4x128x128xbf16, #tpu.memory_space<vmem>>, vector<1x128x128xbf16>
    %334 = vector.shape_cast %333 : vector<1x128x128xbf16> to vector<128x128xbf16>
    %cst_305 = arith.constant dense<0.000000e+00> : vector<16x128xf32>
    %335 = tpu.matmul %241, %334, %cst_305 {dimension_numbers = #tpu.dot_dimension_numbers<[1], [0], [0], [1], [0, 0, 1, 1], [], []>} : vector<16x128xbf16>, vector<128x128xbf16>, vector<16x128xf32> -> vector<16x128xf32>
    %336 = arith.addf %332, %335 : vector<16x128xf32>
    %c2_306 = arith.constant 2 : index
    %c0_307 = arith.constant 0 : index
    %c0_308 = arith.constant 0 : index
    %337 = vector.load %arg16[%c2_306, %c0_307, %c0_308] : memref<4x128x128xbf16, #tpu.memory_space<vmem>>, vector<1x128x128xbf16>
    %338 = vector.shape_cast %337 : vector<1x128x128xbf16> to vector<128x128xbf16>
    %cst_309 = arith.constant dense<0.000000e+00> : vector<16x128xf32>
    %339 = tpu.matmul %318, %338, %cst_309 {dimension_numbers = #tpu.dot_dimension_numbers<[1], [0], [0], [1], [0, 0, 1, 1], [], []>} : vector<16x128xbf16>, vector<128x128xbf16>, vector<16x128xf32> -> vector<16x128xf32>
    %340 = arith.addf %336, %339 : vector<16x128xf32>
    %c3_310 = arith.constant 3 : index
    %c0_311 = arith.constant 0 : index
    %c0_312 = arith.constant 0 : index
    %341 = vector.load %arg16[%c3_310, %c0_311, %c0_312] : memref<4x128x128xbf16, #tpu.memory_space<vmem>>, vector<1x128x128xbf16>
    %342 = vector.shape_cast %341 : vector<1x128x128xbf16> to vector<128x128xbf16>
    %cst_313 = arith.constant dense<0.000000e+00> : vector<16x128xf32>
    %343 = tpu.matmul %329, %342, %cst_313 {dimension_numbers = #tpu.dot_dimension_numbers<[1], [0], [0], [1], [0, 0, 1, 1], [], []>} : vector<16x128xbf16>, vector<128x128xbf16>, vector<16x128xf32> -> vector<16x128xf32>
    %344 = arith.addf %340, %343 : vector<16x128xf32>
    %345 = vector.extract_strided_slice %0 {offsets = [6, 0], sizes = [1, 128], strides = [1, 1]} : vector<10x128xf32> to vector<1x128xf32>
    %346 = vector.broadcast %345 : vector<1x128xf32> to vector<16x128xf32>
    %347 = arith.addf %344, %346 : vector<16x128xf32>
    %cst_314 = arith.constant 0.000000e+00 : f32
    %348 = vector.broadcast %cst_314 : f32 to vector<16x128xf32>
    %349 = arith.maximumf %347, %348 : vector<16x128xf32>
    %350 = arith.truncf %349 : vector<16x128xf32> to vector<16x128xbf16>
    %c0_315 = arith.constant 0 : index
    %c0_316 = arith.constant 0 : index
    %351 = vector.load %arg17[%c0_315, %c0_316] : memref<128x128xbf16, #tpu.memory_space<vmem>>, vector<128x128xbf16>
    %cst_317 = arith.constant dense<0.000000e+00> : vector<64x128xf32>
    %352 = tpu.matmul %79, %351, %cst_317 {dimension_numbers = #tpu.dot_dimension_numbers<[1], [0], [0], [1], [0, 0, 1, 1], [], []>} : vector<64x128xbf16>, vector<128x128xbf16>, vector<64x128xf32> -> vector<64x128xf32>
    %353 = vector.extract_strided_slice %0 {offsets = [7, 0], sizes = [1, 128], strides = [1, 1]} : vector<10x128xf32> to vector<1x128xf32>
    %354 = vector.broadcast %353 : vector<1x128xf32> to vector<64x128xf32>
    %355 = arith.addf %352, %354 : vector<64x128xf32>
    %cst_318 = arith.constant 0.000000e+00 : f32
    %356 = vector.broadcast %cst_318 : f32 to vector<64x128xf32>
    %357 = arith.maximumf %355, %356 : vector<64x128xf32>
    %358 = arith.truncf %357 : vector<64x128xf32> to vector<64x128xbf16>
    %c0_319 = arith.constant 0 : index
    %c0_320 = arith.constant 0 : index
    %359 = vector.load %arg8[%c0_319, %c0_320] : memref<64x16xbf16, #tpu.memory_space<vmem>>, vector<64x16xbf16>
    %cst_321 = arith.constant dense<0.000000e+00> : vector<64x128xf32>
    %360 = tpu.matmul %359, %350, %cst_321 {dimension_numbers = #tpu.dot_dimension_numbers<[1], [0], [0], [1], [0, 0, 1, 1], [], []>} : vector<64x16xbf16>, vector<16x128xbf16>, vector<64x128xf32> -> vector<64x128xf32>
    %361 = arith.truncf %360 : vector<64x128xf32> to vector<64x128xbf16>
    %c0_322 = arith.constant 0 : index
    %c0_323 = arith.constant 0 : index
    %c0_324 = arith.constant 0 : index
    %362 = vector.load %arg6[%c0_322, %c0_323, %c0_324] : memref<9x64x64xbf16, #tpu.memory_space<vmem>>, vector<1x64x64xbf16>
    %363 = vector.shape_cast %362 : vector<1x64x64xbf16> to vector<64x64xbf16>
    %cst_325 = arith.constant dense<0.000000e+00> : vector<64x128xf32>
    %364 = tpu.matmul %363, %361, %cst_325 {dimension_numbers = #tpu.dot_dimension_numbers<[1], [0], [0], [1], [0, 0, 1, 1], [], []>} : vector<64x64xbf16>, vector<64x128xbf16>, vector<64x128xf32> -> vector<64x128xf32>
    %365 = arith.truncf %364 : vector<64x128xf32> to vector<64x128xbf16>
    %c0_326 = arith.constant 0 : index
    %c0_327 = arith.constant 0 : index
    %c0_328 = arith.constant 0 : index
    %366 = vector.load %arg18[%c0_326, %c0_327, %c0_328] : memref<9x128x128xbf16, #tpu.memory_space<vmem>>, vector<1x128x128xbf16>
    %367 = vector.shape_cast %366 : vector<1x128x128xbf16> to vector<128x128xbf16>
    %cst_329 = arith.constant dense<0.000000e+00> : vector<64x128xf32>
    %368 = tpu.matmul %365, %367, %cst_329 {dimension_numbers = #tpu.dot_dimension_numbers<[1], [0], [0], [1], [0, 0, 1, 1], [], []>} : vector<64x128xbf16>, vector<128x128xbf16>, vector<64x128xf32> -> vector<64x128xf32>
    %cst_330 = arith.constant dense<0.000000e+00> : vector<64x128xf32>
    %369 = tpu.matmul %363, %358, %cst_330 {dimension_numbers = #tpu.dot_dimension_numbers<[1], [0], [0], [1], [0, 0, 1, 1], [], []>} : vector<64x64xbf16>, vector<64x128xbf16>, vector<64x128xf32> -> vector<64x128xf32>
    %370 = arith.truncf %369 : vector<64x128xf32> to vector<64x128xbf16>
    %c0_331 = arith.constant 0 : index
    %c0_332 = arith.constant 0 : index
    %c0_333 = arith.constant 0 : index
    %371 = vector.load %arg19[%c0_331, %c0_332, %c0_333] : memref<9x128x128xbf16, #tpu.memory_space<vmem>>, vector<1x128x128xbf16>
    %372 = vector.shape_cast %371 : vector<1x128x128xbf16> to vector<128x128xbf16>
    %cst_334 = arith.constant dense<0.000000e+00> : vector<64x128xf32>
    %373 = tpu.matmul %370, %372, %cst_334 {dimension_numbers = #tpu.dot_dimension_numbers<[1], [0], [0], [1], [0, 0, 1, 1], [], []>} : vector<64x128xbf16>, vector<128x128xbf16>, vector<64x128xf32> -> vector<64x128xf32>
    %374 = arith.addf %368, %373 : vector<64x128xf32>
    %c1_335 = arith.constant 1 : index
    %c0_336 = arith.constant 0 : index
    %c0_337 = arith.constant 0 : index
    %375 = vector.load %arg6[%c1_335, %c0_336, %c0_337] : memref<9x64x64xbf16, #tpu.memory_space<vmem>>, vector<1x64x64xbf16>
    %376 = vector.shape_cast %375 : vector<1x64x64xbf16> to vector<64x64xbf16>
    %cst_338 = arith.constant dense<0.000000e+00> : vector<64x128xf32>
    %377 = tpu.matmul %376, %361, %cst_338 {dimension_numbers = #tpu.dot_dimension_numbers<[1], [0], [0], [1], [0, 0, 1, 1], [], []>} : vector<64x64xbf16>, vector<64x128xbf16>, vector<64x128xf32> -> vector<64x128xf32>
    %378 = arith.truncf %377 : vector<64x128xf32> to vector<64x128xbf16>
    %c1_339 = arith.constant 1 : index
    %c0_340 = arith.constant 0 : index
    %c0_341 = arith.constant 0 : index
    %379 = vector.load %arg18[%c1_339, %c0_340, %c0_341] : memref<9x128x128xbf16, #tpu.memory_space<vmem>>, vector<1x128x128xbf16>
    %380 = vector.shape_cast %379 : vector<1x128x128xbf16> to vector<128x128xbf16>
    %cst_342 = arith.constant dense<0.000000e+00> : vector<64x128xf32>
    %381 = tpu.matmul %378, %380, %cst_342 {dimension_numbers = #tpu.dot_dimension_numbers<[1], [0], [0], [1], [0, 0, 1, 1], [], []>} : vector<64x128xbf16>, vector<128x128xbf16>, vector<64x128xf32> -> vector<64x128xf32>
    %cst_343 = arith.constant dense<0.000000e+00> : vector<64x128xf32>
    %382 = tpu.matmul %376, %358, %cst_343 {dimension_numbers = #tpu.dot_dimension_numbers<[1], [0], [0], [1], [0, 0, 1, 1], [], []>} : vector<64x64xbf16>, vector<64x128xbf16>, vector<64x128xf32> -> vector<64x128xf32>
    %383 = arith.truncf %382 : vector<64x128xf32> to vector<64x128xbf16>
    %c1_344 = arith.constant 1 : index
    %c0_345 = arith.constant 0 : index
    %c0_346 = arith.constant 0 : index
    %384 = vector.load %arg19[%c1_344, %c0_345, %c0_346] : memref<9x128x128xbf16, #tpu.memory_space<vmem>>, vector<1x128x128xbf16>
    %385 = vector.shape_cast %384 : vector<1x128x128xbf16> to vector<128x128xbf16>
    %cst_347 = arith.constant dense<0.000000e+00> : vector<64x128xf32>
    %386 = tpu.matmul %383, %385, %cst_347 {dimension_numbers = #tpu.dot_dimension_numbers<[1], [0], [0], [1], [0, 0, 1, 1], [], []>} : vector<64x128xbf16>, vector<128x128xbf16>, vector<64x128xf32> -> vector<64x128xf32>
    %387 = arith.addf %381, %386 : vector<64x128xf32>
    %388 = arith.addf %374, %387 : vector<64x128xf32>
    %c2_348 = arith.constant 2 : index
    %c0_349 = arith.constant 0 : index
    %c0_350 = arith.constant 0 : index
    %389 = vector.load %arg6[%c2_348, %c0_349, %c0_350] : memref<9x64x64xbf16, #tpu.memory_space<vmem>>, vector<1x64x64xbf16>
    %390 = vector.shape_cast %389 : vector<1x64x64xbf16> to vector<64x64xbf16>
    %cst_351 = arith.constant dense<0.000000e+00> : vector<64x128xf32>
    %391 = tpu.matmul %390, %361, %cst_351 {dimension_numbers = #tpu.dot_dimension_numbers<[1], [0], [0], [1], [0, 0, 1, 1], [], []>} : vector<64x64xbf16>, vector<64x128xbf16>, vector<64x128xf32> -> vector<64x128xf32>
    %392 = arith.truncf %391 : vector<64x128xf32> to vector<64x128xbf16>
    %c2_352 = arith.constant 2 : index
    %c0_353 = arith.constant 0 : index
    %c0_354 = arith.constant 0 : index
    %393 = vector.load %arg18[%c2_352, %c0_353, %c0_354] : memref<9x128x128xbf16, #tpu.memory_space<vmem>>, vector<1x128x128xbf16>
    %394 = vector.shape_cast %393 : vector<1x128x128xbf16> to vector<128x128xbf16>
    %cst_355 = arith.constant dense<0.000000e+00> : vector<64x128xf32>
    %395 = tpu.matmul %392, %394, %cst_355 {dimension_numbers = #tpu.dot_dimension_numbers<[1], [0], [0], [1], [0, 0, 1, 1], [], []>} : vector<64x128xbf16>, vector<128x128xbf16>, vector<64x128xf32> -> vector<64x128xf32>
    %cst_356 = arith.constant dense<0.000000e+00> : vector<64x128xf32>
    %396 = tpu.matmul %390, %358, %cst_356 {dimension_numbers = #tpu.dot_dimension_numbers<[1], [0], [0], [1], [0, 0, 1, 1], [], []>} : vector<64x64xbf16>, vector<64x128xbf16>, vector<64x128xf32> -> vector<64x128xf32>
    %397 = arith.truncf %396 : vector<64x128xf32> to vector<64x128xbf16>
    %c2_357 = arith.constant 2 : index
    %c0_358 = arith.constant 0 : index
    %c0_359 = arith.constant 0 : index
    %398 = vector.load %arg19[%c2_357, %c0_358, %c0_359] : memref<9x128x128xbf16, #tpu.memory_space<vmem>>, vector<1x128x128xbf16>
    %399 = vector.shape_cast %398 : vector<1x128x128xbf16> to vector<128x128xbf16>
    %cst_360 = arith.constant dense<0.000000e+00> : vector<64x128xf32>
    %400 = tpu.matmul %397, %399, %cst_360 {dimension_numbers = #tpu.dot_dimension_numbers<[1], [0], [0], [1], [0, 0, 1, 1], [], []>} : vector<64x128xbf16>, vector<128x128xbf16>, vector<64x128xf32> -> vector<64x128xf32>
    %401 = arith.addf %395, %400 : vector<64x128xf32>
    %402 = arith.addf %388, %401 : vector<64x128xf32>
    %c3_361 = arith.constant 3 : index
    %c0_362 = arith.constant 0 : index
    %c0_363 = arith.constant 0 : index
    %403 = vector.load %arg6[%c3_361, %c0_362, %c0_363] : memref<9x64x64xbf16, #tpu.memory_space<vmem>>, vector<1x64x64xbf16>
    %404 = vector.shape_cast %403 : vector<1x64x64xbf16> to vector<64x64xbf16>
    %cst_364 = arith.constant dense<0.000000e+00> : vector<64x128xf32>
    %405 = tpu.matmul %404, %361, %cst_364 {dimension_numbers = #tpu.dot_dimension_numbers<[1], [0], [0], [1], [0, 0, 1, 1], [], []>} : vector<64x64xbf16>, vector<64x128xbf16>, vector<64x128xf32> -> vector<64x128xf32>
    %406 = arith.truncf %405 : vector<64x128xf32> to vector<64x128xbf16>
    %c3_365 = arith.constant 3 : index
    %c0_366 = arith.constant 0 : index
    %c0_367 = arith.constant 0 : index
    %407 = vector.load %arg18[%c3_365, %c0_366, %c0_367] : memref<9x128x128xbf16, #tpu.memory_space<vmem>>, vector<1x128x128xbf16>
    %408 = vector.shape_cast %407 : vector<1x128x128xbf16> to vector<128x128xbf16>
    %cst_368 = arith.constant dense<0.000000e+00> : vector<64x128xf32>
    %409 = tpu.matmul %406, %408, %cst_368 {dimension_numbers = #tpu.dot_dimension_numbers<[1], [0], [0], [1], [0, 0, 1, 1], [], []>} : vector<64x128xbf16>, vector<128x128xbf16>, vector<64x128xf32> -> vector<64x128xf32>
    %cst_369 = arith.constant dense<0.000000e+00> : vector<64x128xf32>
    %410 = tpu.matmul %404, %358, %cst_369 {dimension_numbers = #tpu.dot_dimension_numbers<[1], [0], [0], [1], [0, 0, 1, 1], [], []>} : vector<64x64xbf16>, vector<64x128xbf16>, vector<64x128xf32> -> vector<64x128xf32>
    %411 = arith.truncf %410 : vector<64x128xf32> to vector<64x128xbf16>
    %c3_370 = arith.constant 3 : index
    %c0_371 = arith.constant 0 : index
    %c0_372 = arith.constant 0 : index
    %412 = vector.load %arg19[%c3_370, %c0_371, %c0_372] : memref<9x128x128xbf16, #tpu.memory_space<vmem>>, vector<1x128x128xbf16>
    %413 = vector.shape_cast %412 : vector<1x128x128xbf16> to vector<128x128xbf16>
    %cst_373 = arith.constant dense<0.000000e+00> : vector<64x128xf32>
    %414 = tpu.matmul %411, %413, %cst_373 {dimension_numbers = #tpu.dot_dimension_numbers<[1], [0], [0], [1], [0, 0, 1, 1], [], []>} : vector<64x128xbf16>, vector<128x128xbf16>, vector<64x128xf32> -> vector<64x128xf32>
    %415 = arith.addf %409, %414 : vector<64x128xf32>
    %416 = arith.addf %402, %415 : vector<64x128xf32>
    %c4_374 = arith.constant 4 : index
    %c0_375 = arith.constant 0 : index
    %c0_376 = arith.constant 0 : index
    %417 = vector.load %arg6[%c4_374, %c0_375, %c0_376] : memref<9x64x64xbf16, #tpu.memory_space<vmem>>, vector<1x64x64xbf16>
    %418 = vector.shape_cast %417 : vector<1x64x64xbf16> to vector<64x64xbf16>
    %cst_377 = arith.constant dense<0.000000e+00> : vector<64x128xf32>
    %419 = tpu.matmul %418, %361, %cst_377 {dimension_numbers = #tpu.dot_dimension_numbers<[1], [0], [0], [1], [0, 0, 1, 1], [], []>} : vector<64x64xbf16>, vector<64x128xbf16>, vector<64x128xf32> -> vector<64x128xf32>
    %420 = arith.truncf %419 : vector<64x128xf32> to vector<64x128xbf16>
    %c4_378 = arith.constant 4 : index
    %c0_379 = arith.constant 0 : index
    %c0_380 = arith.constant 0 : index
    %421 = vector.load %arg18[%c4_378, %c0_379, %c0_380] : memref<9x128x128xbf16, #tpu.memory_space<vmem>>, vector<1x128x128xbf16>
    %422 = vector.shape_cast %421 : vector<1x128x128xbf16> to vector<128x128xbf16>
    %cst_381 = arith.constant dense<0.000000e+00> : vector<64x128xf32>
    %423 = tpu.matmul %420, %422, %cst_381 {dimension_numbers = #tpu.dot_dimension_numbers<[1], [0], [0], [1], [0, 0, 1, 1], [], []>} : vector<64x128xbf16>, vector<128x128xbf16>, vector<64x128xf32> -> vector<64x128xf32>
    %cst_382 = arith.constant dense<0.000000e+00> : vector<64x128xf32>
    %424 = tpu.matmul %418, %358, %cst_382 {dimension_numbers = #tpu.dot_dimension_numbers<[1], [0], [0], [1], [0, 0, 1, 1], [], []>} : vector<64x64xbf16>, vector<64x128xbf16>, vector<64x128xf32> -> vector<64x128xf32>
    %425 = arith.truncf %424 : vector<64x128xf32> to vector<64x128xbf16>
    %c4_383 = arith.constant 4 : index
    %c0_384 = arith.constant 0 : index
    %c0_385 = arith.constant 0 : index
    %426 = vector.load %arg19[%c4_383, %c0_384, %c0_385] : memref<9x128x128xbf16, #tpu.memory_space<vmem>>, vector<1x128x128xbf16>
    %427 = vector.shape_cast %426 : vector<1x128x128xbf16> to vector<128x128xbf16>
    %cst_386 = arith.constant dense<0.000000e+00> : vector<64x128xf32>
    %428 = tpu.matmul %425, %427, %cst_386 {dimension_numbers = #tpu.dot_dimension_numbers<[1], [0], [0], [1], [0, 0, 1, 1], [], []>} : vector<64x128xbf16>, vector<128x128xbf16>, vector<64x128xf32> -> vector<64x128xf32>
    %429 = arith.addf %423, %428 : vector<64x128xf32>
    %430 = arith.addf %416, %429 : vector<64x128xf32>
    %c5_387 = arith.constant 5 : index
    %c0_388 = arith.constant 0 : index
    %c0_389 = arith.constant 0 : index
    %431 = vector.load %arg6[%c5_387, %c0_388, %c0_389] : memref<9x64x64xbf16, #tpu.memory_space<vmem>>, vector<1x64x64xbf16>
    %432 = vector.shape_cast %431 : vector<1x64x64xbf16> to vector<64x64xbf16>
    %cst_390 = arith.constant dense<0.000000e+00> : vector<64x128xf32>
    %433 = tpu.matmul %432, %361, %cst_390 {dimension_numbers = #tpu.dot_dimension_numbers<[1], [0], [0], [1], [0, 0, 1, 1], [], []>} : vector<64x64xbf16>, vector<64x128xbf16>, vector<64x128xf32> -> vector<64x128xf32>
    %434 = arith.truncf %433 : vector<64x128xf32> to vector<64x128xbf16>
    %c5_391 = arith.constant 5 : index
    %c0_392 = arith.constant 0 : index
    %c0_393 = arith.constant 0 : index
    %435 = vector.load %arg18[%c5_391, %c0_392, %c0_393] : memref<9x128x128xbf16, #tpu.memory_space<vmem>>, vector<1x128x128xbf16>
    %436 = vector.shape_cast %435 : vector<1x128x128xbf16> to vector<128x128xbf16>
    %cst_394 = arith.constant dense<0.000000e+00> : vector<64x128xf32>
    %437 = tpu.matmul %434, %436, %cst_394 {dimension_numbers = #tpu.dot_dimension_numbers<[1], [0], [0], [1], [0, 0, 1, 1], [], []>} : vector<64x128xbf16>, vector<128x128xbf16>, vector<64x128xf32> -> vector<64x128xf32>
    %cst_395 = arith.constant dense<0.000000e+00> : vector<64x128xf32>
    %438 = tpu.matmul %432, %358, %cst_395 {dimension_numbers = #tpu.dot_dimension_numbers<[1], [0], [0], [1], [0, 0, 1, 1], [], []>} : vector<64x64xbf16>, vector<64x128xbf16>, vector<64x128xf32> -> vector<64x128xf32>
    %439 = arith.truncf %438 : vector<64x128xf32> to vector<64x128xbf16>
    %c5_396 = arith.constant 5 : index
    %c0_397 = arith.constant 0 : index
    %c0_398 = arith.constant 0 : index
    %440 = vector.load %arg19[%c5_396, %c0_397, %c0_398] : memref<9x128x128xbf16, #tpu.memory_space<vmem>>, vector<1x128x128xbf16>
    %441 = vector.shape_cast %440 : vector<1x128x128xbf16> to vector<128x128xbf16>
    %cst_399 = arith.constant dense<0.000000e+00> : vector<64x128xf32>
    %442 = tpu.matmul %439, %441, %cst_399 {dimension_numbers = #tpu.dot_dimension_numbers<[1], [0], [0], [1], [0, 0, 1, 1], [], []>} : vector<64x128xbf16>, vector<128x128xbf16>, vector<64x128xf32> -> vector<64x128xf32>
    %443 = arith.addf %437, %442 : vector<64x128xf32>
    %444 = arith.addf %430, %443 : vector<64x128xf32>
    %c6_400 = arith.constant 6 : index
    %c0_401 = arith.constant 0 : index
    %c0_402 = arith.constant 0 : index
    %445 = vector.load %arg6[%c6_400, %c0_401, %c0_402] : memref<9x64x64xbf16, #tpu.memory_space<vmem>>, vector<1x64x64xbf16>
    %446 = vector.shape_cast %445 : vector<1x64x64xbf16> to vector<64x64xbf16>
    %cst_403 = arith.constant dense<0.000000e+00> : vector<64x128xf32>
    %447 = tpu.matmul %446, %361, %cst_403 {dimension_numbers = #tpu.dot_dimension_numbers<[1], [0], [0], [1], [0, 0, 1, 1], [], []>} : vector<64x64xbf16>, vector<64x128xbf16>, vector<64x128xf32> -> vector<64x128xf32>
    %448 = arith.truncf %447 : vector<64x128xf32> to vector<64x128xbf16>
    %c6_404 = arith.constant 6 : index
    %c0_405 = arith.constant 0 : index
    %c0_406 = arith.constant 0 : index
    %449 = vector.load %arg18[%c6_404, %c0_405, %c0_406] : memref<9x128x128xbf16, #tpu.memory_space<vmem>>, vector<1x128x128xbf16>
    %450 = vector.shape_cast %449 : vector<1x128x128xbf16> to vector<128x128xbf16>
    %cst_407 = arith.constant dense<0.000000e+00> : vector<64x128xf32>
    %451 = tpu.matmul %448, %450, %cst_407 {dimension_numbers = #tpu.dot_dimension_numbers<[1], [0], [0], [1], [0, 0, 1, 1], [], []>} : vector<64x128xbf16>, vector<128x128xbf16>, vector<64x128xf32> -> vector<64x128xf32>
    %cst_408 = arith.constant dense<0.000000e+00> : vector<64x128xf32>
    %452 = tpu.matmul %446, %358, %cst_408 {dimension_numbers = #tpu.dot_dimension_numbers<[1], [0], [0], [1], [0, 0, 1, 1], [], []>} : vector<64x64xbf16>, vector<64x128xbf16>, vector<64x128xf32> -> vector<64x128xf32>
    %453 = arith.truncf %452 : vector<64x128xf32> to vector<64x128xbf16>
    %c6_409 = arith.constant 6 : index
    %c0_410 = arith.constant 0 : index
    %c0_411 = arith.constant 0 : index
    %454 = vector.load %arg19[%c6_409, %c0_410, %c0_411] : memref<9x128x128xbf16, #tpu.memory_space<vmem>>, vector<1x128x128xbf16>
    %455 = vector.shape_cast %454 : vector<1x128x128xbf16> to vector<128x128xbf16>
    %cst_412 = arith.constant dense<0.000000e+00> : vector<64x128xf32>
    %456 = tpu.matmul %453, %455, %cst_412 {dimension_numbers = #tpu.dot_dimension_numbers<[1], [0], [0], [1], [0, 0, 1, 1], [], []>} : vector<64x128xbf16>, vector<128x128xbf16>, vector<64x128xf32> -> vector<64x128xf32>
    %457 = arith.addf %451, %456 : vector<64x128xf32>
    %458 = arith.addf %444, %457 : vector<64x128xf32>
    %c7_413 = arith.constant 7 : index
    %c0_414 = arith.constant 0 : index
    %c0_415 = arith.constant 0 : index
    %459 = vector.load %arg6[%c7_413, %c0_414, %c0_415] : memref<9x64x64xbf16, #tpu.memory_space<vmem>>, vector<1x64x64xbf16>
    %460 = vector.shape_cast %459 : vector<1x64x64xbf16> to vector<64x64xbf16>
    %cst_416 = arith.constant dense<0.000000e+00> : vector<64x128xf32>
    %461 = tpu.matmul %460, %361, %cst_416 {dimension_numbers = #tpu.dot_dimension_numbers<[1], [0], [0], [1], [0, 0, 1, 1], [], []>} : vector<64x64xbf16>, vector<64x128xbf16>, vector<64x128xf32> -> vector<64x128xf32>
    %462 = arith.truncf %461 : vector<64x128xf32> to vector<64x128xbf16>
    %c7_417 = arith.constant 7 : index
    %c0_418 = arith.constant 0 : index
    %c0_419 = arith.constant 0 : index
    %463 = vector.load %arg18[%c7_417, %c0_418, %c0_419] : memref<9x128x128xbf16, #tpu.memory_space<vmem>>, vector<1x128x128xbf16>
    %464 = vector.shape_cast %463 : vector<1x128x128xbf16> to vector<128x128xbf16>
    %cst_420 = arith.constant dense<0.000000e+00> : vector<64x128xf32>
    %465 = tpu.matmul %462, %464, %cst_420 {dimension_numbers = #tpu.dot_dimension_numbers<[1], [0], [0], [1], [0, 0, 1, 1], [], []>} : vector<64x128xbf16>, vector<128x128xbf16>, vector<64x128xf32> -> vector<64x128xf32>
    %cst_421 = arith.constant dense<0.000000e+00> : vector<64x128xf32>
    %466 = tpu.matmul %460, %358, %cst_421 {dimension_numbers = #tpu.dot_dimension_numbers<[1], [0], [0], [1], [0, 0, 1, 1], [], []>} : vector<64x64xbf16>, vector<64x128xbf16>, vector<64x128xf32> -> vector<64x128xf32>
    %467 = arith.truncf %466 : vector<64x128xf32> to vector<64x128xbf16>
    %c7_422 = arith.constant 7 : index
    %c0_423 = arith.constant 0 : index
    %c0_424 = arith.constant 0 : index
    %468 = vector.load %arg19[%c7_422, %c0_423, %c0_424] : memref<9x128x128xbf16, #tpu.memory_space<vmem>>, vector<1x128x128xbf16>
    %469 = vector.shape_cast %468 : vector<1x128x128xbf16> to vector<128x128xbf16>
    %cst_425 = arith.constant dense<0.000000e+00> : vector<64x128xf32>
    %470 = tpu.matmul %467, %469, %cst_425 {dimension_numbers = #tpu.dot_dimension_numbers<[1], [0], [0], [1], [0, 0, 1, 1], [], []>} : vector<64x128xbf16>, vector<128x128xbf16>, vector<64x128xf32> -> vector<64x128xf32>
    %471 = arith.addf %465, %470 : vector<64x128xf32>
    %472 = arith.addf %458, %471 : vector<64x128xf32>
    %c8_426 = arith.constant 8 : index
    %c0_427 = arith.constant 0 : index
    %c0_428 = arith.constant 0 : index
    %473 = vector.load %arg6[%c8_426, %c0_427, %c0_428] : memref<9x64x64xbf16, #tpu.memory_space<vmem>>, vector<1x64x64xbf16>
    %474 = vector.shape_cast %473 : vector<1x64x64xbf16> to vector<64x64xbf16>
    %cst_429 = arith.constant dense<0.000000e+00> : vector<64x128xf32>
    %475 = tpu.matmul %474, %361, %cst_429 {dimension_numbers = #tpu.dot_dimension_numbers<[1], [0], [0], [1], [0, 0, 1, 1], [], []>} : vector<64x64xbf16>, vector<64x128xbf16>, vector<64x128xf32> -> vector<64x128xf32>
    %476 = arith.truncf %475 : vector<64x128xf32> to vector<64x128xbf16>
    %c8_430 = arith.constant 8 : index
    %c0_431 = arith.constant 0 : index
    %c0_432 = arith.constant 0 : index
    %477 = vector.load %arg18[%c8_430, %c0_431, %c0_432] : memref<9x128x128xbf16, #tpu.memory_space<vmem>>, vector<1x128x128xbf16>
    %478 = vector.shape_cast %477 : vector<1x128x128xbf16> to vector<128x128xbf16>
    %cst_433 = arith.constant dense<0.000000e+00> : vector<64x128xf32>
    %479 = tpu.matmul %476, %478, %cst_433 {dimension_numbers = #tpu.dot_dimension_numbers<[1], [0], [0], [1], [0, 0, 1, 1], [], []>} : vector<64x128xbf16>, vector<128x128xbf16>, vector<64x128xf32> -> vector<64x128xf32>
    %cst_434 = arith.constant dense<0.000000e+00> : vector<64x128xf32>
    %480 = tpu.matmul %474, %358, %cst_434 {dimension_numbers = #tpu.dot_dimension_numbers<[1], [0], [0], [1], [0, 0, 1, 1], [], []>} : vector<64x64xbf16>, vector<64x128xbf16>, vector<64x128xf32> -> vector<64x128xf32>
    %481 = arith.truncf %480 : vector<64x128xf32> to vector<64x128xbf16>
    %c8_435 = arith.constant 8 : index
    %c0_436 = arith.constant 0 : index
    %c0_437 = arith.constant 0 : index
    %482 = vector.load %arg19[%c8_435, %c0_436, %c0_437] : memref<9x128x128xbf16, #tpu.memory_space<vmem>>, vector<1x128x128xbf16>
    %483 = vector.shape_cast %482 : vector<1x128x128xbf16> to vector<128x128xbf16>
    %cst_438 = arith.constant dense<0.000000e+00> : vector<64x128xf32>
    %484 = tpu.matmul %481, %483, %cst_438 {dimension_numbers = #tpu.dot_dimension_numbers<[1], [0], [0], [1], [0, 0, 1, 1], [], []>} : vector<64x128xbf16>, vector<128x128xbf16>, vector<64x128xf32> -> vector<64x128xf32>
    %485 = arith.addf %479, %484 : vector<64x128xf32>
    %486 = arith.addf %472, %485 : vector<64x128xf32>
    %487 = vector.extract_strided_slice %0 {offsets = [8, 0], sizes = [1, 128], strides = [1, 1]} : vector<10x128xf32> to vector<1x128xf32>
    %488 = vector.broadcast %487 : vector<1x128xf32> to vector<64x128xf32>
    %489 = arith.addf %486, %488 : vector<64x128xf32>
    %cst_439 = arith.constant 0.000000e+00 : f32
    %490 = vector.broadcast %cst_439 : f32 to vector<64x128xf32>
    %491 = arith.maximumf %489, %490 : vector<64x128xf32>
    %492 = arith.truncf %491 : vector<64x128xf32> to vector<64x128xbf16>
    %c0_440 = arith.constant 0 : index
    %c0_441 = arith.constant 0 : index
    %493 = vector.load %arg20[%c0_440, %c0_441] : memref<128x128xbf16, #tpu.memory_space<vmem>>, vector<128x128xbf16>
    %cst_442 = arith.constant dense<0.000000e+00> : vector<64x128xf32>
    %494 = tpu.matmul %492, %493, %cst_442 {dimension_numbers = #tpu.dot_dimension_numbers<[1], [0], [0], [1], [0, 0, 1, 1], [], []>} : vector<64x128xbf16>, vector<128x128xbf16>, vector<64x128xf32> -> vector<64x128xf32>
    %495 = vector.extract_strided_slice %0 {offsets = [9, 0], sizes = [1, 128], strides = [1, 1]} : vector<10x128xf32> to vector<1x128xf32>
    %496 = vector.broadcast %495 : vector<1x128xf32> to vector<64x128xf32>
    %497 = arith.addf %494, %496 : vector<64x128xf32>
    %498 = arith.truncf %497 : vector<64x128xf32> to vector<64x128xbf16>
    %c0_443 = arith.constant 0 : index
    %c0_444 = arith.constant 0 : index
    %499 = vector.load %arg9[%c0_443, %c0_444] : memref<256x64xbf16, #tpu.memory_space<vmem>>, vector<256x64xbf16>
    %cst_445 = arith.constant dense<0.000000e+00> : vector<256x128xf32>
    %500 = tpu.matmul %499, %498, %cst_445 {dimension_numbers = #tpu.dot_dimension_numbers<[1], [0], [0], [1], [0, 0, 1, 1], [], []>} : vector<256x64xbf16>, vector<64x128xbf16>, vector<256x128xf32> -> vector<256x128xf32>
    %c0_446 = arith.constant 0 : index
    %c0_447 = arith.constant 0 : index
    %c0_448 = arith.constant 0 : index
    %501 = vector.load %arg22[%c0_446, %c0_447, %c0_448] : memref<1x256x128xf32, #tpu.memory_space<vmem>>, vector<1x256x128xf32>
    %502 = vector.shape_cast %501 : vector<1x256x128xf32> to vector<256x128xf32>
    %503 = vector.shape_cast %500 : vector<256x128xf32> to vector<1x256x128xf32>
    tpu.vector_store %arg22[%c0_446, %c0_447, %c0_448], %503 {strides = array<i32>} : memref<1x256x128xf32, #tpu.memory_space<vmem>>, vector<1x256x128xf32>,
    return
  }
  func.func @transform_0(%arg0: i32) -> (i32, i32, i32) {
    %c0_i32 = arith.constant 0 : i32
    %c0_i32_0 = arith.constant 0 : i32
    %c0_i32_1 = arith.constant 0 : i32
    return %arg0, %c0_i32, %c0_i32_0 : i32, i32, i32
  }
  func.func @transform_1(%arg0: i32) -> (i32, i32, i32) {
    %c0_i32 = arith.constant 0 : i32
    %c0_i32_0 = arith.constant 0 : i32
    %c0_i32_1 = arith.constant 0 : i32
    %c0_i32_2 = arith.constant 0 : i32
    return %c0_i32, %c0_i32_0, %c0_i32_1 : i32, i32, i32
  }
  func.func @transform_2(%arg0: i32) -> (i32, i32, i32) {
    %c0_i32 = arith.constant 0 : i32
    %c0_i32_0 = arith.constant 0 : i32
    %c0_i32_1 = arith.constant 0 : i32
    %c0_i32_2 = arith.constant 0 : i32
    return %c0_i32, %c0_i32_0, %c0_i32_1 : i32, i32, i32
  }
  func.func @transform_3(%arg0: i32) -> (i32, i32, i32) {
    %c0_i32 = arith.constant 0 : i32
    %c0_i32_0 = arith.constant 0 : i32
    %c0_i32_1 = arith.constant 0 : i32
    %c0_i32_2 = arith.constant 0 : i32
    return %c0_i32, %c0_i32_0, %c0_i32_1 : i32, i32, i32
  }
  func.func @transform_4(%arg0: i32) -> (i32, i32, i32) {
    %c0_i32 = arith.constant 0 : i32
    %c0_i32_0 = arith.constant 0 : i32
    %c0_i32_1 = arith.constant 0 : i32
    %c0_i32_2 = arith.constant 0 : i32
    return %c0_i32, %c0_i32_0, %c0_i32_1 : i32, i32, i32
  }
  func.func @transform_5(%arg0: i32) -> (i32, i32, i32) {
    %c0_i32 = arith.constant 0 : i32
    %c0_i32_0 = arith.constant 0 : i32
    %c0_i32_1 = arith.constant 0 : i32
    %c0_i32_2 = arith.constant 0 : i32
    return %c0_i32, %c0_i32_0, %c0_i32_1 : i32, i32, i32
  }
  func.func @transform_6(%arg0: i32) -> (i32, i32) {
    %c0_i32 = arith.constant 0 : i32
    %c0_i32_0 = arith.constant 0 : i32
    %c0_i32_1 = arith.constant 0 : i32
    return %c0_i32, %c0_i32_0 : i32, i32
  }
  func.func @transform_7(%arg0: i32) -> (i32, i32) {
    %c0_i32 = arith.constant 0 : i32
    %c0_i32_0 = arith.constant 0 : i32
    %c0_i32_1 = arith.constant 0 : i32
    return %c0_i32, %c0_i32_0 : i32, i32
  }
  func.func @transform_8(%arg0: i32) -> (i32, i32) {
    %c0_i32 = arith.constant 0 : i32
    %c0_i32_0 = arith.constant 0 : i32
    %c0_i32_1 = arith.constant 0 : i32
    return %c0_i32, %c0_i32_0 : i32, i32
  }
  func.func @transform_9(%arg0: i32) -> (i32, i32, i32) {
    %c0_i32 = arith.constant 0 : i32
    %c0_i32_0 = arith.constant 0 : i32
    %c0_i32_1 = arith.constant 0 : i32
    %c0_i32_2 = arith.constant 0 : i32
    return %c0_i32, %c0_i32_0, %c0_i32_1 : i32, i32, i32
  }
  func.func @transform_10(%arg0: i32) -> (i32, i32, i32) {
    %c0_i32 = arith.constant 0 : i32
    %c0_i32_0 = arith.constant 0 : i32
    %c0_i32_1 = arith.constant 0 : i32
    %c0_i32_2 = arith.constant 0 : i32
    return %c0_i32, %c0_i32_0, %c0_i32_1 : i32, i32, i32
  }
  func.func @transform_11(%arg0: i32) -> (i32, i32) {
    %c0_i32 = arith.constant 0 : i32
    %c0_i32_0 = arith.constant 0 : i32
    %c0_i32_1 = arith.constant 0 : i32
    return %c0_i32, %c0_i32_0 : i32, i32
  }
  func.func @transform_12(%arg0: i32) -> (i32, i32, i32) {
    %c0_i32 = arith.constant 0 : i32
    %c0_i32_0 = arith.constant 0 : i32
    %c0_i32_1 = arith.constant 0 : i32
    %c0_i32_2 = arith.constant 0 : i32
    return %c0_i32, %c0_i32_0, %c0_i32_1 : i32, i32, i32
  }
  func.func @transform_13(%arg0: i32) -> (i32, i32, i32) {
    %c0_i32 = arith.constant 0 : i32
    %c0_i32_0 = arith.constant 0 : i32
    %c0_i32_1 = arith.constant 0 : i32
    %c0_i32_2 = arith.constant 0 : i32
    return %c0_i32, %c0_i32_0, %c0_i32_1 : i32, i32, i32
  }
  func.func @transform_14(%arg0: i32) -> (i32, i32) {
    %c0_i32 = arith.constant 0 : i32
    %c0_i32_0 = arith.constant 0 : i32
    %c0_i32_1 = arith.constant 0 : i32
    return %c0_i32, %c0_i32_0 : i32, i32
  }
  func.func @transform_15(%arg0: i32) -> (i32, i32, i32) {
    %c0_i32 = arith.constant 0 : i32
    %c0_i32_0 = arith.constant 0 : i32
    %c0_i32_1 = arith.constant 0 : i32
    %c0_i32_2 = arith.constant 0 : i32
    return %c0_i32, %c0_i32_0, %c0_i32_1 : i32, i32, i32
  }
  func.func @transform_16(%arg0: i32) -> (i32, i32) {
    %c0_i32 = arith.constant 0 : i32
    %c0_i32_0 = arith.constant 0 : i32
    %c0_i32_1 = arith.constant 0 : i32
    return %c0_i32, %c0_i32_0 : i32, i32
  }
  func.func @transform_17(%arg0: i32) -> (i32, i32, i32) {
    %c0_i32 = arith.constant 0 : i32
    %c0_i32_0 = arith.constant 0 : i32
    %c0_i32_1 = arith.constant 0 : i32
    %c0_i32_2 = arith.constant 0 : i32
    return %c0_i32, %c0_i32_0, %c0_i32_1 : i32, i32, i32
  }
  func.func @transform_18(%arg0: i32) -> (i32, i32, i32) {
    %c0_i32 = arith.constant 0 : i32
    %c0_i32_0 = arith.constant 0 : i32
    %c0_i32_1 = arith.constant 0 : i32
    %c0_i32_2 = arith.constant 0 : i32
    return %c0_i32, %c0_i32_0, %c0_i32_1 : i32, i32, i32
  }
  func.func @transform_19(%arg0: i32) -> (i32, i32) {
    %c0_i32 = arith.constant 0 : i32
    %c0_i32_0 = arith.constant 0 : i32
    %c0_i32_1 = arith.constant 0 : i32
    return %c0_i32, %c0_i32_0 : i32, i32
  }
  func.func @transform_20(%arg0: i32) -> (i32, i32) {
    %c0_i32 = arith.constant 0 : i32
    %c0_i32_0 = arith.constant 0 : i32
    %c0_i32_1 = arith.constant 0 : i32
    return %c0_i32, %c0_i32_0 : i32, i32
  }
  func.func @transform_21(%arg0: i32) -> (i32, i32, i32) {
    %c0_i32 = arith.constant 0 : i32
    %c0_i32_0 = arith.constant 0 : i32
    %c0_i32_1 = arith.constant 0 : i32
    return %arg0, %c0_i32, %c0_i32_0 : i32, i32, i32
  }
}

</mosaic_0001>

<llo_original>
// kernel: deeplab_forward.1
$region0: #{deeplab_forward.1}
  #allocation0 [shape = 'u32[]', space=smem, size = 0x4, offset = 0x4, fixed_abs, tag = 'smem constant byte address 0x4 - core index']
  #allocation1 [shape = 'u32[72,128]{1,0:T(1,128)}', space=vmem, size = 0x9000, scoped, tag = 'internal scratch']
  %s0 = inlined_call_operand.vmem [shape: bf16[2,256,128], index: 0, kind: input, shape index: {}]
  %s1 = inlined_call_operand.vmem [shape: bf16[9,64,256], index: 1, kind: input, shape index: {}]
  %s2 = inlined_call_operand.vmem [shape: bf16[9,16,64], index: 2, kind: input, shape index: {}]
  %s3 = inlined_call_operand.vmem [shape: bf16[9,16,16], index: 3, kind: input, shape index: {}]
  %s4 = inlined_call_operand.vmem [shape: bf16[9,16,16], index: 4, kind: input, shape index: {}]
  %s5 = inlined_call_operand.vmem [shape: bf16[9,64,64], index: 5, kind: input, shape index: {}]
  %s6 = inlined_call_operand.vmem [shape: bf16[16,16], index: 6, kind: input, shape index: {}]
  %s7 = inlined_call_operand.vmem [shape: bf16[64,16], index: 7, kind: input, shape index: {}]
  %s8 = inlined_call_operand.vmem [shape: bf16[256,64], index: 8, kind: input, shape index: {}]
  %s9 = inlined_call_operand.hbm [shape: bf16[9,128,128], index: 9, kind: input, shape index: {}]
  %s10 = inlined_call_operand.hbm [shape: bf16[9,128,128], index: 10, kind: input, shape index: {}]
  %s11 = inlined_call_operand.hbm [shape: bf16[128,128], index: 11, kind: input, shape index: {}]
  %s12 = inlined_call_operand.hbm [shape: bf16[9,128,128], index: 12, kind: input, shape index: {}]
  %s13 = inlined_call_operand.hbm [shape: bf16[9,128,128], index: 13, kind: input, shape index: {}]
  %s14 = inlined_call_operand.hbm [shape: bf16[128,128], index: 14, kind: input, shape index: {}]
  %s15 = inlined_call_operand.hbm [shape: bf16[4,128,128], index: 15, kind: input, shape index: {}]
  %s16 = inlined_call_operand.hbm [shape: bf16[128,128], index: 16, kind: input, shape index: {}]
  %s17 = inlined_call_operand.hbm [shape: bf16[9,128,128], index: 17, kind: input, shape index: {}]
  %s18 = inlined_call_operand.hbm [shape: bf16[9,128,128], index: 18, kind: input, shape index: {}]
  %s19 = inlined_call_operand.hbm [shape: bf16[128,128], index: 19, kind: input, shape index: {}]
  %s20 = inlined_call_operand.vmem [shape: f32[10,128], index: 20, kind: input, shape index: {}]
  %s21 = inlined_call_operand.vmem [shape: f32[2,256,128], index: 21, kind: output, shape index: {}]
  %s22 = sld [smem:[#allocation0]]
  $region161: #{deeplab_forward.1} parent=0
    _
  %s24 = ssub.s32 1, %s22
  %s25 = scalar_select 0, %s24, %s22
  $region1: #{deeplab_forward.1} parent=0
    #allocation2 [shape = 'u8[294912]{0}', space=vmem, size = 0x48000, scoped, tag = 'input window, operand 9, single buffered']
    #allocation3 [shape = 's32[2]{0}', space=sflag, size = 0x8, scoped, tag = 'scoped memory for deeplab_forward.1']
    #allocation4 [shape = 'u8[294912]{0}', space=vmem, size = 0x48000, scoped, tag = 'input window, operand 10, single buffered']
    #allocation5 [shape = 's32[1]{0}', space=sflag, size = 0x4, scoped, tag = 'scoped memory for deeplab_forward.1']
    #allocation6 [shape = 'u8[32768]{0}', space=vmem, size = 0x8000, scoped, tag = 'input window, operand 11, single buffered']
    #allocation7 [shape = 'u8[294912]{0}', space=vmem, size = 0x48000, scoped, tag = 'input window, operand 12, single buffered']
    #allocation8 [shape = 's32[1]{0}', space=sflag, size = 0x4, scoped, tag = 'scoped memory for deeplab_forward.1']
    #allocation9 [shape = 'u8[294912]{0}', space=vmem, size = 0x48000, scoped, tag = 'input window, operand 13, single buffered']
    #allocation10 [shape = 'u8[32768]{0}', space=vmem, size = 0x8000, scoped, tag = 'input window, operand 14, single buffered']
    #allocation11 [shape = 's32[1]{0}', space=sflag, size = 0x4, scoped, tag = 'scoped memory for deeplab_forward.1']
    #allocation12 [shape = 'u8[131072]{0}', space=vmem, size = 0x20000, scoped, tag = 'input window, operand 15, single buffered']
    #allocation13 [shape = 'u8[32768]{0}', space=vmem, size = 0x8000, scoped, tag = 'input window, operand 16, single buffered']
    #allocation14 [shape = 's32[1]{0}', space=sflag, size = 0x4, scoped, tag = 'scoped memory for deeplab_forward.1']
    #allocation15 [shape = 'u8[294912]{0}', space=vmem, size = 0x48000, scoped, tag = 'input window, operand 17, single buffered']
    #allocation16 [shape = 'u8[294912]{0}', space=vmem, size = 0x48000, scoped, tag = 'input window, operand 18, single buffered']
    #allocation17 [shape = 's32[1]{0}', space=sflag, size = 0x4, scoped, tag = 'scoped memory for deeplab_forward.1']
    #allocation18 [shape = 'u8[32768]{0}', space=vmem, size = 0x8000, scoped, tag = 'input window, operand 19, single buffered']
    %26 = vsyncpa [#allocation3], 0
    %27 = vsyncpa [#allocation5], 0
    %28 = vsyncpa [#allocation8], 0
    %29 = vsyncpa [#allocation11], 0
    %30 = vsyncpa [#allocation14], 0
    %31 = vsyncpa [#allocation17], 0
    loop: start=0, step=1, limit=4
    $region2: #{deeplab_forward.1} parent=1 // loop_pre_header
      _
    $region3: #{deeplab_forward.1} parent=1 // loop_header
      %s33 = sphi 0, %s37
      %p34 = scmp.ge.s32.totalorder %s33, 4
      %s43 = sphi 0, %s45
      %s46 = sphi 0, %s43
      %s47 = sphi 0, %s46
      %s63 = sphi 0, %s47
      %s67 = sphi 0, %s67
      %s69 = sphi 0, %s67
      %s70 = sphi 0, %s69
      %s84 = sphi 0, %s70
      %s88 = sphi 0, %s88
      %s90 = sphi 0, %s88
      %s91 = sphi 0, %s90
      %s105 = sphi 0, %s91
      %s109 = sphi 0, %s109
      %s111 = sphi 0, %s109
      %s112 = sphi 0, %s111
      %s126 = sphi 0, %s112
      %s130 = sphi 0, %s130
      %s132 = sphi 0, %s130
      %s133 = sphi 0, %s132
      %s147 = sphi 0, %s133
      %s151 = sphi 0, %s151
      %s153 = sphi 0, %s151
      %s154 = sphi 0, %s153
      %s168 = sphi 0, %s154
      %s172 = sphi 0, %s172
      %s174 = sphi 0, %s172
      %s175 = sphi 0, %s174
      %s189 = sphi 0, %s175
      %s193 = sphi 0, %s193
      %s195 = sphi 0, %s193
      %s196 = sphi 0, %s195
      %s210 = sphi 0, %s196
      %s214 = sphi 0, %s214
      %s216 = sphi 0, %s214
      %s217 = sphi 0, %s216
      %s231 = sphi 0, %s217
      %s235 = sphi 0, %s235
      %s237 = sphi 0, %s235
      %s238 = sphi 0, %s237
      %s252 = sphi 0, %s238
      %s256 = sphi 0, %s256
      %s258 = sphi 0, %s256
      %s259 = sphi 0, %s258
      %s273 = sphi 0, %s259
      %s277 = sphi 0, %s277
      %s279 = sphi 0, %s277
      %s280 = sphi 0, %s279
      %s294 = sphi 0, %s280
      %s298 = sphi 0, %s298
      %s300 = sphi 0, %s298
      %s301 = sphi 0, %s300
      %s315 = sphi 0, %s301
      %s319 = sphi 0, %s319
      %s321 = sphi 0, %s319
      %s322 = sphi 0, %s321
      %s336 = sphi 0, %s322
      %s340 = sphi 0, %s340
      %s342 = sphi 0, %s340
      %s343 = sphi 0, %s342
      %s357 = sphi 0, %s343
      %s361 = sphi 0, %s361
      %s363 = sphi 0, %s361
      %s364 = sphi 0, %s363
      %s378 = sphi 0, %s364
      %s382 = sphi 0, %s382
      %s384 = sphi 0, %s382
      %s385 = sphi 0, %s384
      %s399 = sphi 0, %s385
      %s403 = sphi 0, %s403
      %s405 = sphi 0, %s403
      %s406 = sphi 0, %s405
      %s420 = sphi 0, %s406
      %s424 = sphi 0, %s424
      %s426 = sphi 0, %s424
      %s427 = sphi 0, %s426
      %s441 = sphi 0, %s427
      %s445 = sphi 0, %s445
      %s447 = sphi 0, %s445
      %s448 = sphi 0, %s447
      %s462 = sphi 0, %s448
      %s466 = sphi 0, %s466
      %s468 = sphi 0, %s466
      %s469 = sphi 0, %s468
      %s483 = sphi 0, %s469
      %s489 = sphi 0, %s491
      %s492 = sphi 0, %s489
      %s493 = sphi 0, %s492
      %s509 = sphi 0, %s493
    $region4: #{deeplab_forward.1} parent=1 // loop_header_branch
      %36 = sbr.rel (%p34) target = $region8
    $region5: #{deeplab_forward.1} parent=1 // loop_body
      %s38 = ssub.s32 %s33, 1
      %s39 = ssub.s32 %s33, 2
      %s40 = sadd.s32 %s33, 1
      %s41 = ssub.s32 %s33, %s40
      %p42 = scmp.eq.s32.totalorder %s41, 0
      %s44 = sadd.s32 %s43, 1
      %s45 = scalar_select %p42, %s43, %s44
      %p48 = pneg %p42
      %p49 = scmp.eq.s32.totalorder %s33, 1
      %p50 = por %p48, %p49
      %p51 = scmp.ne.s32.totalorder %s43, %s46
      %p52 = scmp.eq.s32.totalorder %s33, 0
      %p53 = por %p51, %p52
      %p54 = scmp.ne.s32.totalorder %s43, %s46
      %p55 = scmp.eq.s32.totalorder %s38, 1
      %p56 = por %p54, %p55
      %p57 = scmp.ne.s32.totalorder %s46, %s47
      %p58 = scmp.eq.s32.totalorder %s38, 0
      %p59 = por %p57, %p58
      %p60 = scmp.ne.s32.totalorder %s46, %s47
      %p61 = scmp.eq.s32.totalorder %s39, 1
      %p62 = por %p60, %p61
      %p64 = scmp.ne.s32.totalorder %s47, %s63
      %p65 = scmp.eq.s32.totalorder %s39, 0
      %p66 = por %p64, %p65
      %s68 = sadd.s32 %s67, 1
      %p71 = scmp.eq.s32.totalorder %s33, 1
      %p72 = scmp.ne.s32.totalorder %s67, %s69
      %p73 = scmp.eq.s32.totalorder %s33, 0
      %p74 = por %p72, %p73
      %p75 = scmp.ne.s32.totalorder %s67, %s69
      %p76 = scmp.eq.s32.totalorder %s38, 1
      %p77 = por %p75, %p76
      %p78 = scmp.ne.s32.totalorder %s69, %s70
      %p79 = scmp.eq.s32.totalorder %s38, 0
      %p80 = por %p78, %p79
      %p81 = scmp.ne.s32.totalorder %s69, %s70
      %p82 = scmp.eq.s32.totalorder %s39, 1
      %p83 = por %p81, %p82
      %p85 = scmp.ne.s32.totalorder %s70, %s84
      %p86 = scmp.eq.s32.totalorder %s39, 0
      %p87 = por %p85, %p86
      %s89 = sadd.s32 %s88, 1
      %p92 = scmp.eq.s32.totalorder %s33, 1
      %p93 = scmp.ne.s32.totalorder %s88, %s90
      %p94 = scmp.eq.s32.totalorder %s33, 0
      %p95 = por %p93, %p94
      %p96 = scmp.ne.s32.totalorder %s88, %s90
      %p97 = scmp.eq.s32.totalorder %s38, 1
      %p98 = por %p96, %p97
      %p99 = scmp.ne.s32.totalorder %s90, %s91
      %p100 = scmp.eq.s32.totalorder %s38, 0
      %p101 = por %p99, %p100
      %p102 = scmp.ne.s32.totalorder %s90, %s91
      %p103 = scmp.eq.s32.totalorder %s39, 1
      %p104 = por %p102, %p103
      %p106 = scmp.ne.s32.totalorder %s91, %s105
      %p107 = scmp.eq.s32.totalorder %s39, 0
      %p108 = por %p106, %p107
      %s110 = sadd.s32 %s109, 1
      %p113 = scmp.eq.s32.totalorder %s33, 1
      %p114 = scmp.ne.s32.totalorder %s109, %s111
      %p115 = scmp.eq.s32.totalorder %s33, 0
      %p116 = por %p114, %p115
      %p117 = scmp.ne.s32.totalorder %s109, %s111
      %p118 = scmp.eq.s32.totalorder %s38, 1
      %p119 = por %p117, %p118
      %p120 = scmp.ne.s32.totalorder %s111, %s112
      %p121 = scmp.eq.s32.totalorder %s38, 0
      %p122 = por %p120, %p121
      %p123 = scmp.ne.s32.totalorder %s111, %s112
      %p124 = scmp.eq.s32.totalorder %s39, 1
      %p125 = por %p123, %p124
      %p127 = scmp.ne.s32.totalorder %s112, %s126
      %p128 = scmp.eq.s32.totalorder %s39, 0
      %p129 = por %p127, %p128
      %s131 = sadd.s32 %s130, 1
      %p134 = scmp.eq.s32.totalorder %s33, 1
      %p135 = scmp.ne.s32.totalorder %s130, %s132
      %p136 = scmp.eq.s32.totalorder %s33, 0
      %p137 = por %p135, %p136
      %p138 = scmp.ne.s32.totalorder %s130, %s132
      %p139 = scmp.eq.s32.totalorder %s38, 1
      %p140 = por %p138, %p139
      %p141 = scmp.ne.s32.totalorder %s132, %s133
      %p142 = scmp.eq.s32.totalorder %s38, 0
      %p143 = por %p141, %p142
      %p144 = scmp.ne.s32.totalorder %s132, %s133
      %p145 = scmp.eq.s32.totalorder %s39, 1
      %p146 = por %p144, %p145
      %p148 = scmp.ne.s32.totalorder %s133, %s147
      %p149 = scmp.eq.s32.totalorder %s39, 0
      %p150 = por %p148, %p149
      %s152 = sadd.s32 %s151, 1
      %p155 = scmp.eq.s32.totalorder %s33, 1
      %p156 = scmp.ne.s32.totalorder %s151, %s153
      %p157 = scmp.eq.s32.totalorder %s33, 0
      %p158 = por %p156, %p157
      %p159 = scmp.ne.s32.totalorder %s151, %s153
      %p160 = scmp.eq.s32.totalorder %s38, 1
      %p161 = por %p159, %p160
      %p162 = scmp.ne.s32.totalorder %s153, %s154
      %p163 = scmp.eq.s32.totalorder %s38, 0
      %p164 = por %p162, %p163
      %p165 = scmp.ne.s32.totalorder %s153, %s154
      %p166 = scmp.eq.s32.totalorder %s39, 1
      %p167 = por %p165, %p166
      %p169 = scmp.ne.s32.totalorder %s154, %s168
      %p170 = scmp.eq.s32.totalorder %s39, 0
      %p171 = por %p169, %p170
      %s173 = sadd.s32 %s172, 1
      %p176 = scmp.eq.s32.totalorder %s33, 1
      %p177 = scmp.ne.s32.totalorder %s172, %s174
      %p178 = scmp.eq.s32.totalorder %s33, 0
      %p179 = por %p177, %p178
      %p180 = scmp.ne.s32.totalorder %s172, %s174
      %p181 = scmp.eq.s32.totalorder %s38, 1
      %p182 = por %p180, %p181
      %p183 = scmp.ne.s32.totalorder %s174, %s175
      %p184 = scmp.eq.s32.totalorder %s38, 0
      %p185 = por %p183, %p184
      %p186 = scmp.ne.s32.totalorder %s174, %s175
      %p187 = scmp.eq.s32.totalorder %s39, 1
      %p188 = por %p186, %p187
      %p190 = scmp.ne.s32.totalorder %s175, %s189
      %p191 = scmp.eq.s32.totalorder %s39, 0
      %p192 = por %p190, %p191
      %s194 = sadd.s32 %s193, 1
      %p197 = scmp.eq.s32.totalorder %s33, 1
      %p198 = scmp.ne.s32.totalorder %s193, %s195
      %p199 = scmp.eq.s32.totalorder %s33, 0
      %p200 = por %p198, %p199
      %p201 = scmp.ne.s32.totalorder %s193, %s195
      %p202 = scmp.eq.s32.totalorder %s38, 1
      %p203 = por %p201, %p202
      %p204 = scmp.ne.s32.totalorder %s195, %s196
      %p205 = scmp.eq.s32.totalorder %s38, 0
      %p206 = por %p204, %p205
      %p207 = scmp.ne.s32.totalorder %s195, %s196
      %p208 = scmp.eq.s32.totalorder %s39, 1
      %p209 = por %p207, %p208
      %p211 = scmp.ne.s32.totalorder %s196, %s210
      %p212 = scmp.eq.s32.totalorder %s39, 0
      %p213 = por %p211, %p212
      %s215 = sadd.s32 %s214, 1
      %p218 = scmp.eq.s32.totalorder %s33, 1
      %p219 = scmp.ne.s32.totalorder %s214, %s216
      %p220 = scmp.eq.s32.totalorder %s33, 0
      %p221 = por %p219, %p220
      %p222 = scmp.ne.s32.totalorder %s214, %s216
      %p223 = scmp.eq.s32.totalorder %s38, 1
      %p224 = por %p222, %p223
      %p225 = scmp.ne.s32.totalorder %s216, %s217
      %p226 = scmp.eq.s32.totalorder %s38, 0
      %p227 = por %p225, %p226
      %p228 = scmp.ne.s32.totalorder %s216, %s217
      %p229 = scmp.eq.s32.totalorder %s39, 1
      %p230 = por %p228, %p229
      %p232 = scmp.ne.s32.totalorder %s217, %s231
      %p233 = scmp.eq.s32.totalorder %s39, 0
      %p234 = por %p232, %p233
      %s236 = sadd.s32 %s235, 1
      %p239 = scmp.eq.s32.totalorder %s33, 1
      %p240 = scmp.ne.s32.totalorder %s235, %s237
      %p241 = scmp.eq.s32.totalorder %s33, 0
      %p242 = por %p240, %p241
      %p243 = scmp.ne.s32.totalorder %s235, %s237
      %p244 = scmp.eq.s32.totalorder %s38, 1
      %p245 = por %p243, %p244
      %p246 = scmp.ne.s32.totalorder %s237, %s238
      %p247 = scmp.eq.s32.totalorder %s38, 0
      %p248 = por %p246, %p247
      %p249 = scmp.ne.s32.totalorder %s237, %s238
      %p250 = scmp.eq.s32.totalorder %s39, 1
      %p251 = por %p249, %p250
      %p253 = scmp.ne.s32.totalorder %s238, %s252
      %p254 = scmp.eq.s32.totalorder %s39, 0
      %p255 = por %p253, %p254
      %s257 = sadd.s32 %s256, 1
      %p260 = scmp.eq.s32.totalorder %s33, 1
      %p261 = scmp.ne.s32.totalorder %s256, %s258
      %p262 = scmp.eq.s32.totalorder %s33, 0
      %p263 = por %p261, %p262
      %p264 = scmp.ne.s32.totalorder %s256, %s258
      %p265 = scmp.eq.s32.totalorder %s38, 1
      %p266 = por %p264, %p265
      %p267 = scmp.ne.s32.totalorder %s258, %s259
      %p268 = scmp.eq.s32.totalorder %s38, 0
      %p269 = por %p267, %p268
      %p270 = scmp.ne.s32.totalorder %s258, %s259
      %p271 = scmp.eq.s32.totalorder %s39, 1
      %p272 = por %p270, %p271
      %p274 = scmp.ne.s32.totalorder %s259, %s273
      %p275 = scmp.eq.s32.totalorder %s39, 0
      %p276 = por %p274, %p275
      %s278 = sadd.s32 %s277, 1
      %p281 = scmp.eq.s32.totalorder %s33, 1
      %p282 = scmp.ne.s32.totalorder %s277, %s279
      %p283 = scmp.eq.s32.totalorder %s33, 0
      %p284 = por %p282, %p283
      %p285 = scmp.ne.s32.totalorder %s277, %s279
      %p286 = scmp.eq.s32.totalorder %s38, 1
      %p287 = por %p285, %p286
      %p288 = scmp.ne.s32.totalorder %s279, %s280
      %p289 = scmp.eq.s32.totalorder %s38, 0
      %p290 = por %p288, %p289
      %p291 = scmp.ne.s32.totalorder %s279, %s280
      %p292 = scmp.eq.s32.totalorder %s39, 1
      %p293 = por %p291, %p292
      %p295 = scmp.ne.s32.totalorder %s280, %s294
      %p296 = scmp.eq.s32.totalorder %s39, 0
      %p297 = por %p295, %p296
      %s299 = sadd.s32 %s298, 1
      %p302 = scmp.eq.s32.totalorder %s33, 1
      %p303 = scmp.ne.s32.totalorder %s298, %s300
      %p304 = scmp.eq.s32.totalorder %s33, 0
      %p305 = por %p303, %p304
      %p306 = scmp.ne.s32.totalorder %s298, %s300
      %p307 = scmp.eq.s32.totalorder %s38, 1
      %p308 = por %p306, %p307
      %p309 = scmp.ne.s32.totalorder %s300, %s301
      %p310 = scmp.eq.s32.totalorder %s38, 0
      %p311 = por %p309, %p310
      %p312 = scmp.ne.s32.totalorder %s300, %s301
      %p313 = scmp.eq.s32.totalorder %s39, 1
      %p314 = por %p312, %p313
      %p316 = scmp.ne.s32.totalorder %s301, %s315
      %p317 = scmp.eq.s32.totalorder %s39, 0
      %p318 = por %p316, %p317
      %s320 = sadd.s32 %s319, 1
      %p323 = scmp.eq.s32.totalorder %s33, 1
      %p324 = scmp.ne.s32.totalorder %s319, %s321
      %p325 = scmp.eq.s32.totalorder %s33, 0
      %p326 = por %p324, %p325
      %p327 = scmp.ne.s32.totalorder %s319, %s321
      %p328 = scmp.eq.s32.totalorder %s38, 1
      %p329 = por %p327, %p328
      %p330 = scmp.ne.s32.totalorder %s321, %s322
      %p331 = scmp.eq.s32.totalorder %s38, 0
      %p332 = por %p330, %p331
      %p333 = scmp.ne.s32.totalorder %s321, %s322
      %p334 = scmp.eq.s32.totalorder %s39, 1
      %p335 = por %p333, %p334
      %p337 = scmp.ne.s32.totalorder %s322, %s336
      %p338 = scmp.eq.s32.totalorder %s39, 0
      %p339 = por %p337, %p338
      %s341 = sadd.s32 %s340, 1
      %p344 = scmp.eq.s32.totalorder %s33, 1
      %p345 = scmp.ne.s32.totalorder %s340, %s342
      %p346 = scmp.eq.s32.totalorder %s33, 0
      %p347 = por %p345, %p346
      %p348 = scmp.ne.s32.totalorder %s340, %s342
      %p349 = scmp.eq.s32.totalorder %s38, 1
      %p350 = por %p348, %p349
      %p351 = scmp.ne.s32.totalorder %s342, %s343
      %p352 = scmp.eq.s32.totalorder %s38, 0
      %p353 = por %p351, %p352
      %p354 = scmp.ne.s32.totalorder %s342, %s343
      %p355 = scmp.eq.s32.totalorder %s39, 1
      %p356 = por %p354, %p355
      %p358 = scmp.ne.s32.totalorder %s343, %s357
      %p359 = scmp.eq.s32.totalorder %s39, 0
      %p360 = por %p358, %p359
      %s362 = sadd.s32 %s361, 1
      %p365 = scmp.eq.s32.totalorder %s33, 1
      %p366 = scmp.ne.s32.totalorder %s361, %s363
      %p367 = scmp.eq.s32.totalorder %s33, 0
      %p368 = por %p366, %p367
      %p369 = scmp.ne.s32.totalorder %s361, %s363
      %p370 = scmp.eq.s32.totalorder %s38, 1
      %p371 = por %p369, %p370
      %p372 = scmp.ne.s32.totalorder %s363, %s364
      %p373 = scmp.eq.s32.totalorder %s38, 0
      %p374 = por %p372, %p373
      %p375 = scmp.ne.s32.totalorder %s363, %s364
      %p376 = scmp.eq.s32.totalorder %s39, 1
      %p377 = por %p375, %p376
      %p379 = scmp.ne.s32.totalorder %s364, %s378
      %p380 = scmp.eq.s32.totalorder %s39, 0
      %p381 = por %p379, %p380
      %s383 = sadd.s32 %s382, 1
      %p386 = scmp.eq.s32.totalorder %s33, 1
      %p387 = scmp.ne.s32.totalorder %s382, %s384
      %p388 = scmp.eq.s32.totalorder %s33, 0
      %p389 = por %p387, %p388
      %p390 = scmp.ne.s32.totalorder %s382, %s384
      %p391 = scmp.eq.s32.totalorder %s38, 1
      %p392 = por %p390, %p391
      %p393 = scmp.ne.s32.totalorder %s384, %s385
      %p394 = scmp.eq.s32.totalorder %s38, 0
      %p395 = por %p393, %p394
      %p396 = scmp.ne.s32.totalorder %s384, %s385
      %p397 = scmp.eq.s32.totalorder %s39, 1
      %p398 = por %p396, %p397
      %p400 = scmp.ne.s32.totalorder %s385, %s399
      %p401 = scmp.eq.s32.totalorder %s39, 0
      %p402 = por %p400, %p401
      %s404 = sadd.s32 %s403, 1
      %p407 = scmp.eq.s32.totalorder %s33, 1
      %p408 = scmp.ne.s32.totalorder %s403, %s405
      %p409 = scmp.eq.s32.totalorder %s33, 0
      %p410 = por %p408, %p409
      %p411 = scmp.ne.s32.totalorder %s403, %s405
      %p412 = scmp.eq.s32.totalorder %s38, 1
      %p413 = por %p411, %p412
      %p414 = scmp.ne.s32.totalorder %s405, %s406
      %p415 = scmp.eq.s32.totalorder %s38, 0
      %p416 = por %p414, %p415
      %p417 = scmp.ne.s32.totalorder %s405, %s406
      %p418 = scmp.eq.s32.totalorder %s39, 1
      %p419 = por %p417, %p418
      %p421 = scmp.ne.s32.totalorder %s406, %s420
      %p422 = scmp.eq.s32.totalorder %s39, 0
      %p423 = por %p421, %p422
      %s425 = sadd.s32 %s424, 1
      %p428 = scmp.eq.s32.totalorder %s33, 1
      %p429 = scmp.ne.s32.totalorder %s424, %s426
      %p430 = scmp.eq.s32.totalorder %s33, 0
      %p431 = por %p429, %p430
      %p432 = scmp.ne.s32.totalorder %s424, %s426
      %p433 = scmp.eq.s32.totalorder %s38, 1
      %p434 = por %p432, %p433
      %p435 = scmp.ne.s32.totalorder %s426, %s427
      %p436 = scmp.eq.s32.totalorder %s38, 0
      %p437 = por %p435, %p436
      %p438 = scmp.ne.s32.totalorder %s426, %s427
      %p439 = scmp.eq.s32.totalorder %s39, 1
      %p440 = por %p438, %p439
      %p442 = scmp.ne.s32.totalorder %s427, %s441
      %p443 = scmp.eq.s32.totalorder %s39, 0
      %p444 = por %p442, %p443
      %s446 = sadd.s32 %s445, 1
      %p449 = scmp.eq.s32.totalorder %s33, 1
      %p450 = scmp.ne.s32.totalorder %s445, %s447
      %p451 = scmp.eq.s32.totalorder %s33, 0
      %p452 = por %p450, %p451
      %p453 = scmp.ne.s32.totalorder %s445, %s447
      %p454 = scmp.eq.s32.totalorder %s38, 1
      %p455 = por %p453, %p454
      %p456 = scmp.ne.s32.totalorder %s447, %s448
      %p457 = scmp.eq.s32.totalorder %s38, 0
      %p458 = por %p456, %p457
      %p459 = scmp.ne.s32.totalorder %s447, %s448
      %p460 = scmp.eq.s32.totalorder %s39, 1
      %p461 = por %p459, %p460
      %p463 = scmp.ne.s32.totalorder %s448, %s462
      %p464 = scmp.eq.s32.totalorder %s39, 0
      %p465 = por %p463, %p464
      %s467 = sadd.s32 %s466, 1
      %p470 = scmp.eq.s32.totalorder %s33, 1
      %p471 = scmp.ne.s32.totalorder %s466, %s468
      %p472 = scmp.eq.s32.totalorder %s33, 0
      %p473 = por %p471, %p472
      %p474 = scmp.ne.s32.totalorder %s466, %s468
      %p475 = scmp.eq.s32.totalorder %s38, 1
      %p476 = por %p474, %p475
      %p477 = scmp.ne.s32.totalorder %s468, %s469
      %p478 = scmp.eq.s32.totalorder %s38, 0
      %p479 = por %p477, %p478
      %p480 = scmp.ne.s32.totalorder %s468, %s469
      %p481 = scmp.eq.s32.totalorder %s39, 1
      %p482 = por %p480, %p481
      %p484 = scmp.ne.s32.totalorder %s469, %s483
      %p485 = scmp.eq.s32.totalorder %s39, 0
      %p486 = por %p484, %p485
      %s487 = ssub.s32 %s33, %s40
      %p488 = scmp.eq.s32.totalorder %s487, 0
      %s490 = sadd.s32 %s489, 1
      %s491 = scalar_select %p488, %s489, %s490
      %p494 = pneg %p488
      %p495 = scmp.eq.s32.totalorder %s33, 1
      %p496 = por %p494, %p495
      %p497 = scmp.ne.s32.totalorder %s489, %s492
      %p498 = scmp.eq.s32.totalorder %s33, 0
      %p499 = por %p497, %p498
      %p500 = scmp.ne.s32.totalorder %s489, %s492
      %p501 = scmp.eq.s32.totalorder %s38, 1
      %p502 = por %p500, %p501
      %p503 = scmp.ne.s32.totalorder %s492, %s493
      %p504 = scmp.eq.s32.totalorder %s38, 0
      %p505 = por %p503, %p504
      %p506 = scmp.ne.s32.totalorder %s492, %s493
      %p507 = scmp.eq.s32.totalorder %s39, 1
      %p508 = por %p506, %p507
      %p510 = scmp.ne.s32.totalorder %s493, %s509
      %p511 = scmp.eq.s32.totalorder %s39, 0
      %p512 = por %p510, %p511
      %p513 = scmp.le.s32.totalorder 1, %s33
      %p514 = scmp.lt.s32.totalorder %s33, 3
      %p515 = pnand %p513, %p514
      %p516 = pneg %p515
      // Predicated region
      $region9: #{deeplab_forward.1} parent=5 // pred_check
        _
      $region10: #{deeplab_forward.1} parent=5 // pred_check_branch
        %518 = sbr.rel (%p515) target = $region12
      $region11: #{deeplab_forward.1} parent=5 // pred_region
        %s519 = ssub.s32 %s33, 1
        // Predicated region
        $region13: #{deeplab_forward.1} parent=11 // pred_check
          %p520 = pneg %p80
        $region14: #{deeplab_forward.1} parent=11 // pred_check_branch
          %522 = sbr.rel (%p520) target = $region16
        $region15: #{deeplab_forward.1} parent=11 // pred_region
          _
        $region16: #{deeplab_forward.1} parent=11 // pred_fallthru
          _
        // Predicated region
        $region17: #{deeplab_forward.1} parent=11 // pred_check
          %p523 = pneg %p101
        $region18: #{deeplab_forward.1} parent=11 // pred_check_branch
          %525 = sbr.rel (%p523) target = $region20
        $region19: #{deeplab_forward.1} parent=11 // pred_region
          _
        $region20: #{deeplab_forward.1} parent=11 // pred_fallthru
          _
        // Predicated region
        $region21: #{deeplab_forward.1} parent=11 // pred_check
          %p526 = pneg %p122
        $region22: #{deeplab_forward.1} parent=11 // pred_check_branch
          %528 = sbr.rel (%p526) target = $region24
        $region23: #{deeplab_forward.1} parent=11 // pred_region
          _
        $region24: #{deeplab_forward.1} parent=11 // pred_fallthru
          _
        // Predicated region
        $region25: #{deeplab_forward.1} parent=11 // pred_check
          %p529 = pneg %p143
        $region26: #{deeplab_forward.1} parent=11 // pred_check_branch
          %531 = sbr.rel (%p529) target = $region28
        $region27: #{deeplab_forward.1} parent=11 // pred_region
          _
        $region28: #{deeplab_forward.1} parent=11 // pred_fallthru
          _
        // Predicated region
        $region29: #{deeplab_forward.1} parent=11 // pred_check
          %p532 = pneg %p164
        $region30: #{deeplab_forward.1} parent=11 // pred_check_branch
          %534 = sbr.rel (%p532) target = $region32
        $region31: #{deeplab_forward.1} parent=11 // pred_region
          _
        $region32: #{deeplab_forward.1} parent=11 // pred_fallthru
          _
        // Predicated region
        $region33: #{deeplab_forward.1} parent=11 // pred_check
          %p535 = pneg %p185
        $region34: #{deeplab_forward.1} parent=11 // pred_check_branch
          %537 = sbr.rel (%p535) target = $region36
        $region35: #{deeplab_forward.1} parent=11 // pred_region
          _
        $region36: #{deeplab_forward.1} parent=11 // pred_fallthru
          _
        // Predicated region
        $region37: #{deeplab_forward.1} parent=11 // pred_check
          %p538 = pneg %p206
        $region38: #{deeplab_forward.1} parent=11 // pred_check_branch
          %540 = sbr.rel (%p538) target = $region40
        $region39: #{deeplab_forward.1} parent=11 // pred_region
          _
        $region40: #{deeplab_forward.1} parent=11 // pred_fallthru
          _
        // Predicated region
        $region41: #{deeplab_forward.1} parent=11 // pred_check
          %p541 = pneg %p227
        $region42: #{deeplab_forward.1} parent=11 // pred_check_branch
          %543 = sbr.rel (%p541) target = $region44
        $region43: #{deeplab_forward.1} parent=11 // pred_region
          _
        $region44: #{deeplab_forward.1} parent=11 // pred_fallthru
          _
        // Predicated region
        $region45: #{deeplab_forward.1} parent=11 // pred_check
          %p544 = pneg %p248
        $region46: #{deeplab_forward.1} parent=11 // pred_check_branch
          %546 = sbr.rel (%p544) target = $region48
        $region47: #{deeplab_forward.1} parent=11 // pred_region
          %548 = vsyncadd [#allocation3], 0
          %s549 = sshll.u32 %s9, 4
          %s550 = int_to_ptr.hbm [resolvable:$true] %s549
          %s551 = sshll.u32 [#allocation2], 4
          %s552 = int_to_ptr.vmem [resolvable:$true] %s551
          %557 = dma.hbm_to_vmem [thread:$0]  %s550, 9216, %s552, [#allocation3], 64, 64, 4
        $region48: #{deeplab_forward.1} parent=11 // pred_fallthru
          _
        // Predicated region
        $region49: #{deeplab_forward.1} parent=11 // pred_check
          %p558 = pneg %p269
        $region50: #{deeplab_forward.1} parent=11 // pred_check_branch
          %560 = sbr.rel (%p558) target = $region52
        $region51: #{deeplab_forward.1} parent=11 // pred_region
          %562 = vsyncadd [#allocation5], 0
          %s563 = sshll.u32 %s10, 4
          %s564 = int_to_ptr.hbm [resolvable:$true] %s563
          %s565 = sshll.u32 [#allocation4], 4
          %s566 = int_to_ptr.vmem [resolvable:$true] %s565
          %571 = dma.hbm_to_vmem [thread:$0]  %s564, 9216, %s566, [#allocation5], 64, 64, 4
        $region52: #{deeplab_forward.1} parent=11 // pred_fallthru
          _
        // Predicated region
        $region53: #{deeplab_forward.1} parent=11 // pred_check
          %p572 = pneg %p290
        $region54: #{deeplab_forward.1} parent=11 // pred_check_branch
          %574 = sbr.rel (%p572) target = $region56
        $region55: #{deeplab_forward.1} parent=11 // pred_region
          %576 = vsyncadd [#allocation5], 0
          %s577 = sshll.u32 %s11, 4
          %s578 = int_to_ptr.hbm [resolvable:$true] %s577
          %s579 = sshll.u32 [#allocation6], 4
          %s580 = int_to_ptr.vmem [resolvable:$true] %s579
          %585 = dma.hbm_to_vmem [thread:$0]  %s578, 1024, %s580, [#allocation5], 64, 64, 4
        $region56: #{deeplab_forward.1} parent=11 // pred_fallthru
          _
        // Predicated region
        $region57: #{deeplab_forward.1} parent=11 // pred_check
          %p586 = pneg %p311
        $region58: #{deeplab_forward.1} parent=11 // pred_check_branch
          %588 = sbr.rel (%p586) target = $region60
        $region59: #{deeplab_forward.1} parent=11 // pred_region
          %590 = vsyncadd [#allocation8], 0
          %s591 = sshll.u32 %s12, 4
          %s592 = int_to_ptr.hbm [resolvable:$true] %s591
          %s593 = sshll.u32 [#allocation7], 4
          %s594 = int_to_ptr.vmem [resolvable:$true] %s593
          %599 = dma.hbm_to_vmem [thread:$0]  %s592, 9216, %s594, [#allocation8], 64, 64, 4
        $region60: #{deeplab_forward.1} parent=11 // pred_fallthru
          _
        // Predicated region
        $region61: #{deeplab_forward.1} parent=11 // pred_check
          %p600 = pneg %p332
        $region62: #{deeplab_forward.1} parent=11 // pred_check_branch
          %602 = sbr.rel (%p600) target = $region64
        $region63: #{deeplab_forward.1} parent=11 // pred_region
          %604 = vsyncadd [#allocation8], 0
          %s605 = sshll.u32 %s13, 4
          %s606 = int_to_ptr.hbm [resolvable:$true] %s605
          %s607 = sshll.u32 [#allocation9], 4
          %s608 = int_to_ptr.vmem [resolvable:$true] %s607
          %613 = dma.hbm_to_vmem [thread:$0]  %s606, 9216, %s608, [#allocation8], 64, 64, 4
        $region64: #{deeplab_forward.1} parent=11 // pred_fallthru
          _
        // Predicated region
        $region65: #{deeplab_forward.1} parent=11 // pred_check
          %p614 = pneg %p353
        $region66: #{deeplab_forward.1} parent=11 // pred_check_branch
          %616 = sbr.rel (%p614) target = $region68
        $region67: #{deeplab_forward.1} parent=11 // pred_region
          %618 = vsyncadd [#allocation11], 0
          %s619 = sshll.u32 %s14, 4
          %s620 = int_to_ptr.hbm [resolvable:$true] %s619
          %s621 = sshll.u32 [#allocation10], 4
          %s622 = int_to_ptr.vmem [resolvable:$true] %s621
          %627 = dma.hbm_to_vmem [thread:$0]  %s620, 1024, %s622, [#allocation11], 64, 64, 4
        $region68: #{deeplab_forward.1} parent=11 // pred_fallthru
          _
        // Predicated region
        $region69: #{deeplab_forward.1} parent=11 // pred_check
          %p628 = pneg %p374
        $region70: #{deeplab_forward.1} parent=11 // pred_check_branch
          %630 = sbr.rel (%p628) target = $region72
        $region71: #{deeplab_forward.1} parent=11 // pred_region
          %632 = vsyncadd [#allocation11], 0
          %s633 = sshll.u32 %s15, 4
          %s634 = int_to_ptr.hbm [resolvable:$true] %s633
          %s635 = sshll.u32 [#allocation12], 4
          %s636 = int_to_ptr.vmem [resolvable:$true] %s635
          %641 = dma.hbm_to_vmem [thread:$0]  %s634, 4096, %s636, [#allocation11], 64, 64, 4
        $region72: #{deeplab_forward.1} parent=11 // pred_fallthru
          _
        // Predicated region
        $region73: #{deeplab_forward.1} parent=11 // pred_check
          %p642 = pneg %p395
        $region74: #{deeplab_forward.1} parent=11 // pred_check_branch
          %644 = sbr.rel (%p642) target = $region76
        $region75: #{deeplab_forward.1} parent=11 // pred_region
          %646 = vsyncadd [#allocation14], 0
          %s647 = sshll.u32 %s16, 4
          %s648 = int_to_ptr.hbm [resolvable:$true] %s647
          %s649 = sshll.u32 [#allocation13], 4
          %s650 = int_to_ptr.vmem [resolvable:$true] %s649
          %655 = dma.hbm_to_vmem [thread:$0]  %s648, 1024, %s650, [#allocation14], 64, 64, 4
        $region76: #{deeplab_forward.1} parent=11 // pred_fallthru
          _
        // Predicated region
        $region77: #{deeplab_forward.1} parent=11 // pred_check
          %p656 = pneg %p416
        $region78: #{deeplab_forward.1} parent=11 // pred_check_branch
          %658 = sbr.rel (%p656) target = $region80
        $region79: #{deeplab_forward.1} parent=11 // pred_region
          %660 = vsyncadd [#allocation14], 0
          %s661 = sshll.u32 %s17, 4
          %s662 = int_to_ptr.hbm [resolvable:$true] %s661
          %s663 = sshll.u32 [#allocation15], 4
          %s664 = int_to_ptr.vmem [resolvable:$true] %s663
          %669 = dma.hbm_to_vmem [thread:$0]  %s662, 9216, %s664, [#allocation14], 64, 64, 4
        $region80: #{deeplab_forward.1} parent=11 // pred_fallthru
          _
        // Predicated region
        $region81: #{deeplab_forward.1} parent=11 // pred_check
          %p670 = pneg %p437
        $region82: #{deeplab_forward.1} parent=11 // pred_check_branch
          %672 = sbr.rel (%p670) target = $region84
        $region83: #{deeplab_forward.1} parent=11 // pred_region
          %674 = vsyncadd [#allocation17], 0
          %s675 = sshll.u32 %s18, 4
          %s676 = int_to_ptr.hbm [resolvable:$true] %s675
          %s677 = sshll.u32 [#allocation16], 4
          %s678 = int_to_ptr.vmem [resolvable:$true] %s677
          %683 = dma.hbm_to_vmem [thread:$0]  %s676, 9216, %s678, [#allocation17], 64, 64, 4
        $region84: #{deeplab_forward.1} parent=11 // pred_fallthru
          _
        // Predicated region
        $region85: #{deeplab_forward.1} parent=11 // pred_check
          %p684 = pneg %p458
        $region86: #{deeplab_forward.1} parent=11 // pred_check_branch
          %686 = sbr.rel (%p684) target = $region88
        $region87: #{deeplab_forward.1} parent=11 // pred_region
          %688 = vsyncadd [#allocation17], 0
          %s689 = sshll.u32 %s19, 4
          %s690 = int_to_ptr.hbm [resolvable:$true] %s689
          %s691 = sshll.u32 [#allocation18], 4
          %s692 = int_to_ptr.vmem [resolvable:$true] %s691
          %697 = dma.hbm_to_vmem [thread:$0]  %s690, 1024, %s692, [#allocation17], 64, 64, 4
        $region88: #{deeplab_forward.1} parent=11 // pred_fallthru
          _
        // Predicated region
        $region89: #{deeplab_forward.1} parent=11 // pred_check
          %p698 = pneg %p479
        $region90: #{deeplab_forward.1} parent=11 // pred_check_branch
          %700 = sbr.rel (%p698) target = $region92
        $region91: #{deeplab_forward.1} parent=11 // pred_region
          _
        $region92: #{deeplab_forward.1} parent=11 // pred_fallthru
          _
      $region12: #{deeplab_forward.1} parent=5 // pred_fallthru
        _
      %p701 = scmp.lt.s32.totalorder %s33, 2
      // Predicated region
      $region93: #{deeplab_forward.1} parent=5 // pred_check
        %p702 = pneg %p701
      $region94: #{deeplab_forward.1} parent=5 // pred_check_branch
        %704 = sbr.rel (%p702) target = $region96
      $region95: #{deeplab_forward.1} parent=5 // pred_region
        // Predicated region
        $region97: #{deeplab_forward.1} parent=95 // pred_check
          %p705 = pneg %p53
        $region98: #{deeplab_forward.1} parent=95 // pred_check_branch
          %707 = sbr.rel (%p705) target = $region100
        $region99: #{deeplab_forward.1} parent=95 // pred_region
          %p708 = scmp.lt.s32.totalorder %s33, 1
          %s709 = scalar_select %p708, %s33, 1
          %s710 = smul.addr %s709, 32
          %s711 = smul.addr %s710, 4
          %s712 = scalar_lea.vmem %s0, %s711
        $region100: #{deeplab_forward.1} parent=95 // pred_fallthru
          _
      $region96: #{deeplab_forward.1} parent=5 // pred_fallthru
        _
      %p713 = scmp.le.s32.totalorder 1, %s33
      %p714 = scmp.lt.s32.totalorder %s33, 3
      %p715 = pnand %p713, %p714
      %p716 = pneg %p715
      // Predicated region
      $region101: #{deeplab_forward.1} parent=5 // pred_check
        _
      $region102: #{deeplab_forward.1} parent=5 // pred_check_branch
        %718 = sbr.rel (%p715) target = $region104
      $region103: #{deeplab_forward.1} parent=5 // pred_region
        %s719 = ssub.s32 %s33, 1
        // Predicated region
        $region105: #{deeplab_forward.1} parent=103 // pred_check
          %p720 = pneg %p248
        $region106: #{deeplab_forward.1} parent=103 // pred_check_branch
          %722 = sbr.rel (%p720) target = $region108
        $region107: #{deeplab_forward.1} parent=103 // pred_region
          %724 = dma.done [#allocation3], 9216
        $region108: #{deeplab_forward.1} parent=103 // pred_fallthru
          _
        // Predicated region
        $region109: #{deeplab_forward.1} parent=103 // pred_check
          %p725 = pneg %p269
        $region110: #{deeplab_forward.1} parent=103 // pred_check_branch
          %727 = sbr.rel (%p725) target = $region112
        $region111: #{deeplab_forward.1} parent=103 // pred_region
          %729 = dma.done [#allocation5], 9216
        $region112: #{deeplab_forward.1} parent=103 // pred_fallthru
          _
        // Predicated region
        $region113: #{deeplab_forward.1} parent=103 // pred_check
          %p730 = pneg %p290
        $region114: #{deeplab_forward.1} parent=103 // pred_check_branch
          %732 = sbr.rel (%p730) target = $region116
        $region115: #{deeplab_forward.1} parent=103 // pred_region
          %734 = dma.done [#allocation5], 1024
        $region116: #{deeplab_forward.1} parent=103 // pred_fallthru
          _
        // Predicated region
        $region117: #{deeplab_forward.1} parent=103 // pred_check
          %p735 = pneg %p311
        $region118: #{deeplab_forward.1} parent=103 // pred_check_branch
          %737 = sbr.rel (%p735) target = $region120
        $region119: #{deeplab_forward.1} parent=103 // pred_region
          %739 = dma.done [#allocation8], 9216
        $region120: #{deeplab_forward.1} parent=103 // pred_fallthru
          _
        // Predicated region
        $region121: #{deeplab_forward.1} parent=103 // pred_check
          %p740 = pneg %p332
        $region122: #{deeplab_forward.1} parent=103 // pred_check_branch
          %742 = sbr.rel (%p740) target = $region124
        $region123: #{deeplab_forward.1} parent=103 // pred_region
          %744 = dma.done [#allocation8], 9216
        $region124: #{deeplab_forward.1} parent=103 // pred_fallthru
          _
        // Predicated region
        $region125: #{deeplab_forward.1} parent=103 // pred_check
          %p745 = pneg %p353
        $region126: #{deeplab_forward.1} parent=103 // pred_check_branch
          %747 = sbr.rel (%p745) target = $region128
        $region127: #{deeplab_forward.1} parent=103 // pred_region
          %749 = dma.done [#allocation11], 1024
        $region128: #{deeplab_forward.1} parent=103 // pred_fallthru
          _
        // Predicated region
        $region129: #{deeplab_forward.1} parent=103 // pred_check
          %p750 = pneg %p374
        $region130: #{deeplab_forward.1} parent=103 // pred_check_branch
          %752 = sbr.rel (%p750) target = $region132
        $region131: #{deeplab_forward.1} parent=103 // pred_region
          %754 = dma.done [#allocation11], 4096
        $region132: #{deeplab_forward.1} parent=103 // pred_fallthru
          _
        // Predicated region
        $region133: #{deeplab_forward.1} parent=103 // pred_check
          %p755 = pneg %p395
        $region134: #{deeplab_forward.1} parent=103 // pred_check_branch
          %757 = sbr.rel (%p755) target = $region136
        $region135: #{deeplab_forward.1} parent=103 // pred_region
          %759 = dma.done [#allocation14], 1024
        $region136: #{deeplab_forward.1} parent=103 // pred_fallthru
          _
        // Predicated region
        $region137: #{deeplab_forward.1} parent=103 // pred_check
          %p760 = pneg %p416
        $region138: #{deeplab_forward.1} parent=103 // pred_check_branch
          %762 = sbr.rel (%p760) target = $region140
        $region139: #{deeplab_forward.1} parent=103 // pred_region
          %764 = dma.done [#allocation14], 9216
        $region140: #{deeplab_forward.1} parent=103 // pred_fallthru
          _
        // Predicated region
        $region141: #{deeplab_forward.1} parent=103 // pred_check
          %p765 = pneg %p437
        $region142: #{deeplab_forward.1} parent=103 // pred_check_branch
          %767 = sbr.rel (%p765) target = $region144
        $region143: #{deeplab_forward.1} parent=103 // pred_region
          %769 = dma.done [#allocation17], 9216
        $region144: #{deeplab_forward.1} parent=103 // pred_fallthru
          _
        // Predicated region
        $region145: #{deeplab_forward.1} parent=103 // pred_check
          %p770 = pneg %p458
        $region146: #{deeplab_forward.1} parent=103 // pred_check_branch
          %772 = sbr.rel (%p770) target = $region148
        $region147: #{deeplab_forward.1} parent=103 // pred_region
          %774 = dma.done [#allocation17], 1024
        $region148: #{deeplab_forward.1} parent=103 // pred_fallthru
          _
        %p775 = scmp.lt.s32.totalorder %s38, 1
        %s776 = scalar_select %p775, %s38, 1
        %s777 = smul.addr %s776, 32
        %s778 = smul.addr %s777, 4
        %s779 = scalar_lea.vmem %s0, %s778
        %p780 = pneg %p59
        %p781 = pneg %p56
        %p782 = pneg %p80
        %p783 = pneg %p77
        %p784 = pneg %p101
        %p785 = pneg %p98
        %p786 = pneg %p122
        %p787 = pneg %p119
        %p788 = pneg %p143
        %p789 = pneg %p140
        %p790 = pneg %p164
        %p791 = pneg %p161
        %p792 = pneg %p185
        %p793 = pneg %p182
        %p794 = pneg %p206
        %p795 = pneg %p203
        %p796 = pneg %p227
        %p797 = pneg %p224
        %p798 = pneg %p248
        %p799 = pneg %p245
        %p800 = pneg %p269
        %p801 = pneg %p266
        %p802 = pneg %p290
        %p803 = pneg %p287
        %p804 = pneg %p311
        %p805 = pneg %p308
        %p806 = pneg %p332
        %p807 = pneg %p329
        %p808 = pneg %p353
        %p809 = pneg %p350
        %p810 = pneg %p374
        %p811 = pneg %p371
        %p812 = pneg %p395
        %p813 = pneg %p392
        %p814 = pneg %p416
        %p815 = pneg %p413
        %p816 = pneg %p437
        %p817 = pneg %p434
        %p818 = pneg %p458
        %p819 = pneg %p455
        %p820 = pneg %p479
        %p821 = pneg %p476
        %p822 = pneg %p505
        %p823 = pneg %p502
        %p824 = scmp.lt.s32.totalorder %s38, 1
        %s825 = scalar_select %p824, %s38, 1
        %s826 = smul.addr %s825, 32
        %s827 = smul.addr %s826, 8
        %s828 = scalar_lea.vmem %s21, %s827
        %p829 = scmp.lt.s32.totalorder %s38, 1
        %s830 = scalar_select %p829, %s38, 1
        %s831 = smul.addr %s830, 32
        %s832 = smul.addr %s831, 4
        %s833 = scalar_lea.vmem %s0, %s832
        %p834 = scmp.lt.s32.totalorder %s38, 1
        %s835 = scalar_select %p834, %s38, 1
        %s836 = smul.addr %s835, 32
        %s837 = smul.addr %s836, 8
        %s838 = scalar_lea.vmem %s21, %s837
        %v840 = vld [vmem:[%s20] sm:$0xff]
        %v841 = vld [vmem:[%s20 + $0x8] sm:$0x3]
        %v842 = vld [vmem:[%s833] sm:$0xf]
        %v843 = vld [vmem:[%s833 + $0x4] sm:$0xf]
        %v844 = vld [vmem:[%s833 + $0x8] sm:$0xf]
        %v845 = vld [vmem:[%s833 + $0xc] sm:$0xf]
        %v846 = vld [vmem:[%s833 + $0x10] sm:$0xf]
        %v847 = vld [vmem:[%s833 + $0x14] sm:$0xf]
        %v848 = vld [vmem:[%s833 + $0x18] sm:$0xf]
        %v849 = vld [vmem:[%s833 + $0x1c] sm:$0xf]
        %v850 = vld [vmem:[%s833 + $0x20] sm:$0xf]
        %v851 = vld [vmem:[%s833 + $0x24] sm:$0xf]
        %v852 = vld [vmem:[%s833 + $0x28] sm:$0xf]
        %v853 = vld [vmem:[%s833 + $0x2c] sm:$0xf]
        %v854 = vld [vmem:[%s833 + $0x30] sm:$0xf]
        %v855 = vld [vmem:[%s833 + $0x34] sm:$0xf]
        %v856 = vld [vmem:[%s833 + $0x38] sm:$0xf]
        %v857 = vld [vmem:[%s833 + $0x3c] sm:$0xf]
        %v858 = vld [vmem:[%s833 + $0x40] sm:$0xf]
        %v859 = vld [vmem:[%s833 + $0x44] sm:$0xf]
        %v860 = vld [vmem:[%s833 + $0x48] sm:$0xf]
        %v861 = vld [vmem:[%s833 + $0x4c] sm:$0xf]
        %v862 = vld [vmem:[%s833 + $0x50] sm:$0xf]
        %v863 = vld [vmem:[%s833 + $0x54] sm:$0xf]
        %v864 = vld [vmem:[%s833 + $0x58] sm:$0xf]
        %v865 = vld [vmem:[%s833 + $0x5c] sm:$0xf]
        %v866 = vld [vmem:[%s833 + $0x60] sm:$0xf]
        %v867 = vld [vmem:[%s833 + $0x64] sm:$0xf]
        %v868 = vld [vmem:[%s833 + $0x68] sm:$0xf]
        %v869 = vld [vmem:[%s833 + $0x6c] sm:$0xf]
        %v870 = vld [vmem:[%s833 + $0x70] sm:$0xf]
        %v871 = vld [vmem:[%s833 + $0x74] sm:$0xf]
        %v872 = vld [vmem:[%s833 + $0x78] sm:$0xf]
        %v873 = vld [vmem:[%s833 + $0x7c] sm:$0xf]
        %v874 = vld [vmem:[%s1] sm:$0xff]
        %v875 = vld [vmem:[%s1 + $0x8] sm:$0xff]
        %v876 = vld [vmem:[%s1 + $0x10] sm:$0xff]
        %v877 = vld [vmem:[%s1 + $0x18] sm:$0xff]
        %v878 = vld [vmem:[%s1 + $0x20] sm:$0xff]
        %v879 = vld [vmem:[%s1 + $0x28] sm:$0xff]
        %v880 = vld [vmem:[%s1 + $0x30] sm:$0xff]
        %v881 = vld [vmem:[%s1 + $0x38] sm:$0xff]
        %v890 = vunpack.c.l.b16 %v874
        %v891 = vunpack.c.h.b16 %v874
        %v892 = vunpack.c.l.b16 %v875
        %v893 = vunpack.c.h.b16 %v875
        %v894 = vunpack.c.l.b16 %v876
        %v895 = vunpack.c.h.b16 %v876
        %v896 = vunpack.c.l.b16 %v877
        %v897 = vunpack.c.h.b16 %v877
        %v898 = vunpack.c.l.b16 %v878
        %v899 = vunpack.c.h.b16 %v878
        %v900 = vunpack.c.l.b16 %v879
        %v901 = vunpack.c.h.b16 %v879
        %v902 = vunpack.c.l.b16 %v880
        %v903 = vunpack.c.h.b16 %v880
        %v904 = vunpack.c.l.b16 %v881
        %v905 = vunpack.c.h.b16 %v881
        %v906 = vpack.c.b16 %v892, %v890
        %v907 = vpack.c.b16 %v893, %v891
        %v908 = vpack.c.b16 %v896, %v894
        %v909 = vpack.c.b16 %v897, %v895
        %v910 = vpack.c.b16 %v900, %v898
        %v911 = vpack.c.b16 %v901, %v899
        %v912 = vpack.c.b16 %v904, %v902
        %v913 = vpack.c.b16 %v905, %v903
        %v954 = vunpack.c.l.b16 %v842
        %v955 = vunpack.c.l.b16 %v843
        %v956 = vunpack.c.l.b16 %v844
        %v957 = vunpack.c.l.b16 %v845
        %v958 = vunpack.c.l.b16 %v846
        %v959 = vunpack.c.l.b16 %v847
        %v960 = vunpack.c.l.b16 %v848
        %v961 = vunpack.c.l.b16 %v849
        %v962 = vunpack.c.l.b16 %v850
        %v963 = vunpack.c.l.b16 %v851
        %v964 = vunpack.c.l.b16 %v852
        %v965 = vunpack.c.l.b16 %v853
        %v966 = vunpack.c.l.b16 %v854
        %v967 = vunpack.c.l.b16 %v855
        %v968 = vunpack.c.l.b16 %v856
        %v969 = vunpack.c.l.b16 %v857
        %v970 = vunpack.c.l.b16 %v858
        %v971 = vunpack.c.l.b16 %v859
        %v972 = vunpack.c.l.b16 %v860
        %v973 = vunpack.c.l.b16 %v861
        %v974 = vunpack.c.l.b16 %v862
        %v975 = vunpack.c.l.b16 %v863
        %v976 = vunpack.c.l.b16 %v864
        %v977 = vunpack.c.l.b16 %v865
        %v978 = vunpack.c.l.b16 %v866
        %v979 = vunpack.c.l.b16 %v867
        %v980 = vunpack.c.l.b16 %v868
        %v981 = vunpack.c.l.b16 %v869
        %v982 = vunpack.c.l.b16 %v870
        %v983 = vunpack.c.l.b16 %v871
        %v984 = vunpack.c.l.b16 %v872
        %v985 = vunpack.c.l.b16 %v873
        %v986 = vpack.c.b16 %v955, %v954
        %v987 = vpack.c.b16 %v957, %v956
        %v988 = vpack.c.b16 %v959, %v958
        %v989 = vpack.c.b16 %v961, %v960
        %v990 = vpack.c.b16 %v963, %v962
        %v991 = vpack.c.b16 %v965, %v964
        %v992 = vpack.c.b16 %v967, %v966
        %v993 = vpack.c.b16 %v969, %v968
        %v994 = vpack.c.b16 %v971, %v970
        %v995 = vpack.c.b16 %v973, %v972
        %v996 = vpack.c.b16 %v975, %v974
        %v997 = vpack.c.b16 %v977, %v976
        %v998 = vpack.c.b16 %v979, %v978
        %v999 = vpack.c.b16 %v981, %v980
        %v1000 = vpack.c.b16 %v983, %v982
        %v1001 = vpack.c.b16 %v985, %v984
        %1018 = vmatpush.bf16.msra.mxu0 %v993
        %1019 = vmatpush.bf16.msra.mxu0 %v992
        %1020 = vmatpush.bf16.msra.mxu0 %v991
        %1021 = vmatpush.bf16.msra.mxu0 %v990
        %1022 = vmatpush.bf16.msra.mxu0 %v989
        %1023 = vmatpush.bf16.msra.mxu0 %v988
        %1024 = vmatpush.bf16.msra.mxu0 %v987
        %1025 = vmatpush.bf16.msra.mxu0 %v986
        %1026 = vmatmul.bf16.gmra.mxu0 %v906
        %v1027 = vpop.f32.mrf.mxu0
        %v1028 = vadd.f32 0.0, %v1027
        %v1029 = vpop.f32.mrf.mxu0
        %v1030 = vadd.f32 0.0, %v1029
        %1031 = vmatmul.bf16.gmra.mxu0 %v908
        %v1032 = vpop.f32.mrf.mxu0
        %v1033 = vadd.f32 0.0, %v1032
        %v1034 = vpop.f32.mrf.mxu0
        %v1035 = vadd.f32 0.0, %v1034
        %1036 = vmatmul.bf16.gmra.mxu0 %v910
        %v1037 = vpop.f32.mrf.mxu0
        %v1038 = vadd.f32 0.0, %v1037
        %v1039 = vpop.f32.mrf.mxu0
        %v1040 = vadd.f32 0.0, %v1039
        %1041 = vmatmul.bf16.gmra.mxu0 %v912
        %v1042 = vpop.f32.mrf.mxu0
        %v1043 = vadd.f32 0.0, %v1042
        %v1044 = vpop.f32.mrf.mxu0
        %v1045 = vadd.f32 0.0, %v1044
        %1046 = vdwg.mxu0
        %1047 = vmatpush.bf16.msra.mxu0 %v1001
        %1048 = vmatpush.bf16.msra.mxu0 %v1000
        %1049 = vmatpush.bf16.msra.mxu0 %v999
        %1050 = vmatpush.bf16.msra.mxu0 %v998
        %1051 = vmatpush.bf16.msra.mxu0 %v997
        %1052 = vmatpush.bf16.msra.mxu0 %v996
        %1053 = vmatpush.bf16.msra.mxu0 %v995
        %1054 = vmatpush.bf16.msra.mxu0 %v994
        %1055 = vmatmul.bf16.gmra.mxu0 %v907
        %v1056 = vpop.f32.mrf.mxu0
        %v1057 = vadd.f32 %v1028, %v1056
        %v1058 = vpop.f32.mrf.mxu0
        %v1059 = vadd.f32 %v1030, %v1058
        %1060 = vmatmul.bf16.gmra.mxu0 %v909
        %v1061 = vpop.f32.mrf.mxu0
        %v1062 = vadd.f32 %v1033, %v1061
        %v1063 = vpop.f32.mrf.mxu0
        %v1064 = vadd.f32 %v1035, %v1063
        %1065 = vmatmul.bf16.gmra.mxu0 %v911
        %v1066 = vpop.f32.mrf.mxu0
        %v1067 = vadd.f32 %v1038, %v1066
        %v1068 = vpop.f32.mrf.mxu0
        %v1069 = vadd.f32 %v1040, %v1068
        %1070 = vmatmul.bf16.gmra.mxu0 %v913
        %v1071 = vpop.f32.mrf.mxu0
        %v1072 = vadd.f32 %v1043, %v1071
        %v1073 = vpop.f32.mrf.mxu0
        %v1074 = vadd.f32 %v1045, %v1073
        %1075 = vdwg.mxu0
        %v1076 = vpack.c.bf16 %v1059, %v1057
        %v1077 = vpack.c.bf16 %v1064, %v1062
        %v1078 = vpack.c.bf16 %v1069, %v1067
        %v1079 = vpack.c.bf16 %v1074, %v1072
        %v1080 = vld [vmem:[#allocation2] sm:$0xf]
        %v1081 = vld [vmem:[#allocation2 + $0x4] sm:$0xf]
        %v1082 = vld [vmem:[#allocation2 + $0x8] sm:$0xf]
        %v1083 = vld [vmem:[#allocation2 + $0xc] sm:$0xf]
        %v1084 = vld [vmem:[#allocation2 + $0x10] sm:$0xf]
        %v1085 = vld [vmem:[#allocation2 + $0x14] sm:$0xf]
        %v1086 = vld [vmem:[#allocation2 + $0x18] sm:$0xf]
        %v1087 = vld [vmem:[#allocation2 + $0x1c] sm:$0xf]
        %v1088 = vld [vmem:[#allocation2 + $0x20] sm:$0xf]
        %v1089 = vld [vmem:[#allocation2 + $0x24] sm:$0xf]
        %v1090 = vld [vmem:[#allocation2 + $0x28] sm:$0xf]
        %v1091 = vld [vmem:[#allocation2 + $0x2c] sm:$0xf]
        %v1092 = vld [vmem:[#allocation2 + $0x30] sm:$0xf]
        %v1093 = vld [vmem:[#allocation2 + $0x34] sm:$0xf]
        %v1094 = vld [vmem:[#allocation2 + $0x38] sm:$0xf]
        %v1095 = vld [vmem:[#allocation2 + $0x3c] sm:$0xf]
        %s1096 = scalar_lea.vmem %s1, 64
        %v1097 = vld [vmem:[%s1096] sm:$0xff]
        %v1098 = vld [vmem:[%s1096 + $0x8] sm:$0xff]
        %v1099 = vld [vmem:[%s1096 + $0x10] sm:$0xff]
        %v1100 = vld [vmem:[%s1096 + $0x18] sm:$0xff]
        %v1101 = vld [vmem:[%s1096 + $0x20] sm:$0xff]
        %v1102 = vld [vmem:[%s1096 + $0x28] sm:$0xff]
        %v1103 = vld [vmem:[%s1096 + $0x30] sm:$0xff]
        %v1104 = vld [vmem:[%s1096 + $0x38] sm:$0xff]
        %v1113 = vunpack.c.l.b16 %v1097
        %v1114 = vunpack.c.h.b16 %v1097
        %v1115 = vunpack.c.l.b16 %v1098
        %v1116 = vunpack.c.h.b16 %v1098
        %v1117 = vunpack.c.l.b16 %v1099
        %v1118 = vunpack.c.h.b16 %v1099
        %v1119 = vunpack.c.l.b16 %v1100
        %v1120 = vunpack.c.h.b16 %v1100
        %v1121 = vunpack.c.l.b16 %v1101
        %v1122 = vunpack.c.h.b16 %v1101
        %v1123 = vunpack.c.l.b16 %v1102
        %v1124 = vunpack.c.h.b16 %v1102
        %v1125 = vunpack.c.l.b16 %v1103
        %v1126 = vunpack.c.h.b16 %v1103
        %v1127 = vunpack.c.l.b16 %v1104
        %v1128 = vunpack.c.h.b16 %v1104
        %v1129 = vpack.c.b16 %v1115, %v1113
        %v1130 = vpack.c.b16 %v1116, %v1114
        %v1131 = vpack.c.b16 %v1119, %v1117
        %v1132 = vpack.c.b16 %v1120, %v1118
        %v1133 = vpack.c.b16 %v1123, %v1121
        %v1134 = vpack.c.b16 %v1124, %v1122
        %v1135 = vpack.c.b16 %v1127, %v1125
        %v1136 = vpack.c.b16 %v1128, %v1126
        %1145 = vmatpush.bf16.msra.mxu0 %v993
        %1146 = vmatpush.bf16.msra.mxu0 %v992
        %1147 = vmatpush.bf16.msra.mxu0 %v991
        %1148 = vmatpush.bf16.msra.mxu0 %v990
        %1149 = vmatpush.bf16.msra.mxu0 %v989
        %1150 = vmatpush.bf16.msra.mxu0 %v988
        %1151 = vmatpush.bf16.msra.mxu0 %v987
        %1152 = vmatpush.bf16.msra.mxu0 %v986
        %1153 = vmatmul.bf16.gmra.mxu0 %v1129
        %v1154 = vpop.f32.mrf.mxu0
        %v1155 = vadd.f32 0.0, %v1154
        %v1156 = vpop.f32.mrf.mxu0
        %v1157 = vadd.f32 0.0, %v1156
        %1158 = vmatmul.bf16.gmra.mxu0 %v1131
        %v1159 = vpop.f32.mrf.mxu0
        %v1160 = vadd.f32 0.0, %v1159
        %v1161 = vpop.f32.mrf.mxu0
        %v1162 = vadd.f32 0.0, %v1161
        %1163 = vmatmul.bf16.gmra.mxu0 %v1133
        %v1164 = vpop.f32.mrf.mxu0
        %v1165 = vadd.f32 0.0, %v1164
        %v1166 = vpop.f32.mrf.mxu0
        %v1167 = vadd.f32 0.0, %v1166
        %1168 = vmatmul.bf16.gmra.mxu0 %v1135
        %v1169 = vpop.f32.mrf.mxu0
        %v1170 = vadd.f32 0.0, %v1169
        %v1171 = vpop.f32.mrf.mxu0
        %v1172 = vadd.f32 0.0, %v1171
        %1173 = vdwg.mxu0
        %1174 = vmatpush.bf16.msra.mxu0 %v1001
        %1175 = vmatpush.bf16.msra.mxu0 %v1000
        %1176 = vmatpush.bf16.msra.mxu0 %v999
        %1177 = vmatpush.bf16.msra.mxu0 %v998
        %1178 = vmatpush.bf16.msra.mxu0 %v997
        %1179 = vmatpush.bf16.msra.mxu0 %v996
        %1180 = vmatpush.bf16.msra.mxu0 %v995
        %1181 = vmatpush.bf16.msra.mxu0 %v994
        %1182 = vmatmul.bf16.gmra.mxu0 %v1130
        %v1183 = vpop.f32.mrf.mxu0
        %v1184 = vadd.f32 %v1155, %v1183
        %v1185 = vpop.f32.mrf.mxu0
        %v1186 = vadd.f32 %v1157, %v1185
        %1187 = vmatmul.bf16.gmra.mxu0 %v1132
        %v1188 = vpop.f32.mrf.mxu0
        %v1189 = vadd.f32 %v1160, %v1188
        %v1190 = vpop.f32.mrf.mxu0
        %v1191 = vadd.f32 %v1162, %v1190
        %1192 = vmatmul.bf16.gmra.mxu0 %v1134
        %v1193 = vpop.f32.mrf.mxu0
        %v1194 = vadd.f32 %v1165, %v1193
        %v1195 = vpop.f32.mrf.mxu0
        %v1196 = vadd.f32 %v1167, %v1195
        %1197 = vmatmul.bf16.gmra.mxu0 %v1136
        %v1198 = vpop.f32.mrf.mxu0
        %v1199 = vadd.f32 %v1170, %v1198
        %v1200 = vpop.f32.mrf.mxu0
        %v1201 = vadd.f32 %v1172, %v1200
        %1202 = vdwg.mxu0
        %v1203 = vpack.c.bf16 %v1186, %v1184
        %v1204 = vpack.c.bf16 %v1191, %v1189
        %v1205 = vpack.c.bf16 %v1196, %v1194
        %v1206 = vpack.c.bf16 %v1201, %v1199
        %s1207 = scalar_lea.vmem [#allocation2], 64
        %v1208 = vld [vmem:[%s1207] sm:$0xf]
        %v1209 = vld [vmem:[%s1207 + $0x4] sm:$0xf]
        %v1210 = vld [vmem:[%s1207 + $0x8] sm:$0xf]
        %v1211 = vld [vmem:[%s1207 + $0xc] sm:$0xf]
        %v1212 = vld [vmem:[%s1207 + $0x10] sm:$0xf]
        %v1213 = vld [vmem:[%s1207 + $0x14] sm:$0xf]
        %v1214 = vld [vmem:[%s1207 + $0x18] sm:$0xf]
        %v1215 = vld [vmem:[%s1207 + $0x1c] sm:$0xf]
        %v1216 = vld [vmem:[%s1207 + $0x20] sm:$0xf]
        %v1217 = vld [vmem:[%s1207 + $0x24] sm:$0xf]
        %v1218 = vld [vmem:[%s1207 + $0x28] sm:$0xf]
        %v1219 = vld [vmem:[%s1207 + $0x2c] sm:$0xf]
        %v1220 = vld [vmem:[%s1207 + $0x30] sm:$0xf]
        %v1221 = vld [vmem:[%s1207 + $0x34] sm:$0xf]
        %v1222 = vld [vmem:[%s1207 + $0x38] sm:$0xf]
        %v1223 = vld [vmem:[%s1207 + $0x3c] sm:$0xf]
        %v1240 = vunpack.c.l.b16 %v1208
        %v1241 = vunpack.c.l.b16 %v1209
        %v1242 = vunpack.c.l.b16 %v1210
        %v1243 = vunpack.c.l.b16 %v1211
        %v1244 = vunpack.c.l.b16 %v1212
        %v1245 = vunpack.c.l.b16 %v1213
        %v1246 = vunpack.c.l.b16 %v1214
        %v1247 = vunpack.c.l.b16 %v1215
        %v1248 = vunpack.c.l.b16 %v1216
        %v1249 = vunpack.c.l.b16 %v1217
        %v1250 = vunpack.c.l.b16 %v1218
        %v1251 = vunpack.c.l.b16 %v1219
        %v1252 = vunpack.c.l.b16 %v1220
        %v1253 = vunpack.c.l.b16 %v1221
        %v1254 = vunpack.c.l.b16 %v1222
        %v1255 = vunpack.c.l.b16 %v1223
        %v1256 = vpack.c.b16 %v1241, %v1240
        %v1257 = vpack.c.b16 %v1243, %v1242
        %v1258 = vpack.c.b16 %v1245, %v1244
        %v1259 = vpack.c.b16 %v1247, %v1246
        %v1260 = vpack.c.b16 %v1249, %v1248
        %v1261 = vpack.c.b16 %v1251, %v1250
        %v1262 = vpack.c.b16 %v1253, %v1252
        %v1263 = vpack.c.b16 %v1255, %v1254
        %1272 = vmatpush.bf16.msra.mxu0 %v1263
        %1273 = vmatpush.bf16.msra.mxu0 %v1262
        %1274 = vmatpush.bf16.msra.mxu0 %v1261
        %1275 = vmatpush.bf16.msra.mxu0 %v1260
        %1276 = vmatpush.bf16.msra.mxu0 %v1259
        %1277 = vmatpush.bf16.msra.mxu0 %v1258
        %1278 = vmatpush.bf16.msra.mxu0 %v1257
        %1279 = vmatpush.bf16.msra.mxu0 %v1256
        %1280 = vmatmul.bf16.gmra.mxu0 %v1203
        %v1281 = vpop.f32.mrf.mxu0
        %v1282 = vadd.f32 0.0, %v1281
        %v1283 = vpop.f32.mrf.mxu0
        %v1284 = vadd.f32 0.0, %v1283
        %1285 = vmatmul.bf16.gmra.mxu0 %v1204
        %v1286 = vpop.f32.mrf.mxu0
        %v1287 = vadd.f32 0.0, %v1286
        %v1288 = vpop.f32.mrf.mxu0
        %v1289 = vadd.f32 0.0, %v1288
        %1290 = vmatmul.bf16.gmra.mxu0 %v1205
        %v1291 = vpop.f32.mrf.mxu0
        %v1292 = vadd.f32 0.0, %v1291
        %v1293 = vpop.f32.mrf.mxu0
        %v1294 = vadd.f32 0.0, %v1293
        %1295 = vmatmul.bf16.gmra.mxu0 %v1206
        %v1296 = vpop.f32.mrf.mxu0
        %v1297 = vadd.f32 0.0, %v1296
        %v1298 = vpop.f32.mrf.mxu0
        %v1299 = vadd.f32 0.0, %v1298
        %1300 = vdwg.mxu0
        %v1317 = vunpack.c.l.b16 %v1080
        %v1318 = vunpack.c.l.b16 %v1081
        %v1319 = vunpack.c.l.b16 %v1082
        %v1320 = vunpack.c.l.b16 %v1083
        %v1321 = vunpack.c.l.b16 %v1084
        %v1322 = vunpack.c.l.b16 %v1085
        %v1323 = vunpack.c.l.b16 %v1086
        %v1324 = vunpack.c.l.b16 %v1087
        %v1325 = vunpack.c.l.b16 %v1088
        %v1326 = vunpack.c.l.b16 %v1089
        %v1327 = vunpack.c.l.b16 %v1090
        %v1328 = vunpack.c.l.b16 %v1091
        %v1329 = vunpack.c.l.b16 %v1092
        %v1330 = vunpack.c.l.b16 %v1093
        %v1331 = vunpack.c.l.b16 %v1094
        %v1332 = vunpack.c.l.b16 %v1095
        %v1333 = vpack.c.b16 %v1318, %v1317
        %v1334 = vpack.c.b16 %v1320, %v1319
        %v1335 = vpack.c.b16 %v1322, %v1321
        %v1336 = vpack.c.b16 %v1324, %v1323
        %v1337 = vpack.c.b16 %v1326, %v1325
        %v1338 = vpack.c.b16 %v1328, %v1327
        %v1339 = vpack.c.b16 %v1330, %v1329
        %v1340 = vpack.c.b16 %v1332, %v1331
        %1349 = vmatpush.bf16.msra.mxu0 %v1340
        %1350 = vmatpush.bf16.msra.mxu0 %v1339
        %1351 = vmatpush.bf16.msra.mxu0 %v1338
        %1352 = vmatpush.bf16.msra.mxu0 %v1337
        %1353 = vmatpush.bf16.msra.mxu0 %v1336
        %1354 = vmatpush.bf16.msra.mxu0 %v1335
        %1355 = vmatpush.bf16.msra.mxu0 %v1334
        %1356 = vmatpush.bf16.msra.mxu0 %v1333
        %1357 = vmatmul.bf16.gmra.mxu0 %v1076
        %v1358 = vpop.f32.mrf.mxu0
        %v1359 = vadd.f32 %v1282, %v1358
        %v1360 = vpop.f32.mrf.mxu0
        %v1361 = vadd.f32 %v1284, %v1360
        %1362 = vmatmul.bf16.gmra.mxu0 %v1077
        %v1363 = vpop.f32.mrf.mxu0
        %v1364 = vadd.f32 %v1287, %v1363
        %v1365 = vpop.f32.mrf.mxu0
        %v1366 = vadd.f32 %v1289, %v1365
        %1367 = vmatmul.bf16.gmra.mxu0 %v1078
        %v1368 = vpop.f32.mrf.mxu0
        %v1369 = vadd.f32 %v1292, %v1368
        %v1370 = vpop.f32.mrf.mxu0
        %v1371 = vadd.f32 %v1294, %v1370
        %1372 = vmatmul.bf16.gmra.mxu0 %v1079
        %v1373 = vpop.f32.mrf.mxu0
        %v1374 = vadd.f32 %v1297, %v1373
        %v1375 = vpop.f32.mrf.mxu0
        %v1376 = vadd.f32 %v1299, %v1375
        %1377 = vdwg.mxu0
        %s1378 = scalar_lea.vmem %s1, 128
        %v1379 = vld [vmem:[%s1378] sm:$0xff]
        %v1380 = vld [vmem:[%s1378 + $0x8] sm:$0xff]
        %v1381 = vld [vmem:[%s1378 + $0x10] sm:$0xff]
        %v1382 = vld [vmem:[%s1378 + $0x18] sm:$0xff]
        %v1383 = vld [vmem:[%s1378 + $0x20] sm:$0xff]
        %v1384 = vld [vmem:[%s1378 + $0x28] sm:$0xff]
        %v1385 = vld [vmem:[%s1378 + $0x30] sm:$0xff]
        %v1386 = vld [vmem:[%s1378 + $0x38] sm:$0xff]
        %v1395 = vunpack.c.l.b16 %v1379
        %v1396 = vunpack.c.h.b16 %v1379
        %v1397 = vunpack.c.l.b16 %v1380
        %v1398 = vunpack.c.h.b16 %v1380
        %v1399 = vunpack.c.l.b16 %v1381
        %v1400 = vunpack.c.h.b16 %v1381
        %v1401 = vunpack.c.l.b16 %v1382
        %v1402 = vunpack.c.h.b16 %v1382
        %v1403 = vunpack.c.l.b16 %v1383
        %v1404 = vunpack.c.h.b16 %v1383
        %v1405 = vunpack.c.l.b16 %v1384
        %v1406 = vunpack.c.h.b16 %v1384
        %v1407 = vunpack.c.l.b16 %v1385
        %v1408 = vunpack.c.h.b16 %v1385
        %v1409 = vunpack.c.l.b16 %v1386
        %v1410 = vunpack.c.h.b16 %v1386
        %v1411 = vpack.c.b16 %v1397, %v1395
        %v1412 = vpack.c.b16 %v1398, %v1396
        %v1413 = vpack.c.b16 %v1401, %v1399
        %v1414 = vpack.c.b16 %v1402, %v1400
        %v1415 = vpack.c.b16 %v1405, %v1403
        %v1416 = vpack.c.b16 %v1406, %v1404
        %v1417 = vpack.c.b16 %v1409, %v1407
        %v1418 = vpack.c.b16 %v1410, %v1408
        %1427 = vmatpush.bf16.msra.mxu0 %v993
        %1428 = vmatpush.bf16.msra.mxu0 %v992
        %1429 = vmatpush.bf16.msra.mxu0 %v991
        %1430 = vmatpush.bf16.msra.mxu0 %v990
        %1431 = vmatpush.bf16.msra.mxu0 %v989
        %1432 = vmatpush.bf16.msra.mxu0 %v988
        %1433 = vmatpush.bf16.msra.mxu0 %v987
        %1434 = vmatpush.bf16.msra.mxu0 %v986
        %1435 = vmatmul.bf16.gmra.mxu0 %v1411
        %v1436 = vpop.f32.mrf.mxu0
        %v1437 = vadd.f32 0.0, %v1436
        %v1438 = vpop.f32.mrf.mxu0
        %v1439 = vadd.f32 0.0, %v1438
        %1440 = vmatmul.bf16.gmra.mxu0 %v1413
        %v1441 = vpop.f32.mrf.mxu0
        %v1442 = vadd.f32 0.0, %v1441
        %v1443 = vpop.f32.mrf.mxu0
        %v1444 = vadd.f32 0.0, %v1443
        %1445 = vmatmul.bf16.gmra.mxu0 %v1415
        %v1446 = vpop.f32.mrf.mxu0
        %v1447 = vadd.f32 0.0, %v1446
        %v1448 = vpop.f32.mrf.mxu0
        %v1449 = vadd.f32 0.0, %v1448
        %1450 = vmatmul.bf16.gmra.mxu0 %v1417
        %v1451 = vpop.f32.mrf.mxu0
        %v1452 = vadd.f32 0.0, %v1451
        %v1453 = vpop.f32.mrf.mxu0
        %v1454 = vadd.f32 0.0, %v1453
        %1455 = vdwg.mxu0
        %1456 = vmatpush.bf16.msra.mxu0 %v1001
        %1457 = vmatpush.bf16.msra.mxu0 %v1000
        %1458 = vmatpush.bf16.msra.mxu0 %v999
        %1459 = vmatpush.bf16.msra.mxu0 %v998
        %1460 = vmatpush.bf16.msra.mxu0 %v997
        %1461 = vmatpush.bf16.msra.mxu0 %v996
        %1462 = vmatpush.bf16.msra.mxu0 %v995
        %1463 = vmatpush.bf16.msra.mxu0 %v994
        %1464 = vmatmul.bf16.gmra.mxu0 %v1412
        %v1465 = vpop.f32.mrf.mxu0
        %v1466 = vadd.f32 %v1437, %v1465
        %v1467 = vpop.f32.mrf.mxu0
        %v1468 = vadd.f32 %v1439, %v1467
        %1469 = vmatmul.bf16.gmra.mxu0 %v1414
        %v1470 = vpop.f32.mrf.mxu0
        %v1471 = vadd.f32 %v1442, %v1470
        %v1472 = vpop.f32.mrf.mxu0
        %v1473 = vadd.f32 %v1444, %v1472
        %1474 = vmatmul.bf16.gmra.mxu0 %v1416
        %v1475 = vpop.f32.mrf.mxu0
        %v1476 = vadd.f32 %v1447, %v1475
        %v1477 = vpop.f32.mrf.mxu0
        %v1478 = vadd.f32 %v1449, %v1477
        %1479 = vmatmul.bf16.gmra.mxu0 %v1418
        %v1480 = vpop.f32.mrf.mxu0
        %v1481 = vadd.f32 %v1452, %v1480
        %v1482 = vpop.f32.mrf.mxu0
        %v1483 = vadd.f32 %v1454, %v1482
        %1484 = vdwg.mxu0
        %v1485 = vpack.c.bf16 %v1468, %v1466
        %v1486 = vpack.c.bf16 %v1473, %v1471
        %v1487 = vpack.c.bf16 %v1478, %v1476
        %v1488 = vpack.c.bf16 %v1483, %v1481
        %s1489 = scalar_lea.vmem [#allocation2], 128
        %v1490 = vld [vmem:[%s1489] sm:$0xf]
        %v1491 = vld [vmem:[%s1489 + $0x4] sm:$0xf]
        %v1492 = vld [vmem:[%s1489 + $0x8] sm:$0xf]
        %v1493 = vld [vmem:[%s1489 + $0xc] sm:$0xf]
        %v1494 = vld [vmem:[%s1489 + $0x10] sm:$0xf]
        %v1495 = vld [vmem:[%s1489 + $0x14] sm:$0xf]
        %v1496 = vld [vmem:[%s1489 + $0x18] sm:$0xf]
        %v1497 = vld [vmem:[%s1489 + $0x1c] sm:$0xf]
        %v1498 = vld [vmem:[%s1489 + $0x20] sm:$0xf]
        %v1499 = vld [vmem:[%s1489 + $0x24] sm:$0xf]
        %v1500 = vld [vmem:[%s1489 + $0x28] sm:$0xf]
        %v1501 = vld [vmem:[%s1489 + $0x2c] sm:$0xf]
        %v1502 = vld [vmem:[%s1489 + $0x30] sm:$0xf]
        %v1503 = vld [vmem:[%s1489 + $0x34] sm:$0xf]
        %v1504 = vld [vmem:[%s1489 + $0x38] sm:$0xf]
        %v1505 = vld [vmem:[%s1489 + $0x3c] sm:$0xf]
        %v1522 = vunpack.c.l.b16 %v1490
        %v1523 = vunpack.c.l.b16 %v1491
        %v1524 = vunpack.c.l.b16 %v1492
        %v1525 = vunpack.c.l.b16 %v1493
        %v1526 = vunpack.c.l.b16 %v1494
        %v1527 = vunpack.c.l.b16 %v1495
        %v1528 = vunpack.c.l.b16 %v1496
        %v1529 = vunpack.c.l.b16 %v1497
        %v1530 = vunpack.c.l.b16 %v1498
        %v1531 = vunpack.c.l.b16 %v1499
        %v1532 = vunpack.c.l.b16 %v1500
        %v1533 = vunpack.c.l.b16 %v1501
        %v1534 = vunpack.c.l.b16 %v1502
        %v1535 = vunpack.c.l.b16 %v1503
        %v1536 = vunpack.c.l.b16 %v1504
        %v1537 = vunpack.c.l.b16 %v1505
        %v1538 = vpack.c.b16 %v1523, %v1522
        %v1539 = vpack.c.b16 %v1525, %v1524
        %v1540 = vpack.c.b16 %v1527, %v1526
        %v1541 = vpack.c.b16 %v1529, %v1528
        %v1542 = vpack.c.b16 %v1531, %v1530
        %v1543 = vpack.c.b16 %v1533, %v1532
        %v1544 = vpack.c.b16 %v1535, %v1534
        %v1545 = vpack.c.b16 %v1537, %v1536
        %1554 = vmatpush.bf16.msra.mxu0 %v1545
        %1555 = vmatpush.bf16.msra.mxu0 %v1544
        %1556 = vmatpush.bf16.msra.mxu0 %v1543
        %1557 = vmatpush.bf16.msra.mxu0 %v1542
        %1558 = vmatpush.bf16.msra.mxu0 %v1541
        %1559 = vmatpush.bf16.msra.mxu0 %v1540
        %1560 = vmatpush.bf16.msra.mxu0 %v1539
        %1561 = vmatpush.bf16.msra.mxu0 %v1538
        %1562 = vmatmul.bf16.gmra.mxu0 %v1485
        %v1563 = vpop.f32.mrf.mxu0
        %v1564 = vadd.f32 0.0, %v1563
        %v1565 = vpop.f32.mrf.mxu0
        %v1566 = vadd.f32 0.0, %v1565
        %1567 = vmatmul.bf16.gmra.mxu0 %v1486
        %v1568 = vpop.f32.mrf.mxu0
        %v1569 = vadd.f32 0.0, %v1568
        %v1570 = vpop.f32.mrf.mxu0
        %v1571 = vadd.f32 0.0, %v1570
        %1572 = vmatmul.bf16.gmra.mxu0 %v1487
        %v1573 = vpop.f32.mrf.mxu0
        %v1574 = vadd.f32 0.0, %v1573
        %v1575 = vpop.f32.mrf.mxu0
        %v1576 = vadd.f32 0.0, %v1575
        %1577 = vmatmul.bf16.gmra.mxu0 %v1488
        %v1578 = vpop.f32.mrf.mxu0
        %v1579 = vadd.f32 0.0, %v1578
        %v1580 = vpop.f32.mrf.mxu0
        %v1581 = vadd.f32 0.0, %v1580
        %1582 = vdwg.mxu0
        %v1583 = vadd.f32 %v1359, %v1564
        %v1584 = vadd.f32 %v1361, %v1566
        %v1585 = vadd.f32 %v1364, %v1569
        %v1586 = vadd.f32 %v1366, %v1571
        %v1587 = vadd.f32 %v1369, %v1574
        %v1588 = vadd.f32 %v1371, %v1576
        %v1589 = vadd.f32 %v1374, %v1579
        %v1590 = vadd.f32 %v1376, %v1581
        %s1591 = scalar_lea.vmem %s1, 192
        %v1592 = vld [vmem:[%s1591] sm:$0xff]
        %v1593 = vld [vmem:[%s1591 + $0x8] sm:$0xff]
        %v1594 = vld [vmem:[%s1591 + $0x10] sm:$0xff]
        %v1595 = vld [vmem:[%s1591 + $0x18] sm:$0xff]
        %v1596 = vld [vmem:[%s1591 + $0x20] sm:$0xff]
        %v1597 = vld [vmem:[%s1591 + $0x28] sm:$0xff]
        %v1598 = vld [vmem:[%s1591 + $0x30] sm:$0xff]
        %v1599 = vld [vmem:[%s1591 + $0x38] sm:$0xff]
        %v1608 = vunpack.c.l.b16 %v1592
        %v1609 = vunpack.c.h.b16 %v1592
        %v1610 = vunpack.c.l.b16 %v1593
        %v1611 = vunpack.c.h.b16 %v1593
        %v1612 = vunpack.c.l.b16 %v1594
        %v1613 = vunpack.c.h.b16 %v1594
        %v1614 = vunpack.c.l.b16 %v1595
        %v1615 = vunpack.c.h.b16 %v1595
        %v1616 = vunpack.c.l.b16 %v1596
        %v1617 = vunpack.c.h.b16 %v1596
        %v1618 = vunpack.c.l.b16 %v1597
        %v1619 = vunpack.c.h.b16 %v1597
        %v1620 = vunpack.c.l.b16 %v1598
        %v1621 = vunpack.c.h.b16 %v1598
        %v1622 = vunpack.c.l.b16 %v1599
        %v1623 = vunpack.c.h.b16 %v1599
        %v1624 = vpack.c.b16 %v1610, %v1608
        %v1625 = vpack.c.b16 %v1611, %v1609
        %v1626 = vpack.c.b16 %v1614, %v1612
        %v1627 = vpack.c.b16 %v1615, %v1613
        %v1628 = vpack.c.b16 %v1618, %v1616
        %v1629 = vpack.c.b16 %v1619, %v1617
        %v1630 = vpack.c.b16 %v1622, %v1620
        %v1631 = vpack.c.b16 %v1623, %v1621
        %1640 = vmatpush.bf16.msra.mxu0 %v993
        %1641 = vmatpush.bf16.msra.mxu0 %v992
        %1642 = vmatpush.bf16.msra.mxu0 %v991
        %1643 = vmatpush.bf16.msra.mxu0 %v990
        %1644 = vmatpush.bf16.msra.mxu0 %v989
        %1645 = vmatpush.bf16.msra.mxu0 %v988
        %1646 = vmatpush.bf16.msra.mxu0 %v987
        %1647 = vmatpush.bf16.msra.mxu0 %v986
        %1648 = vmatmul.bf16.gmra.mxu0 %v1624
        %v1649 = vpop.f32.mrf.mxu0
        %v1650 = vadd.f32 0.0, %v1649
        %v1651 = vpop.f32.mrf.mxu0
        %v1652 = vadd.f32 0.0, %v1651
        %1653 = vmatmul.bf16.gmra.mxu0 %v1626
        %v1654 = vpop.f32.mrf.mxu0
        %v1655 = vadd.f32 0.0, %v1654
        %v1656 = vpop.f32.mrf.mxu0
        %v1657 = vadd.f32 0.0, %v1656
        %1658 = vmatmul.bf16.gmra.mxu0 %v1628
        %v1659 = vpop.f32.mrf.mxu0
        %v1660 = vadd.f32 0.0, %v1659
        %v1661 = vpop.f32.mrf.mxu0
        %v1662 = vadd.f32 0.0, %v1661
        %1663 = vmatmul.bf16.gmra.mxu0 %v1630
        %v1664 = vpop.f32.mrf.mxu0
        %v1665 = vadd.f32 0.0, %v1664
        %v1666 = vpop.f32.mrf.mxu0
        %v1667 = vadd.f32 0.0, %v1666
        %1668 = vdwg.mxu0
        %1669 = vmatpush.bf16.msra.mxu0 %v1001
        %1670 = vmatpush.bf16.msra.mxu0 %v1000
        %1671 = vmatpush.bf16.msra.mxu0 %v999
        %1672 = vmatpush.bf16.msra.mxu0 %v998
        %1673 = vmatpush.bf16.msra.mxu0 %v997
        %1674 = vmatpush.bf16.msra.mxu0 %v996
        %1675 = vmatpush.bf16.msra.mxu0 %v995
        %1676 = vmatpush.bf16.msra.mxu0 %v994
        %1677 = vmatmul.bf16.gmra.mxu0 %v1625
        %v1678 = vpop.f32.mrf.mxu0
        %v1679 = vadd.f32 %v1650, %v1678
        %v1680 = vpop.f32.mrf.mxu0
        %v1681 = vadd.f32 %v1652, %v1680
        %1682 = vmatmul.bf16.gmra.mxu0 %v1627
        %v1683 = vpop.f32.mrf.mxu0
        %v1684 = vadd.f32 %v1655, %v1683
        %v1685 = vpop.f32.mrf.mxu0
        %v1686 = vadd.f32 %v1657, %v1685
        %1687 = vmatmul.bf16.gmra.mxu0 %v1629
        %v1688 = vpop.f32.mrf.mxu0
        %v1689 = vadd.f32 %v1660, %v1688
        %v1690 = vpop.f32.mrf.mxu0
        %v1691 = vadd.f32 %v1662, %v1690
        %1692 = vmatmul.bf16.gmra.mxu0 %v1631
        %v1693 = vpop.f32.mrf.mxu0
        %v1694 = vadd.f32 %v1665, %v1693
        %v1695 = vpop.f32.mrf.mxu0
        %v1696 = vadd.f32 %v1667, %v1695
        %1697 = vdwg.mxu0
        %v1698 = vpack.c.bf16 %v1681, %v1679
        %v1699 = vpack.c.bf16 %v1686, %v1684
        %v1700 = vpack.c.bf16 %v1691, %v1689
        %v1701 = vpack.c.bf16 %v1696, %v1694
        %s1702 = scalar_lea.vmem [#allocation2], 192
        %v1703 = vld [vmem:[%s1702] sm:$0xf]
        %v1704 = vld [vmem:[%s1702 + $0x4] sm:$0xf]
        %v1705 = vld [vmem:[%s1702 + $0x8] sm:$0xf]
        %v1706 = vld [vmem:[%s1702 + $0xc] sm:$0xf]
        %v1707 = vld [vmem:[%s1702 + $0x10] sm:$0xf]
        %v1708 = vld [vmem:[%s1702 + $0x14] sm:$0xf]
        %v1709 = vld [vmem:[%s1702 + $0x18] sm:$0xf]
        %v1710 = vld [vmem:[%s1702 + $0x1c] sm:$0xf]
        %v1711 = vld [vmem:[%s1702 + $0x20] sm:$0xf]
        %v1712 = vld [vmem:[%s1702 + $0x24] sm:$0xf]
        %v1713 = vld [vmem:[%s1702 + $0x28] sm:$0xf]
        %v1714 = vld [vmem:[%s1702 + $0x2c] sm:$0xf]
        %v1715 = vld [vmem:[%s1702 + $0x30] sm:$0xf]
        %v1716 = vld [vmem:[%s1702 + $0x34] sm:$0xf]
        %v1717 = vld [vmem:[%s1702 + $0x38] sm:$0xf]
        %v1718 = vld [vmem:[%s1702 + $0x3c] sm:$0xf]
        %v1735 = vunpack.c.l.b16 %v1703
        %v1736 = vunpack.c.l.b16 %v1704
        %v1737 = vunpack.c.l.b16 %v1705
        %v1738 = vunpack.c.l.b16 %v1706
        %v1739 = vunpack.c.l.b16 %v1707
        %v1740 = vunpack.c.l.b16 %v1708
        %v1741 = vunpack.c.l.b16 %v1709
        %v1742 = vunpack.c.l.b16 %v1710
        %v1743 = vunpack.c.l.b16 %v1711
        %v1744 = vunpack.c.l.b16 %v1712
        %v1745 = vunpack.c.l.b16 %v1713
        %v1746 = vunpack.c.l.b16 %v1714
        %v1747 = vunpack.c.l.b16 %v1715
        %v1748 = vunpack.c.l.b16 %v1716
        %v1749 = vunpack.c.l.b16 %v1717
        %v1750 = vunpack.c.l.b16 %v1718
        %v1751 = vpack.c.b16 %v1736, %v1735
        %v1752 = vpack.c.b16 %v1738, %v1737
        %v1753 = vpack.c.b16 %v1740, %v1739
        %v1754 = vpack.c.b16 %v1742, %v1741
        %v1755 = vpack.c.b16 %v1744, %v1743
        %v1756 = vpack.c.b16 %v1746, %v1745
        %v1757 = vpack.c.b16 %v1748, %v1747
        %v1758 = vpack.c.b16 %v1750, %v1749
        %1767 = vmatpush.bf16.msra.mxu0 %v1758
        %1768 = vmatpush.bf16.msra.mxu0 %v1757
        %1769 = vmatpush.bf16.msra.mxu0 %v1756
        %1770 = vmatpush.bf16.msra.mxu0 %v1755
        %1771 = vmatpush.bf16.msra.mxu0 %v1754
        %1772 = vmatpush.bf16.msra.mxu0 %v1753
        %1773 = vmatpush.bf16.msra.mxu0 %v1752
        %1774 = vmatpush.bf16.msra.mxu0 %v1751
        %1775 = vmatmul.bf16.gmra.mxu0 %v1698
        %v1776 = vpop.f32.mrf.mxu0
        %v1777 = vadd.f32 0.0, %v1776
        %v1778 = vpop.f32.mrf.mxu0
        %v1779 = vadd.f32 0.0, %v1778
        %1780 = vmatmul.bf16.gmra.mxu0 %v1699
        %v1781 = vpop.f32.mrf.mxu0
        %v1782 = vadd.f32 0.0, %v1781
        %v1783 = vpop.f32.mrf.mxu0
        %v1784 = vadd.f32 0.0, %v1783
        %1785 = vmatmul.bf16.gmra.mxu0 %v1700
        %v1786 = vpop.f32.mrf.mxu0
        %v1787 = vadd.f32 0.0, %v1786
        %v1788 = vpop.f32.mrf.mxu0
        %v1789 = vadd.f32 0.0, %v1788
        %1790 = vmatmul.bf16.gmra.mxu0 %v1701
        %v1791 = vpop.f32.mrf.mxu0
        %v1792 = vadd.f32 0.0, %v1791
        %v1793 = vpop.f32.mrf.mxu0
        %v1794 = vadd.f32 0.0, %v1793
        %1795 = vdwg.mxu0
        %v1796 = vadd.f32 %v1583, %v1777
        %v1797 = vadd.f32 %v1584, %v1779
        %v1798 = vadd.f32 %v1585, %v1782
        %v1799 = vadd.f32 %v1586, %v1784
        %v1800 = vadd.f32 %v1587, %v1787
        %v1801 = vadd.f32 %v1588, %v1789
        %v1802 = vadd.f32 %v1589, %v1792
        %v1803 = vadd.f32 %v1590, %v1794
        %s1804 = scalar_lea.vmem %s1, 256
        %v1805 = vld [vmem:[%s1804] sm:$0xff]
        %v1806 = vld [vmem:[%s1804 + $0x8] sm:$0xff]
        %v1807 = vld [vmem:[%s1804 + $0x10] sm:$0xff]
        %v1808 = vld [vmem:[%s1804 + $0x18] sm:$0xff]
        %v1809 = vld [vmem:[%s1804 + $0x20] sm:$0xff]
        %v1810 = vld [vmem:[%s1804 + $0x28] sm:$0xff]
        %v1811 = vld [vmem:[%s1804 + $0x30] sm:$0xff]
        %v1812 = vld [vmem:[%s1804 + $0x38] sm:$0xff]
        %v1821 = vunpack.c.l.b16 %v1805
        %v1822 = vunpack.c.h.b16 %v1805
        %v1823 = vunpack.c.l.b16 %v1806
        %v1824 = vunpack.c.h.b16 %v1806
        %v1825 = vunpack.c.l.b16 %v1807
        %v1826 = vunpack.c.h.b16 %v1807
        %v1827 = vunpack.c.l.b16 %v1808
        %v1828 = vunpack.c.h.b16 %v1808
        %v1829 = vunpack.c.l.b16 %v1809
        %v1830 = vunpack.c.h.b16 %v1809
        %v1831 = vunpack.c.l.b16 %v1810
        %v1832 = vunpack.c.h.b16 %v1810
        %v1833 = vunpack.c.l.b16 %v1811
        %v1834 = vunpack.c.h.b16 %v1811
        %v1835 = vunpack.c.l.b16 %v1812
        %v1836 = vunpack.c.h.b16 %v1812
        %v1837 = vpack.c.b16 %v1823, %v1821
        %v1838 = vpack.c.b16 %v1824, %v1822
        %v1839 = vpack.c.b16 %v1827, %v1825
        %v1840 = vpack.c.b16 %v1828, %v1826
        %v1841 = vpack.c.b16 %v1831, %v1829
        %v1842 = vpack.c.b16 %v1832, %v1830
        %v1843 = vpack.c.b16 %v1835, %v1833
        %v1844 = vpack.c.b16 %v1836, %v1834
        %1853 = vmatpush.bf16.msra.mxu0 %v993
        %1854 = vmatpush.bf16.msra.mxu0 %v992
        %1855 = vmatpush.bf16.msra.mxu0 %v991
        %1856 = vmatpush.bf16.msra.mxu0 %v990
        %1857 = vmatpush.bf16.msra.mxu0 %v989
        %1858 = vmatpush.bf16.msra.mxu0 %v988
        %1859 = vmatpush.bf16.msra.mxu0 %v987
        %1860 = vmatpush.bf16.msra.mxu0 %v986
        %1861 = vmatmul.bf16.gmra.mxu0 %v1837
        %v1862 = vpop.f32.mrf.mxu0
        %v1863 = vadd.f32 0.0, %v1862
        %v1864 = vpop.f32.mrf.mxu0
        %v1865 = vadd.f32 0.0, %v1864
        %1866 = vmatmul.bf16.gmra.mxu0 %v1839
        %v1867 = vpop.f32.mrf.mxu0
        %v1868 = vadd.f32 0.0, %v1867
        %v1869 = vpop.f32.mrf.mxu0
        %v1870 = vadd.f32 0.0, %v1869
        %1871 = vmatmul.bf16.gmra.mxu0 %v1841
        %v1872 = vpop.f32.mrf.mxu0
        %v1873 = vadd.f32 0.0, %v1872
        %v1874 = vpop.f32.mrf.mxu0
        %v1875 = vadd.f32 0.0, %v1874
        %1876 = vmatmul.bf16.gmra.mxu0 %v1843
        %v1877 = vpop.f32.mrf.mxu0
        %v1878 = vadd.f32 0.0, %v1877
        %v1879 = vpop.f32.mrf.mxu0
        %v1880 = vadd.f32 0.0, %v1879
        %1881 = vdwg.mxu0
        %1882 = vmatpush.bf16.msra.mxu0 %v1001
        %1883 = vmatpush.bf16.msra.mxu0 %v1000
        %1884 = vmatpush.bf16.msra.mxu0 %v999
        %1885 = vmatpush.bf16.msra.mxu0 %v998
        %1886 = vmatpush.bf16.msra.mxu0 %v997
        %1887 = vmatpush.bf16.msra.mxu0 %v996
        %1888 = vmatpush.bf16.msra.mxu0 %v995
        %1889 = vmatpush.bf16.msra.mxu0 %v994
        %1890 = vmatmul.bf16.gmra.mxu0 %v1838
        %v1891 = vpop.f32.mrf.mxu0
        %v1892 = vadd.f32 %v1863, %v1891
        %v1893 = vpop.f32.mrf.mxu0
        %v1894 = vadd.f32 %v1865, %v1893
        %1895 = vmatmul.bf16.gmra.mxu0 %v1840
        %v1896 = vpop.f32.mrf.mxu0
        %v1897 = vadd.f32 %v1868, %v1896
        %v1898 = vpop.f32.mrf.mxu0
        %v1899 = vadd.f32 %v1870, %v1898
        %1900 = vmatmul.bf16.gmra.mxu0 %v1842
        %v1901 = vpop.f32.mrf.mxu0
        %v1902 = vadd.f32 %v1873, %v1901
        %v1903 = vpop.f32.mrf.mxu0
        %v1904 = vadd.f32 %v1875, %v1903
        %1905 = vmatmul.bf16.gmra.mxu0 %v1844
        %v1906 = vpop.f32.mrf.mxu0
        %v1907 = vadd.f32 %v1878, %v1906
        %v1908 = vpop.f32.mrf.mxu0
        %v1909 = vadd.f32 %v1880, %v1908
        %1910 = vdwg.mxu0
        %v1911 = vpack.c.bf16 %v1894, %v1892
        %v1912 = vpack.c.bf16 %v1899, %v1897
        %v1913 = vpack.c.bf16 %v1904, %v1902
        %v1914 = vpack.c.bf16 %v1909, %v1907
        %s1915 = scalar_lea.vmem [#allocation2], 256
        %v1916 = vld [vmem:[%s1915] sm:$0xf]
        %v1917 = vld [vmem:[%s1915 + $0x4] sm:$0xf]
        %v1918 = vld [vmem:[%s1915 + $0x8] sm:$0xf]
        %v1919 = vld [vmem:[%s1915 + $0xc] sm:$0xf]
        %v1920 = vld [vmem:[%s1915 + $0x10] sm:$0xf]
        %v1921 = vld [vmem:[%s1915 + $0x14] sm:$0xf]
        %v1922 = vld [vmem:[%s1915 + $0x18] sm:$0xf]
        %v1923 = vld [vmem:[%s1915 + $0x1c] sm:$0xf]
        %v1924 = vld [vmem:[%s1915 + $0x20] sm:$0xf]
        %v1925 = vld [vmem:[%s1915 + $0x24] sm:$0xf]
        %v1926 = vld [vmem:[%s1915 + $0x28] sm:$0xf]
        %v1927 = vld [vmem:[%s1915 + $0x2c] sm:$0xf]
        %v1928 = vld [vmem:[%s1915 + $0x30] sm:$0xf]
        %v1929 = vld [vmem:[%s1915 + $0x34] sm:$0xf]
        %v1930 = vld [vmem:[%s1915 + $0x38] sm:$0xf]
        %v1931 = vld [vmem:[%s1915 + $0x3c] sm:$0xf]
        %v1948 = vunpack.c.l.b16 %v1916
        %v1949 = vunpack.c.l.b16 %v1917
        %v1950 = vunpack.c.l.b16 %v1918
        %v1951 = vunpack.c.l.b16 %v1919
        %v1952 = vunpack.c.l.b16 %v1920
        %v1953 = vunpack.c.l.b16 %v1921
        %v1954 = vunpack.c.l.b16 %v1922
        %v1955 = vunpack.c.l.b16 %v1923
        %v1956 = vunpack.c.l.b16 %v1924
        %v1957 = vunpack.c.l.b16 %v1925
        %v1958 = vunpack.c.l.b16 %v1926
        %v1959 = vunpack.c.l.b16 %v1927
        %v1960 = vunpack.c.l.b16 %v1928
        %v1961 = vunpack.c.l.b16 %v1929
        %v1962 = vunpack.c.l.b16 %v1930
        %v1963 = vunpack.c.l.b16 %v1931
        %v1964 = vpack.c.b16 %v1949, %v1948
        %v1965 = vpack.c.b16 %v1951, %v1950
        %v1966 = vpack.c.b16 %v1953, %v1952
        %v1967 = vpack.c.b16 %v1955, %v1954
        %v1968 = vpack.c.b16 %v1957, %v1956
        %v1969 = vpack.c.b16 %v1959, %v1958
        %v1970 = vpack.c.b16 %v1961, %v1960
        %v1971 = vpack.c.b16 %v1963, %v1962
        %1980 = vmatpush.bf16.msra.mxu0 %v1971
        %1981 = vmatpush.bf16.msra.mxu0 %v1970
        %1982 = vmatpush.bf16.msra.mxu0 %v1969
        %1983 = vmatpush.bf16.msra.mxu0 %v1968
        %1984 = vmatpush.bf16.msra.mxu0 %v1967
        %1985 = vmatpush.bf16.msra.mxu0 %v1966
        %1986 = vmatpush.bf16.msra.mxu0 %v1965
        %1987 = vmatpush.bf16.msra.mxu0 %v1964
        %1988 = vmatmul.bf16.gmra.mxu0 %v1911
        %v1989 = vpop.f32.mrf.mxu0
        %v1990 = vadd.f32 0.0, %v1989
        %v1991 = vpop.f32.mrf.mxu0
        %v1992 = vadd.f32 0.0, %v1991
        %1993 = vmatmul.bf16.gmra.mxu0 %v1912
        %v1994 = vpop.f32.mrf.mxu0
        %v1995 = vadd.f32 0.0, %v1994
        %v1996 = vpop.f32.mrf.mxu0
        %v1997 = vadd.f32 0.0, %v1996
        %1998 = vmatmul.bf16.gmra.mxu0 %v1913
        %v1999 = vpop.f32.mrf.mxu0
        %v2000 = vadd.f32 0.0, %v1999
        %v2001 = vpop.f32.mrf.mxu0
        %v2002 = vadd.f32 0.0, %v2001
        %2003 = vmatmul.bf16.gmra.mxu0 %v1914
        %v2004 = vpop.f32.mrf.mxu0
        %v2005 = vadd.f32 0.0, %v2004
        %v2006 = vpop.f32.mrf.mxu0
        %v2007 = vadd.f32 0.0, %v2006
        %2008 = vdwg.mxu0
        %v2009 = vadd.f32 %v1796, %v1990
        %v2010 = vadd.f32 %v1797, %v1992
        %v2011 = vadd.f32 %v1798, %v1995
        %v2012 = vadd.f32 %v1799, %v1997
        %v2013 = vadd.f32 %v1800, %v2000
        %v2014 = vadd.f32 %v1801, %v2002
        %v2015 = vadd.f32 %v1802, %v2005
        %v2016 = vadd.f32 %v1803, %v2007
        %s2017 = scalar_lea.vmem %s1, 320
        %v2018 = vld [vmem:[%s2017] sm:$0xff]
        %v2019 = vld [vmem:[%s2017 + $0x8] sm:$0xff]
        %v2020 = vld [vmem:[%s2017 + $0x10] sm:$0xff]
        %v2021 = vld [vmem:[%s2017 + $0x18] sm:$0xff]
        %v2022 = vld [vmem:[%s2017 + $0x20] sm:$0xff]
        %v2023 = vld [vmem:[%s2017 + $0x28] sm:$0xff]
        %v2024 = vld [vmem:[%s2017 + $0x30] sm:$0xff]
        %v2025 = vld [vmem:[%s2017 + $0x38] sm:$0xff]
        %v2034 = vunpack.c.l.b16 %v2018
        %v2035 = vunpack.c.h.b16 %v2018
        %v2036 = vunpack.c.l.b16 %v2019
        %v2037 = vunpack.c.h.b16 %v2019
        %v2038 = vunpack.c.l.b16 %v2020
        %v2039 = vunpack.c.h.b16 %v2020
        %v2040 = vunpack.c.l.b16 %v2021
        %v2041 = vunpack.c.h.b16 %v2021
        %v2042 = vunpack.c.l.b16 %v2022
        %v2043 = vunpack.c.h.b16 %v2022
        %v2044 = vunpack.c.l.b16 %v2023
        %v2045 = vunpack.c.h.b16 %v2023
        %v2046 = vunpack.c.l.b16 %v2024
        %v2047 = vunpack.c.h.b16 %v2024
        %v2048 = vunpack.c.l.b16 %v2025
        %v2049 = vunpack.c.h.b16 %v2025
        %v2050 = vpack.c.b16 %v2036, %v2034
        %v2051 = vpack.c.b16 %v2037, %v2035
        %v2052 = vpack.c.b16 %v2040, %v2038
        %v2053 = vpack.c.b16 %v2041, %v2039
        %v2054 = vpack.c.b16 %v2044, %v2042
        %v2055 = vpack.c.b16 %v2045, %v2043
        %v2056 = vpack.c.b16 %v2048, %v2046
        %v2057 = vpack.c.b16 %v2049, %v2047
        %2066 = vmatpush.bf16.msra.mxu0 %v993
        %2067 = vmatpush.bf16.msra.mxu0 %v992
        %2068 = vmatpush.bf16.msra.mxu0 %v991
        %2069 = vmatpush.bf16.msra.mxu0 %v990
        %2070 = vmatpush.bf16.msra.mxu0 %v989
        %2071 = vmatpush.bf16.msra.mxu0 %v988
        %2072 = vmatpush.bf16.msra.mxu0 %v987
        %2073 = vmatpush.bf16.msra.mxu0 %v986
        %2074 = vmatmul.bf16.gmra.mxu0 %v2050
        %v2075 = vpop.f32.mrf.mxu0
        %v2076 = vadd.f32 0.0, %v2075
        %v2077 = vpop.f32.mrf.mxu0
        %v2078 = vadd.f32 0.0, %v2077
        %2079 = vmatmul.bf16.gmra.mxu0 %v2052
        %v2080 = vpop.f32.mrf.mxu0
        %v2081 = vadd.f32 0.0, %v2080
        %v2082 = vpop.f32.mrf.mxu0
        %v2083 = vadd.f32 0.0, %v2082
        %2084 = vmatmul.bf16.gmra.mxu0 %v2054
        %v2085 = vpop.f32.mrf.mxu0
        %v2086 = vadd.f32 0.0, %v2085
        %v2087 = vpop.f32.mrf.mxu0
        %v2088 = vadd.f32 0.0, %v2087
        %2089 = vmatmul.bf16.gmra.mxu0 %v2056
        %v2090 = vpop.f32.mrf.mxu0
        %v2091 = vadd.f32 0.0, %v2090
        %v2092 = vpop.f32.mrf.mxu0
        %v2093 = vadd.f32 0.0, %v2092
        %2094 = vdwg.mxu0
        %2095 = vmatpush.bf16.msra.mxu0 %v1001
        %2096 = vmatpush.bf16.msra.mxu0 %v1000
        %2097 = vmatpush.bf16.msra.mxu0 %v999
        %2098 = vmatpush.bf16.msra.mxu0 %v998
        %2099 = vmatpush.bf16.msra.mxu0 %v997
        %2100 = vmatpush.bf16.msra.mxu0 %v996
        %2101 = vmatpush.bf16.msra.mxu0 %v995
        %2102 = vmatpush.bf16.msra.mxu0 %v994
        %2103 = vmatmul.bf16.gmra.mxu0 %v2051
        %v2104 = vpop.f32.mrf.mxu0
        %v2105 = vadd.f32 %v2076, %v2104
        %v2106 = vpop.f32.mrf.mxu0
        %v2107 = vadd.f32 %v2078, %v2106
        %2108 = vmatmul.bf16.gmra.mxu0 %v2053
        %v2109 = vpop.f32.mrf.mxu0
        %v2110 = vadd.f32 %v2081, %v2109
        %v2111 = vpop.f32.mrf.mxu0
        %v2112 = vadd.f32 %v2083, %v2111
        %2113 = vmatmul.bf16.gmra.mxu0 %v2055
        %v2114 = vpop.f32.mrf.mxu0
        %v2115 = vadd.f32 %v2086, %v2114
        %v2116 = vpop.f32.mrf.mxu0
        %v2117 = vadd.f32 %v2088, %v2116
        %2118 = vmatmul.bf16.gmra.mxu0 %v2057
        %v2119 = vpop.f32.mrf.mxu0
        %v2120 = vadd.f32 %v2091, %v2119
        %v2121 = vpop.f32.mrf.mxu0
        %v2122 = vadd.f32 %v2093, %v2121
        %2123 = vdwg.mxu0
        %v2124 = vpack.c.bf16 %v2107, %v2105
        %v2125 = vpack.c.bf16 %v2112, %v2110
        %v2126 = vpack.c.bf16 %v2117, %v2115
        %v2127 = vpack.c.bf16 %v2122, %v2120
        %s2128 = scalar_lea.vmem [#allocation2], 320
        %v2129 = vld [vmem:[%s2128] sm:$0xf]
        %v2130 = vld [vmem:[%s2128 + $0x4] sm:$0xf]
        %v2131 = vld [vmem:[%s2128 + $0x8] sm:$0xf]
        %v2132 = vld [vmem:[%s2128 + $0xc] sm:$0xf]
        %v2133 = vld [vmem:[%s2128 + $0x10] sm:$0xf]
        %v2134 = vld [vmem:[%s2128 + $0x14] sm:$0xf]
        %v2135 = vld [vmem:[%s2128 + $0x18] sm:$0xf]
        %v2136 = vld [vmem:[%s2128 + $0x1c] sm:$0xf]
        %v2137 = vld [vmem:[%s2128 + $0x20] sm:$0xf]
        %v2138 = vld [vmem:[%s2128 + $0x24] sm:$0xf]
        %v2139 = vld [vmem:[%s2128 + $0x28] sm:$0xf]
        %v2140 = vld [vmem:[%s2128 + $0x2c] sm:$0xf]
        %v2141 = vld [vmem:[%s2128 + $0x30] sm:$0xf]
        %v2142 = vld [vmem:[%s2128 + $0x34] sm:$0xf]
        %v2143 = vld [vmem:[%s2128 + $0x38] sm:$0xf]
        %v2144 = vld [vmem:[%s2128 + $0x3c] sm:$0xf]
        %v2161 = vunpack.c.l.b16 %v2129
        %v2162 = vunpack.c.l.b16 %v2130
        %v2163 = vunpack.c.l.b16 %v2131
        %v2164 = vunpack.c.l.b16 %v2132
        %v2165 = vunpack.c.l.b16 %v2133
        %v2166 = vunpack.c.l.b16 %v2134
        %v2167 = vunpack.c.l.b16 %v2135
        %v2168 = vunpack.c.l.b16 %v2136
        %v2169 = vunpack.c.l.b16 %v2137
        %v2170 = vunpack.c.l.b16 %v2138
        %v2171 = vunpack.c.l.b16 %v2139
        %v2172 = vunpack.c.l.b16 %v2140
        %v2173 = vunpack.c.l.b16 %v2141
        %v2174 = vunpack.c.l.b16 %v2142
        %v2175 = vunpack.c.l.b16 %v2143
        %v2176 = vunpack.c.l.b16 %v2144
        %v2177 = vpack.c.b16 %v2162, %v2161
        %v2178 = vpack.c.b16 %v2164, %v2163
        %v2179 = vpack.c.b16 %v2166, %v2165
        %v2180 = vpack.c.b16 %v2168, %v2167
        %v2181 = vpack.c.b16 %v2170, %v2169
        %v2182 = vpack.c.b16 %v2172, %v2171
        %v2183 = vpack.c.b16 %v2174, %v2173
        %v2184 = vpack.c.b16 %v2176, %v2175
        %2193 = vmatpush.bf16.msra.mxu0 %v2184
        %2194 = vmatpush.bf16.msra.mxu0 %v2183
        %2195 = vmatpush.bf16.msra.mxu0 %v2182
        %2196 = vmatpush.bf16.msra.mxu0 %v2181
        %2197 = vmatpush.bf16.msra.mxu0 %v2180
        %2198 = vmatpush.bf16.msra.mxu0 %v2179
        %2199 = vmatpush.bf16.msra.mxu0 %v2178
        %2200 = vmatpush.bf16.msra.mxu0 %v2177
        %2201 = vmatmul.bf16.gmra.mxu0 %v2124
        %v2202 = vpop.f32.mrf.mxu0
        %v2203 = vadd.f32 0.0, %v2202
        %v2204 = vpop.f32.mrf.mxu0
        %v2205 = vadd.f32 0.0, %v2204
        %2206 = vmatmul.bf16.gmra.mxu0 %v2125
        %v2207 = vpop.f32.mrf.mxu0
        %v2208 = vadd.f32 0.0, %v2207
        %v2209 = vpop.f32.mrf.mxu0
        %v2210 = vadd.f32 0.0, %v2209
        %2211 = vmatmul.bf16.gmra.mxu0 %v2126
        %v2212 = vpop.f32.mrf.mxu0
        %v2213 = vadd.f32 0.0, %v2212
        %v2214 = vpop.f32.mrf.mxu0
        %v2215 = vadd.f32 0.0, %v2214
        %2216 = vmatmul.bf16.gmra.mxu0 %v2127
        %v2217 = vpop.f32.mrf.mxu0
        %v2218 = vadd.f32 0.0, %v2217
        %v2219 = vpop.f32.mrf.mxu0
        %v2220 = vadd.f32 0.0, %v2219
        %2221 = vdwg.mxu0
        %v2222 = vadd.f32 %v2009, %v2203
        %v2223 = vadd.f32 %v2010, %v2205
        %v2224 = vadd.f32 %v2011, %v2208
        %v2225 = vadd.f32 %v2012, %v2210
        %v2226 = vadd.f32 %v2013, %v2213
        %v2227 = vadd.f32 %v2014, %v2215
        %v2228 = vadd.f32 %v2015, %v2218
        %v2229 = vadd.f32 %v2016, %v2220
        %s2230 = scalar_lea.vmem %s1, 384
        %v2231 = vld [vmem:[%s2230] sm:$0xff]
        %v2232 = vld [vmem:[%s2230 + $0x8] sm:$0xff]
        %v2233 = vld [vmem:[%s2230 + $0x10] sm:$0xff]
        %v2234 = vld [vmem:[%s2230 + $0x18] sm:$0xff]
        %v2235 = vld [vmem:[%s2230 + $0x20] sm:$0xff]
        %v2236 = vld [vmem:[%s2230 + $0x28] sm:$0xff]
        %v2237 = vld [vmem:[%s2230 + $0x30] sm:$0xff]
        %v2238 = vld [vmem:[%s2230 + $0x38] sm:$0xff]
        %v2247 = vunpack.c.l.b16 %v2231
        %v2248 = vunpack.c.h.b16 %v2231
        %v2249 = vunpack.c.l.b16 %v2232
        %v2250 = vunpack.c.h.b16 %v2232
        %v2251 = vunpack.c.l.b16 %v2233
        %v2252 = vunpack.c.h.b16 %v2233
        %v2253 = vunpack.c.l.b16 %v2234
        %v2254 = vunpack.c.h.b16 %v2234
        %v2255 = vunpack.c.l.b16 %v2235
        %v2256 = vunpack.c.h.b16 %v2235
        %v2257 = vunpack.c.l.b16 %v2236
        %v2258 = vunpack.c.h.b16 %v2236
        %v2259 = vunpack.c.l.b16 %v2237
        %v2260 = vunpack.c.h.b16 %v2237
        %v2261 = vunpack.c.l.b16 %v2238
        %v2262 = vunpack.c.h.b16 %v2238
        %v2263 = vpack.c.b16 %v2249, %v2247
        %v2264 = vpack.c.b16 %v2250, %v2248
        %v2265 = vpack.c.b16 %v2253, %v2251
        %v2266 = vpack.c.b16 %v2254, %v2252
        %v2267 = vpack.c.b16 %v2257, %v2255
        %v2268 = vpack.c.b16 %v2258, %v2256
        %v2269 = vpack.c.b16 %v2261, %v2259
        %v2270 = vpack.c.b16 %v2262, %v2260
        %2279 = vmatpush.bf16.msra.mxu0 %v993
        %2280 = vmatpush.bf16.msra.mxu0 %v992
        %2281 = vmatpush.bf16.msra.mxu0 %v991
        %2282 = vmatpush.bf16.msra.mxu0 %v990
        %2283 = vmatpush.bf16.msra.mxu0 %v989
        %2284 = vmatpush.bf16.msra.mxu0 %v988
        %2285 = vmatpush.bf16.msra.mxu0 %v987
        %2286 = vmatpush.bf16.msra.mxu0 %v986
        %2287 = vmatmul.bf16.gmra.mxu0 %v2263
        %v2288 = vpop.f32.mrf.mxu0
        %v2289 = vadd.f32 0.0, %v2288
        %v2290 = vpop.f32.mrf.mxu0
        %v2291 = vadd.f32 0.0, %v2290
        %2292 = vmatmul.bf16.gmra.mxu0 %v2265
        %v2293 = vpop.f32.mrf.mxu0
        %v2294 = vadd.f32 0.0, %v2293
        %v2295 = vpop.f32.mrf.mxu0
        %v2296 = vadd.f32 0.0, %v2295
        %2297 = vmatmul.bf16.gmra.mxu0 %v2267
        %v2298 = vpop.f32.mrf.mxu0
        %v2299 = vadd.f32 0.0, %v2298
        %v2300 = vpop.f32.mrf.mxu0
        %v2301 = vadd.f32 0.0, %v2300
        %2302 = vmatmul.bf16.gmra.mxu0 %v2269
        %v2303 = vpop.f32.mrf.mxu0
        %v2304 = vadd.f32 0.0, %v2303
        %v2305 = vpop.f32.mrf.mxu0
        %v2306 = vadd.f32 0.0, %v2305
        %2307 = vdwg.mxu0
        %2308 = vmatpush.bf16.msra.mxu0 %v1001
        %2309 = vmatpush.bf16.msra.mxu0 %v1000
        %2310 = vmatpush.bf16.msra.mxu0 %v999
        %2311 = vmatpush.bf16.msra.mxu0 %v998
        %2312 = vmatpush.bf16.msra.mxu0 %v997
        %2313 = vmatpush.bf16.msra.mxu0 %v996
        %2314 = vmatpush.bf16.msra.mxu0 %v995
        %2315 = vmatpush.bf16.msra.mxu0 %v994
        %2316 = vmatmul.bf16.gmra.mxu0 %v2264
        %v2317 = vpop.f32.mrf.mxu0
        %v2318 = vadd.f32 %v2289, %v2317
        %v2319 = vpop.f32.mrf.mxu0
        %v2320 = vadd.f32 %v2291, %v2319
        %2321 = vmatmul.bf16.gmra.mxu0 %v2266
        %v2322 = vpop.f32.mrf.mxu0
        %v2323 = vadd.f32 %v2294, %v2322
        %v2324 = vpop.f32.mrf.mxu0
        %v2325 = vadd.f32 %v2296, %v2324
        %2326 = vmatmul.bf16.gmra.mxu0 %v2268
        %v2327 = vpop.f32.mrf.mxu0
        %v2328 = vadd.f32 %v2299, %v2327
        %v2329 = vpop.f32.mrf.mxu0
        %v2330 = vadd.f32 %v2301, %v2329
        %2331 = vmatmul.bf16.gmra.mxu0 %v2270
        %v2332 = vpop.f32.mrf.mxu0
        %v2333 = vadd.f32 %v2304, %v2332
        %v2334 = vpop.f32.mrf.mxu0
        %v2335 = vadd.f32 %v2306, %v2334
        %2336 = vdwg.mxu0
        %v2337 = vpack.c.bf16 %v2320, %v2318
        %v2338 = vpack.c.bf16 %v2325, %v2323
        %v2339 = vpack.c.bf16 %v2330, %v2328
        %v2340 = vpack.c.bf16 %v2335, %v2333
        %s2341 = scalar_lea.vmem [#allocation2], 384
        %v2342 = vld [vmem:[%s2341] sm:$0xf]
        %v2343 = vld [vmem:[%s2341 + $0x4] sm:$0xf]
        %v2344 = vld [vmem:[%s2341 + $0x8] sm:$0xf]
        %v2345 = vld [vmem:[%s2341 + $0xc] sm:$0xf]
        %v2346 = vld [vmem:[%s2341 + $0x10] sm:$0xf]
        %v2347 = vld [vmem:[%s2341 + $0x14] sm:$0xf]
        %v2348 = vld [vmem:[%s2341 + $0x18] sm:$0xf]
        %v2349 = vld [vmem:[%s2341 + $0x1c] sm:$0xf]
        %v2350 = vld [vmem:[%s2341 + $0x20] sm:$0xf]
        %v2351 = vld [vmem:[%s2341 + $0x24] sm:$0xf]
        %v2352 = vld [vmem:[%s2341 + $0x28] sm:$0xf]
        %v2353 = vld [vmem:[%s2341 + $0x2c] sm:$0xf]
        %v2354 = vld [vmem:[%s2341 + $0x30] sm:$0xf]
        %v2355 = vld [vmem:[%s2341 + $0x34] sm:$0xf]
        %v2356 = vld [vmem:[%s2341 + $0x38] sm:$0xf]
        %v2357 = vld [vmem:[%s2341 + $0x3c] sm:$0xf]
        %v2374 = vunpack.c.l.b16 %v2342
        %v2375 = vunpack.c.l.b16 %v2343
        %v2376 = vunpack.c.l.b16 %v2344
        %v2377 = vunpack.c.l.b16 %v2345
        %v2378 = vunpack.c.l.b16 %v2346
        %v2379 = vunpack.c.l.b16 %v2347
        %v2380 = vunpack.c.l.b16 %v2348
        %v2381 = vunpack.c.l.b16 %v2349
        %v2382 = vunpack.c.l.b16 %v2350
        %v2383 = vunpack.c.l.b16 %v2351
        %v2384 = vunpack.c.l.b16 %v2352
        %v2385 = vunpack.c.l.b16 %v2353
        %v2386 = vunpack.c.l.b16 %v2354
        %v2387 = vunpack.c.l.b16 %v2355
        %v2388 = vunpack.c.l.b16 %v2356
        %v2389 = vunpack.c.l.b16 %v2357
        %v2390 = vpack.c.b16 %v2375, %v2374
        %v2391 = vpack.c.b16 %v2377, %v2376
        %v2392 = vpack.c.b16 %v2379, %v2378
        %v2393 = vpack.c.b16 %v2381, %v2380
        %v2394 = vpack.c.b16 %v2383, %v2382
        %v2395 = vpack.c.b16 %v2385, %v2384
        %v2396 = vpack.c.b16 %v2387, %v2386
        %v2397 = vpack.c.b16 %v2389, %v2388
        %2406 = vmatpush.bf16.msra.mxu0 %v2397
        %2407 = vmatpush.bf16.msra.mxu0 %v2396
        %2408 = vmatpush.bf16.msra.mxu0 %v2395
        %2409 = vmatpush.bf16.msra.mxu0 %v2394
        %2410 = vmatpush.bf16.msra.mxu0 %v2393
        %2411 = vmatpush.bf16.msra.mxu0 %v2392
        %2412 = vmatpush.bf16.msra.mxu0 %v2391
        %2413 = vmatpush.bf16.msra.mxu0 %v2390
        %2414 = vmatmul.bf16.gmra.mxu0 %v2337
        %v2415 = vpop.f32.mrf.mxu0
        %v2416 = vadd.f32 0.0, %v2415
        %v2417 = vpop.f32.mrf.mxu0
        %v2418 = vadd.f32 0.0, %v2417
        %2419 = vmatmul.bf16.gmra.mxu0 %v2338
        %v2420 = vpop.f32.mrf.mxu0
        %v2421 = vadd.f32 0.0, %v2420
        %v2422 = vpop.f32.mrf.mxu0
        %v2423 = vadd.f32 0.0, %v2422
        %2424 = vmatmul.bf16.gmra.mxu0 %v2339
        %v2425 = vpop.f32.mrf.mxu0
        %v2426 = vadd.f32 0.0, %v2425
        %v2427 = vpop.f32.mrf.mxu0
        %v2428 = vadd.f32 0.0, %v2427
        %2429 = vmatmul.bf16.gmra.mxu0 %v2340
        %v2430 = vpop.f32.mrf.mxu0
        %v2431 = vadd.f32 0.0, %v2430
        %v2432 = vpop.f32.mrf.mxu0
        %v2433 = vadd.f32 0.0, %v2432
        %2434 = vdwg.mxu0
        %v2435 = vadd.f32 %v2222, %v2416
        %v2436 = vadd.f32 %v2223, %v2418
        %v2437 = vadd.f32 %v2224, %v2421
        %v2438 = vadd.f32 %v2225, %v2423
        %v2439 = vadd.f32 %v2226, %v2426
        %v2440 = vadd.f32 %v2227, %v2428
        %v2441 = vadd.f32 %v2228, %v2431
        %v2442 = vadd.f32 %v2229, %v2433
        %s2443 = scalar_lea.vmem %s1, 448
        %v2444 = vld [vmem:[%s2443] sm:$0xff]
        %v2445 = vld [vmem:[%s2443 + $0x8] sm:$0xff]
        %v2446 = vld [vmem:[%s2443 + $0x10] sm:$0xff]
        %v2447 = vld [vmem:[%s2443 + $0x18] sm:$0xff]
        %v2448 = vld [vmem:[%s2443 + $0x20] sm:$0xff]
        %v2449 = vld [vmem:[%s2443 + $0x28] sm:$0xff]
        %v2450 = vld [vmem:[%s2443 + $0x30] sm:$0xff]
        %v2451 = vld [vmem:[%s2443 + $0x38] sm:$0xff]
        %v2460 = vunpack.c.l.b16 %v2444
        %v2461 = vunpack.c.h.b16 %v2444
        %v2462 = vunpack.c.l.b16 %v2445
        %v2463 = vunpack.c.h.b16 %v2445
        %v2464 = vunpack.c.l.b16 %v2446
        %v2465 = vunpack.c.h.b16 %v2446
        %v2466 = vunpack.c.l.b16 %v2447
        %v2467 = vunpack.c.h.b16 %v2447
        %v2468 = vunpack.c.l.b16 %v2448
        %v2469 = vunpack.c.h.b16 %v2448
        %v2470 = vunpack.c.l.b16 %v2449
        %v2471 = vunpack.c.h.b16 %v2449
        %v2472 = vunpack.c.l.b16 %v2450
        %v2473 = vunpack.c.h.b16 %v2450
        %v2474 = vunpack.c.l.b16 %v2451
        %v2475 = vunpack.c.h.b16 %v2451
        %v2476 = vpack.c.b16 %v2462, %v2460
        %v2477 = vpack.c.b16 %v2463, %v2461
        %v2478 = vpack.c.b16 %v2466, %v2464
        %v2479 = vpack.c.b16 %v2467, %v2465
        %v2480 = vpack.c.b16 %v2470, %v2468
        %v2481 = vpack.c.b16 %v2471, %v2469
        %v2482 = vpack.c.b16 %v2474, %v2472
        %v2483 = vpack.c.b16 %v2475, %v2473
        %2492 = vmatpush.bf16.msra.mxu0 %v993
        %2493 = vmatpush.bf16.msra.mxu0 %v992
        %2494 = vmatpush.bf16.msra.mxu0 %v991
        %2495 = vmatpush.bf16.msra.mxu0 %v990
        %2496 = vmatpush.bf16.msra.mxu0 %v989
        %2497 = vmatpush.bf16.msra.mxu0 %v988
        %2498 = vmatpush.bf16.msra.mxu0 %v987
        %2499 = vmatpush.bf16.msra.mxu0 %v986
        %2500 = vmatmul.bf16.gmra.mxu0 %v2476
        %v2501 = vpop.f32.mrf.mxu0
        %v2502 = vadd.f32 0.0, %v2501
        %v2503 = vpop.f32.mrf.mxu0
        %v2504 = vadd.f32 0.0, %v2503
        %2505 = vmatmul.bf16.gmra.mxu0 %v2478
        %v2506 = vpop.f32.mrf.mxu0
        %v2507 = vadd.f32 0.0, %v2506
        %v2508 = vpop.f32.mrf.mxu0
        %v2509 = vadd.f32 0.0, %v2508
        %2510 = vmatmul.bf16.gmra.mxu0 %v2480
        %v2511 = vpop.f32.mrf.mxu0
        %v2512 = vadd.f32 0.0, %v2511
        %v2513 = vpop.f32.mrf.mxu0
        %v2514 = vadd.f32 0.0, %v2513
        %2515 = vmatmul.bf16.gmra.mxu0 %v2482
        %v2516 = vpop.f32.mrf.mxu0
        %v2517 = vadd.f32 0.0, %v2516
        %v2518 = vpop.f32.mrf.mxu0
        %v2519 = vadd.f32 0.0, %v2518
        %2520 = vdwg.mxu0
        %2521 = vmatpush.bf16.msra.mxu0 %v1001
        %2522 = vmatpush.bf16.msra.mxu0 %v1000
        %2523 = vmatpush.bf16.msra.mxu0 %v999
        %2524 = vmatpush.bf16.msra.mxu0 %v998
        %2525 = vmatpush.bf16.msra.mxu0 %v997
        %2526 = vmatpush.bf16.msra.mxu0 %v996
        %2527 = vmatpush.bf16.msra.mxu0 %v995
        %2528 = vmatpush.bf16.msra.mxu0 %v994
        %2529 = vmatmul.bf16.gmra.mxu0 %v2477
        %v2530 = vpop.f32.mrf.mxu0
        %v2531 = vadd.f32 %v2502, %v2530
        %v2532 = vpop.f32.mrf.mxu0
        %v2533 = vadd.f32 %v2504, %v2532
        %2534 = vmatmul.bf16.gmra.mxu0 %v2479
        %v2535 = vpop.f32.mrf.mxu0
        %v2536 = vadd.f32 %v2507, %v2535
        %v2537 = vpop.f32.mrf.mxu0
        %v2538 = vadd.f32 %v2509, %v2537
        %2539 = vmatmul.bf16.gmra.mxu0 %v2481
        %v2540 = vpop.f32.mrf.mxu0
        %v2541 = vadd.f32 %v2512, %v2540
        %v2542 = vpop.f32.mrf.mxu0
        %v2543 = vadd.f32 %v2514, %v2542
        %2544 = vmatmul.bf16.gmra.mxu0 %v2483
        %v2545 = vpop.f32.mrf.mxu0
        %v2546 = vadd.f32 %v2517, %v2545
        %v2547 = vpop.f32.mrf.mxu0
        %v2548 = vadd.f32 %v2519, %v2547
        %2549 = vdwg.mxu0
        %v2550 = vpack.c.bf16 %v2533, %v2531
        %v2551 = vpack.c.bf16 %v2538, %v2536
        %v2552 = vpack.c.bf16 %v2543, %v2541
        %v2553 = vpack.c.bf16 %v2548, %v2546
        %s2554 = scalar_lea.vmem [#allocation2], 448
        %v2555 = vld [vmem:[%s2554] sm:$0xf]
        %v2556 = vld [vmem:[%s2554 + $0x4] sm:$0xf]
        %v2557 = vld [vmem:[%s2554 + $0x8] sm:$0xf]
        %v2558 = vld [vmem:[%s2554 + $0xc] sm:$0xf]
        %v2559 = vld [vmem:[%s2554 + $0x10] sm:$0xf]
        %v2560 = vld [vmem:[%s2554 + $0x14] sm:$0xf]
        %v2561 = vld [vmem:[%s2554 + $0x18] sm:$0xf]
        %v2562 = vld [vmem:[%s2554 + $0x1c] sm:$0xf]
        %v2563 = vld [vmem:[%s2554 + $0x20] sm:$0xf]
        %v2564 = vld [vmem:[%s2554 + $0x24] sm:$0xf]
        %v2565 = vld [vmem:[%s2554 + $0x28] sm:$0xf]
        %v2566 = vld [vmem:[%s2554 + $0x2c] sm:$0xf]
        %v2567 = vld [vmem:[%s2554 + $0x30] sm:$0xf]
        %v2568 = vld [vmem:[%s2554 + $0x34] sm:$0xf]
        %v2569 = vld [vmem:[%s2554 + $0x38] sm:$0xf]
        %v2570 = vld [vmem:[%s2554 + $0x3c] sm:$0xf]
        %v2587 = vunpack.c.l.b16 %v2555
        %v2588 = vunpack.c.l.b16 %v2556
        %v2589 = vunpack.c.l.b16 %v2557
        %v2590 = vunpack.c.l.b16 %v2558
        %v2591 = vunpack.c.l.b16 %v2559
        %v2592 = vunpack.c.l.b16 %v2560
        %v2593 = vunpack.c.l.b16 %v2561
        %v2594 = vunpack.c.l.b16 %v2562
        %v2595 = vunpack.c.l.b16 %v2563
        %v2596 = vunpack.c.l.b16 %v2564
        %v2597 = vunpack.c.l.b16 %v2565
        %v2598 = vunpack.c.l.b16 %v2566
        %v2599 = vunpack.c.l.b16 %v2567
        %v2600 = vunpack.c.l.b16 %v2568
        %v2601 = vunpack.c.l.b16 %v2569
        %v2602 = vunpack.c.l.b16 %v2570
        %v2603 = vpack.c.b16 %v2588, %v2587
        %v2604 = vpack.c.b16 %v2590, %v2589
        %v2605 = vpack.c.b16 %v2592, %v2591
        %v2606 = vpack.c.b16 %v2594, %v2593
        %v2607 = vpack.c.b16 %v2596, %v2595
        %v2608 = vpack.c.b16 %v2598, %v2597
        %v2609 = vpack.c.b16 %v2600, %v2599
        %v2610 = vpack.c.b16 %v2602, %v2601
        %2619 = vmatpush.bf16.msra.mxu0 %v2610
        %2620 = vmatpush.bf16.msra.mxu0 %v2609
        %2621 = vmatpush.bf16.msra.mxu0 %v2608
        %2622 = vmatpush.bf16.msra.mxu0 %v2607
        %2623 = vmatpush.bf16.msra.mxu0 %v2606
        %2624 = vmatpush.bf16.msra.mxu0 %v2605
        %2625 = vmatpush.bf16.msra.mxu0 %v2604
        %2626 = vmatpush.bf16.msra.mxu0 %v2603
        %2627 = vmatmul.bf16.gmra.mxu0 %v2550
        %v2628 = vpop.f32.mrf.mxu0
        %v2629 = vadd.f32 0.0, %v2628
        %v2630 = vpop.f32.mrf.mxu0
        %v2631 = vadd.f32 0.0, %v2630
        %2632 = vmatmul.bf16.gmra.mxu0 %v2551
        %v2633 = vpop.f32.mrf.mxu0
        %v2634 = vadd.f32 0.0, %v2633
        %v2635 = vpop.f32.mrf.mxu0
        %v2636 = vadd.f32 0.0, %v2635
        %2637 = vmatmul.bf16.gmra.mxu0 %v2552
        %v2638 = vpop.f32.mrf.mxu0
        %v2639 = vadd.f32 0.0, %v2638
        %v2640 = vpop.f32.mrf.mxu0
        %v2641 = vadd.f32 0.0, %v2640
        %2642 = vmatmul.bf16.gmra.mxu0 %v2553
        %v2643 = vpop.f32.mrf.mxu0
        %v2644 = vadd.f32 0.0, %v2643
        %v2645 = vpop.f32.mrf.mxu0
        %v2646 = vadd.f32 0.0, %v2645
        %2647 = vdwg.mxu0
        %v2648 = vadd.f32 %v2435, %v2629
        %v2649 = vadd.f32 %v2436, %v2631
        %v2650 = vadd.f32 %v2437, %v2634
        %v2651 = vadd.f32 %v2438, %v2636
        %v2652 = vadd.f32 %v2439, %v2639
        %v2653 = vadd.f32 %v2440, %v2641
        %v2654 = vadd.f32 %v2441, %v2644
        %v2655 = vadd.f32 %v2442, %v2646
        %s2656 = scalar_lea.vmem %s1, 512
        %v2657 = vld [vmem:[%s2656] sm:$0xff]
        %v2658 = vld [vmem:[%s2656 + $0x8] sm:$0xff]
        %v2659 = vld [vmem:[%s2656 + $0x10] sm:$0xff]
        %v2660 = vld [vmem:[%s2656 + $0x18] sm:$0xff]
        %v2661 = vld [vmem:[%s2656 + $0x20] sm:$0xff]
        %v2662 = vld [vmem:[%s2656 + $0x28] sm:$0xff]
        %v2663 = vld [vmem:[%s2656 + $0x30] sm:$0xff]
        %v2664 = vld [vmem:[%s2656 + $0x38] sm:$0xff]
        %v2673 = vunpack.c.l.b16 %v2657
        %v2674 = vunpack.c.h.b16 %v2657
        %v2675 = vunpack.c.l.b16 %v2658
        %v2676 = vunpack.c.h.b16 %v2658
        %v2677 = vunpack.c.l.b16 %v2659
        %v2678 = vunpack.c.h.b16 %v2659
        %v2679 = vunpack.c.l.b16 %v2660
        %v2680 = vunpack.c.h.b16 %v2660
        %v2681 = vunpack.c.l.b16 %v2661
        %v2682 = vunpack.c.h.b16 %v2661
        %v2683 = vunpack.c.l.b16 %v2662
        %v2684 = vunpack.c.h.b16 %v2662
        %v2685 = vunpack.c.l.b16 %v2663
        %v2686 = vunpack.c.h.b16 %v2663
        %v2687 = vunpack.c.l.b16 %v2664
        %v2688 = vunpack.c.h.b16 %v2664
        %v2689 = vpack.c.b16 %v2675, %v2673
        %v2690 = vpack.c.b16 %v2676, %v2674
        %v2691 = vpack.c.b16 %v2679, %v2677
        %v2692 = vpack.c.b16 %v2680, %v2678
        %v2693 = vpack.c.b16 %v2683, %v2681
        %v2694 = vpack.c.b16 %v2684, %v2682
        %v2695 = vpack.c.b16 %v2687, %v2685
        %v2696 = vpack.c.b16 %v2688, %v2686
        %2705 = vmatpush.bf16.msra.mxu0 %v993
        %2706 = vmatpush.bf16.msra.mxu0 %v992
        %2707 = vmatpush.bf16.msra.mxu0 %v991
        %2708 = vmatpush.bf16.msra.mxu0 %v990
        %2709 = vmatpush.bf16.msra.mxu0 %v989
        %2710 = vmatpush.bf16.msra.mxu0 %v988
        %2711 = vmatpush.bf16.msra.mxu0 %v987
        %2712 = vmatpush.bf16.msra.mxu0 %v986
        %2713 = vmatmul.bf16.gmra.mxu0 %v2689
        %v2714 = vpop.f32.mrf.mxu0
        %v2715 = vadd.f32 0.0, %v2714
        %v2716 = vpop.f32.mrf.mxu0
        %v2717 = vadd.f32 0.0, %v2716
        %2718 = vmatmul.bf16.gmra.mxu0 %v2691
        %v2719 = vpop.f32.mrf.mxu0
        %v2720 = vadd.f32 0.0, %v2719
        %v2721 = vpop.f32.mrf.mxu0
        %v2722 = vadd.f32 0.0, %v2721
        %2723 = vmatmul.bf16.gmra.mxu0 %v2693
        %v2724 = vpop.f32.mrf.mxu0
        %v2725 = vadd.f32 0.0, %v2724
        %v2726 = vpop.f32.mrf.mxu0
        %v2727 = vadd.f32 0.0, %v2726
        %2728 = vmatmul.bf16.gmra.mxu0 %v2695
        %v2729 = vpop.f32.mrf.mxu0
        %v2730 = vadd.f32 0.0, %v2729
        %v2731 = vpop.f32.mrf.mxu0
        %v2732 = vadd.f32 0.0, %v2731
        %2733 = vdwg.mxu0
        %2734 = vmatpush.bf16.msra.mxu0 %v1001
        %2735 = vmatpush.bf16.msra.mxu0 %v1000
        %2736 = vmatpush.bf16.msra.mxu0 %v999
        %2737 = vmatpush.bf16.msra.mxu0 %v998
        %2738 = vmatpush.bf16.msra.mxu0 %v997
        %2739 = vmatpush.bf16.msra.mxu0 %v996
        %2740 = vmatpush.bf16.msra.mxu0 %v995
        %2741 = vmatpush.bf16.msra.mxu0 %v994
        %2742 = vmatmul.bf16.gmra.mxu0 %v2690
        %v2743 = vpop.f32.mrf.mxu0
        %v2744 = vadd.f32 %v2715, %v2743
        %v2745 = vpop.f32.mrf.mxu0
        %v2746 = vadd.f32 %v2717, %v2745
        %2747 = vmatmul.bf16.gmra.mxu0 %v2692
        %v2748 = vpop.f32.mrf.mxu0
        %v2749 = vadd.f32 %v2720, %v2748
        %v2750 = vpop.f32.mrf.mxu0
        %v2751 = vadd.f32 %v2722, %v2750
        %2752 = vmatmul.bf16.gmra.mxu0 %v2694
        %v2753 = vpop.f32.mrf.mxu0
        %v2754 = vadd.f32 %v2725, %v2753
        %v2755 = vpop.f32.mrf.mxu0
        %v2756 = vadd.f32 %v2727, %v2755
        %2757 = vmatmul.bf16.gmra.mxu0 %v2696
        %v2758 = vpop.f32.mrf.mxu0
        %v2759 = vadd.f32 %v2730, %v2758
        %v2760 = vpop.f32.mrf.mxu0
        %v2761 = vadd.f32 %v2732, %v2760
        %2762 = vdwg.mxu0
        %v2763 = vpack.c.bf16 %v2746, %v2744
        %v2764 = vpack.c.bf16 %v2751, %v2749
        %v2765 = vpack.c.bf16 %v2756, %v2754
        %v2766 = vpack.c.bf16 %v2761, %v2759
        %s2767 = scalar_lea.vmem [#allocation2], 512
        %v2768 = vld [vmem:[%s2767] sm:$0xf]
        %v2769 = vld [vmem:[%s2767 + $0x4] sm:$0xf]
        %v2770 = vld [vmem:[%s2767 + $0x8] sm:$0xf]
        %v2771 = vld [vmem:[%s2767 + $0xc] sm:$0xf]
        %v2772 = vld [vmem:[%s2767 + $0x10] sm:$0xf]
        %v2773 = vld [vmem:[%s2767 + $0x14] sm:$0xf]
        %v2774 = vld [vmem:[%s2767 + $0x18] sm:$0xf]
        %v2775 = vld [vmem:[%s2767 + $0x1c] sm:$0xf]
        %v2776 = vld [vmem:[%s2767 + $0x20] sm:$0xf]
        %v2777 = vld [vmem:[%s2767 + $0x24] sm:$0xf]
        %v2778 = vld [vmem:[%s2767 + $0x28] sm:$0xf]
        %v2779 = vld [vmem:[%s2767 + $0x2c] sm:$0xf]
        %v2780 = vld [vmem:[%s2767 + $0x30] sm:$0xf]
        %v2781 = vld [vmem:[%s2767 + $0x34] sm:$0xf]
        %v2782 = vld [vmem:[%s2767 + $0x38] sm:$0xf]
        %v2783 = vld [vmem:[%s2767 + $0x3c] sm:$0xf]
        %v2800 = vunpack.c.l.b16 %v2768
        %v2801 = vunpack.c.l.b16 %v2769
        %v2802 = vunpack.c.l.b16 %v2770
        %v2803 = vunpack.c.l.b16 %v2771
        %v2804 = vunpack.c.l.b16 %v2772
        %v2805 = vunpack.c.l.b16 %v2773
        %v2806 = vunpack.c.l.b16 %v2774
        %v2807 = vunpack.c.l.b16 %v2775
        %v2808 = vunpack.c.l.b16 %v2776
        %v2809 = vunpack.c.l.b16 %v2777
        %v2810 = vunpack.c.l.b16 %v2778
        %v2811 = vunpack.c.l.b16 %v2779
        %v2812 = vunpack.c.l.b16 %v2780
        %v2813 = vunpack.c.l.b16 %v2781
        %v2814 = vunpack.c.l.b16 %v2782
        %v2815 = vunpack.c.l.b16 %v2783
        %v2816 = vpack.c.b16 %v2801, %v2800
        %v2817 = vpack.c.b16 %v2803, %v2802
        %v2818 = vpack.c.b16 %v2805, %v2804
        %v2819 = vpack.c.b16 %v2807, %v2806
        %v2820 = vpack.c.b16 %v2809, %v2808
        %v2821 = vpack.c.b16 %v2811, %v2810
        %v2822 = vpack.c.b16 %v2813, %v2812
        %v2823 = vpack.c.b16 %v2815, %v2814
        %2832 = vmatpush.bf16.msra.mxu0 %v2823
        %2833 = vmatpush.bf16.msra.mxu0 %v2822
        %2834 = vmatpush.bf16.msra.mxu0 %v2821
        %2835 = vmatpush.bf16.msra.mxu0 %v2820
        %2836 = vmatpush.bf16.msra.mxu0 %v2819
        %2837 = vmatpush.bf16.msra.mxu0 %v2818
        %2838 = vmatpush.bf16.msra.mxu0 %v2817
        %2839 = vmatpush.bf16.msra.mxu0 %v2816
        %2840 = vmatmul.bf16.gmra.mxu0 %v2763
        %v2841 = vpop.f32.mrf.mxu0
        %v2842 = vadd.f32 0.0, %v2841
        %v2843 = vpop.f32.mrf.mxu0
        %v2844 = vadd.f32 0.0, %v2843
        %2845 = vmatmul.bf16.gmra.mxu0 %v2764
        %v2846 = vpop.f32.mrf.mxu0
        %v2847 = vadd.f32 0.0, %v2846
        %v2848 = vpop.f32.mrf.mxu0
        %v2849 = vadd.f32 0.0, %v2848
        %2850 = vmatmul.bf16.gmra.mxu0 %v2765
        %v2851 = vpop.f32.mrf.mxu0
        %v2852 = vadd.f32 0.0, %v2851
        %v2853 = vpop.f32.mrf.mxu0
        %v2854 = vadd.f32 0.0, %v2853
        %2855 = vmatmul.bf16.gmra.mxu0 %v2766
        %v2856 = vpop.f32.mrf.mxu0
        %v2857 = vadd.f32 0.0, %v2856
        %v2858 = vpop.f32.mrf.mxu0
        %v2859 = vadd.f32 0.0, %v2858
        %2860 = vdwg.mxu0
        %v2861 = vadd.f32 %v2648, %v2842
        %v2862 = vadd.f32 %v2649, %v2844
        %v2863 = vadd.f32 %v2650, %v2847
        %v2864 = vadd.f32 %v2651, %v2849
        %v2865 = vadd.f32 %v2652, %v2852
        %v2866 = vadd.f32 %v2653, %v2854
        %v2867 = vadd.f32 %v2654, %v2857
        %v2868 = vadd.f32 %v2655, %v2859
        %v2869 = vperm.slane %v840, 0
        %v2870 = vadd.f32 %v2861, %v2869
        %v2871 = vadd.f32 %v2862, %v2869
        %v2872 = vadd.f32 %v2863, %v2869
        %v2873 = vadd.f32 %v2864, %v2869
        %v2874 = vadd.f32 %v2865, %v2869
        %v2875 = vadd.f32 %v2866, %v2869
        %v2876 = vadd.f32 %v2867, %v2869
        %v2877 = vadd.f32 %v2868, %v2869
        %v2878 = vmax.f32 %v2870, 0.0
        %v2879 = vmax.f32 %v2871, 0.0
        %v2880 = vmax.f32 %v2872, 0.0
        %v2881 = vmax.f32 %v2873, 0.0
        %v2882 = vmax.f32 %v2874, 0.0
        %v2883 = vmax.f32 %v2875, 0.0
        %v2884 = vmax.f32 %v2876, 0.0
        %v2885 = vmax.f32 %v2877, 0.0
        %v2886 = vpack.c.bf16 %v2879, %v2878
        %v2887 = vpack.c.bf16 %v2881, %v2880
        %v2888 = vpack.c.bf16 %v2883, %v2882
        %v2889 = vpack.c.bf16 %v2885, %v2884
        %v2890 = vld [vmem:[%s2] sm:$0xf]
        %v2891 = vld [vmem:[%s2 + $0x4] sm:$0xf]
        %v2894 = vunpack.c.l.b16 %v2890
        %v2895 = vunpack.c.l.b16 %v2891
        %v2896 = vpack.c.b16 %v2895, %v2894
        %vm2897 = vcmask 523264
        %v2899 = vsel %vm2897, %v2896, 0
        %2901 = vmatpush.bf16.msra.mxu0 0
        %2902 = vmatpush.bf16.msra.mxu0 0
        %2903 = vmatpush.bf16.msra.mxu0 0
        %2904 = vmatpush.bf16.msra.mxu0 0
        %2905 = vmatpush.bf16.msra.mxu0 %v2889
        %2906 = vmatpush.bf16.msra.mxu0 %v2888
        %2907 = vmatpush.bf16.msra.mxu0 %v2887
        %2908 = vmatpush.bf16.msra.mxu0 %v2886
        %2909 = vmatmul.bf16.gmra.mxu0 %v2899
        %v2910 = vpop.f32.mrf.mxu0
        %v2911 = vadd.f32 0.0, %v2910
        %v2912 = vpop.f32.mrf.mxu0
        %v2913 = vadd.f32 0.0, %v2912
        %2914 = vdwg.mxu0
        %v2915 = vpack.c.bf16 %v2913, %v2911
        %v2916 = vld [vmem:[#allocation4] sm:$0xf]
        %v2917 = vld [vmem:[#allocation4 + $0x4] sm:$0xf]
        %v2918 = vld [vmem:[#allocation4 + $0x8] sm:$0xf]
        %v2919 = vld [vmem:[#allocation4 + $0xc] sm:$0xf]
        %v2920 = vld [vmem:[#allocation4 + $0x10] sm:$0xf]
        %v2921 = vld [vmem:[#allocation4 + $0x14] sm:$0xf]
        %v2922 = vld [vmem:[#allocation4 + $0x18] sm:$0xf]
        %v2923 = vld [vmem:[#allocation4 + $0x1c] sm:$0xf]
        %v2924 = vld [vmem:[#allocation4 + $0x20] sm:$0xf]
        %v2925 = vld [vmem:[#allocation4 + $0x24] sm:$0xf]
        %v2926 = vld [vmem:[#allocation4 + $0x28] sm:$0xf]
        %v2927 = vld [vmem:[#allocation4 + $0x2c] sm:$0xf]
        %v2928 = vld [vmem:[#allocation4 + $0x30] sm:$0xf]
        %v2929 = vld [vmem:[#allocation4 + $0x34] sm:$0xf]
        %v2930 = vld [vmem:[#allocation4 + $0x38] sm:$0xf]
        %v2931 = vld [vmem:[#allocation4 + $0x3c] sm:$0xf]
        %s2932 = scalar_lea.vmem %s2, 8
        %v2933 = vld [vmem:[%s2932] sm:$0xf]
        %v2934 = vld [vmem:[%s2932 + $0x4] sm:$0xf]
        %v2937 = vunpack.c.l.b16 %v2933
        %v2938 = vunpack.c.l.b16 %v2934
        %v2939 = vpack.c.b16 %v2938, %v2937
        %v2941 = vsel %vm2897, %v2939, 0
        %2943 = vmatpush.bf16.msra.mxu0 0
        %2944 = vmatpush.bf16.msra.mxu0 0
        %2945 = vmatpush.bf16.msra.mxu0 0
        %2946 = vmatpush.bf16.msra.mxu0 0
        %2947 = vmatpush.bf16.msra.mxu0 %v2889
        %2948 = vmatpush.bf16.msra.mxu0 %v2888
        %2949 = vmatpush.bf16.msra.mxu0 %v2887
        %2950 = vmatpush.bf16.msra.mxu0 %v2886
        %2951 = vmatmul.bf16.gmra.mxu0 %v2941
        %v2952 = vpop.f32.mrf.mxu0
        %v2953 = vadd.f32 0.0, %v2952
        %v2954 = vpop.f32.mrf.mxu0
        %v2955 = vadd.f32 0.0, %v2954
        %2956 = vdwg.mxu0
        %v2957 = vpack.c.bf16 %v2955, %v2953
        %s2958 = scalar_lea.vmem [#allocation4], 64
        %v2959 = vld [vmem:[%s2958] sm:$0xf]
        %v2960 = vld [vmem:[%s2958 + $0x4] sm:$0xf]
        %v2961 = vld [vmem:[%s2958 + $0x8] sm:$0xf]
        %v2962 = vld [vmem:[%s2958 + $0xc] sm:$0xf]
        %v2963 = vld [vmem:[%s2958 + $0x10] sm:$0xf]
        %v2964 = vld [vmem:[%s2958 + $0x14] sm:$0xf]
        %v2965 = vld [vmem:[%s2958 + $0x18] sm:$0xf]
        %v2966 = vld [vmem:[%s2958 + $0x1c] sm:$0xf]
        %v2967 = vld [vmem:[%s2958 + $0x20] sm:$0xf]
        %v2968 = vld [vmem:[%s2958 + $0x24] sm:$0xf]
        %v2969 = vld [vmem:[%s2958 + $0x28] sm:$0xf]
        %v2970 = vld [vmem:[%s2958 + $0x2c] sm:$0xf]
        %v2971 = vld [vmem:[%s2958 + $0x30] sm:$0xf]
        %v2972 = vld [vmem:[%s2958 + $0x34] sm:$0xf]
        %v2973 = vld [vmem:[%s2958 + $0x38] sm:$0xf]
        %v2974 = vld [vmem:[%s2958 + $0x3c] sm:$0xf]
        %v2991 = vunpack.c.l.b16 %v2959
        %v2992 = vunpack.c.l.b16 %v2960
        %v2993 = vunpack.c.l.b16 %v2961
        %v2994 = vunpack.c.l.b16 %v2962
        %v2995 = vunpack.c.l.b16 %v2963
        %v2996 = vunpack.c.l.b16 %v2964
        %v2997 = vunpack.c.l.b16 %v2965
        %v2998 = vunpack.c.l.b16 %v2966
        %v2999 = vunpack.c.l.b16 %v2967
        %v3000 = vunpack.c.l.b16 %v2968
        %v3001 = vunpack.c.l.b16 %v2969
        %v3002 = vunpack.c.l.b16 %v2970
        %v3003 = vunpack.c.l.b16 %v2971
        %v3004 = vunpack.c.l.b16 %v2972
        %v3005 = vunpack.c.l.b16 %v2973
        %v3006 = vunpack.c.l.b16 %v2974
        %v3007 = vpack.c.b16 %v2992, %v2991
        %v3008 = vpack.c.b16 %v2994, %v2993
        %v3009 = vpack.c.b16 %v2996, %v2995
        %v3010 = vpack.c.b16 %v2998, %v2997
        %v3011 = vpack.c.b16 %v3000, %v2999
        %v3012 = vpack.c.b16 %v3002, %v3001
        %v3013 = vpack.c.b16 %v3004, %v3003
        %v3014 = vpack.c.b16 %v3006, %v3005
        %3023 = vmatpush.bf16.msra.mxu0 %v3014
        %3024 = vmatpush.bf16.msra.mxu0 %v3013
        %3025 = vmatpush.bf16.msra.mxu0 %v3012
        %3026 = vmatpush.bf16.msra.mxu0 %v3011
        %3027 = vmatpush.bf16.msra.mxu0 %v3010
        %3028 = vmatpush.bf16.msra.mxu0 %v3009
        %3029 = vmatpush.bf16.msra.mxu0 %v3008
        %3030 = vmatpush.bf16.msra.mxu0 %v3007
        %3031 = vmatmul.bf16.gmra.mxu0 %v2957
        %v3032 = vpop.f32.mrf.mxu0
        %v3033 = vadd.f32 0.0, %v3032
        %v3034 = vpop.f32.mrf.mxu0
        %v3035 = vadd.f32 0.0, %v3034
        %3036 = vdwg.mxu0
        %v3053 = vunpack.c.l.b16 %v2916
        %v3054 = vunpack.c.l.b16 %v2917
        %v3055 = vunpack.c.l.b16 %v2918
        %v3056 = vunpack.c.l.b16 %v2919
        %v3057 = vunpack.c.l.b16 %v2920
        %v3058 = vunpack.c.l.b16 %v2921
        %v3059 = vunpack.c.l.b16 %v2922
        %v3060 = vunpack.c.l.b16 %v2923
        %v3061 = vunpack.c.l.b16 %v2924
        %v3062 = vunpack.c.l.b16 %v2925
        %v3063 = vunpack.c.l.b16 %v2926
        %v3064 = vunpack.c.l.b16 %v2927
        %v3065 = vunpack.c.l.b16 %v2928
        %v3066 = vunpack.c.l.b16 %v2929
        %v3067 = vunpack.c.l.b16 %v2930
        %v3068 = vunpack.c.l.b16 %v2931
        %v3069 = vpack.c.b16 %v3054, %v3053
        %v3070 = vpack.c.b16 %v3056, %v3055
        %v3071 = vpack.c.b16 %v3058, %v3057
        %v3072 = vpack.c.b16 %v3060, %v3059
        %v3073 = vpack.c.b16 %v3062, %v3061
        %v3074 = vpack.c.b16 %v3064, %v3063
        %v3075 = vpack.c.b16 %v3066, %v3065
        %v3076 = vpack.c.b16 %v3068, %v3067
        %3085 = vmatpush.bf16.msra.mxu0 %v3076
        %3086 = vmatpush.bf16.msra.mxu0 %v3075
        %3087 = vmatpush.bf16.msra.mxu0 %v3074
        %3088 = vmatpush.bf16.msra.mxu0 %v3073
        %3089 = vmatpush.bf16.msra.mxu0 %v3072
        %3090 = vmatpush.bf16.msra.mxu0 %v3071
        %3091 = vmatpush.bf16.msra.mxu0 %v3070
        %3092 = vmatpush.bf16.msra.mxu0 %v3069
        %3093 = vmatmul.bf16.gmra.mxu0 %v2915
        %v3094 = vpop.f32.mrf.mxu0
        %v3095 = vadd.f32 %v3033, %v3094
        %v3096 = vpop.f32.mrf.mxu0
        %v3097 = vadd.f32 %v3035, %v3096
        %3098 = vdwg.mxu0
        %s3099 = scalar_lea.vmem %s2, 16
        %v3100 = vld [vmem:[%s3099] sm:$0xf]
        %v3101 = vld [vmem:[%s3099 + $0x4] sm:$0xf]
        %v3104 = vunpack.c.l.b16 %v3100
        %v3105 = vunpack.c.l.b16 %v3101
        %v3106 = vpack.c.b16 %v3105, %v3104
        %v3108 = vsel %vm2897, %v3106, 0
        %3110 = vmatpush.bf16.msra.mxu0 0
        %3111 = vmatpush.bf16.msra.mxu0 0
        %3112 = vmatpush.bf16.msra.mxu0 0
        %3113 = vmatpush.bf16.msra.mxu0 0
        %3114 = vmatpush.bf16.msra.mxu0 %v2889
        %3115 = vmatpush.bf16.msra.mxu0 %v2888
        %3116 = vmatpush.bf16.msra.mxu0 %v2887
        %3117 = vmatpush.bf16.msra.mxu0 %v2886
        %3118 = vmatmul.bf16.gmra.mxu0 %v3108
        %v3119 = vpop.f32.mrf.mxu0
        %v3120 = vadd.f32 0.0, %v3119
        %v3121 = vpop.f32.mrf.mxu0
        %v3122 = vadd.f32 0.0, %v3121
        %3123 = vdwg.mxu0
        %v3124 = vpack.c.bf16 %v3122, %v3120
        %s3125 = scalar_lea.vmem [#allocation4], 128
        %v3126 = vld [vmem:[%s3125] sm:$0xf]
        %v3127 = vld [vmem:[%s3125 + $0x4] sm:$0xf]
        %v3128 = vld [vmem:[%s3125 + $0x8] sm:$0xf]
        %v3129 = vld [vmem:[%s3125 + $0xc] sm:$0xf]
        %v3130 = vld [vmem:[%s3125 + $0x10] sm:$0xf]
        %v3131 = vld [vmem:[%s3125 + $0x14] sm:$0xf]
        %v3132 = vld [vmem:[%s3125 + $0x18] sm:$0xf]
        %v3133 = vld [vmem:[%s3125 + $0x1c] sm:$0xf]
        %v3134 = vld [vmem:[%s3125 + $0x20] sm:$0xf]
        %v3135 = vld [vmem:[%s3125 + $0x24] sm:$0xf]
        %v3136 = vld [vmem:[%s3125 + $0x28] sm:$0xf]
        %v3137 = vld [vmem:[%s3125 + $0x2c] sm:$0xf]
        %v3138 = vld [vmem:[%s3125 + $0x30] sm:$0xf]
        %v3139 = vld [vmem:[%s3125 + $0x34] sm:$0xf]
        %v3140 = vld [vmem:[%s3125 + $0x38] sm:$0xf]
        %v3141 = vld [vmem:[%s3125 + $0x3c] sm:$0xf]
        %v3158 = vunpack.c.l.b16 %v3126
        %v3159 = vunpack.c.l.b16 %v3127
        %v3160 = vunpack.c.l.b16 %v3128
        %v3161 = vunpack.c.l.b16 %v3129
        %v3162 = vunpack.c.l.b16 %v3130
        %v3163 = vunpack.c.l.b16 %v3131
        %v3164 = vunpack.c.l.b16 %v3132
        %v3165 = vunpack.c.l.b16 %v3133
        %v3166 = vunpack.c.l.b16 %v3134
        %v3167 = vunpack.c.l.b16 %v3135
        %v3168 = vunpack.c.l.b16 %v3136
        %v3169 = vunpack.c.l.b16 %v3137
        %v3170 = vunpack.c.l.b16 %v3138
        %v3171 = vunpack.c.l.b16 %v3139
        %v3172 = vunpack.c.l.b16 %v3140
        %v3173 = vunpack.c.l.b16 %v3141
        %v3174 = vpack.c.b16 %v3159, %v3158
        %v3175 = vpack.c.b16 %v3161, %v3160
        %v3176 = vpack.c.b16 %v3163, %v3162
        %v3177 = vpack.c.b16 %v3165, %v3164
        %v3178 = vpack.c.b16 %v3167, %v3166
        %v3179 = vpack.c.b16 %v3169, %v3168
        %v3180 = vpack.c.b16 %v3171, %v3170
        %v3181 = vpack.c.b16 %v3173, %v3172
        %3190 = vmatpush.bf16.msra.mxu0 %v3181
        %3191 = vmatpush.bf16.msra.mxu0 %v3180
        %3192 = vmatpush.bf16.msra.mxu0 %v3179
        %3193 = vmatpush.bf16.msra.mxu0 %v3178
        %3194 = vmatpush.bf16.msra.mxu0 %v3177
        %3195 = vmatpush.bf16.msra.mxu0 %v3176
        %3196 = vmatpush.bf16.msra.mxu0 %v3175
        %3197 = vmatpush.bf16.msra.mxu0 %v3174
        %3198 = vmatmul.bf16.gmra.mxu0 %v3124
        %v3199 = vpop.f32.mrf.mxu0
        %v3200 = vadd.f32 0.0, %v3199
        %v3201 = vpop.f32.mrf.mxu0
        %v3202 = vadd.f32 0.0, %v3201
        %3203 = vdwg.mxu0
        %v3204 = vadd.f32 %v3095, %v3200
        %v3205 = vadd.f32 %v3097, %v3202
        %s3206 = scalar_lea.vmem %s2, 24
        %v3207 = vld [vmem:[%s3206] sm:$0xf]
        %v3208 = vld [vmem:[%s3206 + $0x4] sm:$0xf]
        %v3211 = vunpack.c.l.b16 %v3207
        %v3212 = vunpack.c.l.b16 %v3208
        %v3213 = vpack.c.b16 %v3212, %v3211
        %v3215 = vsel %vm2897, %v3213, 0
        %3217 = vmatpush.bf16.msra.mxu0 0
        %3218 = vmatpush.bf16.msra.mxu0 0
        %3219 = vmatpush.bf16.msra.mxu0 0
        %3220 = vmatpush.bf16.msra.mxu0 0
        %3221 = vmatpush.bf16.msra.mxu0 %v2889
        %3222 = vmatpush.bf16.msra.mxu0 %v2888
        %3223 = vmatpush.bf16.msra.mxu0 %v2887
        %3224 = vmatpush.bf16.msra.mxu0 %v2886
        %3225 = vmatmul.bf16.gmra.mxu0 %v3215
        %v3226 = vpop.f32.mrf.mxu0
        %v3227 = vadd.f32 0.0, %v3226
        %v3228 = vpop.f32.mrf.mxu0
        %v3229 = vadd.f32 0.0, %v3228
        %3230 = vdwg.mxu0
        %v3231 = vpack.c.bf16 %v3229, %v3227
        %s3232 = scalar_lea.vmem [#allocation4], 192
        %v3233 = vld [vmem:[%s3232] sm:$0xf]
        %v3234 = vld [vmem:[%s3232 + $0x4] sm:$0xf]
        %v3235 = vld [vmem:[%s3232 + $0x8] sm:$0xf]
        %v3236 = vld [vmem:[%s3232 + $0xc] sm:$0xf]
        %v3237 = vld [vmem:[%s3232 + $0x10] sm:$0xf]
        %v3238 = vld [vmem:[%s3232 + $0x14] sm:$0xf]
        %v3239 = vld [vmem:[%s3232 + $0x18] sm:$0xf]
        %v3240 = vld [vmem:[%s3232 + $0x1c] sm:$0xf]
        %v3241 = vld [vmem:[%s3232 + $0x20] sm:$0xf]
        %v3242 = vld [vmem:[%s3232 + $0x24] sm:$0xf]
        %v3243 = vld [vmem:[%s3232 + $0x28] sm:$0xf]
        %v3244 = vld [vmem:[%s3232 + $0x2c] sm:$0xf]
        %v3245 = vld [vmem:[%s3232 + $0x30] sm:$0xf]
        %v3246 = vld [vmem:[%s3232 + $0x34] sm:$0xf]
        %v3247 = vld [vmem:[%s3232 + $0x38] sm:$0xf]
        %v3248 = vld [vmem:[%s3232 + $0x3c] sm:$0xf]
        %v3265 = vunpack.c.l.b16 %v3233
        %v3266 = vunpack.c.l.b16 %v3234
        %v3267 = vunpack.c.l.b16 %v3235
        %v3268 = vunpack.c.l.b16 %v3236
        %v3269 = vunpack.c.l.b16 %v3237
        %v3270 = vunpack.c.l.b16 %v3238
        %v3271 = vunpack.c.l.b16 %v3239
        %v3272 = vunpack.c.l.b16 %v3240
        %v3273 = vunpack.c.l.b16 %v3241
        %v3274 = vunpack.c.l.b16 %v3242
        %v3275 = vunpack.c.l.b16 %v3243
        %v3276 = vunpack.c.l.b16 %v3244
        %v3277 = vunpack.c.l.b16 %v3245
        %v3278 = vunpack.c.l.b16 %v3246
        %v3279 = vunpack.c.l.b16 %v3247
        %v3280 = vunpack.c.l.b16 %v3248
        %v3281 = vpack.c.b16 %v3266, %v3265
        %v3282 = vpack.c.b16 %v3268, %v3267
        %v3283 = vpack.c.b16 %v3270, %v3269
        %v3284 = vpack.c.b16 %v3272, %v3271
        %v3285 = vpack.c.b16 %v3274, %v3273
        %v3286 = vpack.c.b16 %v3276, %v3275
        %v3287 = vpack.c.b16 %v3278, %v3277
        %v3288 = vpack.c.b16 %v3280, %v3279
        %3297 = vmatpush.bf16.msra.mxu0 %v3288
        %3298 = vmatpush.bf16.msra.mxu0 %v3287
        %3299 = vmatpush.bf16.msra.mxu0 %v3286
        %3300 = vmatpush.bf16.msra.mxu0 %v3285
        %3301 = vmatpush.bf16.msra.mxu0 %v3284
        %3302 = vmatpush.bf16.msra.mxu0 %v3283
        %3303 = vmatpush.bf16.msra.mxu0 %v3282
        %3304 = vmatpush.bf16.msra.mxu0 %v3281
        %3305 = vmatmul.bf16.gmra.mxu0 %v3231
        %v3306 = vpop.f32.mrf.mxu0
        %v3307 = vadd.f32 0.0, %v3306
        %v3308 = vpop.f32.mrf.mxu0
        %v3309 = vadd.f32 0.0, %v3308
        %3310 = vdwg.mxu0
        %v3311 = vadd.f32 %v3204, %v3307
        %v3312 = vadd.f32 %v3205, %v3309
        %s3313 = scalar_lea.vmem %s2, 32
        %v3314 = vld [vmem:[%s3313] sm:$0xf]
        %v3315 = vld [vmem:[%s3313 + $0x4] sm:$0xf]
        %v3318 = vunpack.c.l.b16 %v3314
        %v3319 = vunpack.c.l.b16 %v3315
        %v3320 = vpack.c.b16 %v3319, %v3318
        %v3322 = vsel %vm2897, %v3320, 0
        %3324 = vmatpush.bf16.msra.mxu0 0
        %3325 = vmatpush.bf16.msra.mxu0 0
        %3326 = vmatpush.bf16.msra.mxu0 0
        %3327 = vmatpush.bf16.msra.mxu0 0
        %3328 = vmatpush.bf16.msra.mxu0 %v2889
        %3329 = vmatpush.bf16.msra.mxu0 %v2888
        %3330 = vmatpush.bf16.msra.mxu0 %v2887
        %3331 = vmatpush.bf16.msra.mxu0 %v2886
        %3332 = vmatmul.bf16.gmra.mxu0 %v3322
        %v3333 = vpop.f32.mrf.mxu0
        %v3334 = vadd.f32 0.0, %v3333
        %v3335 = vpop.f32.mrf.mxu0
        %v3336 = vadd.f32 0.0, %v3335
        %3337 = vdwg.mxu0
        %v3338 = vpack.c.bf16 %v3336, %v3334
        %s3339 = scalar_lea.vmem [#allocation4], 256
        %v3340 = vld [vmem:[%s3339] sm:$0xf]
        %v3341 = vld [vmem:[%s3339 + $0x4] sm:$0xf]
        %v3342 = vld [vmem:[%s3339 + $0x8] sm:$0xf]
        %v3343 = vld [vmem:[%s3339 + $0xc] sm:$0xf]
        %v3344 = vld [vmem:[%s3339 + $0x10] sm:$0xf]
        %v3345 = vld [vmem:[%s3339 + $0x14] sm:$0xf]
        %v3346 = vld [vmem:[%s3339 + $0x18] sm:$0xf]
        %v3347 = vld [vmem:[%s3339 + $0x1c] sm:$0xf]
        %v3348 = vld [vmem:[%s3339 + $0x20] sm:$0xf]
        %v3349 = vld [vmem:[%s3339 + $0x24] sm:$0xf]
        %v3350 = vld [vmem:[%s3339 + $0x28] sm:$0xf]
        %v3351 = vld [vmem:[%s3339 + $0x2c] sm:$0xf]
        %v3352 = vld [vmem:[%s3339 + $0x30] sm:$0xf]
        %v3353 = vld [vmem:[%s3339 + $0x34] sm:$0xf]
        %v3354 = vld [vmem:[%s3339 + $0x38] sm:$0xf]
        %v3355 = vld [vmem:[%s3339 + $0x3c] sm:$0xf]
        %v3372 = vunpack.c.l.b16 %v3340
        %v3373 = vunpack.c.l.b16 %v3341
        %v3374 = vunpack.c.l.b16 %v3342
        %v3375 = vunpack.c.l.b16 %v3343
        %v3376 = vunpack.c.l.b16 %v3344
        %v3377 = vunpack.c.l.b16 %v3345
        %v3378 = vunpack.c.l.b16 %v3346
        %v3379 = vunpack.c.l.b16 %v3347
        %v3380 = vunpack.c.l.b16 %v3348
        %v3381 = vunpack.c.l.b16 %v3349
        %v3382 = vunpack.c.l.b16 %v3350
        %v3383 = vunpack.c.l.b16 %v3351
        %v3384 = vunpack.c.l.b16 %v3352
        %v3385 = vunpack.c.l.b16 %v3353
        %v3386 = vunpack.c.l.b16 %v3354
        %v3387 = vunpack.c.l.b16 %v3355
        %v3388 = vpack.c.b16 %v3373, %v3372
        %v3389 = vpack.c.b16 %v3375, %v3374
        %v3390 = vpack.c.b16 %v3377, %v3376
        %v3391 = vpack.c.b16 %v3379, %v3378
        %v3392 = vpack.c.b16 %v3381, %v3380
        %v3393 = vpack.c.b16 %v3383, %v3382
        %v3394 = vpack.c.b16 %v3385, %v3384
        %v3395 = vpack.c.b16 %v3387, %v3386
        %3404 = vmatpush.bf16.msra.mxu0 %v3395
        %3405 = vmatpush.bf16.msra.mxu0 %v3394
        %3406 = vmatpush.bf16.msra.mxu0 %v3393
        %3407 = vmatpush.bf16.msra.mxu0 %v3392
        %3408 = vmatpush.bf16.msra.mxu0 %v3391
        %3409 = vmatpush.bf16.msra.mxu0 %v3390
        %3410 = vmatpush.bf16.msra.mxu0 %v3389
        %3411 = vmatpush.bf16.msra.mxu0 %v3388
        %3412 = vmatmul.bf16.gmra.mxu0 %v3338
        %v3413 = vpop.f32.mrf.mxu0
        %v3414 = vadd.f32 0.0, %v3413
        %v3415 = vpop.f32.mrf.mxu0
        %v3416 = vadd.f32 0.0, %v3415
        %3417 = vdwg.mxu0
        %v3418 = vadd.f32 %v3311, %v3414
        %v3419 = vadd.f32 %v3312, %v3416
        %s3420 = scalar_lea.vmem %s2, 40
        %v3421 = vld [vmem:[%s3420] sm:$0xf]
        %v3422 = vld [vmem:[%s3420 + $0x4] sm:$0xf]
        %v3425 = vunpack.c.l.b16 %v3421
        %v3426 = vunpack.c.l.b16 %v3422
        %v3427 = vpack.c.b16 %v3426, %v3425
        %v3429 = vsel %vm2897, %v3427, 0
        %3431 = vmatpush.bf16.msra.mxu0 0
        %3432 = vmatpush.bf16.msra.mxu0 0
        %3433 = vmatpush.bf16.msra.mxu0 0
        %3434 = vmatpush.bf16.msra.mxu0 0
        %3435 = vmatpush.bf16.msra.mxu0 %v2889
        %3436 = vmatpush.bf16.msra.mxu0 %v2888
        %3437 = vmatpush.bf16.msra.mxu0 %v2887
        %3438 = vmatpush.bf16.msra.mxu0 %v2886
        %3439 = vmatmul.bf16.gmra.mxu0 %v3429
        %v3440 = vpop.f32.mrf.mxu0
        %v3441 = vadd.f32 0.0, %v3440
        %v3442 = vpop.f32.mrf.mxu0
        %v3443 = vadd.f32 0.0, %v3442
        %3444 = vdwg.mxu0
        %v3445 = vpack.c.bf16 %v3443, %v3441
        %s3446 = scalar_lea.vmem [#allocation4], 320
        %v3447 = vld [vmem:[%s3446] sm:$0xf]
        %v3448 = vld [vmem:[%s3446 + $0x4] sm:$0xf]
        %v3449 = vld [vmem:[%s3446 + $0x8] sm:$0xf]
        %v3450 = vld [vmem:[%s3446 + $0xc] sm:$0xf]
        %v3451 = vld [vmem:[%s3446 + $0x10] sm:$0xf]
        %v3452 = vld [vmem:[%s3446 + $0x14] sm:$0xf]
        %v3453 = vld [vmem:[%s3446 + $0x18] sm:$0xf]
        %v3454 = vld [vmem:[%s3446 + $0x1c] sm:$0xf]
        %v3455 = vld [vmem:[%s3446 + $0x20] sm:$0xf]
        %v3456 = vld [vmem:[%s3446 + $0x24] sm:$0xf]
        %v3457 = vld [vmem:[%s3446 + $0x28] sm:$0xf]
        %v3458 = vld [vmem:[%s3446 + $0x2c] sm:$0xf]
        %v3459 = vld [vmem:[%s3446 + $0x30] sm:$0xf]
        %v3460 = vld [vmem:[%s3446 + $0x34] sm:$0xf]
        %v3461 = vld [vmem:[%s3446 + $0x38] sm:$0xf]
        %v3462 = vld [vmem:[%s3446 + $0x3c] sm:$0xf]
        %v3479 = vunpack.c.l.b16 %v3447
        %v3480 = vunpack.c.l.b16 %v3448
        %v3481 = vunpack.c.l.b16 %v3449
        %v3482 = vunpack.c.l.b16 %v3450
        %v3483 = vunpack.c.l.b16 %v3451
        %v3484 = vunpack.c.l.b16 %v3452
        %v3485 = vunpack.c.l.b16 %v3453
        %v3486 = vunpack.c.l.b16 %v3454
        %v3487 = vunpack.c.l.b16 %v3455
        %v3488 = vunpack.c.l.b16 %v3456
        %v3489 = vunpack.c.l.b16 %v3457
        %v3490 = vunpack.c.l.b16 %v3458
        %v3491 = vunpack.c.l.b16 %v3459
        %v3492 = vunpack.c.l.b16 %v3460
        %v3493 = vunpack.c.l.b16 %v3461
        %v3494 = vunpack.c.l.b16 %v3462
        %v3495 = vpack.c.b16 %v3480, %v3479
        %v3496 = vpack.c.b16 %v3482, %v3481
        %v3497 = vpack.c.b16 %v3484, %v3483
        %v3498 = vpack.c.b16 %v3486, %v3485
        %v3499 = vpack.c.b16 %v3488, %v3487
        %v3500 = vpack.c.b16 %v3490, %v3489
        %v3501 = vpack.c.b16 %v3492, %v3491
        %v3502 = vpack.c.b16 %v3494, %v3493
        %3511 = vmatpush.bf16.msra.mxu0 %v3502
        %3512 = vmatpush.bf16.msra.mxu0 %v3501
        %3513 = vmatpush.bf16.msra.mxu0 %v3500
        %3514 = vmatpush.bf16.msra.mxu0 %v3499
        %3515 = vmatpush.bf16.msra.mxu0 %v3498
        %3516 = vmatpush.bf16.msra.mxu0 %v3497
        %3517 = vmatpush.bf16.msra.mxu0 %v3496
        %3518 = vmatpush.bf16.msra.mxu0 %v3495
        %3519 = vmatmul.bf16.gmra.mxu0 %v3445
        %v3520 = vpop.f32.mrf.mxu0
        %v3521 = vadd.f32 0.0, %v3520
        %v3522 = vpop.f32.mrf.mxu0
        %v3523 = vadd.f32 0.0, %v3522
        %3524 = vdwg.mxu0
        %v3525 = vadd.f32 %v3418, %v3521
        %v3526 = vadd.f32 %v3419, %v3523
        %s3527 = scalar_lea.vmem %s2, 48
        %v3528 = vld [vmem:[%s3527] sm:$0xf]
        %v3529 = vld [vmem:[%s3527 + $0x4] sm:$0xf]
        %v3532 = vunpack.c.l.b16 %v3528
        %v3533 = vunpack.c.l.b16 %v3529
        %v3534 = vpack.c.b16 %v3533, %v3532
        %v3536 = vsel %vm2897, %v3534, 0
        %3538 = vmatpush.bf16.msra.mxu0 0
        %3539 = vmatpush.bf16.msra.mxu0 0
        %3540 = vmatpush.bf16.msra.mxu0 0
        %3541 = vmatpush.bf16.msra.mxu0 0
        %3542 = vmatpush.bf16.msra.mxu0 %v2889
        %3543 = vmatpush.bf16.msra.mxu0 %v2888
        %3544 = vmatpush.bf16.msra.mxu0 %v2887
        %3545 = vmatpush.bf16.msra.mxu0 %v2886
        %3546 = vmatmul.bf16.gmra.mxu0 %v3536
        %v3547 = vpop.f32.mrf.mxu0
        %v3548 = vadd.f32 0.0, %v3547
        %v3549 = vpop.f32.mrf.mxu0
        %v3550 = vadd.f32 0.0, %v3549
        %3551 = vdwg.mxu0
        %v3552 = vpack.c.bf16 %v3550, %v3548
        %s3553 = scalar_lea.vmem [#allocation4], 384
        %v3554 = vld [vmem:[%s3553] sm:$0xf]
        %v3555 = vld [vmem:[%s3553 + $0x4] sm:$0xf]
        %v3556 = vld [vmem:[%s3553 + $0x8] sm:$0xf]
        %v3557 = vld [vmem:[%s3553 + $0xc] sm:$0xf]
        %v3558 = vld [vmem:[%s3553 + $0x10] sm:$0xf]
        %v3559 = vld [vmem:[%s3553 + $0x14] sm:$0xf]
        %v3560 = vld [vmem:[%s3553 + $0x18] sm:$0xf]
        %v3561 = vld [vmem:[%s3553 + $0x1c] sm:$0xf]
        %v3562 = vld [vmem:[%s3553 + $0x20] sm:$0xf]
        %v3563 = vld [vmem:[%s3553 + $0x24] sm:$0xf]
        %v3564 = vld [vmem:[%s3553 + $0x28] sm:$0xf]
        %v3565 = vld [vmem:[%s3553 + $0x2c] sm:$0xf]
        %v3566 = vld [vmem:[%s3553 + $0x30] sm:$0xf]
        %v3567 = vld [vmem:[%s3553 + $0x34] sm:$0xf]
        %v3568 = vld [vmem:[%s3553 + $0x38] sm:$0xf]
        %v3569 = vld [vmem:[%s3553 + $0x3c] sm:$0xf]
        %v3586 = vunpack.c.l.b16 %v3554
        %v3587 = vunpack.c.l.b16 %v3555
        %v3588 = vunpack.c.l.b16 %v3556
        %v3589 = vunpack.c.l.b16 %v3557
        %v3590 = vunpack.c.l.b16 %v3558
        %v3591 = vunpack.c.l.b16 %v3559
        %v3592 = vunpack.c.l.b16 %v3560
        %v3593 = vunpack.c.l.b16 %v3561
        %v3594 = vunpack.c.l.b16 %v3562
        %v3595 = vunpack.c.l.b16 %v3563
        %v3596 = vunpack.c.l.b16 %v3564
        %v3597 = vunpack.c.l.b16 %v3565
        %v3598 = vunpack.c.l.b16 %v3566
        %v3599 = vunpack.c.l.b16 %v3567
        %v3600 = vunpack.c.l.b16 %v3568
        %v3601 = vunpack.c.l.b16 %v3569
        %v3602 = vpack.c.b16 %v3587, %v3586
        %v3603 = vpack.c.b16 %v3589, %v3588
        %v3604 = vpack.c.b16 %v3591, %v3590
        %v3605 = vpack.c.b16 %v3593, %v3592
        %v3606 = vpack.c.b16 %v3595, %v3594
        %v3607 = vpack.c.b16 %v3597, %v3596
        %v3608 = vpack.c.b16 %v3599, %v3598
        %v3609 = vpack.c.b16 %v3601, %v3600
        %3618 = vmatpush.bf16.msra.mxu0 %v3609
        %3619 = vmatpush.bf16.msra.mxu0 %v3608
        %3620 = vmatpush.bf16.msra.mxu0 %v3607
        %3621 = vmatpush.bf16.msra.mxu0 %v3606
        %3622 = vmatpush.bf16.msra.mxu0 %v3605
        %3623 = vmatpush.bf16.msra.mxu0 %v3604
        %3624 = vmatpush.bf16.msra.mxu0 %v3603
        %3625 = vmatpush.bf16.msra.mxu0 %v3602
        %3626 = vmatmul.bf16.gmra.mxu0 %v3552
        %v3627 = vpop.f32.mrf.mxu0
        %v3628 = vadd.f32 0.0, %v3627
        %v3629 = vpop.f32.mrf.mxu0
        %v3630 = vadd.f32 0.0, %v3629
        %3631 = vdwg.mxu0
        %v3632 = vadd.f32 %v3525, %v3628
        %v3633 = vadd.f32 %v3526, %v3630
        %s3634 = scalar_lea.vmem %s2, 56
        %v3635 = vld [vmem:[%s3634] sm:$0xf]
        %v3636 = vld [vmem:[%s3634 + $0x4] sm:$0xf]
        %v3639 = vunpack.c.l.b16 %v3635
        %v3640 = vunpack.c.l.b16 %v3636
        %v3641 = vpack.c.b16 %v3640, %v3639
        %v3643 = vsel %vm2897, %v3641, 0
        %3645 = vmatpush.bf16.msra.mxu0 0
        %3646 = vmatpush.bf16.msra.mxu0 0
        %3647 = vmatpush.bf16.msra.mxu0 0
        %3648 = vmatpush.bf16.msra.mxu0 0
        %3649 = vmatpush.bf16.msra.mxu0 %v2889
        %3650 = vmatpush.bf16.msra.mxu0 %v2888
        %3651 = vmatpush.bf16.msra.mxu0 %v2887
        %3652 = vmatpush.bf16.msra.mxu0 %v2886
        %3653 = vmatmul.bf16.gmra.mxu0 %v3643
        %v3654 = vpop.f32.mrf.mxu0
        %v3655 = vadd.f32 0.0, %v3654
        %v3656 = vpop.f32.mrf.mxu0
        %v3657 = vadd.f32 0.0, %v3656
        %3658 = vdwg.mxu0
        %v3659 = vpack.c.bf16 %v3657, %v3655
        %s3660 = scalar_lea.vmem [#allocation4], 448
        %v3661 = vld [vmem:[%s3660] sm:$0xf]
        %v3662 = vld [vmem:[%s3660 + $0x4] sm:$0xf]
        %v3663 = vld [vmem:[%s3660 + $0x8] sm:$0xf]
        %v3664 = vld [vmem:[%s3660 + $0xc] sm:$0xf]
        %v3665 = vld [vmem:[%s3660 + $0x10] sm:$0xf]
        %v3666 = vld [vmem:[%s3660 + $0x14] sm:$0xf]
        %v3667 = vld [vmem:[%s3660 + $0x18] sm:$0xf]
        %v3668 = vld [vmem:[%s3660 + $0x1c] sm:$0xf]
        %v3669 = vld [vmem:[%s3660 + $0x20] sm:$0xf]
        %v3670 = vld [vmem:[%s3660 + $0x24] sm:$0xf]
        %v3671 = vld [vmem:[%s3660 + $0x28] sm:$0xf]
        %v3672 = vld [vmem:[%s3660 + $0x2c] sm:$0xf]
        %v3673 = vld [vmem:[%s3660 + $0x30] sm:$0xf]
        %v3674 = vld [vmem:[%s3660 + $0x34] sm:$0xf]
        %v3675 = vld [vmem:[%s3660 + $0x38] sm:$0xf]
        %v3676 = vld [vmem:[%s3660 + $0x3c] sm:$0xf]
        %v3693 = vunpack.c.l.b16 %v3661
        %v3694 = vunpack.c.l.b16 %v3662
        %v3695 = vunpack.c.l.b16 %v3663
        %v3696 = vunpack.c.l.b16 %v3664
        %v3697 = vunpack.c.l.b16 %v3665
        %v3698 = vunpack.c.l.b16 %v3666
        %v3699 = vunpack.c.l.b16 %v3667
        %v3700 = vunpack.c.l.b16 %v3668
        %v3701 = vunpack.c.l.b16 %v3669
        %v3702 = vunpack.c.l.b16 %v3670
        %v3703 = vunpack.c.l.b16 %v3671
        %v3704 = vunpack.c.l.b16 %v3672
        %v3705 = vunpack.c.l.b16 %v3673
        %v3706 = vunpack.c.l.b16 %v3674
        %v3707 = vunpack.c.l.b16 %v3675
        %v3708 = vunpack.c.l.b16 %v3676
        %v3709 = vpack.c.b16 %v3694, %v3693
        %v3710 = vpack.c.b16 %v3696, %v3695
        %v3711 = vpack.c.b16 %v3698, %v3697
        %v3712 = vpack.c.b16 %v3700, %v3699
        %v3713 = vpack.c.b16 %v3702, %v3701
        %v3714 = vpack.c.b16 %v3704, %v3703
        %v3715 = vpack.c.b16 %v3706, %v3705
        %v3716 = vpack.c.b16 %v3708, %v3707
        %3725 = vmatpush.bf16.msra.mxu0 %v3716
        %3726 = vmatpush.bf16.msra.mxu0 %v3715
        %3727 = vmatpush.bf16.msra.mxu0 %v3714
        %3728 = vmatpush.bf16.msra.mxu0 %v3713
        %3729 = vmatpush.bf16.msra.mxu0 %v3712
        %3730 = vmatpush.bf16.msra.mxu0 %v3711
        %3731 = vmatpush.bf16.msra.mxu0 %v3710
        %3732 = vmatpush.bf16.msra.mxu0 %v3709
        %3733 = vmatmul.bf16.gmra.mxu0 %v3659
        %v3734 = vpop.f32.mrf.mxu0
        %v3735 = vadd.f32 0.0, %v3734
        %v3736 = vpop.f32.mrf.mxu0
        %v3737 = vadd.f32 0.0, %v3736
        %3738 = vdwg.mxu0
        %v3739 = vadd.f32 %v3632, %v3735
        %v3740 = vadd.f32 %v3633, %v3737
        %s3741 = scalar_lea.vmem %s2, 64
        %v3742 = vld [vmem:[%s3741] sm:$0xf]
        %v3743 = vld [vmem:[%s3741 + $0x4] sm:$0xf]
        %v3746 = vunpack.c.l.b16 %v3742
        %v3747 = vunpack.c.l.b16 %v3743
        %v3748 = vpack.c.b16 %v3747, %v3746
        %v3750 = vsel %vm2897, %v3748, 0
        %3752 = vmatpush.bf16.msra.mxu0 0
        %3753 = vmatpush.bf16.msra.mxu0 0
        %3754 = vmatpush.bf16.msra.mxu0 0
        %3755 = vmatpush.bf16.msra.mxu0 0
        %3756 = vmatpush.bf16.msra.mxu0 %v2889
        %3757 = vmatpush.bf16.msra.mxu0 %v2888
        %3758 = vmatpush.bf16.msra.mxu0 %v2887
        %3759 = vmatpush.bf16.msra.mxu0 %v2886
        %3760 = vmatmul.bf16.gmra.mxu0 %v3750
        %v3761 = vpop.f32.mrf.mxu0
        %v3762 = vadd.f32 0.0, %v3761
        %v3763 = vpop.f32.mrf.mxu0
        %v3764 = vadd.f32 0.0, %v3763
        %3765 = vdwg.mxu0
        %v3766 = vpack.c.bf16 %v3764, %v3762
        %s3767 = scalar_lea.vmem [#allocation4], 512
        %v3768 = vld [vmem:[%s3767] sm:$0xf]
        %v3769 = vld [vmem:[%s3767 + $0x4] sm:$0xf]
        %v3770 = vld [vmem:[%s3767 + $0x8] sm:$0xf]
        %v3771 = vld [vmem:[%s3767 + $0xc] sm:$0xf]
        %v3772 = vld [vmem:[%s3767 + $0x10] sm:$0xf]
        %v3773 = vld [vmem:[%s3767 + $0x14] sm:$0xf]
        %v3774 = vld [vmem:[%s3767 + $0x18] sm:$0xf]
        %v3775 = vld [vmem:[%s3767 + $0x1c] sm:$0xf]
        %v3776 = vld [vmem:[%s3767 + $0x20] sm:$0xf]
        %v3777 = vld [vmem:[%s3767 + $0x24] sm:$0xf]
        %v3778 = vld [vmem:[%s3767 + $0x28] sm:$0xf]
        %v3779 = vld [vmem:[%s3767 + $0x2c] sm:$0xf]
        %v3780 = vld [vmem:[%s3767 + $0x30] sm:$0xf]
        %v3781 = vld [vmem:[%s3767 + $0x34] sm:$0xf]
        %v3782 = vld [vmem:[%s3767 + $0x38] sm:$0xf]
        %v3783 = vld [vmem:[%s3767 + $0x3c] sm:$0xf]
        %v3800 = vunpack.c.l.b16 %v3768
        %v3801 = vunpack.c.l.b16 %v3769
        %v3802 = vunpack.c.l.b16 %v3770
        %v3803 = vunpack.c.l.b16 %v3771
        %v3804 = vunpack.c.l.b16 %v3772
        %v3805 = vunpack.c.l.b16 %v3773
        %v3806 = vunpack.c.l.b16 %v3774
        %v3807 = vunpack.c.l.b16 %v3775
        %v3808 = vunpack.c.l.b16 %v3776
        %v3809 = vunpack.c.l.b16 %v3777
        %v3810 = vunpack.c.l.b16 %v3778
        %v3811 = vunpack.c.l.b16 %v3779
        %v3812 = vunpack.c.l.b16 %v3780
        %v3813 = vunpack.c.l.b16 %v3781
        %v3814 = vunpack.c.l.b16 %v3782
        %v3815 = vunpack.c.l.b16 %v3783
        %v3816 = vpack.c.b16 %v3801, %v3800
        %v3817 = vpack.c.b16 %v3803, %v3802
        %v3818 = vpack.c.b16 %v3805, %v3804
        %v3819 = vpack.c.b16 %v3807, %v3806
        %v3820 = vpack.c.b16 %v3809, %v3808
        %v3821 = vpack.c.b16 %v3811, %v3810
        %v3822 = vpack.c.b16 %v3813, %v3812
        %v3823 = vpack.c.b16 %v3815, %v3814
        %3832 = vmatpush.bf16.msra.mxu0 %v3823
        %3833 = vmatpush.bf16.msra.mxu0 %v3822
        %3834 = vmatpush.bf16.msra.mxu0 %v3821
        %3835 = vmatpush.bf16.msra.mxu0 %v3820
        %3836 = vmatpush.bf16.msra.mxu0 %v3819
        %3837 = vmatpush.bf16.msra.mxu0 %v3818
        %3838 = vmatpush.bf16.msra.mxu0 %v3817
        %3839 = vmatpush.bf16.msra.mxu0 %v3816
        %3840 = vmatmul.bf16.gmra.mxu0 %v3766
        %v3841 = vpop.f32.mrf.mxu0
        %v3842 = vadd.f32 0.0, %v3841
        %v3843 = vpop.f32.mrf.mxu0
        %v3844 = vadd.f32 0.0, %v3843
        %3845 = vdwg.mxu0
        %v3846 = vadd.f32 %v3739, %v3842
        %v3847 = vadd.f32 %v3740, %v3844
        %v3848 = vperm.slane %v840, 1
        %v3849 = vadd.f32 %v3846, %v3848
        %v3850 = vadd.f32 %v3847, %v3848
        %v3851 = vmax.f32 %v3849, 0.0
        %v3852 = vmax.f32 %v3850, 0.0
        %v3853 = vpack.c.bf16 %v3852, %v3851
        %v3854 = vld [vmem:[#allocation6] sm:$0xf]
        %v3855 = vld [vmem:[#allocation6 + $0x4] sm:$0xf]
        %v3856 = vld [vmem:[#allocation6 + $0x8] sm:$0xf]
        %v3857 = vld [vmem:[#allocation6 + $0xc] sm:$0xf]
        %v3858 = vld [vmem:[#allocation6 + $0x10] sm:$0xf]
        %v3859 = vld [vmem:[#allocation6 + $0x14] sm:$0xf]
        %v3860 = vld [vmem:[#allocation6 + $0x18] sm:$0xf]
        %v3861 = vld [vmem:[#allocation6 + $0x1c] sm:$0xf]
        %v3862 = vld [vmem:[#allocation6 + $0x20] sm:$0xf]
        %v3863 = vld [vmem:[#allocation6 + $0x24] sm:$0xf]
        %v3864 = vld [vmem:[#allocation6 + $0x28] sm:$0xf]
        %v3865 = vld [vmem:[#allocation6 + $0x2c] sm:$0xf]
        %v3866 = vld [vmem:[#allocation6 + $0x30] sm:$0xf]
        %v3867 = vld [vmem:[#allocation6 + $0x34] sm:$0xf]
        %v3868 = vld [vmem:[#allocation6 + $0x38] sm:$0xf]
        %v3869 = vld [vmem:[#allocation6 + $0x3c] sm:$0xf]
        %v3870 = vperm.slane %v840, 2
        %v3887 = vunpack.c.l.b16 %v3854
        %v3888 = vunpack.c.l.b16 %v3855
        %v3889 = vunpack.c.l.b16 %v3856
        %v3890 = vunpack.c.l.b16 %v3857
        %v3891 = vunpack.c.l.b16 %v3858
        %v3892 = vunpack.c.l.b16 %v3859
        %v3893 = vunpack.c.l.b16 %v3860
        %v3894 = vunpack.c.l.b16 %v3861
        %v3895 = vunpack.c.l.b16 %v3862
        %v3896 = vunpack.c.l.b16 %v3863
        %v3897 = vunpack.c.l.b16 %v3864
        %v3898 = vunpack.c.l.b16 %v3865
        %v3899 = vunpack.c.l.b16 %v3866
        %v3900 = vunpack.c.l.b16 %v3867
        %v3901 = vunpack.c.l.b16 %v3868
        %v3902 = vunpack.c.l.b16 %v3869
        %v3903 = vpack.c.b16 %v3888, %v3887
        %v3904 = vpack.c.b16 %v3890, %v3889
        %v3905 = vpack.c.b16 %v3892, %v3891
        %v3906 = vpack.c.b16 %v3894, %v3893
        %v3907 = vpack.c.b16 %v3896, %v3895
        %v3908 = vpack.c.b16 %v3898, %v3897
        %v3909 = vpack.c.b16 %v3900, %v3899
        %v3910 = vpack.c.b16 %v3902, %v3901
        %3919 = vmatpush.bf16.msra.mxu0 %v3910
        %3920 = vmatpush.bf16.msra.mxu0 %v3909
        %3921 = vmatpush.bf16.msra.mxu0 %v3908
        %3922 = vmatpush.bf16.msra.mxu0 %v3907
        %3923 = vmatpush.bf16.msra.mxu0 %v3906
        %3924 = vmatpush.bf16.msra.mxu0 %v3905
        %3925 = vmatpush.bf16.msra.mxu0 %v3904
        %3926 = vmatpush.bf16.msra.mxu0 %v3903
        %3927 = vmatmul.bf16.gmra.mxu0 %v3853
        %v3928 = vpop.f32.mrf.mxu0
        %v3929 = vadd.f32 %v3870, %v3928
        %v3930 = vpop.f32.mrf.mxu0
        %v3931 = vadd.f32 %v3870, %v3930
        %3932 = vdwg.mxu0
        %v3933 = vmax.f32 %v3929, 0.0
        %v3934 = vmax.f32 %v3931, 0.0
        %v3935 = vpack.c.bf16 %v3934, %v3933
        %v3936 = vld [vmem:[%s3] sm:$0xf]
        %v3937 = vld [vmem:[%s3 + $0x4] sm:$0xf]
        %v3940 = vunpack.c.l.b16 %v3936
        %v3941 = vunpack.c.l.b16 %v3937
        %v3942 = vpack.c.b16 %v3941, %v3940
        %vm3943 = vcmask 130048
        %v3945 = vsel %vm3943, %v3942, 0
        %3947 = vmatpush.bf16.msra.mxu0 0
        %3948 = vmatpush.bf16.msra.mxu0 0
        %3949 = vmatpush.bf16.msra.mxu0 0
        %3950 = vmatpush.bf16.msra.mxu0 0
        %3951 = vmatpush.bf16.msra.mxu0 0
        %3952 = vmatpush.bf16.msra.mxu0 0
        %3953 = vmatpush.bf16.msra.mxu0 0
        %3954 = vmatpush.bf16.msra.mxu0 %v3853
        %3955 = vmatmul.bf16.gmra.mxu0 %v3945
        %v3956 = vpop.f32.mrf.mxu0
        %v3957 = vadd.f32 0.0, %v3956
        %v3958 = vpop.f32.mrf.mxu0
        %v3959 = vadd.f32 0.0, %v3958
        %3960 = vdwg.mxu0
        %v3961 = vpack.c.bf16 %v3959, %v3957
        %v3962 = vld [vmem:[#allocation7] sm:$0xf]
        %v3963 = vld [vmem:[#allocation7 + $0x4] sm:$0xf]
        %v3964 = vld [vmem:[#allocation7 + $0x8] sm:$0xf]
        %v3965 = vld [vmem:[#allocation7 + $0xc] sm:$0xf]
        %v3966 = vld [vmem:[#allocation7 + $0x10] sm:$0xf]
        %v3967 = vld [vmem:[#allocation7 + $0x14] sm:$0xf]
        %v3968 = vld [vmem:[#allocation7 + $0x18] sm:$0xf]
        %v3969 = vld [vmem:[#allocation7 + $0x1c] sm:$0xf]
        %v3970 = vld [vmem:[#allocation7 + $0x20] sm:$0xf]
        %v3971 = vld [vmem:[#allocation7 + $0x24] sm:$0xf]
        %v3972 = vld [vmem:[#allocation7 + $0x28] sm:$0xf]
        %v3973 = vld [vmem:[#allocation7 + $0x2c] sm:$0xf]
        %v3974 = vld [vmem:[#allocation7 + $0x30] sm:$0xf]
        %v3975 = vld [vmem:[#allocation7 + $0x34] sm:$0xf]
        %v3976 = vld [vmem:[#allocation7 + $0x38] sm:$0xf]
        %v3977 = vld [vmem:[#allocation7 + $0x3c] sm:$0xf]
        %s3978 = scalar_lea.vmem %s3, 8
        %v3979 = vld [vmem:[%s3978] sm:$0xf]
        %v3980 = vld [vmem:[%s3978 + $0x4] sm:$0xf]
        %v3983 = vunpack.c.l.b16 %v3979
        %v3984 = vunpack.c.l.b16 %v3980
        %v3985 = vpack.c.b16 %v3984, %v3983
        %v3987 = vsel %vm3943, %v3985, 0
        %3989 = vmatpush.bf16.msra.mxu0 0
        %3990 = vmatpush.bf16.msra.mxu0 0
        %3991 = vmatpush.bf16.msra.mxu0 0
        %3992 = vmatpush.bf16.msra.mxu0 0
        %3993 = vmatpush.bf16.msra.mxu0 0
        %3994 = vmatpush.bf16.msra.mxu0 0
        %3995 = vmatpush.bf16.msra.mxu0 0
        %3996 = vmatpush.bf16.msra.mxu0 %v3853
        %3997 = vmatmul.bf16.gmra.mxu0 %v3987
        %v3998 = vpop.f32.mrf.mxu0
        %v3999 = vadd.f32 0.0, %v3998
        %v4000 = vpop.f32.mrf.mxu0
        %v4001 = vadd.f32 0.0, %v4000
        %4002 = vdwg.mxu0
        %v4003 = vpack.c.bf16 %v4001, %v3999
        %s4004 = scalar_lea.vmem [#allocation7], 64
        %v4005 = vld [vmem:[%s4004] sm:$0xf]
        %v4006 = vld [vmem:[%s4004 + $0x4] sm:$0xf]
        %v4007 = vld [vmem:[%s4004 + $0x8] sm:$0xf]
        %v4008 = vld [vmem:[%s4004 + $0xc] sm:$0xf]
        %v4009 = vld [vmem:[%s4004 + $0x10] sm:$0xf]
        %v4010 = vld [vmem:[%s4004 + $0x14] sm:$0xf]
        %v4011 = vld [vmem:[%s4004 + $0x18] sm:$0xf]
        %v4012 = vld [vmem:[%s4004 + $0x1c] sm:$0xf]
        %v4013 = vld [vmem:[%s4004 + $0x20] sm:$0xf]
        %v4014 = vld [vmem:[%s4004 + $0x24] sm:$0xf]
        %v4015 = vld [vmem:[%s4004 + $0x28] sm:$0xf]
        %v4016 = vld [vmem:[%s4004 + $0x2c] sm:$0xf]
        %v4017 = vld [vmem:[%s4004 + $0x30] sm:$0xf]
        %v4018 = vld [vmem:[%s4004 + $0x34] sm:$0xf]
        %v4019 = vld [vmem:[%s4004 + $0x38] sm:$0xf]
        %v4020 = vld [vmem:[%s4004 + $0x3c] sm:$0xf]
        %v4037 = vunpack.c.l.b16 %v4005
        %v4038 = vunpack.c.l.b16 %v4006
        %v4039 = vunpack.c.l.b16 %v4007
        %v4040 = vunpack.c.l.b16 %v4008
        %v4041 = vunpack.c.l.b16 %v4009
        %v4042 = vunpack.c.l.b16 %v4010
        %v4043 = vunpack.c.l.b16 %v4011
        %v4044 = vunpack.c.l.b16 %v4012
        %v4045 = vunpack.c.l.b16 %v4013
        %v4046 = vunpack.c.l.b16 %v4014
        %v4047 = vunpack.c.l.b16 %v4015
        %v4048 = vunpack.c.l.b16 %v4016
        %v4049 = vunpack.c.l.b16 %v4017
        %v4050 = vunpack.c.l.b16 %v4018
        %v4051 = vunpack.c.l.b16 %v4019
        %v4052 = vunpack.c.l.b16 %v4020
        %v4053 = vpack.c.b16 %v4038, %v4037
        %v4054 = vpack.c.b16 %v4040, %v4039
        %v4055 = vpack.c.b16 %v4042, %v4041
        %v4056 = vpack.c.b16 %v4044, %v4043
        %v4057 = vpack.c.b16 %v4046, %v4045
        %v4058 = vpack.c.b16 %v4048, %v4047
        %v4059 = vpack.c.b16 %v4050, %v4049
        %v4060 = vpack.c.b16 %v4052, %v4051
        %4069 = vmatpush.bf16.msra.mxu0 %v4060
        %4070 = vmatpush.bf16.msra.mxu0 %v4059
        %4071 = vmatpush.bf16.msra.mxu0 %v4058
        %4072 = vmatpush.bf16.msra.mxu0 %v4057
        %4073 = vmatpush.bf16.msra.mxu0 %v4056
        %4074 = vmatpush.bf16.msra.mxu0 %v4055
        %4075 = vmatpush.bf16.msra.mxu0 %v4054
        %4076 = vmatpush.bf16.msra.mxu0 %v4053
        %4077 = vmatmul.bf16.gmra.mxu0 %v4003
        %v4078 = vpop.f32.mrf.mxu0
        %v4079 = vadd.f32 0.0, %v4078
        %v4080 = vpop.f32.mrf.mxu0
        %v4081 = vadd.f32 0.0, %v4080
        %4082 = vdwg.mxu0
        %v4099 = vunpack.c.l.b16 %v3962
        %v4100 = vunpack.c.l.b16 %v3963
        %v4101 = vunpack.c.l.b16 %v3964
        %v4102 = vunpack.c.l.b16 %v3965
        %v4103 = vunpack.c.l.b16 %v3966
        %v4104 = vunpack.c.l.b16 %v3967
        %v4105 = vunpack.c.l.b16 %v3968
        %v4106 = vunpack.c.l.b16 %v3969
        %v4107 = vunpack.c.l.b16 %v3970
        %v4108 = vunpack.c.l.b16 %v3971
        %v4109 = vunpack.c.l.b16 %v3972
        %v4110 = vunpack.c.l.b16 %v3973
        %v4111 = vunpack.c.l.b16 %v3974
        %v4112 = vunpack.c.l.b16 %v3975
        %v4113 = vunpack.c.l.b16 %v3976
        %v4114 = vunpack.c.l.b16 %v3977
        %v4115 = vpack.c.b16 %v4100, %v4099
        %v4116 = vpack.c.b16 %v4102, %v4101
        %v4117 = vpack.c.b16 %v4104, %v4103
        %v4118 = vpack.c.b16 %v4106, %v4105
        %v4119 = vpack.c.b16 %v4108, %v4107
        %v4120 = vpack.c.b16 %v4110, %v4109
        %v4121 = vpack.c.b16 %v4112, %v4111
        %v4122 = vpack.c.b16 %v4114, %v4113
        %4131 = vmatpush.bf16.msra.mxu0 %v4122
        %4132 = vmatpush.bf16.msra.mxu0 %v4121
        %4133 = vmatpush.bf16.msra.mxu0 %v4120
        %4134 = vmatpush.bf16.msra.mxu0 %v4119
        %4135 = vmatpush.bf16.msra.mxu0 %v4118
        %4136 = vmatpush.bf16.msra.mxu0 %v4117
        %4137 = vmatpush.bf16.msra.mxu0 %v4116
        %4138 = vmatpush.bf16.msra.mxu0 %v4115
        %4139 = vmatmul.bf16.gmra.mxu0 %v3961
        %v4140 = vpop.f32.mrf.mxu0
        %v4141 = vadd.f32 %v4079, %v4140
        %v4142 = vpop.f32.mrf.mxu0
        %v4143 = vadd.f32 %v4081, %v4142
        %4144 = vdwg.mxu0
        %s4145 = scalar_lea.vmem %s3, 16
        %v4146 = vld [vmem:[%s4145] sm:$0xf]
        %v4147 = vld [vmem:[%s4145 + $0x4] sm:$0xf]
        %v4150 = vunpack.c.l.b16 %v4146
        %v4151 = vunpack.c.l.b16 %v4147
        %v4152 = vpack.c.b16 %v4151, %v4150
        %v4154 = vsel %vm3943, %v4152, 0
        %4156 = vmatpush.bf16.msra.mxu0 0
        %4157 = vmatpush.bf16.msra.mxu0 0
        %4158 = vmatpush.bf16.msra.mxu0 0
        %4159 = vmatpush.bf16.msra.mxu0 0
        %4160 = vmatpush.bf16.msra.mxu0 0
        %4161 = vmatpush.bf16.msra.mxu0 0
        %4162 = vmatpush.bf16.msra.mxu0 0
        %4163 = vmatpush.bf16.msra.mxu0 %v3853
        %4164 = vmatmul.bf16.gmra.mxu0 %v4154
        %v4165 = vpop.f32.mrf.mxu0
        %v4166 = vadd.f32 0.0, %v4165
        %v4167 = vpop.f32.mrf.mxu0
        %v4168 = vadd.f32 0.0, %v4167
        %4169 = vdwg.mxu0
        %v4170 = vpack.c.bf16 %v4168, %v4166
        %s4171 = scalar_lea.vmem [#allocation7], 128
        %v4172 = vld [vmem:[%s4171] sm:$0xf]
        %v4173 = vld [vmem:[%s4171 + $0x4] sm:$0xf]
        %v4174 = vld [vmem:[%s4171 + $0x8] sm:$0xf]
        %v4175 = vld [vmem:[%s4171 + $0xc] sm:$0xf]
        %v4176 = vld [vmem:[%s4171 + $0x10] sm:$0xf]
        %v4177 = vld [vmem:[%s4171 + $0x14] sm:$0xf]
        %v4178 = vld [vmem:[%s4171 + $0x18] sm:$0xf]
        %v4179 = vld [vmem:[%s4171 + $0x1c] sm:$0xf]
        %v4180 = vld [vmem:[%s4171 + $0x20] sm:$0xf]
        %v4181 = vld [vmem:[%s4171 + $0x24] sm:$0xf]
        %v4182 = vld [vmem:[%s4171 + $0x28] sm:$0xf]
        %v4183 = vld [vmem:[%s4171 + $0x2c] sm:$0xf]
        %v4184 = vld [vmem:[%s4171 + $0x30] sm:$0xf]
        %v4185 = vld [vmem:[%s4171 + $0x34] sm:$0xf]
        %v4186 = vld [vmem:[%s4171 + $0x38] sm:$0xf]
        %v4187 = vld [vmem:[%s4171 + $0x3c] sm:$0xf]
        %v4204 = vunpack.c.l.b16 %v4172
        %v4205 = vunpack.c.l.b16 %v4173
        %v4206 = vunpack.c.l.b16 %v4174
        %v4207 = vunpack.c.l.b16 %v4175
        %v4208 = vunpack.c.l.b16 %v4176
        %v4209 = vunpack.c.l.b16 %v4177
        %v4210 = vunpack.c.l.b16 %v4178
        %v4211 = vunpack.c.l.b16 %v4179
        %v4212 = vunpack.c.l.b16 %v4180
        %v4213 = vunpack.c.l.b16 %v4181
        %v4214 = vunpack.c.l.b16 %v4182
        %v4215 = vunpack.c.l.b16 %v4183
        %v4216 = vunpack.c.l.b16 %v4184
        %v4217 = vunpack.c.l.b16 %v4185
        %v4218 = vunpack.c.l.b16 %v4186
        %v4219 = vunpack.c.l.b16 %v4187
        %v4220 = vpack.c.b16 %v4205, %v4204
        %v4221 = vpack.c.b16 %v4207, %v4206
        %v4222 = vpack.c.b16 %v4209, %v4208
        %v4223 = vpack.c.b16 %v4211, %v4210
        %v4224 = vpack.c.b16 %v4213, %v4212
        %v4225 = vpack.c.b16 %v4215, %v4214
        %v4226 = vpack.c.b16 %v4217, %v4216
        %v4227 = vpack.c.b16 %v4219, %v4218
        %4236 = vmatpush.bf16.msra.mxu0 %v4227
        %4237 = vmatpush.bf16.msra.mxu0 %v4226
        %4238 = vmatpush.bf16.msra.mxu0 %v4225
        %4239 = vmatpush.bf16.msra.mxu0 %v4224
        %4240 = vmatpush.bf16.msra.mxu0 %v4223
        %4241 = vmatpush.bf16.msra.mxu0 %v4222
        %4242 = vmatpush.bf16.msra.mxu0 %v4221
        %4243 = vmatpush.bf16.msra.mxu0 %v4220
        %4244 = vmatmul.bf16.gmra.mxu0 %v4170
        %v4245 = vpop.f32.mrf.mxu0
        %v4246 = vadd.f32 0.0, %v4245
        %v4247 = vpop.f32.mrf.mxu0
        %v4248 = vadd.f32 0.0, %v4247
        %4249 = vdwg.mxu0
        %v4250 = vadd.f32 %v4141, %v4246
        %v4251 = vadd.f32 %v4143, %v4248
        %s4252 = scalar_lea.vmem %s3, 24
        %v4253 = vld [vmem:[%s4252] sm:$0xf]
        %v4254 = vld [vmem:[%s4252 + $0x4] sm:$0xf]
        %v4257 = vunpack.c.l.b16 %v4253
        %v4258 = vunpack.c.l.b16 %v4254
        %v4259 = vpack.c.b16 %v4258, %v4257
        %v4261 = vsel %vm3943, %v4259, 0
        %4263 = vmatpush.bf16.msra.mxu0 0
        %4264 = vmatpush.bf16.msra.mxu0 0
        %4265 = vmatpush.bf16.msra.mxu0 0
        %4266 = vmatpush.bf16.msra.mxu0 0
        %4267 = vmatpush.bf16.msra.mxu0 0
        %4268 = vmatpush.bf16.msra.mxu0 0
        %4269 = vmatpush.bf16.msra.mxu0 0
        %4270 = vmatpush.bf16.msra.mxu0 %v3853
        %4271 = vmatmul.bf16.gmra.mxu0 %v4261
        %v4272 = vpop.f32.mrf.mxu0
        %v4273 = vadd.f32 0.0, %v4272
        %v4274 = vpop.f32.mrf.mxu0
        %v4275 = vadd.f32 0.0, %v4274
        %4276 = vdwg.mxu0
        %v4277 = vpack.c.bf16 %v4275, %v4273
        %s4278 = scalar_lea.vmem [#allocation7], 192
        %v4279 = vld [vmem:[%s4278] sm:$0xf]
        %v4280 = vld [vmem:[%s4278 + $0x4] sm:$0xf]
        %v4281 = vld [vmem:[%s4278 + $0x8] sm:$0xf]
        %v4282 = vld [vmem:[%s4278 + $0xc] sm:$0xf]
        %v4283 = vld [vmem:[%s4278 + $0x10] sm:$0xf]
        %v4284 = vld [vmem:[%s4278 + $0x14] sm:$0xf]
        %v4285 = vld [vmem:[%s4278 + $0x18] sm:$0xf]
        %v4286 = vld [vmem:[%s4278 + $0x1c] sm:$0xf]
        %v4287 = vld [vmem:[%s4278 + $0x20] sm:$0xf]
        %v4288 = vld [vmem:[%s4278 + $0x24] sm:$0xf]
        %v4289 = vld [vmem:[%s4278 + $0x28] sm:$0xf]
        %v4290 = vld [vmem:[%s4278 + $0x2c] sm:$0xf]
        %v4291 = vld [vmem:[%s4278 + $0x30] sm:$0xf]
        %v4292 = vld [vmem:[%s4278 + $0x34] sm:$0xf]
        %v4293 = vld [vmem:[%s4278 + $0x38] sm:$0xf]
        %v4294 = vld [vmem:[%s4278 + $0x3c] sm:$0xf]
        %v4311 = vunpack.c.l.b16 %v4279
        %v4312 = vunpack.c.l.b16 %v4280
        %v4313 = vunpack.c.l.b16 %v4281
        %v4314 = vunpack.c.l.b16 %v4282
        %v4315 = vunpack.c.l.b16 %v4283
        %v4316 = vunpack.c.l.b16 %v4284
        %v4317 = vunpack.c.l.b16 %v4285
        %v4318 = vunpack.c.l.b16 %v4286
        %v4319 = vunpack.c.l.b16 %v4287
        %v4320 = vunpack.c.l.b16 %v4288
        %v4321 = vunpack.c.l.b16 %v4289
        %v4322 = vunpack.c.l.b16 %v4290
        %v4323 = vunpack.c.l.b16 %v4291
        %v4324 = vunpack.c.l.b16 %v4292
        %v4325 = vunpack.c.l.b16 %v4293
        %v4326 = vunpack.c.l.b16 %v4294
        %v4327 = vpack.c.b16 %v4312, %v4311
        %v4328 = vpack.c.b16 %v4314, %v4313
        %v4329 = vpack.c.b16 %v4316, %v4315
        %v4330 = vpack.c.b16 %v4318, %v4317
        %v4331 = vpack.c.b16 %v4320, %v4319
        %v4332 = vpack.c.b16 %v4322, %v4321
        %v4333 = vpack.c.b16 %v4324, %v4323
        %v4334 = vpack.c.b16 %v4326, %v4325
        %4343 = vmatpush.bf16.msra.mxu0 %v4334
        %4344 = vmatpush.bf16.msra.mxu0 %v4333
        %4345 = vmatpush.bf16.msra.mxu0 %v4332
        %4346 = vmatpush.bf16.msra.mxu0 %v4331
        %4347 = vmatpush.bf16.msra.mxu0 %v4330
        %4348 = vmatpush.bf16.msra.mxu0 %v4329
        %4349 = vmatpush.bf16.msra.mxu0 %v4328
        %4350 = vmatpush.bf16.msra.mxu0 %v4327
        %4351 = vmatmul.bf16.gmra.mxu0 %v4277
        %v4352 = vpop.f32.mrf.mxu0
        %v4353 = vadd.f32 0.0, %v4352
        %v4354 = vpop.f32.mrf.mxu0
        %v4355 = vadd.f32 0.0, %v4354
        %4356 = vdwg.mxu0
        %v4357 = vadd.f32 %v4250, %v4353
        %v4358 = vadd.f32 %v4251, %v4355
        %s4359 = scalar_lea.vmem %s3, 32
        %v4360 = vld [vmem:[%s4359] sm:$0xf]
        %v4361 = vld [vmem:[%s4359 + $0x4] sm:$0xf]
        %v4364 = vunpack.c.l.b16 %v4360
        %v4365 = vunpack.c.l.b16 %v4361
        %v4366 = vpack.c.b16 %v4365, %v4364
        %v4368 = vsel %vm3943, %v4366, 0
        %4370 = vmatpush.bf16.msra.mxu0 0
        %4371 = vmatpush.bf16.msra.mxu0 0
        %4372 = vmatpush.bf16.msra.mxu0 0
        %4373 = vmatpush.bf16.msra.mxu0 0
        %4374 = vmatpush.bf16.msra.mxu0 0
        %4375 = vmatpush.bf16.msra.mxu0 0
        %4376 = vmatpush.bf16.msra.mxu0 0
        %4377 = vmatpush.bf16.msra.mxu0 %v3853
        %4378 = vmatmul.bf16.gmra.mxu0 %v4368
        %v4379 = vpop.f32.mrf.mxu0
        %v4380 = vadd.f32 0.0, %v4379
        %v4381 = vpop.f32.mrf.mxu0
        %v4382 = vadd.f32 0.0, %v4381
        %4383 = vdwg.mxu0
        %v4384 = vpack.c.bf16 %v4382, %v4380
        %s4385 = scalar_lea.vmem [#allocation7], 256
        %v4386 = vld [vmem:[%s4385] sm:$0xf]
        %v4387 = vld [vmem:[%s4385 + $0x4] sm:$0xf]
        %v4388 = vld [vmem:[%s4385 + $0x8] sm:$0xf]
        %v4389 = vld [vmem:[%s4385 + $0xc] sm:$0xf]
        %v4390 = vld [vmem:[%s4385 + $0x10] sm:$0xf]
        %v4391 = vld [vmem:[%s4385 + $0x14] sm:$0xf]
        %v4392 = vld [vmem:[%s4385 + $0x18] sm:$0xf]
        %v4393 = vld [vmem:[%s4385 + $0x1c] sm:$0xf]
        %v4394 = vld [vmem:[%s4385 + $0x20] sm:$0xf]
        %v4395 = vld [vmem:[%s4385 + $0x24] sm:$0xf]
        %v4396 = vld [vmem:[%s4385 + $0x28] sm:$0xf]
        %v4397 = vld [vmem:[%s4385 + $0x2c] sm:$0xf]
        %v4398 = vld [vmem:[%s4385 + $0x30] sm:$0xf]
        %v4399 = vld [vmem:[%s4385 + $0x34] sm:$0xf]
        %v4400 = vld [vmem:[%s4385 + $0x38] sm:$0xf]
        %v4401 = vld [vmem:[%s4385 + $0x3c] sm:$0xf]
        %v4418 = vunpack.c.l.b16 %v4386
        %v4419 = vunpack.c.l.b16 %v4387
        %v4420 = vunpack.c.l.b16 %v4388
        %v4421 = vunpack.c.l.b16 %v4389
        %v4422 = vunpack.c.l.b16 %v4390
        %v4423 = vunpack.c.l.b16 %v4391
        %v4424 = vunpack.c.l.b16 %v4392
        %v4425 = vunpack.c.l.b16 %v4393
        %v4426 = vunpack.c.l.b16 %v4394
        %v4427 = vunpack.c.l.b16 %v4395
        %v4428 = vunpack.c.l.b16 %v4396
        %v4429 = vunpack.c.l.b16 %v4397
        %v4430 = vunpack.c.l.b16 %v4398
        %v4431 = vunpack.c.l.b16 %v4399
        %v4432 = vunpack.c.l.b16 %v4400
        %v4433 = vunpack.c.l.b16 %v4401
        %v4434 = vpack.c.b16 %v4419, %v4418
        %v4435 = vpack.c.b16 %v4421, %v4420
        %v4436 = vpack.c.b16 %v4423, %v4422
        %v4437 = vpack.c.b16 %v4425, %v4424
        %v4438 = vpack.c.b16 %v4427, %v4426
        %v4439 = vpack.c.b16 %v4429, %v4428
        %v4440 = vpack.c.b16 %v4431, %v4430
        %v4441 = vpack.c.b16 %v4433, %v4432
        %4450 = vmatpush.bf16.msra.mxu0 %v4441
        %4451 = vmatpush.bf16.msra.mxu0 %v4440
        %4452 = vmatpush.bf16.msra.mxu0 %v4439
        %4453 = vmatpush.bf16.msra.mxu0 %v4438
        %4454 = vmatpush.bf16.msra.mxu0 %v4437
        %4455 = vmatpush.bf16.msra.mxu0 %v4436
        %4456 = vmatpush.bf16.msra.mxu0 %v4435
        %4457 = vmatpush.bf16.msra.mxu0 %v4434
        %4458 = vmatmul.bf16.gmra.mxu0 %v4384
        %v4459 = vpop.f32.mrf.mxu0
        %v4460 = vadd.f32 0.0, %v4459
        %v4461 = vpop.f32.mrf.mxu0
        %v4462 = vadd.f32 0.0, %v4461
        %4463 = vdwg.mxu0
        %v4464 = vadd.f32 %v4357, %v4460
        %v4465 = vadd.f32 %v4358, %v4462
        %s4466 = scalar_lea.vmem %s3, 40
        %v4467 = vld [vmem:[%s4466] sm:$0xf]
        %v4468 = vld [vmem:[%s4466 + $0x4] sm:$0xf]
        %v4471 = vunpack.c.l.b16 %v4467
        %v4472 = vunpack.c.l.b16 %v4468
        %v4473 = vpack.c.b16 %v4472, %v4471
        %v4475 = vsel %vm3943, %v4473, 0
        %4477 = vmatpush.bf16.msra.mxu0 0
        %4478 = vmatpush.bf16.msra.mxu0 0
        %4479 = vmatpush.bf16.msra.mxu0 0
        %4480 = vmatpush.bf16.msra.mxu0 0
        %4481 = vmatpush.bf16.msra.mxu0 0
        %4482 = vmatpush.bf16.msra.mxu0 0
        %4483 = vmatpush.bf16.msra.mxu0 0
        %4484 = vmatpush.bf16.msra.mxu0 %v3853
        %4485 = vmatmul.bf16.gmra.mxu0 %v4475
        %v4486 = vpop.f32.mrf.mxu0
        %v4487 = vadd.f32 0.0, %v4486
        %v4488 = vpop.f32.mrf.mxu0
        %v4489 = vadd.f32 0.0, %v4488
        %4490 = vdwg.mxu0
        %v4491 = vpack.c.bf16 %v4489, %v4487
        %s4492 = scalar_lea.vmem [#allocation7], 320
        %v4493 = vld [vmem:[%s4492] sm:$0xf]
        %v4494 = vld [vmem:[%s4492 + $0x4] sm:$0xf]
        %v4495 = vld [vmem:[%s4492 + $0x8] sm:$0xf]
        %v4496 = vld [vmem:[%s4492 + $0xc] sm:$0xf]
        %v4497 = vld [vmem:[%s4492 + $0x10] sm:$0xf]
        %v4498 = vld [vmem:[%s4492 + $0x14] sm:$0xf]
        %v4499 = vld [vmem:[%s4492 + $0x18] sm:$0xf]
        %v4500 = vld [vmem:[%s4492 + $0x1c] sm:$0xf]
        %v4501 = vld [vmem:[%s4492 + $0x20] sm:$0xf]
        %v4502 = vld [vmem:[%s4492 + $0x24] sm:$0xf]
        %v4503 = vld [vmem:[%s4492 + $0x28] sm:$0xf]
        %v4504 = vld [vmem:[%s4492 + $0x2c] sm:$0xf]
        %v4505 = vld [vmem:[%s4492 + $0x30] sm:$0xf]
        %v4506 = vld [vmem:[%s4492 + $0x34] sm:$0xf]
        %v4507 = vld [vmem:[%s4492 + $0x38] sm:$0xf]
        %v4508 = vld [vmem:[%s4492 + $0x3c] sm:$0xf]
        %v4525 = vunpack.c.l.b16 %v4493
        %v4526 = vunpack.c.l.b16 %v4494
        %v4527 = vunpack.c.l.b16 %v4495
        %v4528 = vunpack.c.l.b16 %v4496
        %v4529 = vunpack.c.l.b16 %v4497
        %v4530 = vunpack.c.l.b16 %v4498
        %v4531 = vunpack.c.l.b16 %v4499
        %v4532 = vunpack.c.l.b16 %v4500
        %v4533 = vunpack.c.l.b16 %v4501
        %v4534 = vunpack.c.l.b16 %v4502
        %v4535 = vunpack.c.l.b16 %v4503
        %v4536 = vunpack.c.l.b16 %v4504
        %v4537 = vunpack.c.l.b16 %v4505
        %v4538 = vunpack.c.l.b16 %v4506
        %v4539 = vunpack.c.l.b16 %v4507
        %v4540 = vunpack.c.l.b16 %v4508
        %v4541 = vpack.c.b16 %v4526, %v4525
        %v4542 = vpack.c.b16 %v4528, %v4527
        %v4543 = vpack.c.b16 %v4530, %v4529
        %v4544 = vpack.c.b16 %v4532, %v4531
        %v4545 = vpack.c.b16 %v4534, %v4533
        %v4546 = vpack.c.b16 %v4536, %v4535
        %v4547 = vpack.c.b16 %v4538, %v4537
        %v4548 = vpack.c.b16 %v4540, %v4539
        %4557 = vmatpush.bf16.msra.mxu0 %v4548
        %4558 = vmatpush.bf16.msra.mxu0 %v4547
        %4559 = vmatpush.bf16.msra.mxu0 %v4546
        %4560 = vmatpush.bf16.msra.mxu0 %v4545
        %4561 = vmatpush.bf16.msra.mxu0 %v4544
        %4562 = vmatpush.bf16.msra.mxu0 %v4543
        %4563 = vmatpush.bf16.msra.mxu0 %v4542
        %4564 = vmatpush.bf16.msra.mxu0 %v4541
        %4565 = vmatmul.bf16.gmra.mxu0 %v4491
        %v4566 = vpop.f32.mrf.mxu0
        %v4567 = vadd.f32 0.0, %v4566
        %v4568 = vpop.f32.mrf.mxu0
        %v4569 = vadd.f32 0.0, %v4568
        %4570 = vdwg.mxu0
        %v4571 = vadd.f32 %v4464, %v4567
        %v4572 = vadd.f32 %v4465, %v4569
        %s4573 = scalar_lea.vmem %s3, 48
        %v4574 = vld [vmem:[%s4573] sm:$0xf]
        %v4575 = vld [vmem:[%s4573 + $0x4] sm:$0xf]
        %v4578 = vunpack.c.l.b16 %v4574
        %v4579 = vunpack.c.l.b16 %v4575
        %v4580 = vpack.c.b16 %v4579, %v4578
        %v4582 = vsel %vm3943, %v4580, 0
        %4584 = vmatpush.bf16.msra.mxu0 0
        %4585 = vmatpush.bf16.msra.mxu0 0
        %4586 = vmatpush.bf16.msra.mxu0 0
        %4587 = vmatpush.bf16.msra.mxu0 0
        %4588 = vmatpush.bf16.msra.mxu0 0
        %4589 = vmatpush.bf16.msra.mxu0 0
        %4590 = vmatpush.bf16.msra.mxu0 0
        %4591 = vmatpush.bf16.msra.mxu0 %v3853
        %4592 = vmatmul.bf16.gmra.mxu0 %v4582
        %v4593 = vpop.f32.mrf.mxu0
        %v4594 = vadd.f32 0.0, %v4593
        %v4595 = vpop.f32.mrf.mxu0
        %v4596 = vadd.f32 0.0, %v4595
        %4597 = vdwg.mxu0
        %v4598 = vpack.c.bf16 %v4596, %v4594
        %s4599 = scalar_lea.vmem [#allocation7], 384
        %v4600 = vld [vmem:[%s4599] sm:$0xf]
        %v4601 = vld [vmem:[%s4599 + $0x4] sm:$0xf]
        %v4602 = vld [vmem:[%s4599 + $0x8] sm:$0xf]
        %v4603 = vld [vmem:[%s4599 + $0xc] sm:$0xf]
        %v4604 = vld [vmem:[%s4599 + $0x10] sm:$0xf]
        %v4605 = vld [vmem:[%s4599 + $0x14] sm:$0xf]
        %v4606 = vld [vmem:[%s4599 + $0x18] sm:$0xf]
        %v4607 = vld [vmem:[%s4599 + $0x1c] sm:$0xf]
        %v4608 = vld [vmem:[%s4599 + $0x20] sm:$0xf]
        %v4609 = vld [vmem:[%s4599 + $0x24] sm:$0xf]
        %v4610 = vld [vmem:[%s4599 + $0x28] sm:$0xf]
        %v4611 = vld [vmem:[%s4599 + $0x2c] sm:$0xf]
        %v4612 = vld [vmem:[%s4599 + $0x30] sm:$0xf]
        %v4613 = vld [vmem:[%s4599 + $0x34] sm:$0xf]
        %v4614 = vld [vmem:[%s4599 + $0x38] sm:$0xf]
        %v4615 = vld [vmem:[%s4599 + $0x3c] sm:$0xf]
        %v4632 = vunpack.c.l.b16 %v4600
        %v4633 = vunpack.c.l.b16 %v4601
        %v4634 = vunpack.c.l.b16 %v4602
        %v4635 = vunpack.c.l.b16 %v4603
        %v4636 = vunpack.c.l.b16 %v4604
        %v4637 = vunpack.c.l.b16 %v4605
        %v4638 = vunpack.c.l.b16 %v4606
        %v4639 = vunpack.c.l.b16 %v4607
        %v4640 = vunpack.c.l.b16 %v4608
        %v4641 = vunpack.c.l.b16 %v4609
        %v4642 = vunpack.c.l.b16 %v4610
        %v4643 = vunpack.c.l.b16 %v4611
        %v4644 = vunpack.c.l.b16 %v4612
        %v4645 = vunpack.c.l.b16 %v4613
        %v4646 = vunpack.c.l.b16 %v4614
        %v4647 = vunpack.c.l.b16 %v4615
        %v4648 = vpack.c.b16 %v4633, %v4632
        %v4649 = vpack.c.b16 %v4635, %v4634
        %v4650 = vpack.c.b16 %v4637, %v4636
        %v4651 = vpack.c.b16 %v4639, %v4638
        %v4652 = vpack.c.b16 %v4641, %v4640
        %v4653 = vpack.c.b16 %v4643, %v4642
        %v4654 = vpack.c.b16 %v4645, %v4644
        %v4655 = vpack.c.b16 %v4647, %v4646
        %4664 = vmatpush.bf16.msra.mxu0 %v4655
        %4665 = vmatpush.bf16.msra.mxu0 %v4654
        %4666 = vmatpush.bf16.msra.mxu0 %v4653
        %4667 = vmatpush.bf16.msra.mxu0 %v4652
        %4668 = vmatpush.bf16.msra.mxu0 %v4651
        %4669 = vmatpush.bf16.msra.mxu0 %v4650
        %4670 = vmatpush.bf16.msra.mxu0 %v4649
        %4671 = vmatpush.bf16.msra.mxu0 %v4648
        %4672 = vmatmul.bf16.gmra.mxu0 %v4598
        %v4673 = vpop.f32.mrf.mxu0
        %v4674 = vadd.f32 0.0, %v4673
        %v4675 = vpop.f32.mrf.mxu0
        %v4676 = vadd.f32 0.0, %v4675
        %4677 = vdwg.mxu0
        %v4678 = vadd.f32 %v4571, %v4674
        %v4679 = vadd.f32 %v4572, %v4676
        %s4680 = scalar_lea.vmem %s3, 56
        %v4681 = vld [vmem:[%s4680] sm:$0xf]
        %v4682 = vld [vmem:[%s4680 + $0x4] sm:$0xf]
        %v4685 = vunpack.c.l.b16 %v4681
        %v4686 = vunpack.c.l.b16 %v4682
        %v4687 = vpack.c.b16 %v4686, %v4685
        %v4689 = vsel %vm3943, %v4687, 0
        %4691 = vmatpush.bf16.msra.mxu0 0
        %4692 = vmatpush.bf16.msra.mxu0 0
        %4693 = vmatpush.bf16.msra.mxu0 0
        %4694 = vmatpush.bf16.msra.mxu0 0
        %4695 = vmatpush.bf16.msra.mxu0 0
        %4696 = vmatpush.bf16.msra.mxu0 0
        %4697 = vmatpush.bf16.msra.mxu0 0
        %4698 = vmatpush.bf16.msra.mxu0 %v3853
        %4699 = vmatmul.bf16.gmra.mxu0 %v4689
        %v4700 = vpop.f32.mrf.mxu0
        %v4701 = vadd.f32 0.0, %v4700
        %v4702 = vpop.f32.mrf.mxu0
        %v4703 = vadd.f32 0.0, %v4702
        %4704 = vdwg.mxu0
        %v4705 = vpack.c.bf16 %v4703, %v4701
        %s4706 = scalar_lea.vmem [#allocation7], 448
        %v4707 = vld [vmem:[%s4706] sm:$0xf]
        %v4708 = vld [vmem:[%s4706 + $0x4] sm:$0xf]
        %v4709 = vld [vmem:[%s4706 + $0x8] sm:$0xf]
        %v4710 = vld [vmem:[%s4706 + $0xc] sm:$0xf]
        %v4711 = vld [vmem:[%s4706 + $0x10] sm:$0xf]
        %v4712 = vld [vmem:[%s4706 + $0x14] sm:$0xf]
        %v4713 = vld [vmem:[%s4706 + $0x18] sm:$0xf]
        %v4714 = vld [vmem:[%s4706 + $0x1c] sm:$0xf]
        %v4715 = vld [vmem:[%s4706 + $0x20] sm:$0xf]
        %v4716 = vld [vmem:[%s4706 + $0x24] sm:$0xf]
        %v4717 = vld [vmem:[%s4706 + $0x28] sm:$0xf]
        %v4718 = vld [vmem:[%s4706 + $0x2c] sm:$0xf]
        %v4719 = vld [vmem:[%s4706 + $0x30] sm:$0xf]
        %v4720 = vld [vmem:[%s4706 + $0x34] sm:$0xf]
        %v4721 = vld [vmem:[%s4706 + $0x38] sm:$0xf]
        %v4722 = vld [vmem:[%s4706 + $0x3c] sm:$0xf]
        %v4739 = vunpack.c.l.b16 %v4707
        %v4740 = vunpack.c.l.b16 %v4708
        %v4741 = vunpack.c.l.b16 %v4709
        %v4742 = vunpack.c.l.b16 %v4710
        %v4743 = vunpack.c.l.b16 %v4711
        %v4744 = vunpack.c.l.b16 %v4712
        %v4745 = vunpack.c.l.b16 %v4713
        %v4746 = vunpack.c.l.b16 %v4714
        %v4747 = vunpack.c.l.b16 %v4715
        %v4748 = vunpack.c.l.b16 %v4716
        %v4749 = vunpack.c.l.b16 %v4717
        %v4750 = vunpack.c.l.b16 %v4718
        %v4751 = vunpack.c.l.b16 %v4719
        %v4752 = vunpack.c.l.b16 %v4720
        %v4753 = vunpack.c.l.b16 %v4721
        %v4754 = vunpack.c.l.b16 %v4722
        %v4755 = vpack.c.b16 %v4740, %v4739
        %v4756 = vpack.c.b16 %v4742, %v4741
        %v4757 = vpack.c.b16 %v4744, %v4743
        %v4758 = vpack.c.b16 %v4746, %v4745
        %v4759 = vpack.c.b16 %v4748, %v4747
        %v4760 = vpack.c.b16 %v4750, %v4749
        %v4761 = vpack.c.b16 %v4752, %v4751
        %v4762 = vpack.c.b16 %v4754, %v4753
        %4771 = vmatpush.bf16.msra.mxu0 %v4762
        %4772 = vmatpush.bf16.msra.mxu0 %v4761
        %4773 = vmatpush.bf16.msra.mxu0 %v4760
        %4774 = vmatpush.bf16.msra.mxu0 %v4759
        %4775 = vmatpush.bf16.msra.mxu0 %v4758
        %4776 = vmatpush.bf16.msra.mxu0 %v4757
        %4777 = vmatpush.bf16.msra.mxu0 %v4756
        %4778 = vmatpush.bf16.msra.mxu0 %v4755
        %4779 = vmatmul.bf16.gmra.mxu0 %v4705
        %v4780 = vpop.f32.mrf.mxu0
        %v4781 = vadd.f32 0.0, %v4780
        %v4782 = vpop.f32.mrf.mxu0
        %v4783 = vadd.f32 0.0, %v4782
        %4784 = vdwg.mxu0
        %v4785 = vadd.f32 %v4678, %v4781
        %v4786 = vadd.f32 %v4679, %v4783
        %s4787 = scalar_lea.vmem %s3, 64
        %v4788 = vld [vmem:[%s4787] sm:$0xf]
        %v4789 = vld [vmem:[%s4787 + $0x4] sm:$0xf]
        %v4792 = vunpack.c.l.b16 %v4788
        %v4793 = vunpack.c.l.b16 %v4789
        %v4794 = vpack.c.b16 %v4793, %v4792
        %v4796 = vsel %vm3943, %v4794, 0
        %4798 = vmatpush.bf16.msra.mxu0 0
        %4799 = vmatpush.bf16.msra.mxu0 0
        %4800 = vmatpush.bf16.msra.mxu0 0
        %4801 = vmatpush.bf16.msra.mxu0 0
        %4802 = vmatpush.bf16.msra.mxu0 0
        %4803 = vmatpush.bf16.msra.mxu0 0
        %4804 = vmatpush.bf16.msra.mxu0 0
        %4805 = vmatpush.bf16.msra.mxu0 %v3853
        %4806 = vmatmul.bf16.gmra.mxu0 %v4796
        %v4807 = vpop.f32.mrf.mxu0
        %v4808 = vadd.f32 0.0, %v4807
        %v4809 = vpop.f32.mrf.mxu0
        %v4810 = vadd.f32 0.0, %v4809
        %4811 = vdwg.mxu0
        %v4812 = vpack.c.bf16 %v4810, %v4808
        %s4813 = scalar_lea.vmem [#allocation7], 512
        %v4814 = vld [vmem:[%s4813] sm:$0xf]
        %v4815 = vld [vmem:[%s4813 + $0x4] sm:$0xf]
        %v4816 = vld [vmem:[%s4813 + $0x8] sm:$0xf]
        %v4817 = vld [vmem:[%s4813 + $0xc] sm:$0xf]
        %v4818 = vld [vmem:[%s4813 + $0x10] sm:$0xf]
        %v4819 = vld [vmem:[%s4813 + $0x14] sm:$0xf]
        %v4820 = vld [vmem:[%s4813 + $0x18] sm:$0xf]
        %v4821 = vld [vmem:[%s4813 + $0x1c] sm:$0xf]
        %v4822 = vld [vmem:[%s4813 + $0x20] sm:$0xf]
        %v4823 = vld [vmem:[%s4813 + $0x24] sm:$0xf]
        %v4824 = vld [vmem:[%s4813 + $0x28] sm:$0xf]
        %v4825 = vld [vmem:[%s4813 + $0x2c] sm:$0xf]
        %v4826 = vld [vmem:[%s4813 + $0x30] sm:$0xf]
        %v4827 = vld [vmem:[%s4813 + $0x34] sm:$0xf]
        %v4828 = vld [vmem:[%s4813 + $0x38] sm:$0xf]
        %v4829 = vld [vmem:[%s4813 + $0x3c] sm:$0xf]
        %v4846 = vunpack.c.l.b16 %v4814
        %v4847 = vunpack.c.l.b16 %v4815
        %v4848 = vunpack.c.l.b16 %v4816
        %v4849 = vunpack.c.l.b16 %v4817
        %v4850 = vunpack.c.l.b16 %v4818
        %v4851 = vunpack.c.l.b16 %v4819
        %v4852 = vunpack.c.l.b16 %v4820
        %v4853 = vunpack.c.l.b16 %v4821
        %v4854 = vunpack.c.l.b16 %v4822
        %v4855 = vunpack.c.l.b16 %v4823
        %v4856 = vunpack.c.l.b16 %v4824
        %v4857 = vunpack.c.l.b16 %v4825
        %v4858 = vunpack.c.l.b16 %v4826
        %v4859 = vunpack.c.l.b16 %v4827
        %v4860 = vunpack.c.l.b16 %v4828
        %v4861 = vunpack.c.l.b16 %v4829
        %v4862 = vpack.c.b16 %v4847, %v4846
        %v4863 = vpack.c.b16 %v4849, %v4848
        %v4864 = vpack.c.b16 %v4851, %v4850
        %v4865 = vpack.c.b16 %v4853, %v4852
        %v4866 = vpack.c.b16 %v4855, %v4854
        %v4867 = vpack.c.b16 %v4857, %v4856
        %v4868 = vpack.c.b16 %v4859, %v4858
        %v4869 = vpack.c.b16 %v4861, %v4860
        %4878 = vmatpush.bf16.msra.mxu0 %v4869
        %4879 = vmatpush.bf16.msra.mxu0 %v4868
        %4880 = vmatpush.bf16.msra.mxu0 %v4867
        %4881 = vmatpush.bf16.msra.mxu0 %v4866
        %4882 = vmatpush.bf16.msra.mxu0 %v4865
        %4883 = vmatpush.bf16.msra.mxu0 %v4864
        %4884 = vmatpush.bf16.msra.mxu0 %v4863
        %4885 = vmatpush.bf16.msra.mxu0 %v4862
        %4886 = vmatmul.bf16.gmra.mxu0 %v4812
        %v4887 = vpop.f32.mrf.mxu0
        %v4888 = vadd.f32 0.0, %v4887
        %v4889 = vpop.f32.mrf.mxu0
        %v4890 = vadd.f32 0.0, %v4889
        %4891 = vdwg.mxu0
        %v4892 = vadd.f32 %v4785, %v4888
        %v4893 = vadd.f32 %v4786, %v4890
        %v4894 = vperm.slane %v840, 3
        %v4895 = vadd.f32 %v4892, %v4894
        %v4896 = vadd.f32 %v4893, %v4894
        %v4897 = vmax.f32 %v4895, 0.0
        %v4898 = vmax.f32 %v4896, 0.0
        %v4899 = vpack.c.bf16 %v4898, %v4897
        %v4900 = vld [vmem:[%s4] sm:$0xf]
        %v4901 = vld [vmem:[%s4 + $0x4] sm:$0xf]
        %v4904 = vunpack.c.l.b16 %v4900
        %v4905 = vunpack.c.l.b16 %v4901
        %v4906 = vpack.c.b16 %v4905, %v4904
        %v4908 = vsel %vm3943, %v4906, 0
        %4910 = vmatpush.bf16.msra.mxu0 0
        %4911 = vmatpush.bf16.msra.mxu0 0
        %4912 = vmatpush.bf16.msra.mxu0 0
        %4913 = vmatpush.bf16.msra.mxu0 0
        %4914 = vmatpush.bf16.msra.mxu0 0
        %4915 = vmatpush.bf16.msra.mxu0 0
        %4916 = vmatpush.bf16.msra.mxu0 0
        %4917 = vmatpush.bf16.msra.mxu0 %v3853
        %4918 = vmatmul.bf16.gmra.mxu0 %v4908
        %v4919 = vpop.f32.mrf.mxu0
        %v4920 = vadd.f32 0.0, %v4919
        %v4921 = vpop.f32.mrf.mxu0
        %v4922 = vadd.f32 0.0, %v4921
        %4923 = vdwg.mxu0
        %v4924 = vpack.c.bf16 %v4922, %v4920
        %v4925 = vld [vmem:[#allocation9] sm:$0xf]
        %v4926 = vld [vmem:[#allocation9 + $0x4] sm:$0xf]
        %v4927 = vld [vmem:[#allocation9 + $0x8] sm:$0xf]
        %v4928 = vld [vmem:[#allocation9 + $0xc] sm:$0xf]
        %v4929 = vld [vmem:[#allocation9 + $0x10] sm:$0xf]
        %v4930 = vld [vmem:[#allocation9 + $0x14] sm:$0xf]
        %v4931 = vld [vmem:[#allocation9 + $0x18] sm:$0xf]
        %v4932 = vld [vmem:[#allocation9 + $0x1c] sm:$0xf]
        %v4933 = vld [vmem:[#allocation9 + $0x20] sm:$0xf]
        %v4934 = vld [vmem:[#allocation9 + $0x24] sm:$0xf]
        %v4935 = vld [vmem:[#allocation9 + $0x28] sm:$0xf]
        %v4936 = vld [vmem:[#allocation9 + $0x2c] sm:$0xf]
        %v4937 = vld [vmem:[#allocation9 + $0x30] sm:$0xf]
        %v4938 = vld [vmem:[#allocation9 + $0x34] sm:$0xf]
        %v4939 = vld [vmem:[#allocation9 + $0x38] sm:$0xf]
        %v4940 = vld [vmem:[#allocation9 + $0x3c] sm:$0xf]
        %s4941 = scalar_lea.vmem %s4, 8
        %v4942 = vld [vmem:[%s4941] sm:$0xf]
        %v4943 = vld [vmem:[%s4941 + $0x4] sm:$0xf]
        %v4946 = vunpack.c.l.b16 %v4942
        %v4947 = vunpack.c.l.b16 %v4943
        %v4948 = vpack.c.b16 %v4947, %v4946
        %v4950 = vsel %vm3943, %v4948, 0
        %4952 = vmatpush.bf16.msra.mxu0 0
        %4953 = vmatpush.bf16.msra.mxu0 0
        %4954 = vmatpush.bf16.msra.mxu0 0
        %4955 = vmatpush.bf16.msra.mxu0 0
        %4956 = vmatpush.bf16.msra.mxu0 0
        %4957 = vmatpush.bf16.msra.mxu0 0
        %4958 = vmatpush.bf16.msra.mxu0 0
        %4959 = vmatpush.bf16.msra.mxu0 %v3853
        %4960 = vmatmul.bf16.gmra.mxu0 %v4950
        %v4961 = vpop.f32.mrf.mxu0
        %v4962 = vadd.f32 0.0, %v4961
        %v4963 = vpop.f32.mrf.mxu0
        %v4964 = vadd.f32 0.0, %v4963
        %4965 = vdwg.mxu0
        %v4966 = vpack.c.bf16 %v4964, %v4962
        %s4967 = scalar_lea.vmem [#allocation9], 64
        %v4968 = vld [vmem:[%s4967] sm:$0xf]
        %v4969 = vld [vmem:[%s4967 + $0x4] sm:$0xf]
        %v4970 = vld [vmem:[%s4967 + $0x8] sm:$0xf]
        %v4971 = vld [vmem:[%s4967 + $0xc] sm:$0xf]
        %v4972 = vld [vmem:[%s4967 + $0x10] sm:$0xf]
        %v4973 = vld [vmem:[%s4967 + $0x14] sm:$0xf]
        %v4974 = vld [vmem:[%s4967 + $0x18] sm:$0xf]
        %v4975 = vld [vmem:[%s4967 + $0x1c] sm:$0xf]
        %v4976 = vld [vmem:[%s4967 + $0x20] sm:$0xf]
        %v4977 = vld [vmem:[%s4967 + $0x24] sm:$0xf]
        %v4978 = vld [vmem:[%s4967 + $0x28] sm:$0xf]
        %v4979 = vld [vmem:[%s4967 + $0x2c] sm:$0xf]
        %v4980 = vld [vmem:[%s4967 + $0x30] sm:$0xf]
        %v4981 = vld [vmem:[%s4967 + $0x34] sm:$0xf]
        %v4982 = vld [vmem:[%s4967 + $0x38] sm:$0xf]
        %v4983 = vld [vmem:[%s4967 + $0x3c] sm:$0xf]
        %v5000 = vunpack.c.l.b16 %v4968
        %v5001 = vunpack.c.l.b16 %v4969
        %v5002 = vunpack.c.l.b16 %v4970
        %v5003 = vunpack.c.l.b16 %v4971
        %v5004 = vunpack.c.l.b16 %v4972
        %v5005 = vunpack.c.l.b16 %v4973
        %v5006 = vunpack.c.l.b16 %v4974
        %v5007 = vunpack.c.l.b16 %v4975
        %v5008 = vunpack.c.l.b16 %v4976
        %v5009 = vunpack.c.l.b16 %v4977
        %v5010 = vunpack.c.l.b16 %v4978
        %v5011 = vunpack.c.l.b16 %v4979
        %v5012 = vunpack.c.l.b16 %v4980
        %v5013 = vunpack.c.l.b16 %v4981
        %v5014 = vunpack.c.l.b16 %v4982
        %v5015 = vunpack.c.l.b16 %v4983
        %v5016 = vpack.c.b16 %v5001, %v5000
        %v5017 = vpack.c.b16 %v5003, %v5002
        %v5018 = vpack.c.b16 %v5005, %v5004
        %v5019 = vpack.c.b16 %v5007, %v5006
        %v5020 = vpack.c.b16 %v5009, %v5008
        %v5021 = vpack.c.b16 %v5011, %v5010
        %v5022 = vpack.c.b16 %v5013, %v5012
        %v5023 = vpack.c.b16 %v5015, %v5014
        %5032 = vmatpush.bf16.msra.mxu0 %v5023
        %5033 = vmatpush.bf16.msra.mxu0 %v5022
        %5034 = vmatpush.bf16.msra.mxu0 %v5021
        %5035 = vmatpush.bf16.msra.mxu0 %v5020
        %5036 = vmatpush.bf16.msra.mxu0 %v5019
        %5037 = vmatpush.bf16.msra.mxu0 %v5018
        %5038 = vmatpush.bf16.msra.mxu0 %v5017
        %5039 = vmatpush.bf16.msra.mxu0 %v5016
        %5040 = vmatmul.bf16.gmra.mxu0 %v4966
        %v5041 = vpop.f32.mrf.mxu0
        %v5042 = vadd.f32 0.0, %v5041
        %v5043 = vpop.f32.mrf.mxu0
        %v5044 = vadd.f32 0.0, %v5043
        %5045 = vdwg.mxu0
        %v5062 = vunpack.c.l.b16 %v4925
        %v5063 = vunpack.c.l.b16 %v4926
        %v5064 = vunpack.c.l.b16 %v4927
        %v5065 = vunpack.c.l.b16 %v4928
        %v5066 = vunpack.c.l.b16 %v4929
        %v5067 = vunpack.c.l.b16 %v4930
        %v5068 = vunpack.c.l.b16 %v4931
        %v5069 = vunpack.c.l.b16 %v4932
        %v5070 = vunpack.c.l.b16 %v4933
        %v5071 = vunpack.c.l.b16 %v4934
        %v5072 = vunpack.c.l.b16 %v4935
        %v5073 = vunpack.c.l.b16 %v4936
        %v5074 = vunpack.c.l.b16 %v4937
        %v5075 = vunpack.c.l.b16 %v4938
        %v5076 = vunpack.c.l.b16 %v4939
        %v5077 = vunpack.c.l.b16 %v4940
        %v5078 = vpack.c.b16 %v5063, %v5062
        %v5079 = vpack.c.b16 %v5065, %v5064
        %v5080 = vpack.c.b16 %v5067, %v5066
        %v5081 = vpack.c.b16 %v5069, %v5068
        %v5082 = vpack.c.b16 %v5071, %v5070
        %v5083 = vpack.c.b16 %v5073, %v5072
        %v5084 = vpack.c.b16 %v5075, %v5074
        %v5085 = vpack.c.b16 %v5077, %v5076
        %5094 = vmatpush.bf16.msra.mxu0 %v5085
        %5095 = vmatpush.bf16.msra.mxu0 %v5084
        %5096 = vmatpush.bf16.msra.mxu0 %v5083
        %5097 = vmatpush.bf16.msra.mxu0 %v5082
        %5098 = vmatpush.bf16.msra.mxu0 %v5081
        %5099 = vmatpush.bf16.msra.mxu0 %v5080
        %5100 = vmatpush.bf16.msra.mxu0 %v5079
        %5101 = vmatpush.bf16.msra.mxu0 %v5078
        %5102 = vmatmul.bf16.gmra.mxu0 %v4924
        %v5103 = vpop.f32.mrf.mxu0
        %v5104 = vadd.f32 %v5042, %v5103
        %v5105 = vpop.f32.mrf.mxu0
        %v5106 = vadd.f32 %v5044, %v5105
        %5107 = vdwg.mxu0
        %s5108 = scalar_lea.vmem %s4, 16
        %v5109 = vld [vmem:[%s5108] sm:$0xf]
        %v5110 = vld [vmem:[%s5108 + $0x4] sm:$0xf]
        %v5113 = vunpack.c.l.b16 %v5109
        %v5114 = vunpack.c.l.b16 %v5110
        %v5115 = vpack.c.b16 %v5114, %v5113
        %v5117 = vsel %vm3943, %v5115, 0
        %5119 = vmatpush.bf16.msra.mxu0 0
        %5120 = vmatpush.bf16.msra.mxu0 0
        %5121 = vmatpush.bf16.msra.mxu0 0
        %5122 = vmatpush.bf16.msra.mxu0 0
        %5123 = vmatpush.bf16.msra.mxu0 0
        %5124 = vmatpush.bf16.msra.mxu0 0
        %5125 = vmatpush.bf16.msra.mxu0 0
        %5126 = vmatpush.bf16.msra.mxu0 %v3853
        %5127 = vmatmul.bf16.gmra.mxu0 %v5117
        %v5128 = vpop.f32.mrf.mxu0
        %v5129 = vadd.f32 0.0, %v5128
        %v5130 = vpop.f32.mrf.mxu0
        %v5131 = vadd.f32 0.0, %v5130
        %5132 = vdwg.mxu0
        %v5133 = vpack.c.bf16 %v5131, %v5129
        %s5134 = scalar_lea.vmem [#allocation9], 128
        %v5135 = vld [vmem:[%s5134] sm:$0xf]
        %v5136 = vld [vmem:[%s5134 + $0x4] sm:$0xf]
        %v5137 = vld [vmem:[%s5134 + $0x8] sm:$0xf]
        %v5138 = vld [vmem:[%s5134 + $0xc] sm:$0xf]
        %v5139 = vld [vmem:[%s5134 + $0x10] sm:$0xf]
        %v5140 = vld [vmem:[%s5134 + $0x14] sm:$0xf]
        %v5141 = vld [vmem:[%s5134 + $0x18] sm:$0xf]
        %v5142 = vld [vmem:[%s5134 + $0x1c] sm:$0xf]
        %v5143 = vld [vmem:[%s5134 + $0x20] sm:$0xf]
        %v5144 = vld [vmem:[%s5134 + $0x24] sm:$0xf]
        %v5145 = vld [vmem:[%s5134 + $0x28] sm:$0xf]
        %v5146 = vld [vmem:[%s5134 + $0x2c] sm:$0xf]
        %v5147 = vld [vmem:[%s5134 + $0x30] sm:$0xf]
        %v5148 = vld [vmem:[%s5134 + $0x34] sm:$0xf]
        %v5149 = vld [vmem:[%s5134 + $0x38] sm:$0xf]
        %v5150 = vld [vmem:[%s5134 + $0x3c] sm:$0xf]
        %v5167 = vunpack.c.l.b16 %v5135
        %v5168 = vunpack.c.l.b16 %v5136
        %v5169 = vunpack.c.l.b16 %v5137
        %v5170 = vunpack.c.l.b16 %v5138
        %v5171 = vunpack.c.l.b16 %v5139
        %v5172 = vunpack.c.l.b16 %v5140
        %v5173 = vunpack.c.l.b16 %v5141
        %v5174 = vunpack.c.l.b16 %v5142
        %v5175 = vunpack.c.l.b16 %v5143
        %v5176 = vunpack.c.l.b16 %v5144
        %v5177 = vunpack.c.l.b16 %v5145
        %v5178 = vunpack.c.l.b16 %v5146
        %v5179 = vunpack.c.l.b16 %v5147
        %v5180 = vunpack.c.l.b16 %v5148
        %v5181 = vunpack.c.l.b16 %v5149
        %v5182 = vunpack.c.l.b16 %v5150
        %v5183 = vpack.c.b16 %v5168, %v5167
        %v5184 = vpack.c.b16 %v5170, %v5169
        %v5185 = vpack.c.b16 %v5172, %v5171
        %v5186 = vpack.c.b16 %v5174, %v5173
        %v5187 = vpack.c.b16 %v5176, %v5175
        %v5188 = vpack.c.b16 %v5178, %v5177
        %v5189 = vpack.c.b16 %v5180, %v5179
        %v5190 = vpack.c.b16 %v5182, %v5181
        %5199 = vmatpush.bf16.msra.mxu0 %v5190
        %5200 = vmatpush.bf16.msra.mxu0 %v5189
        %5201 = vmatpush.bf16.msra.mxu0 %v5188
        %5202 = vmatpush.bf16.msra.mxu0 %v5187
        %5203 = vmatpush.bf16.msra.mxu0 %v5186
        %5204 = vmatpush.bf16.msra.mxu0 %v5185
        %5205 = vmatpush.bf16.msra.mxu0 %v5184
        %5206 = vmatpush.bf16.msra.mxu0 %v5183
        %5207 = vmatmul.bf16.gmra.mxu0 %v5133
        %v5208 = vpop.f32.mrf.mxu0
        %v5209 = vadd.f32 0.0, %v5208
        %v5210 = vpop.f32.mrf.mxu0
        %v5211 = vadd.f32 0.0, %v5210
        %5212 = vdwg.mxu0
        %v5213 = vadd.f32 %v5104, %v5209
        %v5214 = vadd.f32 %v5106, %v5211
        %s5215 = scalar_lea.vmem %s4, 24
        %v5216 = vld [vmem:[%s5215] sm:$0xf]
        %v5217 = vld [vmem:[%s5215 + $0x4] sm:$0xf]
        %v5220 = vunpack.c.l.b16 %v5216
        %v5221 = vunpack.c.l.b16 %v5217
        %v5222 = vpack.c.b16 %v5221, %v5220
        %v5224 = vsel %vm3943, %v5222, 0
        %5226 = vmatpush.bf16.msra.mxu0 0
        %5227 = vmatpush.bf16.msra.mxu0 0
        %5228 = vmatpush.bf16.msra.mxu0 0
        %5229 = vmatpush.bf16.msra.mxu0 0
        %5230 = vmatpush.bf16.msra.mxu0 0
        %5231 = vmatpush.bf16.msra.mxu0 0
        %5232 = vmatpush.bf16.msra.mxu0 0
        %5233 = vmatpush.bf16.msra.mxu0 %v3853
        %5234 = vmatmul.bf16.gmra.mxu0 %v5224
        %v5235 = vpop.f32.mrf.mxu0
        %v5236 = vadd.f32 0.0, %v5235
        %v5237 = vpop.f32.mrf.mxu0
        %v5238 = vadd.f32 0.0, %v5237
        %5239 = vdwg.mxu0
        %v5240 = vpack.c.bf16 %v5238, %v5236
        %s5241 = scalar_lea.vmem [#allocation9], 192
        %v5242 = vld [vmem:[%s5241] sm:$0xf]
        %v5243 = vld [vmem:[%s5241 + $0x4] sm:$0xf]
        %v5244 = vld [vmem:[%s5241 + $0x8] sm:$0xf]
        %v5245 = vld [vmem:[%s5241 + $0xc] sm:$0xf]
        %v5246 = vld [vmem:[%s5241 + $0x10] sm:$0xf]
        %v5247 = vld [vmem:[%s5241 + $0x14] sm:$0xf]
        %v5248 = vld [vmem:[%s5241 + $0x18] sm:$0xf]
        %v5249 = vld [vmem:[%s5241 + $0x1c] sm:$0xf]
        %v5250 = vld [vmem:[%s5241 + $0x20] sm:$0xf]
        %v5251 = vld [vmem:[%s5241 + $0x24] sm:$0xf]
        %v5252 = vld [vmem:[%s5241 + $0x28] sm:$0xf]
        %v5253 = vld [vmem:[%s5241 + $0x2c] sm:$0xf]
        %v5254 = vld [vmem:[%s5241 + $0x30] sm:$0xf]
        %v5255 = vld [vmem:[%s5241 + $0x34] sm:$0xf]
        %v5256 = vld [vmem:[%s5241 + $0x38] sm:$0xf]
        %v5257 = vld [vmem:[%s5241 + $0x3c] sm:$0xf]
        %v5274 = vunpack.c.l.b16 %v5242
        %v5275 = vunpack.c.l.b16 %v5243
        %v5276 = vunpack.c.l.b16 %v5244
        %v5277 = vunpack.c.l.b16 %v5245
        %v5278 = vunpack.c.l.b16 %v5246
        %v5279 = vunpack.c.l.b16 %v5247
        %v5280 = vunpack.c.l.b16 %v5248
        %v5281 = vunpack.c.l.b16 %v5249
        %v5282 = vunpack.c.l.b16 %v5250
        %v5283 = vunpack.c.l.b16 %v5251
        %v5284 = vunpack.c.l.b16 %v5252
        %v5285 = vunpack.c.l.b16 %v5253
        %v5286 = vunpack.c.l.b16 %v5254
        %v5287 = vunpack.c.l.b16 %v5255
        %v5288 = vunpack.c.l.b16 %v5256
        %v5289 = vunpack.c.l.b16 %v5257
        %v5290 = vpack.c.b16 %v5275, %v5274
        %v5291 = vpack.c.b16 %v5277, %v5276
        %v5292 = vpack.c.b16 %v5279, %v5278
        %v5293 = vpack.c.b16 %v5281, %v5280
        %v5294 = vpack.c.b16 %v5283, %v5282
        %v5295 = vpack.c.b16 %v5285, %v5284
        %v5296 = vpack.c.b16 %v5287, %v5286
        %v5297 = vpack.c.b16 %v5289, %v5288
        %5306 = vmatpush.bf16.msra.mxu0 %v5297
        %5307 = vmatpush.bf16.msra.mxu0 %v5296
        %5308 = vmatpush.bf16.msra.mxu0 %v5295
        %5309 = vmatpush.bf16.msra.mxu0 %v5294
        %5310 = vmatpush.bf16.msra.mxu0 %v5293
        %5311 = vmatpush.bf16.msra.mxu0 %v5292
        %5312 = vmatpush.bf16.msra.mxu0 %v5291
        %5313 = vmatpush.bf16.msra.mxu0 %v5290
        %5314 = vmatmul.bf16.gmra.mxu0 %v5240
        %v5315 = vpop.f32.mrf.mxu0
        %v5316 = vadd.f32 0.0, %v5315
        %v5317 = vpop.f32.mrf.mxu0
        %v5318 = vadd.f32 0.0, %v5317
        %5319 = vdwg.mxu0
        %v5320 = vadd.f32 %v5213, %v5316
        %v5321 = vadd.f32 %v5214, %v5318
        %s5322 = scalar_lea.vmem %s4, 32
        %v5323 = vld [vmem:[%s5322] sm:$0xf]
        %v5324 = vld [vmem:[%s5322 + $0x4] sm:$0xf]
        %v5327 = vunpack.c.l.b16 %v5323
        %v5328 = vunpack.c.l.b16 %v5324
        %v5329 = vpack.c.b16 %v5328, %v5327
        %v5331 = vsel %vm3943, %v5329, 0
        %5333 = vmatpush.bf16.msra.mxu0 0
        %5334 = vmatpush.bf16.msra.mxu0 0
        %5335 = vmatpush.bf16.msra.mxu0 0
        %5336 = vmatpush.bf16.msra.mxu0 0
        %5337 = vmatpush.bf16.msra.mxu0 0
        %5338 = vmatpush.bf16.msra.mxu0 0
        %5339 = vmatpush.bf16.msra.mxu0 0
        %5340 = vmatpush.bf16.msra.mxu0 %v3853
        %5341 = vmatmul.bf16.gmra.mxu0 %v5331
        %v5342 = vpop.f32.mrf.mxu0
        %v5343 = vadd.f32 0.0, %v5342
        %v5344 = vpop.f32.mrf.mxu0
        %v5345 = vadd.f32 0.0, %v5344
        %5346 = vdwg.mxu0
        %v5347 = vpack.c.bf16 %v5345, %v5343
        %s5348 = scalar_lea.vmem [#allocation9], 256
        %v5349 = vld [vmem:[%s5348] sm:$0xf]
        %v5350 = vld [vmem:[%s5348 + $0x4] sm:$0xf]
        %v5351 = vld [vmem:[%s5348 + $0x8] sm:$0xf]
        %v5352 = vld [vmem:[%s5348 + $0xc] sm:$0xf]
        %v5353 = vld [vmem:[%s5348 + $0x10] sm:$0xf]
        %v5354 = vld [vmem:[%s5348 + $0x14] sm:$0xf]
        %v5355 = vld [vmem:[%s5348 + $0x18] sm:$0xf]
        %v5356 = vld [vmem:[%s5348 + $0x1c] sm:$0xf]
        %v5357 = vld [vmem:[%s5348 + $0x20] sm:$0xf]
        %v5358 = vld [vmem:[%s5348 + $0x24] sm:$0xf]
        %v5359 = vld [vmem:[%s5348 + $0x28] sm:$0xf]
        %v5360 = vld [vmem:[%s5348 + $0x2c] sm:$0xf]
        %v5361 = vld [vmem:[%s5348 + $0x30] sm:$0xf]
        %v5362 = vld [vmem:[%s5348 + $0x34] sm:$0xf]
        %v5363 = vld [vmem:[%s5348 + $0x38] sm:$0xf]
        %v5364 = vld [vmem:[%s5348 + $0x3c] sm:$0xf]
        %v5381 = vunpack.c.l.b16 %v5349
        %v5382 = vunpack.c.l.b16 %v5350
        %v5383 = vunpack.c.l.b16 %v5351
        %v5384 = vunpack.c.l.b16 %v5352
        %v5385 = vunpack.c.l.b16 %v5353
        %v5386 = vunpack.c.l.b16 %v5354
        %v5387 = vunpack.c.l.b16 %v5355
        %v5388 = vunpack.c.l.b16 %v5356
        %v5389 = vunpack.c.l.b16 %v5357
        %v5390 = vunpack.c.l.b16 %v5358
        %v5391 = vunpack.c.l.b16 %v5359
        %v5392 = vunpack.c.l.b16 %v5360
        %v5393 = vunpack.c.l.b16 %v5361
        %v5394 = vunpack.c.l.b16 %v5362
        %v5395 = vunpack.c.l.b16 %v5363
        %v5396 = vunpack.c.l.b16 %v5364
        %v5397 = vpack.c.b16 %v5382, %v5381
        %v5398 = vpack.c.b16 %v5384, %v5383
        %v5399 = vpack.c.b16 %v5386, %v5385
        %v5400 = vpack.c.b16 %v5388, %v5387
        %v5401 = vpack.c.b16 %v5390, %v5389
        %v5402 = vpack.c.b16 %v5392, %v5391
        %v5403 = vpack.c.b16 %v5394, %v5393
        %v5404 = vpack.c.b16 %v5396, %v5395
        %5413 = vmatpush.bf16.msra.mxu0 %v5404
        %5414 = vmatpush.bf16.msra.mxu0 %v5403
        %5415 = vmatpush.bf16.msra.mxu0 %v5402
        %5416 = vmatpush.bf16.msra.mxu0 %v5401
        %5417 = vmatpush.bf16.msra.mxu0 %v5400
        %5418 = vmatpush.bf16.msra.mxu0 %v5399
        %5419 = vmatpush.bf16.msra.mxu0 %v5398
        %5420 = vmatpush.bf16.msra.mxu0 %v5397
        %5421 = vmatmul.bf16.gmra.mxu0 %v5347
        %v5422 = vpop.f32.mrf.mxu0
        %v5423 = vadd.f32 0.0, %v5422
        %v5424 = vpop.f32.mrf.mxu0
        %v5425 = vadd.f32 0.0, %v5424
        %5426 = vdwg.mxu0
        %v5427 = vadd.f32 %v5320, %v5423
        %v5428 = vadd.f32 %v5321, %v5425
        %s5429 = scalar_lea.vmem %s4, 40
        %v5430 = vld [vmem:[%s5429] sm:$0xf]
        %v5431 = vld [vmem:[%s5429 + $0x4] sm:$0xf]
        %v5434 = vunpack.c.l.b16 %v5430
        %v5435 = vunpack.c.l.b16 %v5431
        %v5436 = vpack.c.b16 %v5435, %v5434
        %v5438 = vsel %vm3943, %v5436, 0
        %5440 = vmatpush.bf16.msra.mxu0 0
        %5441 = vmatpush.bf16.msra.mxu0 0
        %5442 = vmatpush.bf16.msra.mxu0 0
        %5443 = vmatpush.bf16.msra.mxu0 0
        %5444 = vmatpush.bf16.msra.mxu0 0
        %5445 = vmatpush.bf16.msra.mxu0 0
        %5446 = vmatpush.bf16.msra.mxu0 0
        %5447 = vmatpush.bf16.msra.mxu0 %v3853
        %5448 = vmatmul.bf16.gmra.mxu0 %v5438
        %v5449 = vpop.f32.mrf.mxu0
        %v5450 = vadd.f32 0.0, %v5449
        %v5451 = vpop.f32.mrf.mxu0
        %v5452 = vadd.f32 0.0, %v5451
        %5453 = vdwg.mxu0
        %v5454 = vpack.c.bf16 %v5452, %v5450
        %s5455 = scalar_lea.vmem [#allocation9], 320
        %v5456 = vld [vmem:[%s5455] sm:$0xf]
        %v5457 = vld [vmem:[%s5455 + $0x4] sm:$0xf]
        %v5458 = vld [vmem:[%s5455 + $0x8] sm:$0xf]
        %v5459 = vld [vmem:[%s5455 + $0xc] sm:$0xf]
        %v5460 = vld [vmem:[%s5455 + $0x10] sm:$0xf]
        %v5461 = vld [vmem:[%s5455 + $0x14] sm:$0xf]
        %v5462 = vld [vmem:[%s5455 + $0x18] sm:$0xf]
        %v5463 = vld [vmem:[%s5455 + $0x1c] sm:$0xf]
        %v5464 = vld [vmem:[%s5455 + $0x20] sm:$0xf]
        %v5465 = vld [vmem:[%s5455 + $0x24] sm:$0xf]
        %v5466 = vld [vmem:[%s5455 + $0x28] sm:$0xf]
        %v5467 = vld [vmem:[%s5455 + $0x2c] sm:$0xf]
        %v5468 = vld [vmem:[%s5455 + $0x30] sm:$0xf]
        %v5469 = vld [vmem:[%s5455 + $0x34] sm:$0xf]
        %v5470 = vld [vmem:[%s5455 + $0x38] sm:$0xf]
        %v5471 = vld [vmem:[%s5455 + $0x3c] sm:$0xf]
        %v5488 = vunpack.c.l.b16 %v5456
        %v5489 = vunpack.c.l.b16 %v5457
        %v5490 = vunpack.c.l.b16 %v5458
        %v5491 = vunpack.c.l.b16 %v5459
        %v5492 = vunpack.c.l.b16 %v5460
        %v5493 = vunpack.c.l.b16 %v5461
        %v5494 = vunpack.c.l.b16 %v5462
        %v5495 = vunpack.c.l.b16 %v5463
        %v5496 = vunpack.c.l.b16 %v5464
        %v5497 = vunpack.c.l.b16 %v5465
        %v5498 = vunpack.c.l.b16 %v5466
        %v5499 = vunpack.c.l.b16 %v5467
        %v5500 = vunpack.c.l.b16 %v5468
        %v5501 = vunpack.c.l.b16 %v5469
        %v5502 = vunpack.c.l.b16 %v5470
        %v5503 = vunpack.c.l.b16 %v5471
        %v5504 = vpack.c.b16 %v5489, %v5488
        %v5505 = vpack.c.b16 %v5491, %v5490
        %v5506 = vpack.c.b16 %v5493, %v5492
        %v5507 = vpack.c.b16 %v5495, %v5494
        %v5508 = vpack.c.b16 %v5497, %v5496
        %v5509 = vpack.c.b16 %v5499, %v5498
        %v5510 = vpack.c.b16 %v5501, %v5500
        %v5511 = vpack.c.b16 %v5503, %v5502
        %5520 = vmatpush.bf16.msra.mxu0 %v5511
        %5521 = vmatpush.bf16.msra.mxu0 %v5510
        %5522 = vmatpush.bf16.msra.mxu0 %v5509
        %5523 = vmatpush.bf16.msra.mxu0 %v5508
        %5524 = vmatpush.bf16.msra.mxu0 %v5507
        %5525 = vmatpush.bf16.msra.mxu0 %v5506
        %5526 = vmatpush.bf16.msra.mxu0 %v5505
        %5527 = vmatpush.bf16.msra.mxu0 %v5504
        %5528 = vmatmul.bf16.gmra.mxu0 %v5454
        %v5529 = vpop.f32.mrf.mxu0
        %v5530 = vadd.f32 0.0, %v5529
        %v5531 = vpop.f32.mrf.mxu0
        %v5532 = vadd.f32 0.0, %v5531
        %5533 = vdwg.mxu0
        %v5534 = vadd.f32 %v5427, %v5530
        %v5535 = vadd.f32 %v5428, %v5532
        %s5536 = scalar_lea.vmem %s4, 48
        %v5537 = vld [vmem:[%s5536] sm:$0xf]
        %v5538 = vld [vmem:[%s5536 + $0x4] sm:$0xf]
        %v5541 = vunpack.c.l.b16 %v5537
        %v5542 = vunpack.c.l.b16 %v5538
        %v5543 = vpack.c.b16 %v5542, %v5541
        %v5545 = vsel %vm3943, %v5543, 0
        %5547 = vmatpush.bf16.msra.mxu0 0
        %5548 = vmatpush.bf16.msra.mxu0 0
        %5549 = vmatpush.bf16.msra.mxu0 0
        %5550 = vmatpush.bf16.msra.mxu0 0
        %5551 = vmatpush.bf16.msra.mxu0 0
        %5552 = vmatpush.bf16.msra.mxu0 0
        %5553 = vmatpush.bf16.msra.mxu0 0
        %5554 = vmatpush.bf16.msra.mxu0 %v3853
        %5555 = vmatmul.bf16.gmra.mxu0 %v5545
        %v5556 = vpop.f32.mrf.mxu0
        %v5557 = vadd.f32 0.0, %v5556
        %v5558 = vpop.f32.mrf.mxu0
        %v5559 = vadd.f32 0.0, %v5558
        %5560 = vdwg.mxu0
        %v5561 = vpack.c.bf16 %v5559, %v5557
        %s5562 = scalar_lea.vmem [#allocation9], 384
        %v5563 = vld [vmem:[%s5562] sm:$0xf]
        %v5564 = vld [vmem:[%s5562 + $0x4] sm:$0xf]
        %v5565 = vld [vmem:[%s5562 + $0x8] sm:$0xf]
        %v5566 = vld [vmem:[%s5562 + $0xc] sm:$0xf]
        %v5567 = vld [vmem:[%s5562 + $0x10] sm:$0xf]
        %v5568 = vld [vmem:[%s5562 + $0x14] sm:$0xf]
        %v5569 = vld [vmem:[%s5562 + $0x18] sm:$0xf]
        %v5570 = vld [vmem:[%s5562 + $0x1c] sm:$0xf]
        %v5571 = vld [vmem:[%s5562 + $0x20] sm:$0xf]
        %v5572 = vld [vmem:[%s5562 + $0x24] sm:$0xf]
        %v5573 = vld [vmem:[%s5562 + $0x28] sm:$0xf]
        %v5574 = vld [vmem:[%s5562 + $0x2c] sm:$0xf]
        %v5575 = vld [vmem:[%s5562 + $0x30] sm:$0xf]
        %v5576 = vld [vmem:[%s5562 + $0x34] sm:$0xf]
        %v5577 = vld [vmem:[%s5562 + $0x38] sm:$0xf]
        %v5578 = vld [vmem:[%s5562 + $0x3c] sm:$0xf]
        %v5595 = vunpack.c.l.b16 %v5563
        %v5596 = vunpack.c.l.b16 %v5564
        %v5597 = vunpack.c.l.b16 %v5565
        %v5598 = vunpack.c.l.b16 %v5566
        %v5599 = vunpack.c.l.b16 %v5567
        %v5600 = vunpack.c.l.b16 %v5568
        %v5601 = vunpack.c.l.b16 %v5569
        %v5602 = vunpack.c.l.b16 %v5570
        %v5603 = vunpack.c.l.b16 %v5571
        %v5604 = vunpack.c.l.b16 %v5572
        %v5605 = vunpack.c.l.b16 %v5573
        %v5606 = vunpack.c.l.b16 %v5574
        %v5607 = vunpack.c.l.b16 %v5575
        %v5608 = vunpack.c.l.b16 %v5576
        %v5609 = vunpack.c.l.b16 %v5577
        %v5610 = vunpack.c.l.b16 %v5578
        %v5611 = vpack.c.b16 %v5596, %v5595
        %v5612 = vpack.c.b16 %v5598, %v5597
        %v5613 = vpack.c.b16 %v5600, %v5599
        %v5614 = vpack.c.b16 %v5602, %v5601
        %v5615 = vpack.c.b16 %v5604, %v5603
        %v5616 = vpack.c.b16 %v5606, %v5605
        %v5617 = vpack.c.b16 %v5608, %v5607
        %v5618 = vpack.c.b16 %v5610, %v5609
        %5627 = vmatpush.bf16.msra.mxu0 %v5618
        %5628 = vmatpush.bf16.msra.mxu0 %v5617
        %5629 = vmatpush.bf16.msra.mxu0 %v5616
        %5630 = vmatpush.bf16.msra.mxu0 %v5615
        %5631 = vmatpush.bf16.msra.mxu0 %v5614
        %5632 = vmatpush.bf16.msra.mxu0 %v5613
        %5633 = vmatpush.bf16.msra.mxu0 %v5612
        %5634 = vmatpush.bf16.msra.mxu0 %v5611
        %5635 = vmatmul.bf16.gmra.mxu0 %v5561
        %v5636 = vpop.f32.mrf.mxu0
        %v5637 = vadd.f32 0.0, %v5636
        %v5638 = vpop.f32.mrf.mxu0
        %v5639 = vadd.f32 0.0, %v5638
        %5640 = vdwg.mxu0
        %v5641 = vadd.f32 %v5534, %v5637
        %v5642 = vadd.f32 %v5535, %v5639
        %s5643 = scalar_lea.vmem %s4, 56
        %v5644 = vld [vmem:[%s5643] sm:$0xf]
        %v5645 = vld [vmem:[%s5643 + $0x4] sm:$0xf]
        %v5648 = vunpack.c.l.b16 %v5644
        %v5649 = vunpack.c.l.b16 %v5645
        %v5650 = vpack.c.b16 %v5649, %v5648
        %v5652 = vsel %vm3943, %v5650, 0
        %5654 = vmatpush.bf16.msra.mxu0 0
        %5655 = vmatpush.bf16.msra.mxu0 0
        %5656 = vmatpush.bf16.msra.mxu0 0
        %5657 = vmatpush.bf16.msra.mxu0 0
        %5658 = vmatpush.bf16.msra.mxu0 0
        %5659 = vmatpush.bf16.msra.mxu0 0
        %5660 = vmatpush.bf16.msra.mxu0 0
        %5661 = vmatpush.bf16.msra.mxu0 %v3853
        %5662 = vmatmul.bf16.gmra.mxu0 %v5652
        %v5663 = vpop.f32.mrf.mxu0
        %v5664 = vadd.f32 0.0, %v5663
        %v5665 = vpop.f32.mrf.mxu0
        %v5666 = vadd.f32 0.0, %v5665
        %5667 = vdwg.mxu0
        %v5668 = vpack.c.bf16 %v5666, %v5664
        %s5669 = scalar_lea.vmem [#allocation9], 448
        %v5670 = vld [vmem:[%s5669] sm:$0xf]
        %v5671 = vld [vmem:[%s5669 + $0x4] sm:$0xf]
        %v5672 = vld [vmem:[%s5669 + $0x8] sm:$0xf]
        %v5673 = vld [vmem:[%s5669 + $0xc] sm:$0xf]
        %v5674 = vld [vmem:[%s5669 + $0x10] sm:$0xf]
        %v5675 = vld [vmem:[%s5669 + $0x14] sm:$0xf]
        %v5676 = vld [vmem:[%s5669 + $0x18] sm:$0xf]
        %v5677 = vld [vmem:[%s5669 + $0x1c] sm:$0xf]
        %v5678 = vld [vmem:[%s5669 + $0x20] sm:$0xf]
        %v5679 = vld [vmem:[%s5669 + $0x24] sm:$0xf]
        %v5680 = vld [vmem:[%s5669 + $0x28] sm:$0xf]
        %v5681 = vld [vmem:[%s5669 + $0x2c] sm:$0xf]
        %v5682 = vld [vmem:[%s5669 + $0x30] sm:$0xf]
        %v5683 = vld [vmem:[%s5669 + $0x34] sm:$0xf]
        %v5684 = vld [vmem:[%s5669 + $0x38] sm:$0xf]
        %v5685 = vld [vmem:[%s5669 + $0x3c] sm:$0xf]
        %v5702 = vunpack.c.l.b16 %v5670
        %v5703 = vunpack.c.l.b16 %v5671
        %v5704 = vunpack.c.l.b16 %v5672
        %v5705 = vunpack.c.l.b16 %v5673
        %v5706 = vunpack.c.l.b16 %v5674
        %v5707 = vunpack.c.l.b16 %v5675
        %v5708 = vunpack.c.l.b16 %v5676
        %v5709 = vunpack.c.l.b16 %v5677
        %v5710 = vunpack.c.l.b16 %v5678
        %v5711 = vunpack.c.l.b16 %v5679
        %v5712 = vunpack.c.l.b16 %v5680
        %v5713 = vunpack.c.l.b16 %v5681
        %v5714 = vunpack.c.l.b16 %v5682
        %v5715 = vunpack.c.l.b16 %v5683
        %v5716 = vunpack.c.l.b16 %v5684
        %v5717 = vunpack.c.l.b16 %v5685
        %v5718 = vpack.c.b16 %v5703, %v5702
        %v5719 = vpack.c.b16 %v5705, %v5704
        %v5720 = vpack.c.b16 %v5707, %v5706
        %v5721 = vpack.c.b16 %v5709, %v5708
        %v5722 = vpack.c.b16 %v5711, %v5710
        %v5723 = vpack.c.b16 %v5713, %v5712
        %v5724 = vpack.c.b16 %v5715, %v5714
        %v5725 = vpack.c.b16 %v5717, %v5716
        %5734 = vmatpush.bf16.msra.mxu0 %v5725
        %5735 = vmatpush.bf16.msra.mxu0 %v5724
        %5736 = vmatpush.bf16.msra.mxu0 %v5723
        %5737 = vmatpush.bf16.msra.mxu0 %v5722
        %5738 = vmatpush.bf16.msra.mxu0 %v5721
        %5739 = vmatpush.bf16.msra.mxu0 %v5720
        %5740 = vmatpush.bf16.msra.mxu0 %v5719
        %5741 = vmatpush.bf16.msra.mxu0 %v5718
        %5742 = vmatmul.bf16.gmra.mxu0 %v5668
        %v5743 = vpop.f32.mrf.mxu0
        %v5744 = vadd.f32 0.0, %v5743
        %v5745 = vpop.f32.mrf.mxu0
        %v5746 = vadd.f32 0.0, %v5745
        %5747 = vdwg.mxu0
        %v5748 = vadd.f32 %v5641, %v5744
        %v5749 = vadd.f32 %v5642, %v5746
        %s5750 = scalar_lea.vmem %s4, 64
        %v5751 = vld [vmem:[%s5750] sm:$0xf]
        %v5752 = vld [vmem:[%s5750 + $0x4] sm:$0xf]
        %v5755 = vunpack.c.l.b16 %v5751
        %v5756 = vunpack.c.l.b16 %v5752
        %v5757 = vpack.c.b16 %v5756, %v5755
        %v5759 = vsel %vm3943, %v5757, 0
        %5761 = vmatpush.bf16.msra.mxu0 0
        %5762 = vmatpush.bf16.msra.mxu0 0
        %5763 = vmatpush.bf16.msra.mxu0 0
        %5764 = vmatpush.bf16.msra.mxu0 0
        %5765 = vmatpush.bf16.msra.mxu0 0
        %5766 = vmatpush.bf16.msra.mxu0 0
        %5767 = vmatpush.bf16.msra.mxu0 0
        %5768 = vmatpush.bf16.msra.mxu0 %v3853
        %5769 = vmatmul.bf16.gmra.mxu0 %v5759
        %v5770 = vpop.f32.mrf.mxu0
        %v5771 = vadd.f32 0.0, %v5770
        %v5772 = vpop.f32.mrf.mxu0
        %v5773 = vadd.f32 0.0, %v5772
        %5774 = vdwg.mxu0
        %v5775 = vpack.c.bf16 %v5773, %v5771
        %s5776 = scalar_lea.vmem [#allocation9], 512
        %v5777 = vld [vmem:[%s5776] sm:$0xf]
        %v5778 = vld [vmem:[%s5776 + $0x4] sm:$0xf]
        %v5779 = vld [vmem:[%s5776 + $0x8] sm:$0xf]
        %v5780 = vld [vmem:[%s5776 + $0xc] sm:$0xf]
        %v5781 = vld [vmem:[%s5776 + $0x10] sm:$0xf]
        %v5782 = vld [vmem:[%s5776 + $0x14] sm:$0xf]
        %v5783 = vld [vmem:[%s5776 + $0x18] sm:$0xf]
        %v5784 = vld [vmem:[%s5776 + $0x1c] sm:$0xf]
        %v5785 = vld [vmem:[%s5776 + $0x20] sm:$0xf]
        %v5786 = vld [vmem:[%s5776 + $0x24] sm:$0xf]
        %v5787 = vld [vmem:[%s5776 + $0x28] sm:$0xf]
        %v5788 = vld [vmem:[%s5776 + $0x2c] sm:$0xf]
        %v5789 = vld [vmem:[%s5776 + $0x30] sm:$0xf]
        %v5790 = vld [vmem:[%s5776 + $0x34] sm:$0xf]
        %v5791 = vld [vmem:[%s5776 + $0x38] sm:$0xf]
        %v5792 = vld [vmem:[%s5776 + $0x3c] sm:$0xf]
        %v5809 = vunpack.c.l.b16 %v5777
        %v5810 = vunpack.c.l.b16 %v5778
        %v5811 = vunpack.c.l.b16 %v5779
        %v5812 = vunpack.c.l.b16 %v5780
        %v5813 = vunpack.c.l.b16 %v5781
        %v5814 = vunpack.c.l.b16 %v5782
        %v5815 = vunpack.c.l.b16 %v5783
        %v5816 = vunpack.c.l.b16 %v5784
        %v5817 = vunpack.c.l.b16 %v5785
        %v5818 = vunpack.c.l.b16 %v5786
        %v5819 = vunpack.c.l.b16 %v5787
        %v5820 = vunpack.c.l.b16 %v5788
        %v5821 = vunpack.c.l.b16 %v5789
        %v5822 = vunpack.c.l.b16 %v5790
        %v5823 = vunpack.c.l.b16 %v5791
        %v5824 = vunpack.c.l.b16 %v5792
        %v5825 = vpack.c.b16 %v5810, %v5809
        %v5826 = vpack.c.b16 %v5812, %v5811
        %v5827 = vpack.c.b16 %v5814, %v5813
        %v5828 = vpack.c.b16 %v5816, %v5815
        %v5829 = vpack.c.b16 %v5818, %v5817
        %v5830 = vpack.c.b16 %v5820, %v5819
        %v5831 = vpack.c.b16 %v5822, %v5821
        %v5832 = vpack.c.b16 %v5824, %v5823
        %5841 = vmatpush.bf16.msra.mxu0 %v5832
        %5842 = vmatpush.bf16.msra.mxu0 %v5831
        %5843 = vmatpush.bf16.msra.mxu0 %v5830
        %5844 = vmatpush.bf16.msra.mxu0 %v5829
        %5845 = vmatpush.bf16.msra.mxu0 %v5828
        %5846 = vmatpush.bf16.msra.mxu0 %v5827
        %5847 = vmatpush.bf16.msra.mxu0 %v5826
        %5848 = vmatpush.bf16.msra.mxu0 %v5825
        %5849 = vmatmul.bf16.gmra.mxu0 %v5775
        %v5850 = vpop.f32.mrf.mxu0
        %v5851 = vadd.f32 0.0, %v5850
        %v5852 = vpop.f32.mrf.mxu0
        %v5853 = vadd.f32 0.0, %v5852
        %5854 = vdwg.mxu0
        %v5855 = vadd.f32 %v5748, %v5851
        %v5856 = vadd.f32 %v5749, %v5853
        %v5857 = vperm.slane %v840, 4
        %v5858 = vadd.f32 %v5855, %v5857
        %v5859 = vadd.f32 %v5856, %v5857
        %v5860 = vmax.f32 %v5858, 0.0
        %v5861 = vmax.f32 %v5859, 0.0
        %v5862 = vpack.c.bf16 %v5861, %v5860
        %v5863 = vld [vmem:[%s6] sm:$0xf]
        %v5864 = vld [vmem:[%s6 + $0x4] sm:$0xf]
        %v5867 = vunpack.c.l.b16 %v5863
        %v5868 = vunpack.c.l.b16 %v5864
        %v5869 = vpack.c.b16 %v5868, %v5867
        %v5871 = vsel %vm3943, %v5869, 0
        %5873 = vmatpush.bf16.msra.mxu0 0
        %5874 = vmatpush.bf16.msra.mxu0 0
        %5875 = vmatpush.bf16.msra.mxu0 0
        %5876 = vmatpush.bf16.msra.mxu0 0
        %5877 = vmatpush.bf16.msra.mxu0 0
        %5878 = vmatpush.bf16.msra.mxu0 0
        %5879 = vmatpush.bf16.msra.mxu0 0
        %5880 = vmatpush.bf16.msra.mxu0 %v3853
        %5881 = vmatmul.bf16.gmra.mxu0 %v5871
        %v5882 = vpop.f32.mrf.mxu0
        %v5883 = vadd.f32 0.0, %v5882
        %v5884 = vpop.f32.mrf.mxu0
        %v5885 = vadd.f32 0.0, %v5884
        %5886 = vdwg.mxu0
        %v5887 = vpack.c.bf16 %v5885, %v5883
        %v5888 = vld [vmem:[#allocation10] sm:$0xf]
        %v5889 = vld [vmem:[#allocation10 + $0x4] sm:$0xf]
        %v5890 = vld [vmem:[#allocation10 + $0x8] sm:$0xf]
        %v5891 = vld [vmem:[#allocation10 + $0xc] sm:$0xf]
        %v5892 = vld [vmem:[#allocation10 + $0x10] sm:$0xf]
        %v5893 = vld [vmem:[#allocation10 + $0x14] sm:$0xf]
        %v5894 = vld [vmem:[#allocation10 + $0x18] sm:$0xf]
        %v5895 = vld [vmem:[#allocation10 + $0x1c] sm:$0xf]
        %v5896 = vld [vmem:[#allocation10 + $0x20] sm:$0xf]
        %v5897 = vld [vmem:[#allocation10 + $0x24] sm:$0xf]
        %v5898 = vld [vmem:[#allocation10 + $0x28] sm:$0xf]
        %v5899 = vld [vmem:[#allocation10 + $0x2c] sm:$0xf]
        %v5900 = vld [vmem:[#allocation10 + $0x30] sm:$0xf]
        %v5901 = vld [vmem:[#allocation10 + $0x34] sm:$0xf]
        %v5902 = vld [vmem:[#allocation10 + $0x38] sm:$0xf]
        %v5903 = vld [vmem:[#allocation10 + $0x3c] sm:$0xf]
        %v5904 = vperm.slane %v840, 5
        %v5921 = vunpack.c.l.b16 %v5888
        %v5922 = vunpack.c.l.b16 %v5889
        %v5923 = vunpack.c.l.b16 %v5890
        %v5924 = vunpack.c.l.b16 %v5891
        %v5925 = vunpack.c.l.b16 %v5892
        %v5926 = vunpack.c.l.b16 %v5893
        %v5927 = vunpack.c.l.b16 %v5894
        %v5928 = vunpack.c.l.b16 %v5895
        %v5929 = vunpack.c.l.b16 %v5896
        %v5930 = vunpack.c.l.b16 %v5897
        %v5931 = vunpack.c.l.b16 %v5898
        %v5932 = vunpack.c.l.b16 %v5899
        %v5933 = vunpack.c.l.b16 %v5900
        %v5934 = vunpack.c.l.b16 %v5901
        %v5935 = vunpack.c.l.b16 %v5902
        %v5936 = vunpack.c.l.b16 %v5903
        %v5937 = vpack.c.b16 %v5922, %v5921
        %v5938 = vpack.c.b16 %v5924, %v5923
        %v5939 = vpack.c.b16 %v5926, %v5925
        %v5940 = vpack.c.b16 %v5928, %v5927
        %v5941 = vpack.c.b16 %v5930, %v5929
        %v5942 = vpack.c.b16 %v5932, %v5931
        %v5943 = vpack.c.b16 %v5934, %v5933
        %v5944 = vpack.c.b16 %v5936, %v5935
        %5953 = vmatpush.bf16.msra.mxu0 %v5944
        %5954 = vmatpush.bf16.msra.mxu0 %v5943
        %5955 = vmatpush.bf16.msra.mxu0 %v5942
        %5956 = vmatpush.bf16.msra.mxu0 %v5941
        %5957 = vmatpush.bf16.msra.mxu0 %v5940
        %5958 = vmatpush.bf16.msra.mxu0 %v5939
        %5959 = vmatpush.bf16.msra.mxu0 %v5938
        %5960 = vmatpush.bf16.msra.mxu0 %v5937
        %5961 = vmatmul.bf16.gmra.mxu0 %v5887
        %v5962 = vpop.f32.mrf.mxu0
        %v5963 = vadd.f32 %v5904, %v5962
        %v5964 = vpop.f32.mrf.mxu0
        %v5965 = vadd.f32 %v5904, %v5964
        %5966 = vdwg.mxu0
        %v5967 = vmax.f32 %v5963, 0.0
        %v5968 = vmax.f32 %v5965, 0.0
        %v5969 = vpack.c.bf16 %v5968, %v5967
        %v5970 = vld [vmem:[#allocation12] sm:$0xf]
        %v5971 = vld [vmem:[#allocation12 + $0x4] sm:$0xf]
        %v5972 = vld [vmem:[#allocation12 + $0x8] sm:$0xf]
        %v5973 = vld [vmem:[#allocation12 + $0xc] sm:$0xf]
        %v5974 = vld [vmem:[#allocation12 + $0x10] sm:$0xf]
        %v5975 = vld [vmem:[#allocation12 + $0x14] sm:$0xf]
        %v5976 = vld [vmem:[#allocation12 + $0x18] sm:$0xf]
        %v5977 = vld [vmem:[#allocation12 + $0x1c] sm:$0xf]
        %v5978 = vld [vmem:[#allocation12 + $0x20] sm:$0xf]
        %v5979 = vld [vmem:[#allocation12 + $0x24] sm:$0xf]
        %v5980 = vld [vmem:[#allocation12 + $0x28] sm:$0xf]
        %v5981 = vld [vmem:[#allocation12 + $0x2c] sm:$0xf]
        %v5982 = vld [vmem:[#allocation12 + $0x30] sm:$0xf]
        %v5983 = vld [vmem:[#allocation12 + $0x34] sm:$0xf]
        %v5984 = vld [vmem:[#allocation12 + $0x38] sm:$0xf]
        %v5985 = vld [vmem:[#allocation12 + $0x3c] sm:$0xf]
        %s5986 = scalar_lea.vmem [#allocation12], 64
        %v5987 = vld [vmem:[%s5986] sm:$0xf]
        %v5988 = vld [vmem:[%s5986 + $0x4] sm:$0xf]
        %v5989 = vld [vmem:[%s5986 + $0x8] sm:$0xf]
        %v5990 = vld [vmem:[%s5986 + $0xc] sm:$0xf]
        %v5991 = vld [vmem:[%s5986 + $0x10] sm:$0xf]
        %v5992 = vld [vmem:[%s5986 + $0x14] sm:$0xf]
        %v5993 = vld [vmem:[%s5986 + $0x18] sm:$0xf]
        %v5994 = vld [vmem:[%s5986 + $0x1c] sm:$0xf]
        %v5995 = vld [vmem:[%s5986 + $0x20] sm:$0xf]
        %v5996 = vld [vmem:[%s5986 + $0x24] sm:$0xf]
        %v5997 = vld [vmem:[%s5986 + $0x28] sm:$0xf]
        %v5998 = vld [vmem:[%s5986 + $0x2c] sm:$0xf]
        %v5999 = vld [vmem:[%s5986 + $0x30] sm:$0xf]
        %v6000 = vld [vmem:[%s5986 + $0x34] sm:$0xf]
        %v6001 = vld [vmem:[%s5986 + $0x38] sm:$0xf]
        %v6002 = vld [vmem:[%s5986 + $0x3c] sm:$0xf]
        %v6019 = vunpack.c.l.b16 %v5987
        %v6020 = vunpack.c.l.b16 %v5988
        %v6021 = vunpack.c.l.b16 %v5989
        %v6022 = vunpack.c.l.b16 %v5990
        %v6023 = vunpack.c.l.b16 %v5991
        %v6024 = vunpack.c.l.b16 %v5992
        %v6025 = vunpack.c.l.b16 %v5993
        %v6026 = vunpack.c.l.b16 %v5994
        %v6027 = vunpack.c.l.b16 %v5995
        %v6028 = vunpack.c.l.b16 %v5996
        %v6029 = vunpack.c.l.b16 %v5997
        %v6030 = vunpack.c.l.b16 %v5998
        %v6031 = vunpack.c.l.b16 %v5999
        %v6032 = vunpack.c.l.b16 %v6000
        %v6033 = vunpack.c.l.b16 %v6001
        %v6034 = vunpack.c.l.b16 %v6002
        %v6035 = vpack.c.b16 %v6020, %v6019
        %v6036 = vpack.c.b16 %v6022, %v6021
        %v6037 = vpack.c.b16 %v6024, %v6023
        %v6038 = vpack.c.b16 %v6026, %v6025
        %v6039 = vpack.c.b16 %v6028, %v6027
        %v6040 = vpack.c.b16 %v6030, %v6029
        %v6041 = vpack.c.b16 %v6032, %v6031
        %v6042 = vpack.c.b16 %v6034, %v6033
        %6051 = vmatpush.bf16.msra.mxu0 %v6042
        %6052 = vmatpush.bf16.msra.mxu0 %v6041
        %6053 = vmatpush.bf16.msra.mxu0 %v6040
        %6054 = vmatpush.bf16.msra.mxu0 %v6039
        %6055 = vmatpush.bf16.msra.mxu0 %v6038
        %6056 = vmatpush.bf16.msra.mxu0 %v6037
        %6057 = vmatpush.bf16.msra.mxu0 %v6036
        %6058 = vmatpush.bf16.msra.mxu0 %v6035
        %6059 = vmatmul.bf16.gmra.mxu0 %v4899
        %v6060 = vpop.f32.mrf.mxu0
        %v6061 = vadd.f32 0.0, %v6060
        %v6062 = vpop.f32.mrf.mxu0
        %v6063 = vadd.f32 0.0, %v6062
        %6064 = vdwg.mxu0
        %v6081 = vunpack.c.l.b16 %v5970
        %v6082 = vunpack.c.l.b16 %v5971
        %v6083 = vunpack.c.l.b16 %v5972
        %v6084 = vunpack.c.l.b16 %v5973
        %v6085 = vunpack.c.l.b16 %v5974
        %v6086 = vunpack.c.l.b16 %v5975
        %v6087 = vunpack.c.l.b16 %v5976
        %v6088 = vunpack.c.l.b16 %v5977
        %v6089 = vunpack.c.l.b16 %v5978
        %v6090 = vunpack.c.l.b16 %v5979
        %v6091 = vunpack.c.l.b16 %v5980
        %v6092 = vunpack.c.l.b16 %v5981
        %v6093 = vunpack.c.l.b16 %v5982
        %v6094 = vunpack.c.l.b16 %v5983
        %v6095 = vunpack.c.l.b16 %v5984
        %v6096 = vunpack.c.l.b16 %v5985
        %v6097 = vpack.c.b16 %v6082, %v6081
        %v6098 = vpack.c.b16 %v6084, %v6083
        %v6099 = vpack.c.b16 %v6086, %v6085
        %v6100 = vpack.c.b16 %v6088, %v6087
        %v6101 = vpack.c.b16 %v6090, %v6089
        %v6102 = vpack.c.b16 %v6092, %v6091
        %v6103 = vpack.c.b16 %v6094, %v6093
        %v6104 = vpack.c.b16 %v6096, %v6095
        %6113 = vmatpush.bf16.msra.mxu0 %v6104
        %6114 = vmatpush.bf16.msra.mxu0 %v6103
        %6115 = vmatpush.bf16.msra.mxu0 %v6102
        %6116 = vmatpush.bf16.msra.mxu0 %v6101
        %6117 = vmatpush.bf16.msra.mxu0 %v6100
        %6118 = vmatpush.bf16.msra.mxu0 %v6099
        %6119 = vmatpush.bf16.msra.mxu0 %v6098
        %6120 = vmatpush.bf16.msra.mxu0 %v6097
        %6121 = vmatmul.bf16.gmra.mxu0 %v3935
        %v6122 = vpop.f32.mrf.mxu0
        %v6123 = vadd.f32 %v6061, %v6122
        %v6124 = vpop.f32.mrf.mxu0
        %v6125 = vadd.f32 %v6063, %v6124
        %6126 = vdwg.mxu0
        %s6127 = scalar_lea.vmem [#allocation12], 128
        %v6128 = vld [vmem:[%s6127] sm:$0xf]
        %v6129 = vld [vmem:[%s6127 + $0x4] sm:$0xf]
        %v6130 = vld [vmem:[%s6127 + $0x8] sm:$0xf]
        %v6131 = vld [vmem:[%s6127 + $0xc] sm:$0xf]
        %v6132 = vld [vmem:[%s6127 + $0x10] sm:$0xf]
        %v6133 = vld [vmem:[%s6127 + $0x14] sm:$0xf]
        %v6134 = vld [vmem:[%s6127 + $0x18] sm:$0xf]
        %v6135 = vld [vmem:[%s6127 + $0x1c] sm:$0xf]
        %v6136 = vld [vmem:[%s6127 + $0x20] sm:$0xf]
        %v6137 = vld [vmem:[%s6127 + $0x24] sm:$0xf]
        %v6138 = vld [vmem:[%s6127 + $0x28] sm:$0xf]
        %v6139 = vld [vmem:[%s6127 + $0x2c] sm:$0xf]
        %v6140 = vld [vmem:[%s6127 + $0x30] sm:$0xf]
        %v6141 = vld [vmem:[%s6127 + $0x34] sm:$0xf]
        %v6142 = vld [vmem:[%s6127 + $0x38] sm:$0xf]
        %v6143 = vld [vmem:[%s6127 + $0x3c] sm:$0xf]
        %v6160 = vunpack.c.l.b16 %v6128
        %v6161 = vunpack.c.l.b16 %v6129
        %v6162 = vunpack.c.l.b16 %v6130
        %v6163 = vunpack.c.l.b16 %v6131
        %v6164 = vunpack.c.l.b16 %v6132
        %v6165 = vunpack.c.l.b16 %v6133
        %v6166 = vunpack.c.l.b16 %v6134
        %v6167 = vunpack.c.l.b16 %v6135
        %v6168 = vunpack.c.l.b16 %v6136
        %v6169 = vunpack.c.l.b16 %v6137
        %v6170 = vunpack.c.l.b16 %v6138
        %v6171 = vunpack.c.l.b16 %v6139
        %v6172 = vunpack.c.l.b16 %v6140
        %v6173 = vunpack.c.l.b16 %v6141
        %v6174 = vunpack.c.l.b16 %v6142
        %v6175 = vunpack.c.l.b16 %v6143
        %v6176 = vpack.c.b16 %v6161, %v6160
        %v6177 = vpack.c.b16 %v6163, %v6162
        %v6178 = vpack.c.b16 %v6165, %v6164
        %v6179 = vpack.c.b16 %v6167, %v6166
        %v6180 = vpack.c.b16 %v6169, %v6168
        %v6181 = vpack.c.b16 %v6171, %v6170
        %v6182 = vpack.c.b16 %v6173, %v6172
        %v6183 = vpack.c.b16 %v6175, %v6174
        %6192 = vmatpush.bf16.msra.mxu0 %v6183
        %6193 = vmatpush.bf16.msra.mxu0 %v6182
        %6194 = vmatpush.bf16.msra.mxu0 %v6181
        %6195 = vmatpush.bf16.msra.mxu0 %v6180
        %6196 = vmatpush.bf16.msra.mxu0 %v6179
        %6197 = vmatpush.bf16.msra.mxu0 %v6178
        %6198 = vmatpush.bf16.msra.mxu0 %v6177
        %6199 = vmatpush.bf16.msra.mxu0 %v6176
        %6200 = vmatmul.bf16.gmra.mxu0 %v5862
        %v6201 = vpop.f32.mrf.mxu0
        %v6202 = vadd.f32 0.0, %v6201
        %v6203 = vpop.f32.mrf.mxu0
        %v6204 = vadd.f32 0.0, %v6203
        %6205 = vdwg.mxu0
        %v6206 = vadd.f32 %v6123, %v6202
        %v6207 = vadd.f32 %v6125, %v6204
        %s6208 = scalar_lea.vmem [#allocation12], 192
        %v6209 = vld [vmem:[%s6208] sm:$0xf]
        %v6210 = vld [vmem:[%s6208 + $0x4] sm:$0xf]
        %v6211 = vld [vmem:[%s6208 + $0x8] sm:$0xf]
        %v6212 = vld [vmem:[%s6208 + $0xc] sm:$0xf]
        %v6213 = vld [vmem:[%s6208 + $0x10] sm:$0xf]
        %v6214 = vld [vmem:[%s6208 + $0x14] sm:$0xf]
        %v6215 = vld [vmem:[%s6208 + $0x18] sm:$0xf]
        %v6216 = vld [vmem:[%s6208 + $0x1c] sm:$0xf]
        %v6217 = vld [vmem:[%s6208 + $0x20] sm:$0xf]
        %v6218 = vld [vmem:[%s6208 + $0x24] sm:$0xf]
        %v6219 = vld [vmem:[%s6208 + $0x28] sm:$0xf]
        %v6220 = vld [vmem:[%s6208 + $0x2c] sm:$0xf]
        %v6221 = vld [vmem:[%s6208 + $0x30] sm:$0xf]
        %v6222 = vld [vmem:[%s6208 + $0x34] sm:$0xf]
        %v6223 = vld [vmem:[%s6208 + $0x38] sm:$0xf]
        %v6224 = vld [vmem:[%s6208 + $0x3c] sm:$0xf]
        %v6241 = vunpack.c.l.b16 %v6209
        %v6242 = vunpack.c.l.b16 %v6210
        %v6243 = vunpack.c.l.b16 %v6211
        %v6244 = vunpack.c.l.b16 %v6212
        %v6245 = vunpack.c.l.b16 %v6213
        %v6246 = vunpack.c.l.b16 %v6214
        %v6247 = vunpack.c.l.b16 %v6215
        %v6248 = vunpack.c.l.b16 %v6216
        %v6249 = vunpack.c.l.b16 %v6217
        %v6250 = vunpack.c.l.b16 %v6218
        %v6251 = vunpack.c.l.b16 %v6219
        %v6252 = vunpack.c.l.b16 %v6220
        %v6253 = vunpack.c.l.b16 %v6221
        %v6254 = vunpack.c.l.b16 %v6222
        %v6255 = vunpack.c.l.b16 %v6223
        %v6256 = vunpack.c.l.b16 %v6224
        %v6257 = vpack.c.b16 %v6242, %v6241
        %v6258 = vpack.c.b16 %v6244, %v6243
        %v6259 = vpack.c.b16 %v6246, %v6245
        %v6260 = vpack.c.b16 %v6248, %v6247
        %v6261 = vpack.c.b16 %v6250, %v6249
        %v6262 = vpack.c.b16 %v6252, %v6251
        %v6263 = vpack.c.b16 %v6254, %v6253
        %v6264 = vpack.c.b16 %v6256, %v6255
        %6273 = vmatpush.bf16.msra.mxu0 %v6264
        %6274 = vmatpush.bf16.msra.mxu0 %v6263
        %6275 = vmatpush.bf16.msra.mxu0 %v6262
        %6276 = vmatpush.bf16.msra.mxu0 %v6261
        %6277 = vmatpush.bf16.msra.mxu0 %v6260
        %6278 = vmatpush.bf16.msra.mxu0 %v6259
        %6279 = vmatpush.bf16.msra.mxu0 %v6258
        %6280 = vmatpush.bf16.msra.mxu0 %v6257
        %6281 = vmatmul.bf16.gmra.mxu0 %v5969
        %v6282 = vpop.f32.mrf.mxu0
        %v6283 = vadd.f32 0.0, %v6282
        %v6284 = vpop.f32.mrf.mxu0
        %v6285 = vadd.f32 0.0, %v6284
        %6286 = vdwg.mxu0
        %v6287 = vadd.f32 %v6206, %v6283
        %v6288 = vadd.f32 %v6207, %v6285
        %v6289 = vperm.slane %v840, 6
        %v6290 = vadd.f32 %v6287, %v6289
        %v6291 = vadd.f32 %v6288, %v6289
        %v6292 = vmax.f32 %v6290, 0.0
        %v6293 = vmax.f32 %v6291, 0.0
        %v6294 = vpack.c.bf16 %v6293, %v6292
        %v6295 = vld [vmem:[#allocation13] sm:$0xf]
        %v6296 = vld [vmem:[#allocation13 + $0x4] sm:$0xf]
        %v6297 = vld [vmem:[#allocation13 + $0x8] sm:$0xf]
        %v6298 = vld [vmem:[#allocation13 + $0xc] sm:$0xf]
        %v6299 = vld [vmem:[#allocation13 + $0x10] sm:$0xf]
        %v6300 = vld [vmem:[#allocation13 + $0x14] sm:$0xf]
        %v6301 = vld [vmem:[#allocation13 + $0x18] sm:$0xf]
        %v6302 = vld [vmem:[#allocation13 + $0x1c] sm:$0xf]
        %v6303 = vld [vmem:[#allocation13 + $0x20] sm:$0xf]
        %v6304 = vld [vmem:[#allocation13 + $0x24] sm:$0xf]
        %v6305 = vld [vmem:[#allocation13 + $0x28] sm:$0xf]
        %v6306 = vld [vmem:[#allocation13 + $0x2c] sm:$0xf]
        %v6307 = vld [vmem:[#allocation13 + $0x30] sm:$0xf]
        %v6308 = vld [vmem:[#allocation13 + $0x34] sm:$0xf]
        %v6309 = vld [vmem:[#allocation13 + $0x38] sm:$0xf]
        %v6310 = vld [vmem:[#allocation13 + $0x3c] sm:$0xf]
        %v6311 = vperm.slane %v840, 7
        %v6328 = vunpack.c.l.b16 %v6295
        %v6329 = vunpack.c.l.b16 %v6296
        %v6330 = vunpack.c.l.b16 %v6297
        %v6331 = vunpack.c.l.b16 %v6298
        %v6332 = vunpack.c.l.b16 %v6299
        %v6333 = vunpack.c.l.b16 %v6300
        %v6334 = vunpack.c.l.b16 %v6301
        %v6335 = vunpack.c.l.b16 %v6302
        %v6336 = vunpack.c.l.b16 %v6303
        %v6337 = vunpack.c.l.b16 %v6304
        %v6338 = vunpack.c.l.b16 %v6305
        %v6339 = vunpack.c.l.b16 %v6306
        %v6340 = vunpack.c.l.b16 %v6307
        %v6341 = vunpack.c.l.b16 %v6308
        %v6342 = vunpack.c.l.b16 %v6309
        %v6343 = vunpack.c.l.b16 %v6310
        %v6344 = vpack.c.b16 %v6329, %v6328
        %v6345 = vpack.c.b16 %v6331, %v6330
        %v6346 = vpack.c.b16 %v6333, %v6332
        %v6347 = vpack.c.b16 %v6335, %v6334
        %v6348 = vpack.c.b16 %v6337, %v6336
        %v6349 = vpack.c.b16 %v6339, %v6338
        %v6350 = vpack.c.b16 %v6341, %v6340
        %v6351 = vpack.c.b16 %v6343, %v6342
        %6360 = vmatpush.bf16.msra.mxu0 %v6351
        %6361 = vmatpush.bf16.msra.mxu0 %v6350
        %6362 = vmatpush.bf16.msra.mxu0 %v6349
        %6363 = vmatpush.bf16.msra.mxu0 %v6348
        %6364 = vmatpush.bf16.msra.mxu0 %v6347
        %6365 = vmatpush.bf16.msra.mxu0 %v6346
        %6366 = vmatpush.bf16.msra.mxu0 %v6345
        %6367 = vmatpush.bf16.msra.mxu0 %v6344
        %6368 = vmatmul.bf16.gmra.mxu0 %v2886
        %v6369 = vpop.f32.mrf.mxu0
        %v6370 = vadd.f32 %v6311, %v6369
        %v6371 = vpop.f32.mrf.mxu0
        %v6372 = vadd.f32 %v6311, %v6371
        %6373 = vmatmul.bf16.gmra.mxu0 %v2887
        %v6374 = vpop.f32.mrf.mxu0
        %v6375 = vadd.f32 %v6311, %v6374
        %v6376 = vpop.f32.mrf.mxu0
        %v6377 = vadd.f32 %v6311, %v6376
        %6378 = vmatmul.bf16.gmra.mxu0 %v2888
        %v6379 = vpop.f32.mrf.mxu0
        %v6380 = vadd.f32 %v6311, %v6379
        %v6381 = vpop.f32.mrf.mxu0
        %v6382 = vadd.f32 %v6311, %v6381
        %6383 = vmatmul.bf16.gmra.mxu0 %v2889
        %v6384 = vpop.f32.mrf.mxu0
        %v6385 = vadd.f32 %v6311, %v6384
        %v6386 = vpop.f32.mrf.mxu0
        %v6387 = vadd.f32 %v6311, %v6386
        %6388 = vdwg.mxu0
        %v6389 = vmax.f32 %v6370, 0.0
        %v6390 = vmax.f32 %v6372, 0.0
        %v6391 = vmax.f32 %v6375, 0.0
        %v6392 = vmax.f32 %v6377, 0.0
        %v6393 = vmax.f32 %v6380, 0.0
        %v6394 = vmax.f32 %v6382, 0.0
        %v6395 = vmax.f32 %v6385, 0.0
        %v6396 = vmax.f32 %v6387, 0.0
        %v6397 = vpack.c.bf16 %v6390, %v6389
        %v6398 = vpack.c.bf16 %v6392, %v6391
        %v6399 = vpack.c.bf16 %v6394, %v6393
        %v6400 = vpack.c.bf16 %v6396, %v6395
        %v6401 = vld [vmem:[%s7] sm:$0xf]
        %v6402 = vld [vmem:[%s7 + $0x4] sm:$0xf]
        %v6403 = vld [vmem:[%s7 + $0x8] sm:$0xf]
        %v6404 = vld [vmem:[%s7 + $0xc] sm:$0xf]
        %v6405 = vld [vmem:[%s7 + $0x10] sm:$0xf]
        %v6406 = vld [vmem:[%s7 + $0x14] sm:$0xf]
        %v6407 = vld [vmem:[%s7 + $0x18] sm:$0xf]
        %v6408 = vld [vmem:[%s7 + $0x1c] sm:$0xf]
        %v6417 = vunpack.c.l.b16 %v6401
        %v6418 = vunpack.c.l.b16 %v6402
        %v6419 = vunpack.c.l.b16 %v6403
        %v6420 = vunpack.c.l.b16 %v6404
        %v6421 = vunpack.c.l.b16 %v6405
        %v6422 = vunpack.c.l.b16 %v6406
        %v6423 = vunpack.c.l.b16 %v6407
        %v6424 = vunpack.c.l.b16 %v6408
        %v6425 = vpack.c.b16 %v6418, %v6417
        %v6426 = vpack.c.b16 %v6420, %v6419
        %v6427 = vpack.c.b16 %v6422, %v6421
        %v6428 = vpack.c.b16 %v6424, %v6423
        %v6430 = vsel %vm3943, %v6425, 0
        %v6433 = vsel %vm3943, %v6426, 0
        %v6436 = vsel %vm3943, %v6427, 0
        %v6439 = vsel %vm3943, %v6428, 0
        %6441 = vmatpush.bf16.msra.mxu0 0
        %6442 = vmatpush.bf16.msra.mxu0 0
        %6443 = vmatpush.bf16.msra.mxu0 0
        %6444 = vmatpush.bf16.msra.mxu0 0
        %6445 = vmatpush.bf16.msra.mxu0 0
        %6446 = vmatpush.bf16.msra.mxu0 0
        %6447 = vmatpush.bf16.msra.mxu0 0
        %6448 = vmatpush.bf16.msra.mxu0 %v6294
        %6449 = vmatmul.bf16.gmra.mxu0 %v6430
        %v6450 = vpop.f32.mrf.mxu0
        %v6451 = vadd.f32 0.0, %v6450
        %v6452 = vpop.f32.mrf.mxu0
        %v6453 = vadd.f32 0.0, %v6452
        %6454 = vmatmul.bf16.gmra.mxu0 %v6433
        %v6455 = vpop.f32.mrf.mxu0
        %v6456 = vadd.f32 0.0, %v6455
        %v6457 = vpop.f32.mrf.mxu0
        %v6458 = vadd.f32 0.0, %v6457
        %6459 = vmatmul.bf16.gmra.mxu0 %v6436
        %v6460 = vpop.f32.mrf.mxu0
        %v6461 = vadd.f32 0.0, %v6460
        %v6462 = vpop.f32.mrf.mxu0
        %v6463 = vadd.f32 0.0, %v6462
        %6464 = vmatmul.bf16.gmra.mxu0 %v6439
        %v6465 = vpop.f32.mrf.mxu0
        %v6466 = vadd.f32 0.0, %v6465
        %v6467 = vpop.f32.mrf.mxu0
        %v6468 = vadd.f32 0.0, %v6467
        %6469 = vdwg.mxu0
        %v6470 = vpack.c.bf16 %v6453, %v6451
        %v6471 = vpack.c.bf16 %v6458, %v6456
        %v6472 = vpack.c.bf16 %v6463, %v6461
        %v6473 = vpack.c.bf16 %v6468, %v6466
        %v6474 = vld [vmem:[%s5] sm:$0xf]
        %v6475 = vld [vmem:[%s5 + $0x4] sm:$0xf]
        %v6476 = vld [vmem:[%s5 + $0x8] sm:$0xf]
        %v6477 = vld [vmem:[%s5 + $0xc] sm:$0xf]
        %v6478 = vld [vmem:[%s5 + $0x10] sm:$0xf]
        %v6479 = vld [vmem:[%s5 + $0x14] sm:$0xf]
        %v6480 = vld [vmem:[%s5 + $0x18] sm:$0xf]
        %v6481 = vld [vmem:[%s5 + $0x1c] sm:$0xf]
        %v6490 = vunpack.c.l.b16 %v6474
        %v6491 = vunpack.c.l.b16 %v6475
        %v6492 = vunpack.c.l.b16 %v6476
        %v6493 = vunpack.c.l.b16 %v6477
        %v6494 = vunpack.c.l.b16 %v6478
        %v6495 = vunpack.c.l.b16 %v6479
        %v6496 = vunpack.c.l.b16 %v6480
        %v6497 = vunpack.c.l.b16 %v6481
        %v6498 = vpack.c.b16 %v6491, %v6490
        %v6499 = vpack.c.b16 %v6493, %v6492
        %v6500 = vpack.c.b16 %v6495, %v6494
        %v6501 = vpack.c.b16 %v6497, %v6496
        %v6503 = vsel %vm2897, %v6498, 0
        %v6506 = vsel %vm2897, %v6499, 0
        %v6509 = vsel %vm2897, %v6500, 0
        %v6512 = vsel %vm2897, %v6501, 0
        %6514 = vmatpush.bf16.msra.mxu0 0
        %6515 = vmatpush.bf16.msra.mxu0 0
        %6516 = vmatpush.bf16.msra.mxu0 0
        %6517 = vmatpush.bf16.msra.mxu0 0
        %6518 = vmatpush.bf16.msra.mxu0 %v6473
        %6519 = vmatpush.bf16.msra.mxu0 %v6472
        %6520 = vmatpush.bf16.msra.mxu0 %v6471
        %6521 = vmatpush.bf16.msra.mxu0 %v6470
        %6522 = vmatmul.bf16.gmra.mxu0 %v6503
        %v6523 = vpop.f32.mrf.mxu0
        %v6524 = vadd.f32 0.0, %v6523
        %v6525 = vpop.f32.mrf.mxu0
        %v6526 = vadd.f32 0.0, %v6525
        %6527 = vmatmul.bf16.gmra.mxu0 %v6506
        %v6528 = vpop.f32.mrf.mxu0
        %v6529 = vadd.f32 0.0, %v6528
        %v6530 = vpop.f32.mrf.mxu0
        %v6531 = vadd.f32 0.0, %v6530
        %6532 = vmatmul.bf16.gmra.mxu0 %v6509
        %v6533 = vpop.f32.mrf.mxu0
        %v6534 = vadd.f32 0.0, %v6533
        %v6535 = vpop.f32.mrf.mxu0
        %v6536 = vadd.f32 0.0, %v6535
        %6537 = vmatmul.bf16.gmra.mxu0 %v6512
        %v6538 = vpop.f32.mrf.mxu0
        %v6539 = vadd.f32 0.0, %v6538
        %v6540 = vpop.f32.mrf.mxu0
        %v6541 = vadd.f32 0.0, %v6540
        %6542 = vdwg.mxu0
        %v6543 = vpack.c.bf16 %v6526, %v6524
        %v6544 = vpack.c.bf16 %v6531, %v6529
        %v6545 = vpack.c.bf16 %v6536, %v6534
        %v6546 = vpack.c.bf16 %v6541, %v6539
        %v6547 = vld [vmem:[#allocation15] sm:$0xf]
        %v6548 = vld [vmem:[#allocation15 + $0x4] sm:$0xf]
        %v6549 = vld [vmem:[#allocation15 + $0x8] sm:$0xf]
        %v6550 = vld [vmem:[#allocation15 + $0xc] sm:$0xf]
        %v6551 = vld [vmem:[#allocation15 + $0x10] sm:$0xf]
        %v6552 = vld [vmem:[#allocation15 + $0x14] sm:$0xf]
        %v6553 = vld [vmem:[#allocation15 + $0x18] sm:$0xf]
        %v6554 = vld [vmem:[#allocation15 + $0x1c] sm:$0xf]
        %v6555 = vld [vmem:[#allocation15 + $0x20] sm:$0xf]
        %v6556 = vld [vmem:[#allocation15 + $0x24] sm:$0xf]
        %v6557 = vld [vmem:[#allocation15 + $0x28] sm:$0xf]
        %v6558 = vld [vmem:[#allocation15 + $0x2c] sm:$0xf]
        %v6559 = vld [vmem:[#allocation15 + $0x30] sm:$0xf]
        %v6560 = vld [vmem:[#allocation15 + $0x34] sm:$0xf]
        %v6561 = vld [vmem:[#allocation15 + $0x38] sm:$0xf]
        %v6562 = vld [vmem:[#allocation15 + $0x3c] sm:$0xf]
        %6563 = vmatpush.bf16.msra.mxu0 0
        %6564 = vmatpush.bf16.msra.mxu0 0
        %6565 = vmatpush.bf16.msra.mxu0 0
        %6566 = vmatpush.bf16.msra.mxu0 0
        %6567 = vmatpush.bf16.msra.mxu0 %v6400
        %6568 = vmatpush.bf16.msra.mxu0 %v6399
        %6569 = vmatpush.bf16.msra.mxu0 %v6398
        %6570 = vmatpush.bf16.msra.mxu0 %v6397
        %6571 = vmatmul.bf16.gmra.mxu0 %v6503
        %v6572 = vpop.f32.mrf.mxu0
        %v6573 = vadd.f32 0.0, %v6572
        %v6574 = vpop.f32.mrf.mxu0
        %v6575 = vadd.f32 0.0, %v6574
        %6576 = vmatmul.bf16.gmra.mxu0 %v6506
        %v6577 = vpop.f32.mrf.mxu0
        %v6578 = vadd.f32 0.0, %v6577
        %v6579 = vpop.f32.mrf.mxu0
        %v6580 = vadd.f32 0.0, %v6579
        %6581 = vmatmul.bf16.gmra.mxu0 %v6509
        %v6582 = vpop.f32.mrf.mxu0
        %v6583 = vadd.f32 0.0, %v6582
        %v6584 = vpop.f32.mrf.mxu0
        %v6585 = vadd.f32 0.0, %v6584
        %6586 = vmatmul.bf16.gmra.mxu0 %v6512
        %v6587 = vpop.f32.mrf.mxu0
        %v6588 = vadd.f32 0.0, %v6587
        %v6589 = vpop.f32.mrf.mxu0
        %v6590 = vadd.f32 0.0, %v6589
        %6591 = vdwg.mxu0
        %v6592 = vpack.c.bf16 %v6575, %v6573
        %v6593 = vpack.c.bf16 %v6580, %v6578
        %v6594 = vpack.c.bf16 %v6585, %v6583
        %v6595 = vpack.c.bf16 %v6590, %v6588
        %v6596 = vld [vmem:[#allocation16] sm:$0xf]
        %v6597 = vld [vmem:[#allocation16 + $0x4] sm:$0xf]
        %v6598 = vld [vmem:[#allocation16 + $0x8] sm:$0xf]
        %v6599 = vld [vmem:[#allocation16 + $0xc] sm:$0xf]
        %v6600 = vld [vmem:[#allocation16 + $0x10] sm:$0xf]
        %v6601 = vld [vmem:[#allocation16 + $0x14] sm:$0xf]
        %v6602 = vld [vmem:[#allocation16 + $0x18] sm:$0xf]
        %v6603 = vld [vmem:[#allocation16 + $0x1c] sm:$0xf]
        %v6604 = vld [vmem:[#allocation16 + $0x20] sm:$0xf]
        %v6605 = vld [vmem:[#allocation16 + $0x24] sm:$0xf]
        %v6606 = vld [vmem:[#allocation16 + $0x28] sm:$0xf]
        %v6607 = vld [vmem:[#allocation16 + $0x2c] sm:$0xf]
        %v6608 = vld [vmem:[#allocation16 + $0x30] sm:$0xf]
        %v6609 = vld [vmem:[#allocation16 + $0x34] sm:$0xf]
        %v6610 = vld [vmem:[#allocation16 + $0x38] sm:$0xf]
        %v6611 = vld [vmem:[#allocation16 + $0x3c] sm:$0xf]
        %v6628 = vunpack.c.l.b16 %v6596
        %v6629 = vunpack.c.l.b16 %v6597
        %v6630 = vunpack.c.l.b16 %v6598
        %v6631 = vunpack.c.l.b16 %v6599
        %v6632 = vunpack.c.l.b16 %v6600
        %v6633 = vunpack.c.l.b16 %v6601
        %v6634 = vunpack.c.l.b16 %v6602
        %v6635 = vunpack.c.l.b16 %v6603
        %v6636 = vunpack.c.l.b16 %v6604
        %v6637 = vunpack.c.l.b16 %v6605
        %v6638 = vunpack.c.l.b16 %v6606
        %v6639 = vunpack.c.l.b16 %v6607
        %v6640 = vunpack.c.l.b16 %v6608
        %v6641 = vunpack.c.l.b16 %v6609
        %v6642 = vunpack.c.l.b16 %v6610
        %v6643 = vunpack.c.l.b16 %v6611
        %v6644 = vpack.c.b16 %v6629, %v6628
        %v6645 = vpack.c.b16 %v6631, %v6630
        %v6646 = vpack.c.b16 %v6633, %v6632
        %v6647 = vpack.c.b16 %v6635, %v6634
        %v6648 = vpack.c.b16 %v6637, %v6636
        %v6649 = vpack.c.b16 %v6639, %v6638
        %v6650 = vpack.c.b16 %v6641, %v6640
        %v6651 = vpack.c.b16 %v6643, %v6642
        %6660 = vmatpush.bf16.msra.mxu0 %v6651
        %6661 = vmatpush.bf16.msra.mxu0 %v6650
        %6662 = vmatpush.bf16.msra.mxu0 %v6649
        %6663 = vmatpush.bf16.msra.mxu0 %v6648
        %6664 = vmatpush.bf16.msra.mxu0 %v6647
        %6665 = vmatpush.bf16.msra.mxu0 %v6646
        %6666 = vmatpush.bf16.msra.mxu0 %v6645
        %6667 = vmatpush.bf16.msra.mxu0 %v6644
        %6668 = vmatmul.bf16.gmra.mxu0 %v6592
        %v6669 = vpop.f32.mrf.mxu0
        %v6670 = vadd.f32 0.0, %v6669
        %v6671 = vpop.f32.mrf.mxu0
        %v6672 = vadd.f32 0.0, %v6671
        %6673 = vmatmul.bf16.gmra.mxu0 %v6593
        %v6674 = vpop.f32.mrf.mxu0
        %v6675 = vadd.f32 0.0, %v6674
        %v6676 = vpop.f32.mrf.mxu0
        %v6677 = vadd.f32 0.0, %v6676
        %6678 = vmatmul.bf16.gmra.mxu0 %v6594
        %v6679 = vpop.f32.mrf.mxu0
        %v6680 = vadd.f32 0.0, %v6679
        %v6681 = vpop.f32.mrf.mxu0
        %v6682 = vadd.f32 0.0, %v6681
        %6683 = vmatmul.bf16.gmra.mxu0 %v6595
        %v6684 = vpop.f32.mrf.mxu0
        %v6685 = vadd.f32 0.0, %v6684
        %v6686 = vpop.f32.mrf.mxu0
        %v6687 = vadd.f32 0.0, %v6686
        %6688 = vdwg.mxu0
        %v6705 = vunpack.c.l.b16 %v6547
        %v6706 = vunpack.c.l.b16 %v6548
        %v6707 = vunpack.c.l.b16 %v6549
        %v6708 = vunpack.c.l.b16 %v6550
        %v6709 = vunpack.c.l.b16 %v6551
        %v6710 = vunpack.c.l.b16 %v6552
        %v6711 = vunpack.c.l.b16 %v6553
        %v6712 = vunpack.c.l.b16 %v6554
        %v6713 = vunpack.c.l.b16 %v6555
        %v6714 = vunpack.c.l.b16 %v6556
        %v6715 = vunpack.c.l.b16 %v6557
        %v6716 = vunpack.c.l.b16 %v6558
        %v6717 = vunpack.c.l.b16 %v6559
        %v6718 = vunpack.c.l.b16 %v6560
        %v6719 = vunpack.c.l.b16 %v6561
        %v6720 = vunpack.c.l.b16 %v6562
        %v6721 = vpack.c.b16 %v6706, %v6705
        %v6722 = vpack.c.b16 %v6708, %v6707
        %v6723 = vpack.c.b16 %v6710, %v6709
        %v6724 = vpack.c.b16 %v6712, %v6711
        %v6725 = vpack.c.b16 %v6714, %v6713
        %v6726 = vpack.c.b16 %v6716, %v6715
        %v6727 = vpack.c.b16 %v6718, %v6717
        %v6728 = vpack.c.b16 %v6720, %v6719
        %6737 = vmatpush.bf16.msra.mxu0 %v6728
        %6738 = vmatpush.bf16.msra.mxu0 %v6727
        %6739 = vmatpush.bf16.msra.mxu0 %v6726
        %6740 = vmatpush.bf16.msra.mxu0 %v6725
        %6741 = vmatpush.bf16.msra.mxu0 %v6724
        %6742 = vmatpush.bf16.msra.mxu0 %v6723
        %6743 = vmatpush.bf16.msra.mxu0 %v6722
        %6744 = vmatpush.bf16.msra.mxu0 %v6721
        %6745 = vmatmul.bf16.gmra.mxu0 %v6543
        %v6746 = vpop.f32.mrf.mxu0
        %v6747 = vadd.f32 %v6670, %v6746
        %v6748 = vpop.f32.mrf.mxu0
        %v6749 = vadd.f32 %v6672, %v6748
        %6750 = vmatmul.bf16.gmra.mxu0 %v6544
        %v6751 = vpop.f32.mrf.mxu0
        %v6752 = vadd.f32 %v6675, %v6751
        %v6753 = vpop.f32.mrf.mxu0
        %v6754 = vadd.f32 %v6677, %v6753
        %6755 = vmatmul.bf16.gmra.mxu0 %v6545
        %v6756 = vpop.f32.mrf.mxu0
        %v6757 = vadd.f32 %v6680, %v6756
        %v6758 = vpop.f32.mrf.mxu0
        %v6759 = vadd.f32 %v6682, %v6758
        %6760 = vmatmul.bf16.gmra.mxu0 %v6546
        %v6761 = vpop.f32.mrf.mxu0
        %v6762 = vadd.f32 %v6685, %v6761
        %v6763 = vpop.f32.mrf.mxu0
        %v6764 = vadd.f32 %v6687, %v6763
        %6765 = vdwg.mxu0
        %s6766 = scalar_lea.vmem %s5, 32
        %v6767 = vld [vmem:[%s6766] sm:$0xf]
        %v6768 = vld [vmem:[%s6766 + $0x4] sm:$0xf]
        %v6769 = vld [vmem:[%s6766 + $0x8] sm:$0xf]
        %v6770 = vld [vmem:[%s6766 + $0xc] sm:$0xf]
        %v6771 = vld [vmem:[%s6766 + $0x10] sm:$0xf]
        %v6772 = vld [vmem:[%s6766 + $0x14] sm:$0xf]
        %v6773 = vld [vmem:[%s6766 + $0x18] sm:$0xf]
        %v6774 = vld [vmem:[%s6766 + $0x1c] sm:$0xf]
        %v6783 = vunpack.c.l.b16 %v6767
        %v6784 = vunpack.c.l.b16 %v6768
        %v6785 = vunpack.c.l.b16 %v6769
        %v6786 = vunpack.c.l.b16 %v6770
        %v6787 = vunpack.c.l.b16 %v6771
        %v6788 = vunpack.c.l.b16 %v6772
        %v6789 = vunpack.c.l.b16 %v6773
        %v6790 = vunpack.c.l.b16 %v6774
        %v6791 = vpack.c.b16 %v6784, %v6783
        %v6792 = vpack.c.b16 %v6786, %v6785
        %v6793 = vpack.c.b16 %v6788, %v6787
        %v6794 = vpack.c.b16 %v6790, %v6789
        %v6796 = vsel %vm2897, %v6791, 0
        %v6799 = vsel %vm2897, %v6792, 0
        %v6802 = vsel %vm2897, %v6793, 0
        %v6805 = vsel %vm2897, %v6794, 0
        %6807 = vmatpush.bf16.msra.mxu0 0
        %6808 = vmatpush.bf16.msra.mxu0 0
        %6809 = vmatpush.bf16.msra.mxu0 0
        %6810 = vmatpush.bf16.msra.mxu0 0
        %6811 = vmatpush.bf16.msra.mxu0 %v6473
        %6812 = vmatpush.bf16.msra.mxu0 %v6472
        %6813 = vmatpush.bf16.msra.mxu0 %v6471
        %6814 = vmatpush.bf16.msra.mxu0 %v6470
        %6815 = vmatmul.bf16.gmra.mxu0 %v6796
        %v6816 = vpop.f32.mrf.mxu0
        %v6817 = vadd.f32 0.0, %v6816
        %v6818 = vpop.f32.mrf.mxu0
        %v6819 = vadd.f32 0.0, %v6818
        %6820 = vmatmul.bf16.gmra.mxu0 %v6799
        %v6821 = vpop.f32.mrf.mxu0
        %v6822 = vadd.f32 0.0, %v6821
        %v6823 = vpop.f32.mrf.mxu0
        %v6824 = vadd.f32 0.0, %v6823
        %6825 = vmatmul.bf16.gmra.mxu0 %v6802
        %v6826 = vpop.f32.mrf.mxu0
        %v6827 = vadd.f32 0.0, %v6826
        %v6828 = vpop.f32.mrf.mxu0
        %v6829 = vadd.f32 0.0, %v6828
        %6830 = vmatmul.bf16.gmra.mxu0 %v6805
        %v6831 = vpop.f32.mrf.mxu0
        %v6832 = vadd.f32 0.0, %v6831
        %v6833 = vpop.f32.mrf.mxu0
        %v6834 = vadd.f32 0.0, %v6833
        %6835 = vdwg.mxu0
        %v6836 = vpack.c.bf16 %v6819, %v6817
        %v6837 = vpack.c.bf16 %v6824, %v6822
        %v6838 = vpack.c.bf16 %v6829, %v6827
        %v6839 = vpack.c.bf16 %v6834, %v6832
        %s6840 = scalar_lea.vmem [#allocation15], 64
        %v6841 = vld [vmem:[%s6840] sm:$0xf]
        %v6842 = vld [vmem:[%s6840 + $0x4] sm:$0xf]
        %v6843 = vld [vmem:[%s6840 + $0x8] sm:$0xf]
        %v6844 = vld [vmem:[%s6840 + $0xc] sm:$0xf]
        %v6845 = vld [vmem:[%s6840 + $0x10] sm:$0xf]
        %v6846 = vld [vmem:[%s6840 + $0x14] sm:$0xf]
        %v6847 = vld [vmem:[%s6840 + $0x18] sm:$0xf]
        %v6848 = vld [vmem:[%s6840 + $0x1c] sm:$0xf]
        %v6849 = vld [vmem:[%s6840 + $0x20] sm:$0xf]
        %v6850 = vld [vmem:[%s6840 + $0x24] sm:$0xf]
        %v6851 = vld [vmem:[%s6840 + $0x28] sm:$0xf]
        %v6852 = vld [vmem:[%s6840 + $0x2c] sm:$0xf]
        %v6853 = vld [vmem:[%s6840 + $0x30] sm:$0xf]
        %v6854 = vld [vmem:[%s6840 + $0x34] sm:$0xf]
        %v6855 = vld [vmem:[%s6840 + $0x38] sm:$0xf]
        %v6856 = vld [vmem:[%s6840 + $0x3c] sm:$0xf]
        %6857 = vmatpush.bf16.msra.mxu0 0
        %6858 = vmatpush.bf16.msra.mxu0 0
        %6859 = vmatpush.bf16.msra.mxu0 0
        %6860 = vmatpush.bf16.msra.mxu0 0
        %6861 = vmatpush.bf16.msra.mxu0 %v6400
        %6862 = vmatpush.bf16.msra.mxu0 %v6399
        %6863 = vmatpush.bf16.msra.mxu0 %v6398
        %6864 = vmatpush.bf16.msra.mxu0 %v6397
        %6865 = vmatmul.bf16.gmra.mxu0 %v6796
        %v6866 = vpop.f32.mrf.mxu0
        %v6867 = vadd.f32 0.0, %v6866
        %v6868 = vpop.f32.mrf.mxu0
        %v6869 = vadd.f32 0.0, %v6868
        %6870 = vmatmul.bf16.gmra.mxu0 %v6799
        %v6871 = vpop.f32.mrf.mxu0
        %v6872 = vadd.f32 0.0, %v6871
        %v6873 = vpop.f32.mrf.mxu0
        %v6874 = vadd.f32 0.0, %v6873
        %6875 = vmatmul.bf16.gmra.mxu0 %v6802
        %v6876 = vpop.f32.mrf.mxu0
        %v6877 = vadd.f32 0.0, %v6876
        %v6878 = vpop.f32.mrf.mxu0
        %v6879 = vadd.f32 0.0, %v6878
        %6880 = vmatmul.bf16.gmra.mxu0 %v6805
        %v6881 = vpop.f32.mrf.mxu0
        %v6882 = vadd.f32 0.0, %v6881
        %v6883 = vpop.f32.mrf.mxu0
        %v6884 = vadd.f32 0.0, %v6883
        %6885 = vdwg.mxu0
        %v6886 = vpack.c.bf16 %v6869, %v6867
        %v6887 = vpack.c.bf16 %v6874, %v6872
        %v6888 = vpack.c.bf16 %v6879, %v6877
        %v6889 = vpack.c.bf16 %v6884, %v6882
        %s6890 = scalar_lea.vmem [#allocation16], 64
        %v6891 = vld [vmem:[%s6890] sm:$0xf]
        %v6892 = vld [vmem:[%s6890 + $0x4] sm:$0xf]
        %v6893 = vld [vmem:[%s6890 + $0x8] sm:$0xf]
        %v6894 = vld [vmem:[%s6890 + $0xc] sm:$0xf]
        %v6895 = vld [vmem:[%s6890 + $0x10] sm:$0xf]
        %v6896 = vld [vmem:[%s6890 + $0x14] sm:$0xf]
        %v6897 = vld [vmem:[%s6890 + $0x18] sm:$0xf]
        %v6898 = vld [vmem:[%s6890 + $0x1c] sm:$0xf]
        %v6899 = vld [vmem:[%s6890 + $0x20] sm:$0xf]
        %v6900 = vld [vmem:[%s6890 + $0x24] sm:$0xf]
        %v6901 = vld [vmem:[%s6890 + $0x28] sm:$0xf]
        %v6902 = vld [vmem:[%s6890 + $0x2c] sm:$0xf]
        %v6903 = vld [vmem:[%s6890 + $0x30] sm:$0xf]
        %v6904 = vld [vmem:[%s6890 + $0x34] sm:$0xf]
        %v6905 = vld [vmem:[%s6890 + $0x38] sm:$0xf]
        %v6906 = vld [vmem:[%s6890 + $0x3c] sm:$0xf]
        %v6923 = vunpack.c.l.b16 %v6891
        %v6924 = vunpack.c.l.b16 %v6892
        %v6925 = vunpack.c.l.b16 %v6893
        %v6926 = vunpack.c.l.b16 %v6894
        %v6927 = vunpack.c.l.b16 %v6895
        %v6928 = vunpack.c.l.b16 %v6896
        %v6929 = vunpack.c.l.b16 %v6897
        %v6930 = vunpack.c.l.b16 %v6898
        %v6931 = vunpack.c.l.b16 %v6899
        %v6932 = vunpack.c.l.b16 %v6900
        %v6933 = vunpack.c.l.b16 %v6901
        %v6934 = vunpack.c.l.b16 %v6902
        %v6935 = vunpack.c.l.b16 %v6903
        %v6936 = vunpack.c.l.b16 %v6904
        %v6937 = vunpack.c.l.b16 %v6905
        %v6938 = vunpack.c.l.b16 %v6906
        %v6939 = vpack.c.b16 %v6924, %v6923
        %v6940 = vpack.c.b16 %v6926, %v6925
        %v6941 = vpack.c.b16 %v6928, %v6927
        %v6942 = vpack.c.b16 %v6930, %v6929
        %v6943 = vpack.c.b16 %v6932, %v6931
        %v6944 = vpack.c.b16 %v6934, %v6933
        %v6945 = vpack.c.b16 %v6936, %v6935
        %v6946 = vpack.c.b16 %v6938, %v6937
        %6955 = vmatpush.bf16.msra.mxu0 %v6946
        %6956 = vmatpush.bf16.msra.mxu0 %v6945
        %6957 = vmatpush.bf16.msra.mxu0 %v6944
        %6958 = vmatpush.bf16.msra.mxu0 %v6943
        %6959 = vmatpush.bf16.msra.mxu0 %v6942
        %6960 = vmatpush.bf16.msra.mxu0 %v6941
        %6961 = vmatpush.bf16.msra.mxu0 %v6940
        %6962 = vmatpush.bf16.msra.mxu0 %v6939
        %6963 = vmatmul.bf16.gmra.mxu0 %v6886
        %v6964 = vpop.f32.mrf.mxu0
        %v6965 = vadd.f32 0.0, %v6964
        %v6966 = vpop.f32.mrf.mxu0
        %v6967 = vadd.f32 0.0, %v6966
        %6968 = vmatmul.bf16.gmra.mxu0 %v6887
        %v6969 = vpop.f32.mrf.mxu0
        %v6970 = vadd.f32 0.0, %v6969
        %v6971 = vpop.f32.mrf.mxu0
        %v6972 = vadd.f32 0.0, %v6971
        %6973 = vmatmul.bf16.gmra.mxu0 %v6888
        %v6974 = vpop.f32.mrf.mxu0
        %v6975 = vadd.f32 0.0, %v6974
        %v6976 = vpop.f32.mrf.mxu0
        %v6977 = vadd.f32 0.0, %v6976
        %6978 = vmatmul.bf16.gmra.mxu0 %v6889
        %v6979 = vpop.f32.mrf.mxu0
        %v6980 = vadd.f32 0.0, %v6979
        %v6981 = vpop.f32.mrf.mxu0
        %v6982 = vadd.f32 0.0, %v6981
        %6983 = vdwg.mxu0
        %v7000 = vunpack.c.l.b16 %v6841
        %v7001 = vunpack.c.l.b16 %v6842
        %v7002 = vunpack.c.l.b16 %v6843
        %v7003 = vunpack.c.l.b16 %v6844
        %v7004 = vunpack.c.l.b16 %v6845
        %v7005 = vunpack.c.l.b16 %v6846
        %v7006 = vunpack.c.l.b16 %v6847
        %v7007 = vunpack.c.l.b16 %v6848
        %v7008 = vunpack.c.l.b16 %v6849
        %v7009 = vunpack.c.l.b16 %v6850
        %v7010 = vunpack.c.l.b16 %v6851
        %v7011 = vunpack.c.l.b16 %v6852
        %v7012 = vunpack.c.l.b16 %v6853
        %v7013 = vunpack.c.l.b16 %v6854
        %v7014 = vunpack.c.l.b16 %v6855
        %v7015 = vunpack.c.l.b16 %v6856
        %v7016 = vpack.c.b16 %v7001, %v7000
        %v7017 = vpack.c.b16 %v7003, %v7002
        %v7018 = vpack.c.b16 %v7005, %v7004
        %v7019 = vpack.c.b16 %v7007, %v7006
        %v7020 = vpack.c.b16 %v7009, %v7008
        %v7021 = vpack.c.b16 %v7011, %v7010
        %v7022 = vpack.c.b16 %v7013, %v7012
        %v7023 = vpack.c.b16 %v7015, %v7014
        %7032 = vmatpush.bf16.msra.mxu0 %v7023
        %7033 = vmatpush.bf16.msra.mxu0 %v7022
        %7034 = vmatpush.bf16.msra.mxu0 %v7021
        %7035 = vmatpush.bf16.msra.mxu0 %v7020
        %7036 = vmatpush.bf16.msra.mxu0 %v7019
        %7037 = vmatpush.bf16.msra.mxu0 %v7018
        %7038 = vmatpush.bf16.msra.mxu0 %v7017
        %7039 = vmatpush.bf16.msra.mxu0 %v7016
        %7040 = vmatmul.bf16.gmra.mxu0 %v6836
        %v7041 = vpop.f32.mrf.mxu0
        %v7042 = vadd.f32 %v6965, %v7041
        %v7043 = vpop.f32.mrf.mxu0
        %v7044 = vadd.f32 %v6967, %v7043
        %7045 = vmatmul.bf16.gmra.mxu0 %v6837
        %v7046 = vpop.f32.mrf.mxu0
        %v7047 = vadd.f32 %v6970, %v7046
        %v7048 = vpop.f32.mrf.mxu0
        %v7049 = vadd.f32 %v6972, %v7048
        %7050 = vmatmul.bf16.gmra.mxu0 %v6838
        %v7051 = vpop.f32.mrf.mxu0
        %v7052 = vadd.f32 %v6975, %v7051
        %v7053 = vpop.f32.mrf.mxu0
        %v7054 = vadd.f32 %v6977, %v7053
        %7055 = vmatmul.bf16.gmra.mxu0 %v6839
        %v7056 = vpop.f32.mrf.mxu0
        %v7057 = vadd.f32 %v6980, %v7056
        %v7058 = vpop.f32.mrf.mxu0
        %v7059 = vadd.f32 %v6982, %v7058
        %7060 = vdwg.mxu0
        %v7061 = vadd.f32 %v6747, %v7042
        %v7062 = vadd.f32 %v6749, %v7044
        %v7063 = vadd.f32 %v6752, %v7047
        %v7064 = vadd.f32 %v6754, %v7049
        %v7065 = vadd.f32 %v6757, %v7052
        %v7066 = vadd.f32 %v6759, %v7054
        %v7067 = vadd.f32 %v6762, %v7057
        %v7068 = vadd.f32 %v6764, %v7059
        %s7069 = scalar_lea.vmem %s5, 64
        %v7070 = vld [vmem:[%s7069] sm:$0xf]
        %v7071 = vld [vmem:[%s7069 + $0x4] sm:$0xf]
        %v7072 = vld [vmem:[%s7069 + $0x8] sm:$0xf]
        %v7073 = vld [vmem:[%s7069 + $0xc] sm:$0xf]
        %v7074 = vld [vmem:[%s7069 + $0x10] sm:$0xf]
        %v7075 = vld [vmem:[%s7069 + $0x14] sm:$0xf]
        %v7076 = vld [vmem:[%s7069 + $0x18] sm:$0xf]
        %v7077 = vld [vmem:[%s7069 + $0x1c] sm:$0xf]
        %v7086 = vunpack.c.l.b16 %v7070
        %v7087 = vunpack.c.l.b16 %v7071
        %v7088 = vunpack.c.l.b16 %v7072
        %v7089 = vunpack.c.l.b16 %v7073
        %v7090 = vunpack.c.l.b16 %v7074
        %v7091 = vunpack.c.l.b16 %v7075
        %v7092 = vunpack.c.l.b16 %v7076
        %v7093 = vunpack.c.l.b16 %v7077
        %v7094 = vpack.c.b16 %v7087, %v7086
        %v7095 = vpack.c.b16 %v7089, %v7088
        %v7096 = vpack.c.b16 %v7091, %v7090
        %v7097 = vpack.c.b16 %v7093, %v7092
        %v7099 = vsel %vm2897, %v7094, 0
        %v7102 = vsel %vm2897, %v7095, 0
        %v7105 = vsel %vm2897, %v7096, 0
        %v7108 = vsel %vm2897, %v7097, 0
        %7110 = vmatpush.bf16.msra.mxu0 0
        %7111 = vmatpush.bf16.msra.mxu0 0
        %7112 = vmatpush.bf16.msra.mxu0 0
        %7113 = vmatpush.bf16.msra.mxu0 0
        %7114 = vmatpush.bf16.msra.mxu0 %v6473
        %7115 = vmatpush.bf16.msra.mxu0 %v6472
        %7116 = vmatpush.bf16.msra.mxu0 %v6471
        %7117 = vmatpush.bf16.msra.mxu0 %v6470
        %7118 = vmatmul.bf16.gmra.mxu0 %v7099
        %v7119 = vpop.f32.mrf.mxu0
        %v7120 = vadd.f32 0.0, %v7119
        %v7121 = vpop.f32.mrf.mxu0
        %v7122 = vadd.f32 0.0, %v7121
        %7123 = vmatmul.bf16.gmra.mxu0 %v7102
        %v7124 = vpop.f32.mrf.mxu0
        %v7125 = vadd.f32 0.0, %v7124
        %v7126 = vpop.f32.mrf.mxu0
        %v7127 = vadd.f32 0.0, %v7126
        %7128 = vmatmul.bf16.gmra.mxu0 %v7105
        %v7129 = vpop.f32.mrf.mxu0
        %v7130 = vadd.f32 0.0, %v7129
        %v7131 = vpop.f32.mrf.mxu0
        %v7132 = vadd.f32 0.0, %v7131
        %7133 = vmatmul.bf16.gmra.mxu0 %v7108
        %v7134 = vpop.f32.mrf.mxu0
        %v7135 = vadd.f32 0.0, %v7134
        %v7136 = vpop.f32.mrf.mxu0
        %v7137 = vadd.f32 0.0, %v7136
        %7138 = vdwg.mxu0
        %v7139 = vpack.c.bf16 %v7122, %v7120
        %v7140 = vpack.c.bf16 %v7127, %v7125
        %v7141 = vpack.c.bf16 %v7132, %v7130
        %v7142 = vpack.c.bf16 %v7137, %v7135
        %s7143 = scalar_lea.vmem [#allocation15], 128
        %v7144 = vld [vmem:[%s7143] sm:$0xf]
        %v7145 = vld [vmem:[%s7143 + $0x4] sm:$0xf]
        %v7146 = vld [vmem:[%s7143 + $0x8] sm:$0xf]
        %v7147 = vld [vmem:[%s7143 + $0xc] sm:$0xf]
        %v7148 = vld [vmem:[%s7143 + $0x10] sm:$0xf]
        %v7149 = vld [vmem:[%s7143 + $0x14] sm:$0xf]
        %v7150 = vld [vmem:[%s7143 + $0x18] sm:$0xf]
        %v7151 = vld [vmem:[%s7143 + $0x1c] sm:$0xf]
        %v7152 = vld [vmem:[%s7143 + $0x20] sm:$0xf]
        %v7153 = vld [vmem:[%s7143 + $0x24] sm:$0xf]
        %v7154 = vld [vmem:[%s7143 + $0x28] sm:$0xf]
        %v7155 = vld [vmem:[%s7143 + $0x2c] sm:$0xf]
        %v7156 = vld [vmem:[%s7143 + $0x30] sm:$0xf]
        %v7157 = vld [vmem:[%s7143 + $0x34] sm:$0xf]
        %v7158 = vld [vmem:[%s7143 + $0x38] sm:$0xf]
        %v7159 = vld [vmem:[%s7143 + $0x3c] sm:$0xf]
        %7160 = vmatpush.bf16.msra.mxu0 0
        %7161 = vmatpush.bf16.msra.mxu0 0
        %7162 = vmatpush.bf16.msra.mxu0 0
        %7163 = vmatpush.bf16.msra.mxu0 0
        %7164 = vmatpush.bf16.msra.mxu0 %v6400
        %7165 = vmatpush.bf16.msra.mxu0 %v6399
        %7166 = vmatpush.bf16.msra.mxu0 %v6398
        %7167 = vmatpush.bf16.msra.mxu0 %v6397
        %7168 = vmatmul.bf16.gmra.mxu0 %v7099
        %v7169 = vpop.f32.mrf.mxu0
        %v7170 = vadd.f32 0.0, %v7169
        %v7171 = vpop.f32.mrf.mxu0
        %v7172 = vadd.f32 0.0, %v7171
        %7173 = vmatmul.bf16.gmra.mxu0 %v7102
        %v7174 = vpop.f32.mrf.mxu0
        %v7175 = vadd.f32 0.0, %v7174
        %v7176 = vpop.f32.mrf.mxu0
        %v7177 = vadd.f32 0.0, %v7176
        %7178 = vmatmul.bf16.gmra.mxu0 %v7105
        %v7179 = vpop.f32.mrf.mxu0
        %v7180 = vadd.f32 0.0, %v7179
        %v7181 = vpop.f32.mrf.mxu0
        %v7182 = vadd.f32 0.0, %v7181
        %7183 = vmatmul.bf16.gmra.mxu0 %v7108
        %v7184 = vpop.f32.mrf.mxu0
        %v7185 = vadd.f32 0.0, %v7184
        %v7186 = vpop.f32.mrf.mxu0
        %v7187 = vadd.f32 0.0, %v7186
        %7188 = vdwg.mxu0
        %v7189 = vpack.c.bf16 %v7172, %v7170
        %v7190 = vpack.c.bf16 %v7177, %v7175
        %v7191 = vpack.c.bf16 %v7182, %v7180
        %v7192 = vpack.c.bf16 %v7187, %v7185
        %s7193 = scalar_lea.vmem [#allocation16], 128
        %v7194 = vld [vmem:[%s7193] sm:$0xf]
        %v7195 = vld [vmem:[%s7193 + $0x4] sm:$0xf]
        %v7196 = vld [vmem:[%s7193 + $0x8] sm:$0xf]
        %v7197 = vld [vmem:[%s7193 + $0xc] sm:$0xf]
        %v7198 = vld [vmem:[%s7193 + $0x10] sm:$0xf]
        %v7199 = vld [vmem:[%s7193 + $0x14] sm:$0xf]
        %v7200 = vld [vmem:[%s7193 + $0x18] sm:$0xf]
        %v7201 = vld [vmem:[%s7193 + $0x1c] sm:$0xf]
        %v7202 = vld [vmem:[%s7193 + $0x20] sm:$0xf]
        %v7203 = vld [vmem:[%s7193 + $0x24] sm:$0xf]
        %v7204 = vld [vmem:[%s7193 + $0x28] sm:$0xf]
        %v7205 = vld [vmem:[%s7193 + $0x2c] sm:$0xf]
        %v7206 = vld [vmem:[%s7193 + $0x30] sm:$0xf]
        %v7207 = vld [vmem:[%s7193 + $0x34] sm:$0xf]
        %v7208 = vld [vmem:[%s7193 + $0x38] sm:$0xf]
        %v7209 = vld [vmem:[%s7193 + $0x3c] sm:$0xf]
        %v7226 = vunpack.c.l.b16 %v7194
        %v7227 = vunpack.c.l.b16 %v7195
        %v7228 = vunpack.c.l.b16 %v7196
        %v7229 = vunpack.c.l.b16 %v7197
        %v7230 = vunpack.c.l.b16 %v7198
        %v7231 = vunpack.c.l.b16 %v7199
        %v7232 = vunpack.c.l.b16 %v7200
        %v7233 = vunpack.c.l.b16 %v7201
        %v7234 = vunpack.c.l.b16 %v7202
        %v7235 = vunpack.c.l.b16 %v7203
        %v7236 = vunpack.c.l.b16 %v7204
        %v7237 = vunpack.c.l.b16 %v7205
        %v7238 = vunpack.c.l.b16 %v7206
        %v7239 = vunpack.c.l.b16 %v7207
        %v7240 = vunpack.c.l.b16 %v7208
        %v7241 = vunpack.c.l.b16 %v7209
        %v7242 = vpack.c.b16 %v7227, %v7226
        %v7243 = vpack.c.b16 %v7229, %v7228
        %v7244 = vpack.c.b16 %v7231, %v7230
        %v7245 = vpack.c.b16 %v7233, %v7232
        %v7246 = vpack.c.b16 %v7235, %v7234
        %v7247 = vpack.c.b16 %v7237, %v7236
        %v7248 = vpack.c.b16 %v7239, %v7238
        %v7249 = vpack.c.b16 %v7241, %v7240
        %7258 = vmatpush.bf16.msra.mxu0 %v7249
        %7259 = vmatpush.bf16.msra.mxu0 %v7248
        %7260 = vmatpush.bf16.msra.mxu0 %v7247
        %7261 = vmatpush.bf16.msra.mxu0 %v7246
        %7262 = vmatpush.bf16.msra.mxu0 %v7245
        %7263 = vmatpush.bf16.msra.mxu0 %v7244
        %7264 = vmatpush.bf16.msra.mxu0 %v7243
        %7265 = vmatpush.bf16.msra.mxu0 %v7242
        %7266 = vmatmul.bf16.gmra.mxu0 %v7189
        %v7267 = vpop.f32.mrf.mxu0
        %v7268 = vadd.f32 0.0, %v7267
        %v7269 = vpop.f32.mrf.mxu0
        %v7270 = vadd.f32 0.0, %v7269
        %7271 = vmatmul.bf16.gmra.mxu0 %v7190
        %v7272 = vpop.f32.mrf.mxu0
        %v7273 = vadd.f32 0.0, %v7272
        %v7274 = vpop.f32.mrf.mxu0
        %v7275 = vadd.f32 0.0, %v7274
        %7276 = vmatmul.bf16.gmra.mxu0 %v7191
        %v7277 = vpop.f32.mrf.mxu0
        %v7278 = vadd.f32 0.0, %v7277
        %v7279 = vpop.f32.mrf.mxu0
        %v7280 = vadd.f32 0.0, %v7279
        %7281 = vmatmul.bf16.gmra.mxu0 %v7192
        %v7282 = vpop.f32.mrf.mxu0
        %v7283 = vadd.f32 0.0, %v7282
        %v7284 = vpop.f32.mrf.mxu0
        %v7285 = vadd.f32 0.0, %v7284
        %7286 = vdwg.mxu0
        %v7303 = vunpack.c.l.b16 %v7144
        %v7304 = vunpack.c.l.b16 %v7145
        %v7305 = vunpack.c.l.b16 %v7146
        %v7306 = vunpack.c.l.b16 %v7147
        %v7307 = vunpack.c.l.b16 %v7148
        %v7308 = vunpack.c.l.b16 %v7149
        %v7309 = vunpack.c.l.b16 %v7150
        %v7310 = vunpack.c.l.b16 %v7151
        %v7311 = vunpack.c.l.b16 %v7152
        %v7312 = vunpack.c.l.b16 %v7153
        %v7313 = vunpack.c.l.b16 %v7154
        %v7314 = vunpack.c.l.b16 %v7155
        %v7315 = vunpack.c.l.b16 %v7156
        %v7316 = vunpack.c.l.b16 %v7157
        %v7317 = vunpack.c.l.b16 %v7158
        %v7318 = vunpack.c.l.b16 %v7159
        %v7319 = vpack.c.b16 %v7304, %v7303
        %v7320 = vpack.c.b16 %v7306, %v7305
        %v7321 = vpack.c.b16 %v7308, %v7307
        %v7322 = vpack.c.b16 %v7310, %v7309
        %v7323 = vpack.c.b16 %v7312, %v7311
        %v7324 = vpack.c.b16 %v7314, %v7313
        %v7325 = vpack.c.b16 %v7316, %v7315
        %v7326 = vpack.c.b16 %v7318, %v7317
        %7335 = vmatpush.bf16.msra.mxu0 %v7326
        %7336 = vmatpush.bf16.msra.mxu0 %v7325
        %7337 = vmatpush.bf16.msra.mxu0 %v7324
        %7338 = vmatpush.bf16.msra.mxu0 %v7323
        %7339 = vmatpush.bf16.msra.mxu0 %v7322
        %7340 = vmatpush.bf16.msra.mxu0 %v7321
        %7341 = vmatpush.bf16.msra.mxu0 %v7320
        %7342 = vmatpush.bf16.msra.mxu0 %v7319
        %7343 = vmatmul.bf16.gmra.mxu0 %v7139
        %v7344 = vpop.f32.mrf.mxu0
        %v7345 = vadd.f32 %v7268, %v7344
        %v7346 = vpop.f32.mrf.mxu0
        %v7347 = vadd.f32 %v7270, %v7346
        %7348 = vmatmul.bf16.gmra.mxu0 %v7140
        %v7349 = vpop.f32.mrf.mxu0
        %v7350 = vadd.f32 %v7273, %v7349
        %v7351 = vpop.f32.mrf.mxu0
        %v7352 = vadd.f32 %v7275, %v7351
        %7353 = vmatmul.bf16.gmra.mxu0 %v7141
        %v7354 = vpop.f32.mrf.mxu0
        %v7355 = vadd.f32 %v7278, %v7354
        %v7356 = vpop.f32.mrf.mxu0
        %v7357 = vadd.f32 %v7280, %v7356
        %7358 = vmatmul.bf16.gmra.mxu0 %v7142
        %v7359 = vpop.f32.mrf.mxu0
        %v7360 = vadd.f32 %v7283, %v7359
        %v7361 = vpop.f32.mrf.mxu0
        %v7362 = vadd.f32 %v7285, %v7361
        %7363 = vdwg.mxu0
        %v7364 = vadd.f32 %v7061, %v7345
        %v7365 = vadd.f32 %v7062, %v7347
        %v7366 = vadd.f32 %v7063, %v7350
        %v7367 = vadd.f32 %v7064, %v7352
        %v7368 = vadd.f32 %v7065, %v7355
        %v7369 = vadd.f32 %v7066, %v7357
        %v7370 = vadd.f32 %v7067, %v7360
        %v7371 = vadd.f32 %v7068, %v7362
        %s7372 = scalar_lea.vmem %s5, 96
        %v7373 = vld [vmem:[%s7372] sm:$0xf]
        %v7374 = vld [vmem:[%s7372 + $0x4] sm:$0xf]
        %v7375 = vld [vmem:[%s7372 + $0x8] sm:$0xf]
        %v7376 = vld [vmem:[%s7372 + $0xc] sm:$0xf]
        %v7377 = vld [vmem:[%s7372 + $0x10] sm:$0xf]
        %v7378 = vld [vmem:[%s7372 + $0x14] sm:$0xf]
        %v7379 = vld [vmem:[%s7372 + $0x18] sm:$0xf]
        %v7380 = vld [vmem:[%s7372 + $0x1c] sm:$0xf]
        %v7389 = vunpack.c.l.b16 %v7373
        %v7390 = vunpack.c.l.b16 %v7374
        %v7391 = vunpack.c.l.b16 %v7375
        %v7392 = vunpack.c.l.b16 %v7376
        %v7393 = vunpack.c.l.b16 %v7377
        %v7394 = vunpack.c.l.b16 %v7378
        %v7395 = vunpack.c.l.b16 %v7379
        %v7396 = vunpack.c.l.b16 %v7380
        %v7397 = vpack.c.b16 %v7390, %v7389
        %v7398 = vpack.c.b16 %v7392, %v7391
        %v7399 = vpack.c.b16 %v7394, %v7393
        %v7400 = vpack.c.b16 %v7396, %v7395
        %v7402 = vsel %vm2897, %v7397, 0
        %v7405 = vsel %vm2897, %v7398, 0
        %v7408 = vsel %vm2897, %v7399, 0
        %v7411 = vsel %vm2897, %v7400, 0
        %7413 = vmatpush.bf16.msra.mxu0 0
        %7414 = vmatpush.bf16.msra.mxu0 0
        %7415 = vmatpush.bf16.msra.mxu0 0
        %7416 = vmatpush.bf16.msra.mxu0 0
        %7417 = vmatpush.bf16.msra.mxu0 %v6473
        %7418 = vmatpush.bf16.msra.mxu0 %v6472
        %7419 = vmatpush.bf16.msra.mxu0 %v6471
        %7420 = vmatpush.bf16.msra.mxu0 %v6470
        %7421 = vmatmul.bf16.gmra.mxu0 %v7402
        %v7422 = vpop.f32.mrf.mxu0
        %v7423 = vadd.f32 0.0, %v7422
        %v7424 = vpop.f32.mrf.mxu0
        %v7425 = vadd.f32 0.0, %v7424
        %7426 = vmatmul.bf16.gmra.mxu0 %v7405
        %v7427 = vpop.f32.mrf.mxu0
        %v7428 = vadd.f32 0.0, %v7427
        %v7429 = vpop.f32.mrf.mxu0
        %v7430 = vadd.f32 0.0, %v7429
        %7431 = vmatmul.bf16.gmra.mxu0 %v7408
        %v7432 = vpop.f32.mrf.mxu0
        %v7433 = vadd.f32 0.0, %v7432
        %v7434 = vpop.f32.mrf.mxu0
        %v7435 = vadd.f32 0.0, %v7434
        %7436 = vmatmul.bf16.gmra.mxu0 %v7411
        %v7437 = vpop.f32.mrf.mxu0
        %v7438 = vadd.f32 0.0, %v7437
        %v7439 = vpop.f32.mrf.mxu0
        %v7440 = vadd.f32 0.0, %v7439
        %7441 = vdwg.mxu0
        %v7442 = vpack.c.bf16 %v7425, %v7423
        %v7443 = vpack.c.bf16 %v7430, %v7428
        %v7444 = vpack.c.bf16 %v7435, %v7433
        %v7445 = vpack.c.bf16 %v7440, %v7438
        %s7446 = scalar_lea.vmem [#allocation15], 192
        %v7447 = vld [vmem:[%s7446] sm:$0xf]
        %v7448 = vld [vmem:[%s7446 + $0x4] sm:$0xf]
        %v7449 = vld [vmem:[%s7446 + $0x8] sm:$0xf]
        %v7450 = vld [vmem:[%s7446 + $0xc] sm:$0xf]
        %v7451 = vld [vmem:[%s7446 + $0x10] sm:$0xf]
        %v7452 = vld [vmem:[%s7446 + $0x14] sm:$0xf]
        %v7453 = vld [vmem:[%s7446 + $0x18] sm:$0xf]
        %v7454 = vld [vmem:[%s7446 + $0x1c] sm:$0xf]
        %v7455 = vld [vmem:[%s7446 + $0x20] sm:$0xf]
        %v7456 = vld [vmem:[%s7446 + $0x24] sm:$0xf]
        %v7457 = vld [vmem:[%s7446 + $0x28] sm:$0xf]
        %v7458 = vld [vmem:[%s7446 + $0x2c] sm:$0xf]
        %v7459 = vld [vmem:[%s7446 + $0x30] sm:$0xf]
        %v7460 = vld [vmem:[%s7446 + $0x34] sm:$0xf]
        %v7461 = vld [vmem:[%s7446 + $0x38] sm:$0xf]
        %v7462 = vld [vmem:[%s7446 + $0x3c] sm:$0xf]
        %7463 = vmatpush.bf16.msra.mxu0 0
        %7464 = vmatpush.bf16.msra.mxu0 0
        %7465 = vmatpush.bf16.msra.mxu0 0
        %7466 = vmatpush.bf16.msra.mxu0 0
        %7467 = vmatpush.bf16.msra.mxu0 %v6400
        %7468 = vmatpush.bf16.msra.mxu0 %v6399
        %7469 = vmatpush.bf16.msra.mxu0 %v6398
        %7470 = vmatpush.bf16.msra.mxu0 %v6397
        %7471 = vmatmul.bf16.gmra.mxu0 %v7402
        %v7472 = vpop.f32.mrf.mxu0
        %v7473 = vadd.f32 0.0, %v7472
        %v7474 = vpop.f32.mrf.mxu0
        %v7475 = vadd.f32 0.0, %v7474
        %7476 = vmatmul.bf16.gmra.mxu0 %v7405
        %v7477 = vpop.f32.mrf.mxu0
        %v7478 = vadd.f32 0.0, %v7477
        %v7479 = vpop.f32.mrf.mxu0
        %v7480 = vadd.f32 0.0, %v7479
        %7481 = vmatmul.bf16.gmra.mxu0 %v7408
        %v7482 = vpop.f32.mrf.mxu0
        %v7483 = vadd.f32 0.0, %v7482
        %v7484 = vpop.f32.mrf.mxu0
        %v7485 = vadd.f32 0.0, %v7484
        %7486 = vmatmul.bf16.gmra.mxu0 %v7411
        %v7487 = vpop.f32.mrf.mxu0
        %v7488 = vadd.f32 0.0, %v7487
        %v7489 = vpop.f32.mrf.mxu0
        %v7490 = vadd.f32 0.0, %v7489
        %7491 = vdwg.mxu0
        %v7492 = vpack.c.bf16 %v7475, %v7473
        %v7493 = vpack.c.bf16 %v7480, %v7478
        %v7494 = vpack.c.bf16 %v7485, %v7483
        %v7495 = vpack.c.bf16 %v7490, %v7488
        %s7496 = scalar_lea.vmem [#allocation16], 192
        %v7497 = vld [vmem:[%s7496] sm:$0xf]
        %v7498 = vld [vmem:[%s7496 + $0x4] sm:$0xf]
        %v7499 = vld [vmem:[%s7496 + $0x8] sm:$0xf]
        %v7500 = vld [vmem:[%s7496 + $0xc] sm:$0xf]
        %v7501 = vld [vmem:[%s7496 + $0x10] sm:$0xf]
        %v7502 = vld [vmem:[%s7496 + $0x14] sm:$0xf]
        %v7503 = vld [vmem:[%s7496 + $0x18] sm:$0xf]
        %v7504 = vld [vmem:[%s7496 + $0x1c] sm:$0xf]
        %v7505 = vld [vmem:[%s7496 + $0x20] sm:$0xf]
        %v7506 = vld [vmem:[%s7496 + $0x24] sm:$0xf]
        %v7507 = vld [vmem:[%s7496 + $0x28] sm:$0xf]
        %v7508 = vld [vmem:[%s7496 + $0x2c] sm:$0xf]
        %v7509 = vld [vmem:[%s7496 + $0x30] sm:$0xf]
        %v7510 = vld [vmem:[%s7496 + $0x34] sm:$0xf]
        %v7511 = vld [vmem:[%s7496 + $0x38] sm:$0xf]
        %v7512 = vld [vmem:[%s7496 + $0x3c] sm:$0xf]
        %v7529 = vunpack.c.l.b16 %v7497
        %v7530 = vunpack.c.l.b16 %v7498
        %v7531 = vunpack.c.l.b16 %v7499
        %v7532 = vunpack.c.l.b16 %v7500
        %v7533 = vunpack.c.l.b16 %v7501
        %v7534 = vunpack.c.l.b16 %v7502
        %v7535 = vunpack.c.l.b16 %v7503
        %v7536 = vunpack.c.l.b16 %v7504
        %v7537 = vunpack.c.l.b16 %v7505
        %v7538 = vunpack.c.l.b16 %v7506
        %v7539 = vunpack.c.l.b16 %v7507
        %v7540 = vunpack.c.l.b16 %v7508
        %v7541 = vunpack.c.l.b16 %v7509
        %v7542 = vunpack.c.l.b16 %v7510
        %v7543 = vunpack.c.l.b16 %v7511
        %v7544 = vunpack.c.l.b16 %v7512
        %v7545 = vpack.c.b16 %v7530, %v7529
        %v7546 = vpack.c.b16 %v7532, %v7531
        %v7547 = vpack.c.b16 %v7534, %v7533
        %v7548 = vpack.c.b16 %v7536, %v7535
        %v7549 = vpack.c.b16 %v7538, %v7537
        %v7550 = vpack.c.b16 %v7540, %v7539
        %v7551 = vpack.c.b16 %v7542, %v7541
        %v7552 = vpack.c.b16 %v7544, %v7543
        %7561 = vmatpush.bf16.msra.mxu0 %v7552
        %7562 = vmatpush.bf16.msra.mxu0 %v7551
        %7563 = vmatpush.bf16.msra.mxu0 %v7550
        %7564 = vmatpush.bf16.msra.mxu0 %v7549
        %7565 = vmatpush.bf16.msra.mxu0 %v7548
        %7566 = vmatpush.bf16.msra.mxu0 %v7547
        %7567 = vmatpush.bf16.msra.mxu0 %v7546
        %7568 = vmatpush.bf16.msra.mxu0 %v7545
        %7569 = vmatmul.bf16.gmra.mxu0 %v7492
        %v7570 = vpop.f32.mrf.mxu0
        %v7571 = vadd.f32 0.0, %v7570
        %v7572 = vpop.f32.mrf.mxu0
        %v7573 = vadd.f32 0.0, %v7572
        %7574 = vmatmul.bf16.gmra.mxu0 %v7493
        %v7575 = vpop.f32.mrf.mxu0
        %v7576 = vadd.f32 0.0, %v7575
        %v7577 = vpop.f32.mrf.mxu0
        %v7578 = vadd.f32 0.0, %v7577
        %7579 = vmatmul.bf16.gmra.mxu0 %v7494
        %v7580 = vpop.f32.mrf.mxu0
        %v7581 = vadd.f32 0.0, %v7580
        %v7582 = vpop.f32.mrf.mxu0
        %v7583 = vadd.f32 0.0, %v7582
        %7584 = vmatmul.bf16.gmra.mxu0 %v7495
        %v7585 = vpop.f32.mrf.mxu0
        %v7586 = vadd.f32 0.0, %v7585
        %v7587 = vpop.f32.mrf.mxu0
        %v7588 = vadd.f32 0.0, %v7587
        %7589 = vdwg.mxu0
        %v7606 = vunpack.c.l.b16 %v7447
        %v7607 = vunpack.c.l.b16 %v7448
        %v7608 = vunpack.c.l.b16 %v7449
        %v7609 = vunpack.c.l.b16 %v7450
        %v7610 = vunpack.c.l.b16 %v7451
        %v7611 = vunpack.c.l.b16 %v7452
        %v7612 = vunpack.c.l.b16 %v7453
        %v7613 = vunpack.c.l.b16 %v7454
        %v7614 = vunpack.c.l.b16 %v7455
        %v7615 = vunpack.c.l.b16 %v7456
        %v7616 = vunpack.c.l.b16 %v7457
        %v7617 = vunpack.c.l.b16 %v7458
        %v7618 = vunpack.c.l.b16 %v7459
        %v7619 = vunpack.c.l.b16 %v7460
        %v7620 = vunpack.c.l.b16 %v7461
        %v7621 = vunpack.c.l.b16 %v7462
        %v7622 = vpack.c.b16 %v7607, %v7606
        %v7623 = vpack.c.b16 %v7609, %v7608
        %v7624 = vpack.c.b16 %v7611, %v7610
        %v7625 = vpack.c.b16 %v7613, %v7612
        %v7626 = vpack.c.b16 %v7615, %v7614
        %v7627 = vpack.c.b16 %v7617, %v7616
        %v7628 = vpack.c.b16 %v7619, %v7618
        %v7629 = vpack.c.b16 %v7621, %v7620
        %7638 = vmatpush.bf16.msra.mxu0 %v7629
        %7639 = vmatpush.bf16.msra.mxu0 %v7628
        %7640 = vmatpush.bf16.msra.mxu0 %v7627
        %7641 = vmatpush.bf16.msra.mxu0 %v7626
        %7642 = vmatpush.bf16.msra.mxu0 %v7625
        %7643 = vmatpush.bf16.msra.mxu0 %v7624
        %7644 = vmatpush.bf16.msra.mxu0 %v7623
        %7645 = vmatpush.bf16.msra.mxu0 %v7622
        %7646 = vmatmul.bf16.gmra.mxu0 %v7442
        %v7647 = vpop.f32.mrf.mxu0
        %v7648 = vadd.f32 %v7571, %v7647
        %v7649 = vpop.f32.mrf.mxu0
        %v7650 = vadd.f32 %v7573, %v7649
        %7651 = vmatmul.bf16.gmra.mxu0 %v7443
        %v7652 = vpop.f32.mrf.mxu0
        %v7653 = vadd.f32 %v7576, %v7652
        %v7654 = vpop.f32.mrf.mxu0
        %v7655 = vadd.f32 %v7578, %v7654
        %7656 = vmatmul.bf16.gmra.mxu0 %v7444
        %v7657 = vpop.f32.mrf.mxu0
        %v7658 = vadd.f32 %v7581, %v7657
        %v7659 = vpop.f32.mrf.mxu0
        %v7660 = vadd.f32 %v7583, %v7659
        %7661 = vmatmul.bf16.gmra.mxu0 %v7445
        %v7662 = vpop.f32.mrf.mxu0
        %v7663 = vadd.f32 %v7586, %v7662
        %v7664 = vpop.f32.mrf.mxu0
        %v7665 = vadd.f32 %v7588, %v7664
        %7666 = vdwg.mxu0
        %v7667 = vadd.f32 %v7364, %v7648
        %v7668 = vadd.f32 %v7365, %v7650
        %v7669 = vadd.f32 %v7366, %v7653
        %v7670 = vadd.f32 %v7367, %v7655
        %v7671 = vadd.f32 %v7368, %v7658
        %v7672 = vadd.f32 %v7369, %v7660
        %v7673 = vadd.f32 %v7370, %v7663
        %v7674 = vadd.f32 %v7371, %v7665
        %s7675 = scalar_lea.vmem %s5, 128
        %v7676 = vld [vmem:[%s7675] sm:$0xf]
        %v7677 = vld [vmem:[%s7675 + $0x4] sm:$0xf]
        %v7678 = vld [vmem:[%s7675 + $0x8] sm:$0xf]
        %v7679 = vld [vmem:[%s7675 + $0xc] sm:$0xf]
        %v7680 = vld [vmem:[%s7675 + $0x10] sm:$0xf]
        %v7681 = vld [vmem:[%s7675 + $0x14] sm:$0xf]
        %v7682 = vld [vmem:[%s7675 + $0x18] sm:$0xf]
        %v7683 = vld [vmem:[%s7675 + $0x1c] sm:$0xf]
        %v7692 = vunpack.c.l.b16 %v7676
        %v7693 = vunpack.c.l.b16 %v7677
        %v7694 = vunpack.c.l.b16 %v7678
        %v7695 = vunpack.c.l.b16 %v7679
        %v7696 = vunpack.c.l.b16 %v7680
        %v7697 = vunpack.c.l.b16 %v7681
        %v7698 = vunpack.c.l.b16 %v7682
        %v7699 = vunpack.c.l.b16 %v7683
        %v7700 = vpack.c.b16 %v7693, %v7692
        %v7701 = vpack.c.b16 %v7695, %v7694
        %v7702 = vpack.c.b16 %v7697, %v7696
        %v7703 = vpack.c.b16 %v7699, %v7698
        %v7705 = vsel %vm2897, %v7700, 0
        %v7708 = vsel %vm2897, %v7701, 0
        %v7711 = vsel %vm2897, %v7702, 0
        %v7714 = vsel %vm2897, %v7703, 0
        %7716 = vmatpush.bf16.msra.mxu0 0
        %7717 = vmatpush.bf16.msra.mxu0 0
        %7718 = vmatpush.bf16.msra.mxu0 0
        %7719 = vmatpush.bf16.msra.mxu0 0
        %7720 = vmatpush.bf16.msra.mxu0 %v6473
        %7721 = vmatpush.bf16.msra.mxu0 %v6472
        %7722 = vmatpush.bf16.msra.mxu0 %v6471
        %7723 = vmatpush.bf16.msra.mxu0 %v6470
        %7724 = vmatmul.bf16.gmra.mxu0 %v7705
        %v7725 = vpop.f32.mrf.mxu0
        %v7726 = vadd.f32 0.0, %v7725
        %v7727 = vpop.f32.mrf.mxu0
        %v7728 = vadd.f32 0.0, %v7727
        %7729 = vmatmul.bf16.gmra.mxu0 %v7708
        %v7730 = vpop.f32.mrf.mxu0
        %v7731 = vadd.f32 0.0, %v7730
        %v7732 = vpop.f32.mrf.mxu0
        %v7733 = vadd.f32 0.0, %v7732
        %7734 = vmatmul.bf16.gmra.mxu0 %v7711
        %v7735 = vpop.f32.mrf.mxu0
        %v7736 = vadd.f32 0.0, %v7735
        %v7737 = vpop.f32.mrf.mxu0
        %v7738 = vadd.f32 0.0, %v7737
        %7739 = vmatmul.bf16.gmra.mxu0 %v7714
        %v7740 = vpop.f32.mrf.mxu0
        %v7741 = vadd.f32 0.0, %v7740
        %v7742 = vpop.f32.mrf.mxu0
        %v7743 = vadd.f32 0.0, %v7742
        %7744 = vdwg.mxu0
        %v7745 = vpack.c.bf16 %v7728, %v7726
        %v7746 = vpack.c.bf16 %v7733, %v7731
        %v7747 = vpack.c.bf16 %v7738, %v7736
        %v7748 = vpack.c.bf16 %v7743, %v7741
        %s7749 = scalar_lea.vmem [#allocation15], 256
        %v7750 = vld [vmem:[%s7749] sm:$0xf]
        %v7751 = vld [vmem:[%s7749 + $0x4] sm:$0xf]
        %v7752 = vld [vmem:[%s7749 + $0x8] sm:$0xf]
        %v7753 = vld [vmem:[%s7749 + $0xc] sm:$0xf]
        %v7754 = vld [vmem:[%s7749 + $0x10] sm:$0xf]
        %v7755 = vld [vmem:[%s7749 + $0x14] sm:$0xf]
        %v7756 = vld [vmem:[%s7749 + $0x18] sm:$0xf]
        %v7757 = vld [vmem:[%s7749 + $0x1c] sm:$0xf]
        %v7758 = vld [vmem:[%s7749 + $0x20] sm:$0xf]
        %v7759 = vld [vmem:[%s7749 + $0x24] sm:$0xf]
        %v7760 = vld [vmem:[%s7749 + $0x28] sm:$0xf]
        %v7761 = vld [vmem:[%s7749 + $0x2c] sm:$0xf]
        %v7762 = vld [vmem:[%s7749 + $0x30] sm:$0xf]
        %v7763 = vld [vmem:[%s7749 + $0x34] sm:$0xf]
        %v7764 = vld [vmem:[%s7749 + $0x38] sm:$0xf]
        %v7765 = vld [vmem:[%s7749 + $0x3c] sm:$0xf]
        %7766 = vmatpush.bf16.msra.mxu0 0
        %7767 = vmatpush.bf16.msra.mxu0 0
        %7768 = vmatpush.bf16.msra.mxu0 0
        %7769 = vmatpush.bf16.msra.mxu0 0
        %7770 = vmatpush.bf16.msra.mxu0 %v6400
        %7771 = vmatpush.bf16.msra.mxu0 %v6399
        %7772 = vmatpush.bf16.msra.mxu0 %v6398
        %7773 = vmatpush.bf16.msra.mxu0 %v6397
        %7774 = vmatmul.bf16.gmra.mxu0 %v7705
        %v7775 = vpop.f32.mrf.mxu0
        %v7776 = vadd.f32 0.0, %v7775
        %v7777 = vpop.f32.mrf.mxu0
        %v7778 = vadd.f32 0.0, %v7777
        %7779 = vmatmul.bf16.gmra.mxu0 %v7708
        %v7780 = vpop.f32.mrf.mxu0
        %v7781 = vadd.f32 0.0, %v7780
        %v7782 = vpop.f32.mrf.mxu0
        %v7783 = vadd.f32 0.0, %v7782
        %7784 = vmatmul.bf16.gmra.mxu0 %v7711
        %v7785 = vpop.f32.mrf.mxu0
        %v7786 = vadd.f32 0.0, %v7785
        %v7787 = vpop.f32.mrf.mxu0
        %v7788 = vadd.f32 0.0, %v7787
        %7789 = vmatmul.bf16.gmra.mxu0 %v7714
        %v7790 = vpop.f32.mrf.mxu0
        %v7791 = vadd.f32 0.0, %v7790
        %v7792 = vpop.f32.mrf.mxu0
        %v7793 = vadd.f32 0.0, %v7792
        %7794 = vdwg.mxu0
        %v7795 = vpack.c.bf16 %v7778, %v7776
        %v7796 = vpack.c.bf16 %v7783, %v7781
        %v7797 = vpack.c.bf16 %v7788, %v7786
        %v7798 = vpack.c.bf16 %v7793, %v7791
        %s7799 = scalar_lea.vmem [#allocation16], 256
        %v7800 = vld [vmem:[%s7799] sm:$0xf]
        %v7801 = vld [vmem:[%s7799 + $0x4] sm:$0xf]
        %v7802 = vld [vmem:[%s7799 + $0x8] sm:$0xf]
        %v7803 = vld [vmem:[%s7799 + $0xc] sm:$0xf]
        %v7804 = vld [vmem:[%s7799 + $0x10] sm:$0xf]
        %v7805 = vld [vmem:[%s7799 + $0x14] sm:$0xf]
        %v7806 = vld [vmem:[%s7799 + $0x18] sm:$0xf]
        %v7807 = vld [vmem:[%s7799 + $0x1c] sm:$0xf]
        %v7808 = vld [vmem:[%s7799 + $0x20] sm:$0xf]
        %v7809 = vld [vmem:[%s7799 + $0x24] sm:$0xf]
        %v7810 = vld [vmem:[%s7799 + $0x28] sm:$0xf]
        %v7811 = vld [vmem:[%s7799 + $0x2c] sm:$0xf]
        %v7812 = vld [vmem:[%s7799 + $0x30] sm:$0xf]
        %v7813 = vld [vmem:[%s7799 + $0x34] sm:$0xf]
        %v7814 = vld [vmem:[%s7799 + $0x38] sm:$0xf]
        %v7815 = vld [vmem:[%s7799 + $0x3c] sm:$0xf]
        %v7832 = vunpack.c.l.b16 %v7800
        %v7833 = vunpack.c.l.b16 %v7801
        %v7834 = vunpack.c.l.b16 %v7802
        %v7835 = vunpack.c.l.b16 %v7803
        %v7836 = vunpack.c.l.b16 %v7804
        %v7837 = vunpack.c.l.b16 %v7805
        %v7838 = vunpack.c.l.b16 %v7806
        %v7839 = vunpack.c.l.b16 %v7807
        %v7840 = vunpack.c.l.b16 %v7808
        %v7841 = vunpack.c.l.b16 %v7809
        %v7842 = vunpack.c.l.b16 %v7810
        %v7843 = vunpack.c.l.b16 %v7811
        %v7844 = vunpack.c.l.b16 %v7812
        %v7845 = vunpack.c.l.b16 %v7813
        %v7846 = vunpack.c.l.b16 %v7814
        %v7847 = vunpack.c.l.b16 %v7815
        %v7848 = vpack.c.b16 %v7833, %v7832
        %v7849 = vpack.c.b16 %v7835, %v7834
        %v7850 = vpack.c.b16 %v7837, %v7836
        %v7851 = vpack.c.b16 %v7839, %v7838
        %v7852 = vpack.c.b16 %v7841, %v7840
        %v7853 = vpack.c.b16 %v7843, %v7842
        %v7854 = vpack.c.b16 %v7845, %v7844
        %v7855 = vpack.c.b16 %v7847, %v7846
        %7864 = vmatpush.bf16.msra.mxu0 %v7855
        %7865 = vmatpush.bf16.msra.mxu0 %v7854
        %7866 = vmatpush.bf16.msra.mxu0 %v7853
        %7867 = vmatpush.bf16.msra.mxu0 %v7852
        %7868 = vmatpush.bf16.msra.mxu0 %v7851
        %7869 = vmatpush.bf16.msra.mxu0 %v7850
        %7870 = vmatpush.bf16.msra.mxu0 %v7849
        %7871 = vmatpush.bf16.msra.mxu0 %v7848
        %7872 = vmatmul.bf16.gmra.mxu0 %v7795
        %v7873 = vpop.f32.mrf.mxu0
        %v7874 = vadd.f32 0.0, %v7873
        %v7875 = vpop.f32.mrf.mxu0
        %v7876 = vadd.f32 0.0, %v7875
        %7877 = vmatmul.bf16.gmra.mxu0 %v7796
        %v7878 = vpop.f32.mrf.mxu0
        %v7879 = vadd.f32 0.0, %v7878
        %v7880 = vpop.f32.mrf.mxu0
        %v7881 = vadd.f32 0.0, %v7880
        %7882 = vmatmul.bf16.gmra.mxu0 %v7797
        %v7883 = vpop.f32.mrf.mxu0
        %v7884 = vadd.f32 0.0, %v7883
        %v7885 = vpop.f32.mrf.mxu0
        %v7886 = vadd.f32 0.0, %v7885
        %7887 = vmatmul.bf16.gmra.mxu0 %v7798
        %v7888 = vpop.f32.mrf.mxu0
        %v7889 = vadd.f32 0.0, %v7888
        %v7890 = vpop.f32.mrf.mxu0
        %v7891 = vadd.f32 0.0, %v7890
        %7892 = vdwg.mxu0
        %v7909 = vunpack.c.l.b16 %v7750
        %v7910 = vunpack.c.l.b16 %v7751
        %v7911 = vunpack.c.l.b16 %v7752
        %v7912 = vunpack.c.l.b16 %v7753
        %v7913 = vunpack.c.l.b16 %v7754
        %v7914 = vunpack.c.l.b16 %v7755
        %v7915 = vunpack.c.l.b16 %v7756
        %v7916 = vunpack.c.l.b16 %v7757
        %v7917 = vunpack.c.l.b16 %v7758
        %v7918 = vunpack.c.l.b16 %v7759
        %v7919 = vunpack.c.l.b16 %v7760
        %v7920 = vunpack.c.l.b16 %v7761
        %v7921 = vunpack.c.l.b16 %v7762
        %v7922 = vunpack.c.l.b16 %v7763
        %v7923 = vunpack.c.l.b16 %v7764
        %v7924 = vunpack.c.l.b16 %v7765
        %v7925 = vpack.c.b16 %v7910, %v7909
        %v7926 = vpack.c.b16 %v7912, %v7911
        %v7927 = vpack.c.b16 %v7914, %v7913
        %v7928 = vpack.c.b16 %v7916, %v7915
        %v7929 = vpack.c.b16 %v7918, %v7917
        %v7930 = vpack.c.b16 %v7920, %v7919
        %v7931 = vpack.c.b16 %v7922, %v7921
        %v7932 = vpack.c.b16 %v7924, %v7923
        %7941 = vmatpush.bf16.msra.mxu0 %v7932
        %7942 = vmatpush.bf16.msra.mxu0 %v7931
        %7943 = vmatpush.bf16.msra.mxu0 %v7930
        %7944 = vmatpush.bf16.msra.mxu0 %v7929
        %7945 = vmatpush.bf16.msra.mxu0 %v7928
        %7946 = vmatpush.bf16.msra.mxu0 %v7927
        %7947 = vmatpush.bf16.msra.mxu0 %v7926
        %7948 = vmatpush.bf16.msra.mxu0 %v7925
        %7949 = vmatmul.bf16.gmra.mxu0 %v7745
        %v7950 = vpop.f32.mrf.mxu0
        %v7951 = vadd.f32 %v7874, %v7950
        %v7952 = vpop.f32.mrf.mxu0
        %v7953 = vadd.f32 %v7876, %v7952
        %7954 = vmatmul.bf16.gmra.mxu0 %v7746
        %v7955 = vpop.f32.mrf.mxu0
        %v7956 = vadd.f32 %v7879, %v7955
        %v7957 = vpop.f32.mrf.mxu0
        %v7958 = vadd.f32 %v7881, %v7957
        %7959 = vmatmul.bf16.gmra.mxu0 %v7747
        %v7960 = vpop.f32.mrf.mxu0
        %v7961 = vadd.f32 %v7884, %v7960
        %v7962 = vpop.f32.mrf.mxu0
        %v7963 = vadd.f32 %v7886, %v7962
        %7964 = vmatmul.bf16.gmra.mxu0 %v7748
        %v7965 = vpop.f32.mrf.mxu0
        %v7966 = vadd.f32 %v7889, %v7965
        %v7967 = vpop.f32.mrf.mxu0
        %v7968 = vadd.f32 %v7891, %v7967
        %7969 = vdwg.mxu0
        %v7970 = vadd.f32 %v7667, %v7951
        %v7971 = vadd.f32 %v7668, %v7953
        %v7972 = vadd.f32 %v7669, %v7956
        %v7973 = vadd.f32 %v7670, %v7958
        %v7974 = vadd.f32 %v7671, %v7961
        %v7975 = vadd.f32 %v7672, %v7963
        %v7976 = vadd.f32 %v7673, %v7966
        %v7977 = vadd.f32 %v7674, %v7968
        %s7978 = scalar_lea.vmem %s5, 160
        %v7979 = vld [vmem:[%s7978] sm:$0xf]
        %v7980 = vld [vmem:[%s7978 + $0x4] sm:$0xf]
        %v7981 = vld [vmem:[%s7978 + $0x8] sm:$0xf]
        %v7982 = vld [vmem:[%s7978 + $0xc] sm:$0xf]
        %v7983 = vld [vmem:[%s7978 + $0x10] sm:$0xf]
        %v7984 = vld [vmem:[%s7978 + $0x14] sm:$0xf]
        %v7985 = vld [vmem:[%s7978 + $0x18] sm:$0xf]
        %v7986 = vld [vmem:[%s7978 + $0x1c] sm:$0xf]
        %v7995 = vunpack.c.l.b16 %v7979
        %v7996 = vunpack.c.l.b16 %v7980
        %v7997 = vunpack.c.l.b16 %v7981
        %v7998 = vunpack.c.l.b16 %v7982
        %v7999 = vunpack.c.l.b16 %v7983
        %v8000 = vunpack.c.l.b16 %v7984
        %v8001 = vunpack.c.l.b16 %v7985
        %v8002 = vunpack.c.l.b16 %v7986
        %v8003 = vpack.c.b16 %v7996, %v7995
        %v8004 = vpack.c.b16 %v7998, %v7997
        %v8005 = vpack.c.b16 %v8000, %v7999
        %v8006 = vpack.c.b16 %v8002, %v8001
        %v8008 = vsel %vm2897, %v8003, 0
        %v8011 = vsel %vm2897, %v8004, 0
        %v8014 = vsel %vm2897, %v8005, 0
        %v8017 = vsel %vm2897, %v8006, 0
        %8019 = vmatpush.bf16.msra.mxu0 0
        %8020 = vmatpush.bf16.msra.mxu0 0
        %8021 = vmatpush.bf16.msra.mxu0 0
        %8022 = vmatpush.bf16.msra.mxu0 0
        %8023 = vmatpush.bf16.msra.mxu0 %v6473
        %8024 = vmatpush.bf16.msra.mxu0 %v6472
        %8025 = vmatpush.bf16.msra.mxu0 %v6471
        %8026 = vmatpush.bf16.msra.mxu0 %v6470
        %8027 = vmatmul.bf16.gmra.mxu0 %v8008
        %v8028 = vpop.f32.mrf.mxu0
        %v8029 = vadd.f32 0.0, %v8028
        %v8030 = vpop.f32.mrf.mxu0
        %v8031 = vadd.f32 0.0, %v8030
        %8032 = vmatmul.bf16.gmra.mxu0 %v8011
        %v8033 = vpop.f32.mrf.mxu0
        %v8034 = vadd.f32 0.0, %v8033
        %v8035 = vpop.f32.mrf.mxu0
        %v8036 = vadd.f32 0.0, %v8035
        %8037 = vmatmul.bf16.gmra.mxu0 %v8014
        %v8038 = vpop.f32.mrf.mxu0
        %v8039 = vadd.f32 0.0, %v8038
        %v8040 = vpop.f32.mrf.mxu0
        %v8041 = vadd.f32 0.0, %v8040
        %8042 = vmatmul.bf16.gmra.mxu0 %v8017
        %v8043 = vpop.f32.mrf.mxu0
        %v8044 = vadd.f32 0.0, %v8043
        %v8045 = vpop.f32.mrf.mxu0
        %v8046 = vadd.f32 0.0, %v8045
        %8047 = vdwg.mxu0
        %v8048 = vpack.c.bf16 %v8031, %v8029
        %v8049 = vpack.c.bf16 %v8036, %v8034
        %v8050 = vpack.c.bf16 %v8041, %v8039
        %v8051 = vpack.c.bf16 %v8046, %v8044
        %s8052 = scalar_lea.vmem [#allocation15], 320
        %v8053 = vld [vmem:[%s8052] sm:$0xf]
        %v8054 = vld [vmem:[%s8052 + $0x4] sm:$0xf]
        %v8055 = vld [vmem:[%s8052 + $0x8] sm:$0xf]
        %v8056 = vld [vmem:[%s8052 + $0xc] sm:$0xf]
        %v8057 = vld [vmem:[%s8052 + $0x10] sm:$0xf]
        %v8058 = vld [vmem:[%s8052 + $0x14] sm:$0xf]
        %v8059 = vld [vmem:[%s8052 + $0x18] sm:$0xf]
        %v8060 = vld [vmem:[%s8052 + $0x1c] sm:$0xf]
        %v8061 = vld [vmem:[%s8052 + $0x20] sm:$0xf]
        %v8062 = vld [vmem:[%s8052 + $0x24] sm:$0xf]
        %v8063 = vld [vmem:[%s8052 + $0x28] sm:$0xf]
        %v8064 = vld [vmem:[%s8052 + $0x2c] sm:$0xf]
        %v8065 = vld [vmem:[%s8052 + $0x30] sm:$0xf]
        %v8066 = vld [vmem:[%s8052 + $0x34] sm:$0xf]
        %v8067 = vld [vmem:[%s8052 + $0x38] sm:$0xf]
        %v8068 = vld [vmem:[%s8052 + $0x3c] sm:$0xf]
        %8069 = vmatpush.bf16.msra.mxu0 0
        %8070 = vmatpush.bf16.msra.mxu0 0
        %8071 = vmatpush.bf16.msra.mxu0 0
        %8072 = vmatpush.bf16.msra.mxu0 0
        %8073 = vmatpush.bf16.msra.mxu0 %v6400
        %8074 = vmatpush.bf16.msra.mxu0 %v6399
        %8075 = vmatpush.bf16.msra.mxu0 %v6398
        %8076 = vmatpush.bf16.msra.mxu0 %v6397
        %8077 = vmatmul.bf16.gmra.mxu0 %v8008
        %v8078 = vpop.f32.mrf.mxu0
        %v8079 = vadd.f32 0.0, %v8078
        %v8080 = vpop.f32.mrf.mxu0
        %v8081 = vadd.f32 0.0, %v8080
        %8082 = vmatmul.bf16.gmra.mxu0 %v8011
        %v8083 = vpop.f32.mrf.mxu0
        %v8084 = vadd.f32 0.0, %v8083
        %v8085 = vpop.f32.mrf.mxu0
        %v8086 = vadd.f32 0.0, %v8085
        %8087 = vmatmul.bf16.gmra.mxu0 %v8014
        %v8088 = vpop.f32.mrf.mxu0
        %v8089 = vadd.f32 0.0, %v8088
        %v8090 = vpop.f32.mrf.mxu0
        %v8091 = vadd.f32 0.0, %v8090
        %8092 = vmatmul.bf16.gmra.mxu0 %v8017
        %v8093 = vpop.f32.mrf.mxu0
        %v8094 = vadd.f32 0.0, %v8093
        %v8095 = vpop.f32.mrf.mxu0
        %v8096 = vadd.f32 0.0, %v8095
        %8097 = vdwg.mxu0
        %v8098 = vpack.c.bf16 %v8081, %v8079
        %v8099 = vpack.c.bf16 %v8086, %v8084
        %v8100 = vpack.c.bf16 %v8091, %v8089
        %v8101 = vpack.c.bf16 %v8096, %v8094
        %s8102 = scalar_lea.vmem [#allocation16], 320
        %v8103 = vld [vmem:[%s8102] sm:$0xf]
        %v8104 = vld [vmem:[%s8102 + $0x4] sm:$0xf]
        %v8105 = vld [vmem:[%s8102 + $0x8] sm:$0xf]
        %v8106 = vld [vmem:[%s8102 + $0xc] sm:$0xf]
        %v8107 = vld [vmem:[%s8102 + $0x10] sm:$0xf]
        %v8108 = vld [vmem:[%s8102 + $0x14] sm:$0xf]
        %v8109 = vld [vmem:[%s8102 + $0x18] sm:$0xf]
        %v8110 = vld [vmem:[%s8102 + $0x1c] sm:$0xf]
        %v8111 = vld [vmem:[%s8102 + $0x20] sm:$0xf]
        %v8112 = vld [vmem:[%s8102 + $0x24] sm:$0xf]
        %v8113 = vld [vmem:[%s8102 + $0x28] sm:$0xf]
        %v8114 = vld [vmem:[%s8102 + $0x2c] sm:$0xf]
        %v8115 = vld [vmem:[%s8102 + $0x30] sm:$0xf]
        %v8116 = vld [vmem:[%s8102 + $0x34] sm:$0xf]
        %v8117 = vld [vmem:[%s8102 + $0x38] sm:$0xf]
        %v8118 = vld [vmem:[%s8102 + $0x3c] sm:$0xf]
        %v8135 = vunpack.c.l.b16 %v8103
        %v8136 = vunpack.c.l.b16 %v8104
        %v8137 = vunpack.c.l.b16 %v8105
        %v8138 = vunpack.c.l.b16 %v8106
        %v8139 = vunpack.c.l.b16 %v8107
        %v8140 = vunpack.c.l.b16 %v8108
        %v8141 = vunpack.c.l.b16 %v8109
        %v8142 = vunpack.c.l.b16 %v8110
        %v8143 = vunpack.c.l.b16 %v8111
        %v8144 = vunpack.c.l.b16 %v8112
        %v8145 = vunpack.c.l.b16 %v8113
        %v8146 = vunpack.c.l.b16 %v8114
        %v8147 = vunpack.c.l.b16 %v8115
        %v8148 = vunpack.c.l.b16 %v8116
        %v8149 = vunpack.c.l.b16 %v8117
        %v8150 = vunpack.c.l.b16 %v8118
        %v8151 = vpack.c.b16 %v8136, %v8135
        %v8152 = vpack.c.b16 %v8138, %v8137
        %v8153 = vpack.c.b16 %v8140, %v8139
        %v8154 = vpack.c.b16 %v8142, %v8141
        %v8155 = vpack.c.b16 %v8144, %v8143
        %v8156 = vpack.c.b16 %v8146, %v8145
        %v8157 = vpack.c.b16 %v8148, %v8147
        %v8158 = vpack.c.b16 %v8150, %v8149
        %8167 = vmatpush.bf16.msra.mxu0 %v8158
        %8168 = vmatpush.bf16.msra.mxu0 %v8157
        %8169 = vmatpush.bf16.msra.mxu0 %v8156
        %8170 = vmatpush.bf16.msra.mxu0 %v8155
        %8171 = vmatpush.bf16.msra.mxu0 %v8154
        %8172 = vmatpush.bf16.msra.mxu0 %v8153
        %8173 = vmatpush.bf16.msra.mxu0 %v8152
        %8174 = vmatpush.bf16.msra.mxu0 %v8151
        %8175 = vmatmul.bf16.gmra.mxu0 %v8098
        %v8176 = vpop.f32.mrf.mxu0
        %v8177 = vadd.f32 0.0, %v8176
        %v8178 = vpop.f32.mrf.mxu0
        %v8179 = vadd.f32 0.0, %v8178
        %8180 = vmatmul.bf16.gmra.mxu0 %v8099
        %v8181 = vpop.f32.mrf.mxu0
        %v8182 = vadd.f32 0.0, %v8181
        %v8183 = vpop.f32.mrf.mxu0
        %v8184 = vadd.f32 0.0, %v8183
        %8185 = vmatmul.bf16.gmra.mxu0 %v8100
        %v8186 = vpop.f32.mrf.mxu0
        %v8187 = vadd.f32 0.0, %v8186
        %v8188 = vpop.f32.mrf.mxu0
        %v8189 = vadd.f32 0.0, %v8188
        %8190 = vmatmul.bf16.gmra.mxu0 %v8101
        %v8191 = vpop.f32.mrf.mxu0
        %v8192 = vadd.f32 0.0, %v8191
        %v8193 = vpop.f32.mrf.mxu0
        %v8194 = vadd.f32 0.0, %v8193
        %8195 = vdwg.mxu0
        %v8212 = vunpack.c.l.b16 %v8053
        %v8213 = vunpack.c.l.b16 %v8054
        %v8214 = vunpack.c.l.b16 %v8055
        %v8215 = vunpack.c.l.b16 %v8056
        %v8216 = vunpack.c.l.b16 %v8057
        %v8217 = vunpack.c.l.b16 %v8058
        %v8218 = vunpack.c.l.b16 %v8059
        %v8219 = vunpack.c.l.b16 %v8060
        %v8220 = vunpack.c.l.b16 %v8061
        %v8221 = vunpack.c.l.b16 %v8062
        %v8222 = vunpack.c.l.b16 %v8063
        %v8223 = vunpack.c.l.b16 %v8064
        %v8224 = vunpack.c.l.b16 %v8065
        %v8225 = vunpack.c.l.b16 %v8066
        %v8226 = vunpack.c.l.b16 %v8067
        %v8227 = vunpack.c.l.b16 %v8068
        %v8228 = vpack.c.b16 %v8213, %v8212
        %v8229 = vpack.c.b16 %v8215, %v8214
        %v8230 = vpack.c.b16 %v8217, %v8216
        %v8231 = vpack.c.b16 %v8219, %v8218
        %v8232 = vpack.c.b16 %v8221, %v8220
        %v8233 = vpack.c.b16 %v8223, %v8222
        %v8234 = vpack.c.b16 %v8225, %v8224
        %v8235 = vpack.c.b16 %v8227, %v8226
        %8244 = vmatpush.bf16.msra.mxu0 %v8235
        %8245 = vmatpush.bf16.msra.mxu0 %v8234
        %8246 = vmatpush.bf16.msra.mxu0 %v8233
        %8247 = vmatpush.bf16.msra.mxu0 %v8232
        %8248 = vmatpush.bf16.msra.mxu0 %v8231
        %8249 = vmatpush.bf16.msra.mxu0 %v8230
        %8250 = vmatpush.bf16.msra.mxu0 %v8229
        %8251 = vmatpush.bf16.msra.mxu0 %v8228
        %8252 = vmatmul.bf16.gmra.mxu0 %v8048
        %v8253 = vpop.f32.mrf.mxu0
        %v8254 = vadd.f32 %v8177, %v8253
        %v8255 = vpop.f32.mrf.mxu0
        %v8256 = vadd.f32 %v8179, %v8255
        %8257 = vmatmul.bf16.gmra.mxu0 %v8049
        %v8258 = vpop.f32.mrf.mxu0
        %v8259 = vadd.f32 %v8182, %v8258
        %v8260 = vpop.f32.mrf.mxu0
        %v8261 = vadd.f32 %v8184, %v8260
        %8262 = vmatmul.bf16.gmra.mxu0 %v8050
        %v8263 = vpop.f32.mrf.mxu0
        %v8264 = vadd.f32 %v8187, %v8263
        %v8265 = vpop.f32.mrf.mxu0
        %v8266 = vadd.f32 %v8189, %v8265
        %8267 = vmatmul.bf16.gmra.mxu0 %v8051
        %v8268 = vpop.f32.mrf.mxu0
        %v8269 = vadd.f32 %v8192, %v8268
        %v8270 = vpop.f32.mrf.mxu0
        %v8271 = vadd.f32 %v8194, %v8270
        %8272 = vdwg.mxu0
        %v8273 = vadd.f32 %v7970, %v8254
        %v8274 = vadd.f32 %v7971, %v8256
        %v8275 = vadd.f32 %v7972, %v8259
        %v8276 = vadd.f32 %v7973, %v8261
        %v8277 = vadd.f32 %v7974, %v8264
        %v8278 = vadd.f32 %v7975, %v8266
        %v8279 = vadd.f32 %v7976, %v8269
        %v8280 = vadd.f32 %v7977, %v8271
        %s8281 = scalar_lea.vmem %s5, 192
        %v8282 = vld [vmem:[%s8281] sm:$0xf]
        %v8283 = vld [vmem:[%s8281 + $0x4] sm:$0xf]
        %v8284 = vld [vmem:[%s8281 + $0x8] sm:$0xf]
        %v8285 = vld [vmem:[%s8281 + $0xc] sm:$0xf]
        %v8286 = vld [vmem:[%s8281 + $0x10] sm:$0xf]
        %v8287 = vld [vmem:[%s8281 + $0x14] sm:$0xf]
        %v8288 = vld [vmem:[%s8281 + $0x18] sm:$0xf]
        %v8289 = vld [vmem:[%s8281 + $0x1c] sm:$0xf]
        %v8298 = vunpack.c.l.b16 %v8282
        %v8299 = vunpack.c.l.b16 %v8283
        %v8300 = vunpack.c.l.b16 %v8284
        %v8301 = vunpack.c.l.b16 %v8285
        %v8302 = vunpack.c.l.b16 %v8286
        %v8303 = vunpack.c.l.b16 %v8287
        %v8304 = vunpack.c.l.b16 %v8288
        %v8305 = vunpack.c.l.b16 %v8289
        %v8306 = vpack.c.b16 %v8299, %v8298
        %v8307 = vpack.c.b16 %v8301, %v8300
        %v8308 = vpack.c.b16 %v8303, %v8302
        %v8309 = vpack.c.b16 %v8305, %v8304
        %v8311 = vsel %vm2897, %v8306, 0
        %v8314 = vsel %vm2897, %v8307, 0
        %v8317 = vsel %vm2897, %v8308, 0
        %v8320 = vsel %vm2897, %v8309, 0
        %8322 = vmatpush.bf16.msra.mxu0 0
        %8323 = vmatpush.bf16.msra.mxu0 0
        %8324 = vmatpush.bf16.msra.mxu0 0
        %8325 = vmatpush.bf16.msra.mxu0 0
        %8326 = vmatpush.bf16.msra.mxu0 %v6473
        %8327 = vmatpush.bf16.msra.mxu0 %v6472
        %8328 = vmatpush.bf16.msra.mxu0 %v6471
        %8329 = vmatpush.bf16.msra.mxu0 %v6470
        %8330 = vmatmul.bf16.gmra.mxu0 %v8311
        %v8331 = vpop.f32.mrf.mxu0
        %v8332 = vadd.f32 0.0, %v8331
        %v8333 = vpop.f32.mrf.mxu0
        %v8334 = vadd.f32 0.0, %v8333
        %8335 = vmatmul.bf16.gmra.mxu0 %v8314
        %v8336 = vpop.f32.mrf.mxu0
        %v8337 = vadd.f32 0.0, %v8336
        %v8338 = vpop.f32.mrf.mxu0
        %v8339 = vadd.f32 0.0, %v8338
        %8340 = vmatmul.bf16.gmra.mxu0 %v8317
        %v8341 = vpop.f32.mrf.mxu0
        %v8342 = vadd.f32 0.0, %v8341
        %v8343 = vpop.f32.mrf.mxu0
        %v8344 = vadd.f32 0.0, %v8343
        %8345 = vmatmul.bf16.gmra.mxu0 %v8320
        %v8346 = vpop.f32.mrf.mxu0
        %v8347 = vadd.f32 0.0, %v8346
        %v8348 = vpop.f32.mrf.mxu0
        %v8349 = vadd.f32 0.0, %v8348
        %8350 = vdwg.mxu0
        %v8351 = vpack.c.bf16 %v8334, %v8332
        %v8352 = vpack.c.bf16 %v8339, %v8337
        %v8353 = vpack.c.bf16 %v8344, %v8342
        %v8354 = vpack.c.bf16 %v8349, %v8347
        %s8355 = scalar_lea.vmem [#allocation15], 384
        %v8356 = vld [vmem:[%s8355] sm:$0xf]
        %v8357 = vld [vmem:[%s8355 + $0x4] sm:$0xf]
        %v8358 = vld [vmem:[%s8355 + $0x8] sm:$0xf]
        %v8359 = vld [vmem:[%s8355 + $0xc] sm:$0xf]
        %v8360 = vld [vmem:[%s8355 + $0x10] sm:$0xf]
        %v8361 = vld [vmem:[%s8355 + $0x14] sm:$0xf]
        %v8362 = vld [vmem:[%s8355 + $0x18] sm:$0xf]
        %v8363 = vld [vmem:[%s8355 + $0x1c] sm:$0xf]
        %v8364 = vld [vmem:[%s8355 + $0x20] sm:$0xf]
        %v8365 = vld [vmem:[%s8355 + $0x24] sm:$0xf]
        %v8366 = vld [vmem:[%s8355 + $0x28] sm:$0xf]
        %v8367 = vld [vmem:[%s8355 + $0x2c] sm:$0xf]
        %v8368 = vld [vmem:[%s8355 + $0x30] sm:$0xf]
        %v8369 = vld [vmem:[%s8355 + $0x34] sm:$0xf]
        %v8370 = vld [vmem:[%s8355 + $0x38] sm:$0xf]
        %v8371 = vld [vmem:[%s8355 + $0x3c] sm:$0xf]
        %8372 = vmatpush.bf16.msra.mxu0 0
        %8373 = vmatpush.bf16.msra.mxu0 0
        %8374 = vmatpush.bf16.msra.mxu0 0
        %8375 = vmatpush.bf16.msra.mxu0 0
        %8376 = vmatpush.bf16.msra.mxu0 %v6400
        %8377 = vmatpush.bf16.msra.mxu0 %v6399
        %8378 = vmatpush.bf16.msra.mxu0 %v6398
        %8379 = vmatpush.bf16.msra.mxu0 %v6397
        %8380 = vmatmul.bf16.gmra.mxu0 %v8311
        %v8381 = vpop.f32.mrf.mxu0
        %v8382 = vadd.f32 0.0, %v8381
        %v8383 = vpop.f32.mrf.mxu0
        %v8384 = vadd.f32 0.0, %v8383
        %8385 = vmatmul.bf16.gmra.mxu0 %v8314
        %v8386 = vpop.f32.mrf.mxu0
        %v8387 = vadd.f32 0.0, %v8386
        %v8388 = vpop.f32.mrf.mxu0
        %v8389 = vadd.f32 0.0, %v8388
        %8390 = vmatmul.bf16.gmra.mxu0 %v8317
        %v8391 = vpop.f32.mrf.mxu0
        %v8392 = vadd.f32 0.0, %v8391
        %v8393 = vpop.f32.mrf.mxu0
        %v8394 = vadd.f32 0.0, %v8393
        %8395 = vmatmul.bf16.gmra.mxu0 %v8320
        %v8396 = vpop.f32.mrf.mxu0
        %v8397 = vadd.f32 0.0, %v8396
        %v8398 = vpop.f32.mrf.mxu0
        %v8399 = vadd.f32 0.0, %v8398
        %8400 = vdwg.mxu0
        %v8401 = vpack.c.bf16 %v8384, %v8382
        %v8402 = vpack.c.bf16 %v8389, %v8387
        %v8403 = vpack.c.bf16 %v8394, %v8392
        %v8404 = vpack.c.bf16 %v8399, %v8397
        %s8405 = scalar_lea.vmem [#allocation16], 384
        %v8406 = vld [vmem:[%s8405] sm:$0xf]
        %v8407 = vld [vmem:[%s8405 + $0x4] sm:$0xf]
        %v8408 = vld [vmem:[%s8405 + $0x8] sm:$0xf]
        %v8409 = vld [vmem:[%s8405 + $0xc] sm:$0xf]
        %v8410 = vld [vmem:[%s8405 + $0x10] sm:$0xf]
        %v8411 = vld [vmem:[%s8405 + $0x14] sm:$0xf]
        %v8412 = vld [vmem:[%s8405 + $0x18] sm:$0xf]
        %v8413 = vld [vmem:[%s8405 + $0x1c] sm:$0xf]
        %v8414 = vld [vmem:[%s8405 + $0x20] sm:$0xf]
        %v8415 = vld [vmem:[%s8405 + $0x24] sm:$0xf]
        %v8416 = vld [vmem:[%s8405 + $0x28] sm:$0xf]
        %v8417 = vld [vmem:[%s8405 + $0x2c] sm:$0xf]
        %v8418 = vld [vmem:[%s8405 + $0x30] sm:$0xf]
        %v8419 = vld [vmem:[%s8405 + $0x34] sm:$0xf]
        %v8420 = vld [vmem:[%s8405 + $0x38] sm:$0xf]
        %v8421 = vld [vmem:[%s8405 + $0x3c] sm:$0xf]
        %v8438 = vunpack.c.l.b16 %v8406
        %v8439 = vunpack.c.l.b16 %v8407
        %v8440 = vunpack.c.l.b16 %v8408
        %v8441 = vunpack.c.l.b16 %v8409
        %v8442 = vunpack.c.l.b16 %v8410
        %v8443 = vunpack.c.l.b16 %v8411
        %v8444 = vunpack.c.l.b16 %v8412
        %v8445 = vunpack.c.l.b16 %v8413
        %v8446 = vunpack.c.l.b16 %v8414
        %v8447 = vunpack.c.l.b16 %v8415
        %v8448 = vunpack.c.l.b16 %v8416
        %v8449 = vunpack.c.l.b16 %v8417
        %v8450 = vunpack.c.l.b16 %v8418
        %v8451 = vunpack.c.l.b16 %v8419
        %v8452 = vunpack.c.l.b16 %v8420
        %v8453 = vunpack.c.l.b16 %v8421
        %v8454 = vpack.c.b16 %v8439, %v8438
        %v8455 = vpack.c.b16 %v8441, %v8440
        %v8456 = vpack.c.b16 %v8443, %v8442
        %v8457 = vpack.c.b16 %v8445, %v8444
        %v8458 = vpack.c.b16 %v8447, %v8446
        %v8459 = vpack.c.b16 %v8449, %v8448
        %v8460 = vpack.c.b16 %v8451, %v8450
        %v8461 = vpack.c.b16 %v8453, %v8452
        %8470 = vmatpush.bf16.msra.mxu0 %v8461
        %8471 = vmatpush.bf16.msra.mxu0 %v8460
        %8472 = vmatpush.bf16.msra.mxu0 %v8459
        %8473 = vmatpush.bf16.msra.mxu0 %v8458
        %8474 = vmatpush.bf16.msra.mxu0 %v8457
        %8475 = vmatpush.bf16.msra.mxu0 %v8456
        %8476 = vmatpush.bf16.msra.mxu0 %v8455
        %8477 = vmatpush.bf16.msra.mxu0 %v8454
        %8478 = vmatmul.bf16.gmra.mxu0 %v8401
        %v8479 = vpop.f32.mrf.mxu0
        %v8480 = vadd.f32 0.0, %v8479
        %v8481 = vpop.f32.mrf.mxu0
        %v8482 = vadd.f32 0.0, %v8481
        %8483 = vmatmul.bf16.gmra.mxu0 %v8402
        %v8484 = vpop.f32.mrf.mxu0
        %v8485 = vadd.f32 0.0, %v8484
        %v8486 = vpop.f32.mrf.mxu0
        %v8487 = vadd.f32 0.0, %v8486
        %8488 = vmatmul.bf16.gmra.mxu0 %v8403
        %v8489 = vpop.f32.mrf.mxu0
        %v8490 = vadd.f32 0.0, %v8489
        %v8491 = vpop.f32.mrf.mxu0
        %v8492 = vadd.f32 0.0, %v8491
        %8493 = vmatmul.bf16.gmra.mxu0 %v8404
        %v8494 = vpop.f32.mrf.mxu0
        %v8495 = vadd.f32 0.0, %v8494
        %v8496 = vpop.f32.mrf.mxu0
        %v8497 = vadd.f32 0.0, %v8496
        %8498 = vdwg.mxu0
        %v8515 = vunpack.c.l.b16 %v8356
        %v8516 = vunpack.c.l.b16 %v8357
        %v8517 = vunpack.c.l.b16 %v8358
        %v8518 = vunpack.c.l.b16 %v8359
        %v8519 = vunpack.c.l.b16 %v8360
        %v8520 = vunpack.c.l.b16 %v8361
        %v8521 = vunpack.c.l.b16 %v8362
        %v8522 = vunpack.c.l.b16 %v8363
        %v8523 = vunpack.c.l.b16 %v8364
        %v8524 = vunpack.c.l.b16 %v8365
        %v8525 = vunpack.c.l.b16 %v8366
        %v8526 = vunpack.c.l.b16 %v8367
        %v8527 = vunpack.c.l.b16 %v8368
        %v8528 = vunpack.c.l.b16 %v8369
        %v8529 = vunpack.c.l.b16 %v8370
        %v8530 = vunpack.c.l.b16 %v8371
        %v8531 = vpack.c.b16 %v8516, %v8515
        %v8532 = vpack.c.b16 %v8518, %v8517
        %v8533 = vpack.c.b16 %v8520, %v8519
        %v8534 = vpack.c.b16 %v8522, %v8521
        %v8535 = vpack.c.b16 %v8524, %v8523
        %v8536 = vpack.c.b16 %v8526, %v8525
        %v8537 = vpack.c.b16 %v8528, %v8527
        %v8538 = vpack.c.b16 %v8530, %v8529
        %8547 = vmatpush.bf16.msra.mxu0 %v8538
        %8548 = vmatpush.bf16.msra.mxu0 %v8537
        %8549 = vmatpush.bf16.msra.mxu0 %v8536
        %8550 = vmatpush.bf16.msra.mxu0 %v8535
        %8551 = vmatpush.bf16.msra.mxu0 %v8534
        %8552 = vmatpush.bf16.msra.mxu0 %v8533
        %8553 = vmatpush.bf16.msra.mxu0 %v8532
        %8554 = vmatpush.bf16.msra.mxu0 %v8531
        %8555 = vmatmul.bf16.gmra.mxu0 %v8351
        %v8556 = vpop.f32.mrf.mxu0
        %v8557 = vadd.f32 %v8480, %v8556
        %v8558 = vpop.f32.mrf.mxu0
        %v8559 = vadd.f32 %v8482, %v8558
        %8560 = vmatmul.bf16.gmra.mxu0 %v8352
        %v8561 = vpop.f32.mrf.mxu0
        %v8562 = vadd.f32 %v8485, %v8561
        %v8563 = vpop.f32.mrf.mxu0
        %v8564 = vadd.f32 %v8487, %v8563
        %8565 = vmatmul.bf16.gmra.mxu0 %v8353
        %v8566 = vpop.f32.mrf.mxu0
        %v8567 = vadd.f32 %v8490, %v8566
        %v8568 = vpop.f32.mrf.mxu0
        %v8569 = vadd.f32 %v8492, %v8568
        %8570 = vmatmul.bf16.gmra.mxu0 %v8354
        %v8571 = vpop.f32.mrf.mxu0
        %v8572 = vadd.f32 %v8495, %v8571
        %v8573 = vpop.f32.mrf.mxu0
        %v8574 = vadd.f32 %v8497, %v8573
        %8575 = vdwg.mxu0
        %v8576 = vadd.f32 %v8273, %v8557
        %v8577 = vadd.f32 %v8274, %v8559
        %v8578 = vadd.f32 %v8275, %v8562
        %v8579 = vadd.f32 %v8276, %v8564
        %v8580 = vadd.f32 %v8277, %v8567
        %v8581 = vadd.f32 %v8278, %v8569
        %v8582 = vadd.f32 %v8279, %v8572
        %v8583 = vadd.f32 %v8280, %v8574
        %s8584 = scalar_lea.vmem %s5, 224
        %v8585 = vld [vmem:[%s8584] sm:$0xf]
        %v8586 = vld [vmem:[%s8584 + $0x4] sm:$0xf]
        %v8587 = vld [vmem:[%s8584 + $0x8] sm:$0xf]
        %v8588 = vld [vmem:[%s8584 + $0xc] sm:$0xf]
        %v8589 = vld [vmem:[%s8584 + $0x10] sm:$0xf]
        %v8590 = vld [vmem:[%s8584 + $0x14] sm:$0xf]
        %v8591 = vld [vmem:[%s8584 + $0x18] sm:$0xf]
        %v8592 = vld [vmem:[%s8584 + $0x1c] sm:$0xf]
        %v8601 = vunpack.c.l.b16 %v8585
        %v8602 = vunpack.c.l.b16 %v8586
        %v8603 = vunpack.c.l.b16 %v8587
        %v8604 = vunpack.c.l.b16 %v8588
        %v8605 = vunpack.c.l.b16 %v8589
        %v8606 = vunpack.c.l.b16 %v8590
        %v8607 = vunpack.c.l.b16 %v8591
        %v8608 = vunpack.c.l.b16 %v8592
        %v8609 = vpack.c.b16 %v8602, %v8601
        %v8610 = vpack.c.b16 %v8604, %v8603
        %v8611 = vpack.c.b16 %v8606, %v8605
        %v8612 = vpack.c.b16 %v8608, %v8607
        %v8614 = vsel %vm2897, %v8609, 0
        %v8617 = vsel %vm2897, %v8610, 0
        %v8620 = vsel %vm2897, %v8611, 0
        %v8623 = vsel %vm2897, %v8612, 0
        %8625 = vmatpush.bf16.msra.mxu0 0
        %8626 = vmatpush.bf16.msra.mxu0 0
        %8627 = vmatpush.bf16.msra.mxu0 0
        %8628 = vmatpush.bf16.msra.mxu0 0
        %8629 = vmatpush.bf16.msra.mxu0 %v6473
        %8630 = vmatpush.bf16.msra.mxu0 %v6472
        %8631 = vmatpush.bf16.msra.mxu0 %v6471
        %8632 = vmatpush.bf16.msra.mxu0 %v6470
        %8633 = vmatmul.bf16.gmra.mxu0 %v8614
        %v8634 = vpop.f32.mrf.mxu0
        %v8635 = vadd.f32 0.0, %v8634
        %v8636 = vpop.f32.mrf.mxu0
        %v8637 = vadd.f32 0.0, %v8636
        %8638 = vmatmul.bf16.gmra.mxu0 %v8617
        %v8639 = vpop.f32.mrf.mxu0
        %v8640 = vadd.f32 0.0, %v8639
        %v8641 = vpop.f32.mrf.mxu0
        %v8642 = vadd.f32 0.0, %v8641
        %8643 = vmatmul.bf16.gmra.mxu0 %v8620
        %v8644 = vpop.f32.mrf.mxu0
        %v8645 = vadd.f32 0.0, %v8644
        %v8646 = vpop.f32.mrf.mxu0
        %v8647 = vadd.f32 0.0, %v8646
        %8648 = vmatmul.bf16.gmra.mxu0 %v8623
        %v8649 = vpop.f32.mrf.mxu0
        %v8650 = vadd.f32 0.0, %v8649
        %v8651 = vpop.f32.mrf.mxu0
        %v8652 = vadd.f32 0.0, %v8651
        %8653 = vdwg.mxu0
        %v8654 = vpack.c.bf16 %v8637, %v8635
        %v8655 = vpack.c.bf16 %v8642, %v8640
        %v8656 = vpack.c.bf16 %v8647, %v8645
        %v8657 = vpack.c.bf16 %v8652, %v8650
        %s8658 = scalar_lea.vmem [#allocation15], 448
        %v8659 = vld [vmem:[%s8658] sm:$0xf]
        %v8660 = vld [vmem:[%s8658 + $0x4] sm:$0xf]
        %v8661 = vld [vmem:[%s8658 + $0x8] sm:$0xf]
        %v8662 = vld [vmem:[%s8658 + $0xc] sm:$0xf]
        %v8663 = vld [vmem:[%s8658 + $0x10] sm:$0xf]
        %v8664 = vld [vmem:[%s8658 + $0x14] sm:$0xf]
        %v8665 = vld [vmem:[%s8658 + $0x18] sm:$0xf]
        %v8666 = vld [vmem:[%s8658 + $0x1c] sm:$0xf]
        %v8667 = vld [vmem:[%s8658 + $0x20] sm:$0xf]
        %v8668 = vld [vmem:[%s8658 + $0x24] sm:$0xf]
        %v8669 = vld [vmem:[%s8658 + $0x28] sm:$0xf]
        %v8670 = vld [vmem:[%s8658 + $0x2c] sm:$0xf]
        %v8671 = vld [vmem:[%s8658 + $0x30] sm:$0xf]
        %v8672 = vld [vmem:[%s8658 + $0x34] sm:$0xf]
        %v8673 = vld [vmem:[%s8658 + $0x38] sm:$0xf]
        %v8674 = vld [vmem:[%s8658 + $0x3c] sm:$0xf]
        %8675 = vmatpush.bf16.msra.mxu0 0
        %8676 = vmatpush.bf16.msra.mxu0 0
        %8677 = vmatpush.bf16.msra.mxu0 0
        %8678 = vmatpush.bf16.msra.mxu0 0
        %8679 = vmatpush.bf16.msra.mxu0 %v6400
        %8680 = vmatpush.bf16.msra.mxu0 %v6399
        %8681 = vmatpush.bf16.msra.mxu0 %v6398
        %8682 = vmatpush.bf16.msra.mxu0 %v6397
        %8683 = vmatmul.bf16.gmra.mxu0 %v8614
        %v8684 = vpop.f32.mrf.mxu0
        %v8685 = vadd.f32 0.0, %v8684
        %v8686 = vpop.f32.mrf.mxu0
        %v8687 = vadd.f32 0.0, %v8686
        %8688 = vmatmul.bf16.gmra.mxu0 %v8617
        %v8689 = vpop.f32.mrf.mxu0
        %v8690 = vadd.f32 0.0, %v8689
        %v8691 = vpop.f32.mrf.mxu0
        %v8692 = vadd.f32 0.0, %v8691
        %8693 = vmatmul.bf16.gmra.mxu0 %v8620
        %v8694 = vpop.f32.mrf.mxu0
        %v8695 = vadd.f32 0.0, %v8694
        %v8696 = vpop.f32.mrf.mxu0
        %v8697 = vadd.f32 0.0, %v8696
        %8698 = vmatmul.bf16.gmra.mxu0 %v8623
        %v8699 = vpop.f32.mrf.mxu0
        %v8700 = vadd.f32 0.0, %v8699
        %v8701 = vpop.f32.mrf.mxu0
        %v8702 = vadd.f32 0.0, %v8701
        %8703 = vdwg.mxu0
        %v8704 = vpack.c.bf16 %v8687, %v8685
        %v8705 = vpack.c.bf16 %v8692, %v8690
        %v8706 = vpack.c.bf16 %v8697, %v8695
        %v8707 = vpack.c.bf16 %v8702, %v8700
        %s8708 = scalar_lea.vmem [#allocation16], 448
        %v8709 = vld [vmem:[%s8708] sm:$0xf]
        %v8710 = vld [vmem:[%s8708 + $0x4] sm:$0xf]
        %v8711 = vld [vmem:[%s8708 + $0x8] sm:$0xf]
        %v8712 = vld [vmem:[%s8708 + $0xc] sm:$0xf]
        %v8713 = vld [vmem:[%s8708 + $0x10] sm:$0xf]
        %v8714 = vld [vmem:[%s8708 + $0x14] sm:$0xf]
        %v8715 = vld [vmem:[%s8708 + $0x18] sm:$0xf]
        %v8716 = vld [vmem:[%s8708 + $0x1c] sm:$0xf]
        %v8717 = vld [vmem:[%s8708 + $0x20] sm:$0xf]
        %v8718 = vld [vmem:[%s8708 + $0x24] sm:$0xf]
        %v8719 = vld [vmem:[%s8708 + $0x28] sm:$0xf]
        %v8720 = vld [vmem:[%s8708 + $0x2c] sm:$0xf]
        %v8721 = vld [vmem:[%s8708 + $0x30] sm:$0xf]
        %v8722 = vld [vmem:[%s8708 + $0x34] sm:$0xf]
        %v8723 = vld [vmem:[%s8708 + $0x38] sm:$0xf]
        %v8724 = vld [vmem:[%s8708 + $0x3c] sm:$0xf]
        %v8741 = vunpack.c.l.b16 %v8709
        %v8742 = vunpack.c.l.b16 %v8710
        %v8743 = vunpack.c.l.b16 %v8711
        %v8744 = vunpack.c.l.b16 %v8712
        %v8745 = vunpack.c.l.b16 %v8713
        %v8746 = vunpack.c.l.b16 %v8714
        %v8747 = vunpack.c.l.b16 %v8715
        %v8748 = vunpack.c.l.b16 %v8716
        %v8749 = vunpack.c.l.b16 %v8717
        %v8750 = vunpack.c.l.b16 %v8718
        %v8751 = vunpack.c.l.b16 %v8719
        %v8752 = vunpack.c.l.b16 %v8720
        %v8753 = vunpack.c.l.b16 %v8721
        %v8754 = vunpack.c.l.b16 %v8722
        %v8755 = vunpack.c.l.b16 %v8723
        %v8756 = vunpack.c.l.b16 %v8724
        %v8757 = vpack.c.b16 %v8742, %v8741
        %v8758 = vpack.c.b16 %v8744, %v8743
        %v8759 = vpack.c.b16 %v8746, %v8745
        %v8760 = vpack.c.b16 %v8748, %v8747
        %v8761 = vpack.c.b16 %v8750, %v8749
        %v8762 = vpack.c.b16 %v8752, %v8751
        %v8763 = vpack.c.b16 %v8754, %v8753
        %v8764 = vpack.c.b16 %v8756, %v8755
        %8773 = vmatpush.bf16.msra.mxu0 %v8764
        %8774 = vmatpush.bf16.msra.mxu0 %v8763
        %8775 = vmatpush.bf16.msra.mxu0 %v8762
        %8776 = vmatpush.bf16.msra.mxu0 %v8761
        %8777 = vmatpush.bf16.msra.mxu0 %v8760
        %8778 = vmatpush.bf16.msra.mxu0 %v8759
        %8779 = vmatpush.bf16.msra.mxu0 %v8758
        %8780 = vmatpush.bf16.msra.mxu0 %v8757
        %8781 = vmatmul.bf16.gmra.mxu0 %v8704
        %v8782 = vpop.f32.mrf.mxu0
        %v8783 = vadd.f32 0.0, %v8782
        %v8784 = vpop.f32.mrf.mxu0
        %v8785 = vadd.f32 0.0, %v8784
        %8786 = vmatmul.bf16.gmra.mxu0 %v8705
        %v8787 = vpop.f32.mrf.mxu0
        %v8788 = vadd.f32 0.0, %v8787
        %v8789 = vpop.f32.mrf.mxu0
        %v8790 = vadd.f32 0.0, %v8789
        %8791 = vmatmul.bf16.gmra.mxu0 %v8706
        %v8792 = vpop.f32.mrf.mxu0
        %v8793 = vadd.f32 0.0, %v8792
        %v8794 = vpop.f32.mrf.mxu0
        %v8795 = vadd.f32 0.0, %v8794
        %8796 = vmatmul.bf16.gmra.mxu0 %v8707
        %v8797 = vpop.f32.mrf.mxu0
        %v8798 = vadd.f32 0.0, %v8797
        %v8799 = vpop.f32.mrf.mxu0
        %v8800 = vadd.f32 0.0, %v8799
        %8801 = vdwg.mxu0
        %v8818 = vunpack.c.l.b16 %v8659
        %v8819 = vunpack.c.l.b16 %v8660
        %v8820 = vunpack.c.l.b16 %v8661
        %v8821 = vunpack.c.l.b16 %v8662
        %v8822 = vunpack.c.l.b16 %v8663
        %v8823 = vunpack.c.l.b16 %v8664
        %v8824 = vunpack.c.l.b16 %v8665
        %v8825 = vunpack.c.l.b16 %v8666
        %v8826 = vunpack.c.l.b16 %v8667
        %v8827 = vunpack.c.l.b16 %v8668
        %v8828 = vunpack.c.l.b16 %v8669
        %v8829 = vunpack.c.l.b16 %v8670
        %v8830 = vunpack.c.l.b16 %v8671
        %v8831 = vunpack.c.l.b16 %v8672
        %v8832 = vunpack.c.l.b16 %v8673
        %v8833 = vunpack.c.l.b16 %v8674
        %v8834 = vpack.c.b16 %v8819, %v8818
        %v8835 = vpack.c.b16 %v8821, %v8820
        %v8836 = vpack.c.b16 %v8823, %v8822
        %v8837 = vpack.c.b16 %v8825, %v8824
        %v8838 = vpack.c.b16 %v8827, %v8826
        %v8839 = vpack.c.b16 %v8829, %v8828
        %v8840 = vpack.c.b16 %v8831, %v8830
        %v8841 = vpack.c.b16 %v8833, %v8832
        %8850 = vmatpush.bf16.msra.mxu0 %v8841
        %8851 = vmatpush.bf16.msra.mxu0 %v8840
        %8852 = vmatpush.bf16.msra.mxu0 %v8839
        %8853 = vmatpush.bf16.msra.mxu0 %v8838
        %8854 = vmatpush.bf16.msra.mxu0 %v8837
        %8855 = vmatpush.bf16.msra.mxu0 %v8836
        %8856 = vmatpush.bf16.msra.mxu0 %v8835
        %8857 = vmatpush.bf16.msra.mxu0 %v8834
        %8858 = vmatmul.bf16.gmra.mxu0 %v8654
        %v8859 = vpop.f32.mrf.mxu0
        %v8860 = vadd.f32 %v8783, %v8859
        %v8861 = vpop.f32.mrf.mxu0
        %v8862 = vadd.f32 %v8785, %v8861
        %8863 = vmatmul.bf16.gmra.mxu0 %v8655
        %v8864 = vpop.f32.mrf.mxu0
        %v8865 = vadd.f32 %v8788, %v8864
        %v8866 = vpop.f32.mrf.mxu0
        %v8867 = vadd.f32 %v8790, %v8866
        %8868 = vmatmul.bf16.gmra.mxu0 %v8656
        %v8869 = vpop.f32.mrf.mxu0
        %v8870 = vadd.f32 %v8793, %v8869
        %v8871 = vpop.f32.mrf.mxu0
        %v8872 = vadd.f32 %v8795, %v8871
        %8873 = vmatmul.bf16.gmra.mxu0 %v8657
        %v8874 = vpop.f32.mrf.mxu0
        %v8875 = vadd.f32 %v8798, %v8874
        %v8876 = vpop.f32.mrf.mxu0
        %v8877 = vadd.f32 %v8800, %v8876
        %8878 = vdwg.mxu0
        %v8879 = vadd.f32 %v8576, %v8860
        %v8880 = vadd.f32 %v8577, %v8862
        %v8881 = vadd.f32 %v8578, %v8865
        %v8882 = vadd.f32 %v8579, %v8867
        %v8883 = vadd.f32 %v8580, %v8870
        %v8884 = vadd.f32 %v8581, %v8872
        %v8885 = vadd.f32 %v8582, %v8875
        %v8886 = vadd.f32 %v8583, %v8877
        %s8887 = scalar_lea.vmem %s5, 256
        %v8888 = vld [vmem:[%s8887] sm:$0xf]
        %v8889 = vld [vmem:[%s8887 + $0x4] sm:$0xf]
        %v8890 = vld [vmem:[%s8887 + $0x8] sm:$0xf]
        %v8891 = vld [vmem:[%s8887 + $0xc] sm:$0xf]
        %v8892 = vld [vmem:[%s8887 + $0x10] sm:$0xf]
        %v8893 = vld [vmem:[%s8887 + $0x14] sm:$0xf]
        %v8894 = vld [vmem:[%s8887 + $0x18] sm:$0xf]
        %v8895 = vld [vmem:[%s8887 + $0x1c] sm:$0xf]
        %v8904 = vunpack.c.l.b16 %v8888
        %v8905 = vunpack.c.l.b16 %v8889
        %v8906 = vunpack.c.l.b16 %v8890
        %v8907 = vunpack.c.l.b16 %v8891
        %v8908 = vunpack.c.l.b16 %v8892
        %v8909 = vunpack.c.l.b16 %v8893
        %v8910 = vunpack.c.l.b16 %v8894
        %v8911 = vunpack.c.l.b16 %v8895
        %v8912 = vpack.c.b16 %v8905, %v8904
        %v8913 = vpack.c.b16 %v8907, %v8906
        %v8914 = vpack.c.b16 %v8909, %v8908
        %v8915 = vpack.c.b16 %v8911, %v8910
        %v8917 = vsel %vm2897, %v8912, 0
        %v8920 = vsel %vm2897, %v8913, 0
        %v8923 = vsel %vm2897, %v8914, 0
        %v8926 = vsel %vm2897, %v8915, 0
        %8928 = vmatpush.bf16.msra.mxu0 0
        %8929 = vmatpush.bf16.msra.mxu0 0
        %8930 = vmatpush.bf16.msra.mxu0 0
        %8931 = vmatpush.bf16.msra.mxu0 0
        %8932 = vmatpush.bf16.msra.mxu0 %v6473
        %8933 = vmatpush.bf16.msra.mxu0 %v6472
        %8934 = vmatpush.bf16.msra.mxu0 %v6471
        %8935 = vmatpush.bf16.msra.mxu0 %v6470
        %8936 = vmatmul.bf16.gmra.mxu0 %v8917
        %v8937 = vpop.f32.mrf.mxu0
        %v8938 = vadd.f32 0.0, %v8937
        %v8939 = vpop.f32.mrf.mxu0
        %v8940 = vadd.f32 0.0, %v8939
        %8941 = vmatmul.bf16.gmra.mxu0 %v8920
        %v8942 = vpop.f32.mrf.mxu0
        %v8943 = vadd.f32 0.0, %v8942
        %v8944 = vpop.f32.mrf.mxu0
        %v8945 = vadd.f32 0.0, %v8944
        %8946 = vmatmul.bf16.gmra.mxu0 %v8923
        %v8947 = vpop.f32.mrf.mxu0
        %v8948 = vadd.f32 0.0, %v8947
        %v8949 = vpop.f32.mrf.mxu0
        %v8950 = vadd.f32 0.0, %v8949
        %8951 = vmatmul.bf16.gmra.mxu0 %v8926
        %v8952 = vpop.f32.mrf.mxu0
        %v8953 = vadd.f32 0.0, %v8952
        %v8954 = vpop.f32.mrf.mxu0
        %v8955 = vadd.f32 0.0, %v8954
        %8956 = vdwg.mxu0
        %v8957 = vpack.c.bf16 %v8940, %v8938
        %v8958 = vpack.c.bf16 %v8945, %v8943
        %v8959 = vpack.c.bf16 %v8950, %v8948
        %v8960 = vpack.c.bf16 %v8955, %v8953
        %s8961 = scalar_lea.vmem [#allocation15], 512
        %v8962 = vld [vmem:[%s8961] sm:$0xf]
        %v8963 = vld [vmem:[%s8961 + $0x4] sm:$0xf]
        %v8964 = vld [vmem:[%s8961 + $0x8] sm:$0xf]
        %v8965 = vld [vmem:[%s8961 + $0xc] sm:$0xf]
        %v8966 = vld [vmem:[%s8961 + $0x10] sm:$0xf]
        %v8967 = vld [vmem:[%s8961 + $0x14] sm:$0xf]
        %v8968 = vld [vmem:[%s8961 + $0x18] sm:$0xf]
        %v8969 = vld [vmem:[%s8961 + $0x1c] sm:$0xf]
        %v8970 = vld [vmem:[%s8961 + $0x20] sm:$0xf]
        %v8971 = vld [vmem:[%s8961 + $0x24] sm:$0xf]
        %v8972 = vld [vmem:[%s8961 + $0x28] sm:$0xf]
        %v8973 = vld [vmem:[%s8961 + $0x2c] sm:$0xf]
        %v8974 = vld [vmem:[%s8961 + $0x30] sm:$0xf]
        %v8975 = vld [vmem:[%s8961 + $0x34] sm:$0xf]
        %v8976 = vld [vmem:[%s8961 + $0x38] sm:$0xf]
        %v8977 = vld [vmem:[%s8961 + $0x3c] sm:$0xf]
        %8978 = vmatpush.bf16.msra.mxu0 0
        %8979 = vmatpush.bf16.msra.mxu0 0
        %8980 = vmatpush.bf16.msra.mxu0 0
        %8981 = vmatpush.bf16.msra.mxu0 0
        %8982 = vmatpush.bf16.msra.mxu0 %v6400
        %8983 = vmatpush.bf16.msra.mxu0 %v6399
        %8984 = vmatpush.bf16.msra.mxu0 %v6398
        %8985 = vmatpush.bf16.msra.mxu0 %v6397
        %8986 = vmatmul.bf16.gmra.mxu0 %v8917
        %v8987 = vpop.f32.mrf.mxu0
        %v8988 = vadd.f32 0.0, %v8987
        %v8989 = vpop.f32.mrf.mxu0
        %v8990 = vadd.f32 0.0, %v8989
        %8991 = vmatmul.bf16.gmra.mxu0 %v8920
        %v8992 = vpop.f32.mrf.mxu0
        %v8993 = vadd.f32 0.0, %v8992
        %v8994 = vpop.f32.mrf.mxu0
        %v8995 = vadd.f32 0.0, %v8994
        %8996 = vmatmul.bf16.gmra.mxu0 %v8923
        %v8997 = vpop.f32.mrf.mxu0
        %v8998 = vadd.f32 0.0, %v8997
        %v8999 = vpop.f32.mrf.mxu0
        %v9000 = vadd.f32 0.0, %v8999
        %9001 = vmatmul.bf16.gmra.mxu0 %v8926
        %v9002 = vpop.f32.mrf.mxu0
        %v9003 = vadd.f32 0.0, %v9002
        %v9004 = vpop.f32.mrf.mxu0
        %v9005 = vadd.f32 0.0, %v9004
        %9006 = vdwg.mxu0
        %v9007 = vpack.c.bf16 %v8990, %v8988
        %v9008 = vpack.c.bf16 %v8995, %v8993
        %v9009 = vpack.c.bf16 %v9000, %v8998
        %v9010 = vpack.c.bf16 %v9005, %v9003
        %s9011 = scalar_lea.vmem [#allocation16], 512
        %v9012 = vld [vmem:[%s9011] sm:$0xf]
        %v9013 = vld [vmem:[%s9011 + $0x4] sm:$0xf]
        %v9014 = vld [vmem:[%s9011 + $0x8] sm:$0xf]
        %v9015 = vld [vmem:[%s9011 + $0xc] sm:$0xf]
        %v9016 = vld [vmem:[%s9011 + $0x10] sm:$0xf]
        %v9017 = vld [vmem:[%s9011 + $0x14] sm:$0xf]
        %v9018 = vld [vmem:[%s9011 + $0x18] sm:$0xf]
        %v9019 = vld [vmem:[%s9011 + $0x1c] sm:$0xf]
        %v9020 = vld [vmem:[%s9011 + $0x20] sm:$0xf]
        %v9021 = vld [vmem:[%s9011 + $0x24] sm:$0xf]
        %v9022 = vld [vmem:[%s9011 + $0x28] sm:$0xf]
        %v9023 = vld [vmem:[%s9011 + $0x2c] sm:$0xf]
        %v9024 = vld [vmem:[%s9011 + $0x30] sm:$0xf]
        %v9025 = vld [vmem:[%s9011 + $0x34] sm:$0xf]
        %v9026 = vld [vmem:[%s9011 + $0x38] sm:$0xf]
        %v9027 = vld [vmem:[%s9011 + $0x3c] sm:$0xf]
        %v9044 = vunpack.c.l.b16 %v9012
        %v9045 = vunpack.c.l.b16 %v9013
        %v9046 = vunpack.c.l.b16 %v9014
        %v9047 = vunpack.c.l.b16 %v9015
        %v9048 = vunpack.c.l.b16 %v9016
        %v9049 = vunpack.c.l.b16 %v9017
        %v9050 = vunpack.c.l.b16 %v9018
        %v9051 = vunpack.c.l.b16 %v9019
        %v9052 = vunpack.c.l.b16 %v9020
        %v9053 = vunpack.c.l.b16 %v9021
        %v9054 = vunpack.c.l.b16 %v9022
        %v9055 = vunpack.c.l.b16 %v9023
        %v9056 = vunpack.c.l.b16 %v9024
        %v9057 = vunpack.c.l.b16 %v9025
        %v9058 = vunpack.c.l.b16 %v9026
        %v9059 = vunpack.c.l.b16 %v9027
        %v9060 = vpack.c.b16 %v9045, %v9044
        %v9061 = vpack.c.b16 %v9047, %v9046
        %v9062 = vpack.c.b16 %v9049, %v9048
        %v9063 = vpack.c.b16 %v9051, %v9050
        %v9064 = vpack.c.b16 %v9053, %v9052
        %v9065 = vpack.c.b16 %v9055, %v9054
        %v9066 = vpack.c.b16 %v9057, %v9056
        %v9067 = vpack.c.b16 %v9059, %v9058
        %9076 = vmatpush.bf16.msra.mxu0 %v9067
        %9077 = vmatpush.bf16.msra.mxu0 %v9066
        %9078 = vmatpush.bf16.msra.mxu0 %v9065
        %9079 = vmatpush.bf16.msra.mxu0 %v9064
        %9080 = vmatpush.bf16.msra.mxu0 %v9063
        %9081 = vmatpush.bf16.msra.mxu0 %v9062
        %9082 = vmatpush.bf16.msra.mxu0 %v9061
        %9083 = vmatpush.bf16.msra.mxu0 %v9060
        %9084 = vmatmul.bf16.gmra.mxu0 %v9007
        %v9085 = vpop.f32.mrf.mxu0
        %v9086 = vadd.f32 0.0, %v9085
        %v9087 = vpop.f32.mrf.mxu0
        %v9088 = vadd.f32 0.0, %v9087
        %9089 = vmatmul.bf16.gmra.mxu0 %v9008
        %v9090 = vpop.f32.mrf.mxu0
        %v9091 = vadd.f32 0.0, %v9090
        %v9092 = vpop.f32.mrf.mxu0
        %v9093 = vadd.f32 0.0, %v9092
        %9094 = vmatmul.bf16.gmra.mxu0 %v9009
        %v9095 = vpop.f32.mrf.mxu0
        %v9096 = vadd.f32 0.0, %v9095
        %v9097 = vpop.f32.mrf.mxu0
        %v9098 = vadd.f32 0.0, %v9097
        %9099 = vmatmul.bf16.gmra.mxu0 %v9010
        %v9100 = vpop.f32.mrf.mxu0
        %v9101 = vadd.f32 0.0, %v9100
        %v9102 = vpop.f32.mrf.mxu0
        %v9103 = vadd.f32 0.0, %v9102
        %9104 = vdwg.mxu0
        %v9121 = vunpack.c.l.b16 %v8962
        %v9122 = vunpack.c.l.b16 %v8963
        %v9123 = vunpack.c.l.b16 %v8964
        %v9124 = vunpack.c.l.b16 %v8965
        %v9125 = vunpack.c.l.b16 %v8966
        %v9126 = vunpack.c.l.b16 %v8967
        %v9127 = vunpack.c.l.b16 %v8968
        %v9128 = vunpack.c.l.b16 %v8969
        %v9129 = vunpack.c.l.b16 %v8970
        %v9130 = vunpack.c.l.b16 %v8971
        %v9131 = vunpack.c.l.b16 %v8972
        %v9132 = vunpack.c.l.b16 %v8973
        %v9133 = vunpack.c.l.b16 %v8974
        %v9134 = vunpack.c.l.b16 %v8975
        %v9135 = vunpack.c.l.b16 %v8976
        %v9136 = vunpack.c.l.b16 %v8977
        %v9137 = vpack.c.b16 %v9122, %v9121
        %v9138 = vpack.c.b16 %v9124, %v9123
        %v9139 = vpack.c.b16 %v9126, %v9125
        %v9140 = vpack.c.b16 %v9128, %v9127
        %v9141 = vpack.c.b16 %v9130, %v9129
        %v9142 = vpack.c.b16 %v9132, %v9131
        %v9143 = vpack.c.b16 %v9134, %v9133
        %v9144 = vpack.c.b16 %v9136, %v9135
        %9153 = vmatpush.bf16.msra.mxu0 %v9144
        %9154 = vmatpush.bf16.msra.mxu0 %v9143
        %9155 = vmatpush.bf16.msra.mxu0 %v9142
        %9156 = vmatpush.bf16.msra.mxu0 %v9141
        %9157 = vmatpush.bf16.msra.mxu0 %v9140
        %9158 = vmatpush.bf16.msra.mxu0 %v9139
        %9159 = vmatpush.bf16.msra.mxu0 %v9138
        %9160 = vmatpush.bf16.msra.mxu0 %v9137
        %9161 = vmatmul.bf16.gmra.mxu0 %v8957
        %v9162 = vpop.f32.mrf.mxu0
        %v9163 = vadd.f32 %v9086, %v9162
        %v9164 = vpop.f32.mrf.mxu0
        %v9165 = vadd.f32 %v9088, %v9164
        %9166 = vmatmul.bf16.gmra.mxu0 %v8958
        %v9167 = vpop.f32.mrf.mxu0
        %v9168 = vadd.f32 %v9091, %v9167
        %v9169 = vpop.f32.mrf.mxu0
        %v9170 = vadd.f32 %v9093, %v9169
        %9171 = vmatmul.bf16.gmra.mxu0 %v8959
        %v9172 = vpop.f32.mrf.mxu0
        %v9173 = vadd.f32 %v9096, %v9172
        %v9174 = vpop.f32.mrf.mxu0
        %v9175 = vadd.f32 %v9098, %v9174
        %9176 = vmatmul.bf16.gmra.mxu0 %v8960
        %v9177 = vpop.f32.mrf.mxu0
        %v9178 = vadd.f32 %v9101, %v9177
        %v9179 = vpop.f32.mrf.mxu0
        %v9180 = vadd.f32 %v9103, %v9179
        %9181 = vdwg.mxu0
        %v9182 = vadd.f32 %v8879, %v9163
        %v9183 = vadd.f32 %v8880, %v9165
        %v9184 = vadd.f32 %v8881, %v9168
        %v9185 = vadd.f32 %v8882, %v9170
        %v9186 = vadd.f32 %v8883, %v9173
        %v9187 = vadd.f32 %v8884, %v9175
        %v9188 = vadd.f32 %v8885, %v9178
        %v9189 = vadd.f32 %v8886, %v9180
        %v9190 = vperm.slane %v841, 0
        %v9191 = vadd.f32 %v9182, %v9190
        %v9192 = vadd.f32 %v9183, %v9190
        %v9193 = vadd.f32 %v9184, %v9190
        %v9194 = vadd.f32 %v9185, %v9190
        %v9195 = vadd.f32 %v9186, %v9190
        %v9196 = vadd.f32 %v9187, %v9190
        %v9197 = vadd.f32 %v9188, %v9190
        %v9198 = vadd.f32 %v9189, %v9190
        %v9199 = vmax.f32 %v9191, 0.0
        %v9200 = vmax.f32 %v9192, 0.0
        %v9201 = vmax.f32 %v9193, 0.0
        %v9202 = vmax.f32 %v9194, 0.0
        %v9203 = vmax.f32 %v9195, 0.0
        %v9204 = vmax.f32 %v9196, 0.0
        %v9205 = vmax.f32 %v9197, 0.0
        %v9206 = vmax.f32 %v9198, 0.0
        %v9207 = vpack.c.bf16 %v9200, %v9199
        %v9208 = vpack.c.bf16 %v9202, %v9201
        %v9209 = vpack.c.bf16 %v9204, %v9203
        %v9210 = vpack.c.bf16 %v9206, %v9205
        %v9211 = vld [vmem:[#allocation18] sm:$0xf]
        %v9212 = vld [vmem:[#allocation18 + $0x4] sm:$0xf]
        %v9213 = vld [vmem:[#allocation18 + $0x8] sm:$0xf]
        %v9214 = vld [vmem:[#allocation18 + $0xc] sm:$0xf]
        %v9215 = vld [vmem:[#allocation18 + $0x10] sm:$0xf]
        %v9216 = vld [vmem:[#allocation18 + $0x14] sm:$0xf]
        %v9217 = vld [vmem:[#allocation18 + $0x18] sm:$0xf]
        %v9218 = vld [vmem:[#allocation18 + $0x1c] sm:$0xf]
        %v9219 = vld [vmem:[#allocation18 + $0x20] sm:$0xf]
        %v9220 = vld [vmem:[#allocation18 + $0x24] sm:$0xf]
        %v9221 = vld [vmem:[#allocation18 + $0x28] sm:$0xf]
        %v9222 = vld [vmem:[#allocation18 + $0x2c] sm:$0xf]
        %v9223 = vld [vmem:[#allocation18 + $0x30] sm:$0xf]
        %v9224 = vld [vmem:[#allocation18 + $0x34] sm:$0xf]
        %v9225 = vld [vmem:[#allocation18 + $0x38] sm:$0xf]
        %v9226 = vld [vmem:[#allocation18 + $0x3c] sm:$0xf]
        %v9227 = vperm.slane %v841, 1
        %v9244 = vunpack.c.l.b16 %v9211
        %v9245 = vunpack.c.l.b16 %v9212
        %v9246 = vunpack.c.l.b16 %v9213
        %v9247 = vunpack.c.l.b16 %v9214
        %v9248 = vunpack.c.l.b16 %v9215
        %v9249 = vunpack.c.l.b16 %v9216
        %v9250 = vunpack.c.l.b16 %v9217
        %v9251 = vunpack.c.l.b16 %v9218
        %v9252 = vunpack.c.l.b16 %v9219
        %v9253 = vunpack.c.l.b16 %v9220
        %v9254 = vunpack.c.l.b16 %v9221
        %v9255 = vunpack.c.l.b16 %v9222
        %v9256 = vunpack.c.l.b16 %v9223
        %v9257 = vunpack.c.l.b16 %v9224
        %v9258 = vunpack.c.l.b16 %v9225
        %v9259 = vunpack.c.l.b16 %v9226
        %v9260 = vpack.c.b16 %v9245, %v9244
        %v9261 = vpack.c.b16 %v9247, %v9246
        %v9262 = vpack.c.b16 %v9249, %v9248
        %v9263 = vpack.c.b16 %v9251, %v9250
        %v9264 = vpack.c.b16 %v9253, %v9252
        %v9265 = vpack.c.b16 %v9255, %v9254
        %v9266 = vpack.c.b16 %v9257, %v9256
        %v9267 = vpack.c.b16 %v9259, %v9258
        %9276 = vmatpush.bf16.msra.mxu0 %v9267
        %9277 = vmatpush.bf16.msra.mxu0 %v9266
        %9278 = vmatpush.bf16.msra.mxu0 %v9265
        %9279 = vmatpush.bf16.msra.mxu0 %v9264
        %9280 = vmatpush.bf16.msra.mxu0 %v9263
        %9281 = vmatpush.bf16.msra.mxu0 %v9262
        %9282 = vmatpush.bf16.msra.mxu0 %v9261
        %9283 = vmatpush.bf16.msra.mxu0 %v9260
        %9284 = vmatmul.bf16.gmra.mxu0 %v9207
        %v9285 = vpop.f32.mrf.mxu0
        %v9286 = vadd.f32 %v9227, %v9285
        %v9287 = vpop.f32.mrf.mxu0
        %v9288 = vadd.f32 %v9227, %v9287
        %9289 = vmatmul.bf16.gmra.mxu0 %v9208
        %v9290 = vpop.f32.mrf.mxu0
        %v9291 = vadd.f32 %v9227, %v9290
        %v9292 = vpop.f32.mrf.mxu0
        %v9293 = vadd.f32 %v9227, %v9292
        %9294 = vmatmul.bf16.gmra.mxu0 %v9209
        %v9295 = vpop.f32.mrf.mxu0
        %v9296 = vadd.f32 %v9227, %v9295
        %v9297 = vpop.f32.mrf.mxu0
        %v9298 = vadd.f32 %v9227, %v9297
        %9299 = vmatmul.bf16.gmra.mxu0 %v9210
        %v9300 = vpop.f32.mrf.mxu0
        %v9301 = vadd.f32 %v9227, %v9300
        %v9302 = vpop.f32.mrf.mxu0
        %v9303 = vadd.f32 %v9227, %v9302
        %9304 = vdwg.mxu0
        %v9305 = vpack.c.bf16 %v9288, %v9286
        %v9306 = vpack.c.bf16 %v9293, %v9291
        %v9307 = vpack.c.bf16 %v9298, %v9296
        %v9308 = vpack.c.bf16 %v9303, %v9301
        %v9309 = vld [vmem:[%s8] sm:$0xf]
        %v9310 = vld [vmem:[%s8 + $0x4] sm:$0xf]
        %v9311 = vld [vmem:[%s8 + $0x8] sm:$0xf]
        %v9312 = vld [vmem:[%s8 + $0xc] sm:$0xf]
        %v9313 = vld [vmem:[%s8 + $0x10] sm:$0xf]
        %v9314 = vld [vmem:[%s8 + $0x14] sm:$0xf]
        %v9315 = vld [vmem:[%s8 + $0x18] sm:$0xf]
        %v9316 = vld [vmem:[%s8 + $0x1c] sm:$0xf]
        %v9317 = vld [vmem:[%s8 + $0x20] sm:$0xf]
        %v9318 = vld [vmem:[%s8 + $0x24] sm:$0xf]
        %v9319 = vld [vmem:[%s8 + $0x28] sm:$0xf]
        %v9320 = vld [vmem:[%s8 + $0x2c] sm:$0xf]
        %v9321 = vld [vmem:[%s8 + $0x30] sm:$0xf]
        %v9322 = vld [vmem:[%s8 + $0x34] sm:$0xf]
        %v9323 = vld [vmem:[%s8 + $0x38] sm:$0xf]
        %v9324 = vld [vmem:[%s8 + $0x3c] sm:$0xf]
        %v9325 = vld [vmem:[%s8 + $0x40] sm:$0xf]
        %v9326 = vld [vmem:[%s8 + $0x44] sm:$0xf]
        %v9327 = vld [vmem:[%s8 + $0x48] sm:$0xf]
        %v9328 = vld [vmem:[%s8 + $0x4c] sm:$0xf]
        %v9329 = vld [vmem:[%s8 + $0x50] sm:$0xf]
        %v9330 = vld [vmem:[%s8 + $0x54] sm:$0xf]
        %v9331 = vld [vmem:[%s8 + $0x58] sm:$0xf]
        %v9332 = vld [vmem:[%s8 + $0x5c] sm:$0xf]
        %v9333 = vld [vmem:[%s8 + $0x60] sm:$0xf]
        %v9334 = vld [vmem:[%s8 + $0x64] sm:$0xf]
        %v9335 = vld [vmem:[%s8 + $0x68] sm:$0xf]
        %v9336 = vld [vmem:[%s8 + $0x6c] sm:$0xf]
        %v9337 = vld [vmem:[%s8 + $0x70] sm:$0xf]
        %v9338 = vld [vmem:[%s8 + $0x74] sm:$0xf]
        %v9339 = vld [vmem:[%s8 + $0x78] sm:$0xf]
        %v9340 = vld [vmem:[%s8 + $0x7c] sm:$0xf]
        %v9373 = vunpack.c.l.b16 %v9309
        %v9374 = vunpack.c.l.b16 %v9310
        %v9375 = vunpack.c.l.b16 %v9311
        %v9376 = vunpack.c.l.b16 %v9312
        %v9377 = vunpack.c.l.b16 %v9313
        %v9378 = vunpack.c.l.b16 %v9314
        %v9379 = vunpack.c.l.b16 %v9315
        %v9380 = vunpack.c.l.b16 %v9316
        %v9381 = vunpack.c.l.b16 %v9317
        %v9382 = vunpack.c.l.b16 %v9318
        %v9383 = vunpack.c.l.b16 %v9319
        %v9384 = vunpack.c.l.b16 %v9320
        %v9385 = vunpack.c.l.b16 %v9321
        %v9386 = vunpack.c.l.b16 %v9322
        %v9387 = vunpack.c.l.b16 %v9323
        %v9388 = vunpack.c.l.b16 %v9324
        %v9389 = vunpack.c.l.b16 %v9325
        %v9390 = vunpack.c.l.b16 %v9326
        %v9391 = vunpack.c.l.b16 %v9327
        %v9392 = vunpack.c.l.b16 %v9328
        %v9393 = vunpack.c.l.b16 %v9329
        %v9394 = vunpack.c.l.b16 %v9330
        %v9395 = vunpack.c.l.b16 %v9331
        %v9396 = vunpack.c.l.b16 %v9332
        %v9397 = vunpack.c.l.b16 %v9333
        %v9398 = vunpack.c.l.b16 %v9334
        %v9399 = vunpack.c.l.b16 %v9335
        %v9400 = vunpack.c.l.b16 %v9336
        %v9401 = vunpack.c.l.b16 %v9337
        %v9402 = vunpack.c.l.b16 %v9338
        %v9403 = vunpack.c.l.b16 %v9339
        %v9404 = vunpack.c.l.b16 %v9340
        %v9405 = vpack.c.b16 %v9374, %v9373
        %v9406 = vpack.c.b16 %v9376, %v9375
        %v9407 = vpack.c.b16 %v9378, %v9377
        %v9408 = vpack.c.b16 %v9380, %v9379
        %v9409 = vpack.c.b16 %v9382, %v9381
        %v9410 = vpack.c.b16 %v9384, %v9383
        %v9411 = vpack.c.b16 %v9386, %v9385
        %v9412 = vpack.c.b16 %v9388, %v9387
        %v9413 = vpack.c.b16 %v9390, %v9389
        %v9414 = vpack.c.b16 %v9392, %v9391
        %v9415 = vpack.c.b16 %v9394, %v9393
        %v9416 = vpack.c.b16 %v9396, %v9395
        %v9417 = vpack.c.b16 %v9398, %v9397
        %v9418 = vpack.c.b16 %v9400, %v9399
        %v9419 = vpack.c.b16 %v9402, %v9401
        %v9420 = vpack.c.b16 %v9404, %v9403
        %v9422 = vsel %vm2897, %v9405, 0
        %v9425 = vsel %vm2897, %v9406, 0
        %v9428 = vsel %vm2897, %v9407, 0
        %v9431 = vsel %vm2897, %v9408, 0
        %v9434 = vsel %vm2897, %v9409, 0
        %v9437 = vsel %vm2897, %v9410, 0
        %v9440 = vsel %vm2897, %v9411, 0
        %v9443 = vsel %vm2897, %v9412, 0
        %v9446 = vsel %vm2897, %v9413, 0
        %v9449 = vsel %vm2897, %v9414, 0
        %v9452 = vsel %vm2897, %v9415, 0
        %v9455 = vsel %vm2897, %v9416, 0
        %v9458 = vsel %vm2897, %v9417, 0
        %v9461 = vsel %vm2897, %v9418, 0
        %v9464 = vsel %vm2897, %v9419, 0
        %v9467 = vsel %vm2897, %v9420, 0
        %9469 = vmatpush.bf16.msra.mxu0 0
        %9470 = vmatpush.bf16.msra.mxu0 0
        %9471 = vmatpush.bf16.msra.mxu0 0
        %9472 = vmatpush.bf16.msra.mxu0 0
        %9473 = vmatpush.bf16.msra.mxu0 %v9308
        %9474 = vmatpush.bf16.msra.mxu0 %v9307
        %9475 = vmatpush.bf16.msra.mxu0 %v9306
        %9476 = vmatpush.bf16.msra.mxu0 %v9305
        %9477 = vmatmul.bf16.gmra.mxu0 %v9422
        %v9478 = vpop.f32.mrf.mxu0
        %v9479 = vadd.f32 0.0, %v9478
        %v9480 = vpop.f32.mrf.mxu0
        %v9481 = vadd.f32 0.0, %v9480
        %9482 = vmatmul.bf16.gmra.mxu0 %v9425
        %v9483 = vpop.f32.mrf.mxu0
        %v9484 = vadd.f32 0.0, %v9483
        %v9485 = vpop.f32.mrf.mxu0
        %v9486 = vadd.f32 0.0, %v9485
        %9487 = vmatmul.bf16.gmra.mxu0 %v9428
        %v9488 = vpop.f32.mrf.mxu0
        %v9489 = vadd.f32 0.0, %v9488
        %v9490 = vpop.f32.mrf.mxu0
        %v9491 = vadd.f32 0.0, %v9490
        %9492 = vmatmul.bf16.gmra.mxu0 %v9431
        %v9493 = vpop.f32.mrf.mxu0
        %v9494 = vadd.f32 0.0, %v9493
        %v9495 = vpop.f32.mrf.mxu0
        %v9496 = vadd.f32 0.0, %v9495
        %9497 = vmatmul.bf16.gmra.mxu0 %v9434
        %v9498 = vpop.f32.mrf.mxu0
        %v9499 = vadd.f32 0.0, %v9498
        %v9500 = vpop.f32.mrf.mxu0
        %v9501 = vadd.f32 0.0, %v9500
        %9502 = vmatmul.bf16.gmra.mxu0 %v9437
        %v9503 = vpop.f32.mrf.mxu0
        %v9504 = vadd.f32 0.0, %v9503
        %v9505 = vpop.f32.mrf.mxu0
        %v9506 = vadd.f32 0.0, %v9505
        %9507 = vmatmul.bf16.gmra.mxu0 %v9440
        %v9508 = vpop.f32.mrf.mxu0
        %v9509 = vadd.f32 0.0, %v9508
        %v9510 = vpop.f32.mrf.mxu0
        %v9511 = vadd.f32 0.0, %v9510
        %9512 = vmatmul.bf16.gmra.mxu0 %v9443
        %v9513 = vpop.f32.mrf.mxu0
        %v9514 = vadd.f32 0.0, %v9513
        %v9515 = vpop.f32.mrf.mxu0
        %v9516 = vadd.f32 0.0, %v9515
        %9517 = vmatmul.bf16.gmra.mxu0 %v9446
        %v9518 = vpop.f32.mrf.mxu0
        %v9519 = vadd.f32 0.0, %v9518
        %v9520 = vpop.f32.mrf.mxu0
        %v9521 = vadd.f32 0.0, %v9520
        %9522 = vmatmul.bf16.gmra.mxu0 %v9449
        %v9523 = vpop.f32.mrf.mxu0
        %v9524 = vadd.f32 0.0, %v9523
        %v9525 = vpop.f32.mrf.mxu0
        %v9526 = vadd.f32 0.0, %v9525
        %9527 = vmatmul.bf16.gmra.mxu0 %v9452
        %v9528 = vpop.f32.mrf.mxu0
        %v9529 = vadd.f32 0.0, %v9528
        %v9530 = vpop.f32.mrf.mxu0
        %v9531 = vadd.f32 0.0, %v9530
        %9532 = vmatmul.bf16.gmra.mxu0 %v9455
        %v9533 = vpop.f32.mrf.mxu0
        %v9534 = vadd.f32 0.0, %v9533
        %v9535 = vpop.f32.mrf.mxu0
        %v9536 = vadd.f32 0.0, %v9535
        %9537 = vmatmul.bf16.gmra.mxu0 %v9458
        %v9538 = vpop.f32.mrf.mxu0
        %v9539 = vadd.f32 0.0, %v9538
        %v9540 = vpop.f32.mrf.mxu0
        %v9541 = vadd.f32 0.0, %v9540
        %9542 = vmatmul.bf16.gmra.mxu0 %v9461
        %v9543 = vpop.f32.mrf.mxu0
        %v9544 = vadd.f32 0.0, %v9543
        %v9545 = vpop.f32.mrf.mxu0
        %v9546 = vadd.f32 0.0, %v9545
        %9547 = vmatmul.bf16.gmra.mxu0 %v9464
        %v9548 = vpop.f32.mrf.mxu0
        %v9549 = vadd.f32 0.0, %v9548
        %v9550 = vpop.f32.mrf.mxu0
        %v9551 = vadd.f32 0.0, %v9550
        %9552 = vmatmul.bf16.gmra.mxu0 %v9467
        %v9553 = vpop.f32.mrf.mxu0
        %v9554 = vadd.f32 0.0, %v9553
        %v9555 = vpop.f32.mrf.mxu0
        %v9556 = vadd.f32 0.0, %v9555
        %9557 = vdwg.mxu0
        %9558 = vst [vmem:[%s838] sm:$0xff] %v9479
        %9559 = vst [vmem:[%s838 + $0x8] sm:$0xff] %v9481
        %9560 = vst [vmem:[%s838 + $0x10] sm:$0xff] %v9484
        %9561 = vst [vmem:[%s838 + $0x18] sm:$0xff] %v9486
        %9562 = vst [vmem:[%s838 + $0x20] sm:$0xff] %v9489
        %9563 = vst [vmem:[%s838 + $0x28] sm:$0xff] %v9491
        %9564 = vst [vmem:[%s838 + $0x30] sm:$0xff] %v9494
        %9565 = vst [vmem:[%s838 + $0x38] sm:$0xff] %v9496
        %9566 = vst [vmem:[%s838 + $0x40] sm:$0xff] %v9499
        %9567 = vst [vmem:[%s838 + $0x48] sm:$0xff] %v9501
        %9568 = vst [vmem:[%s838 + $0x50] sm:$0xff] %v9504
        %9569 = vst [vmem:[%s838 + $0x58] sm:$0xff] %v9506
        %9570 = vst [vmem:[%s838 + $0x60] sm:$0xff] %v9509
        %9571 = vst [vmem:[%s838 + $0x68] sm:$0xff] %v9511
        %9572 = vst [vmem:[%s838 + $0x70] sm:$0xff] %v9514
        %9573 = vst [vmem:[%s838 + $0x78] sm:$0xff] %v9516
        %9574 = vst [vmem:[%s838 + $0x80] sm:$0xff] %v9519
        %9575 = vst [vmem:[%s838 + $0x88] sm:$0xff] %v9521
        %9576 = vst [vmem:[%s838 + $0x90] sm:$0xff] %v9524
        %9577 = vst [vmem:[%s838 + $0x98] sm:$0xff] %v9526
        %9578 = vst [vmem:[%s838 + $0xa0] sm:$0xff] %v9529
        %9579 = vst [vmem:[%s838 + $0xa8] sm:$0xff] %v9531
        %9580 = vst [vmem:[%s838 + $0xb0] sm:$0xff] %v9534
        %9581 = vst [vmem:[%s838 + $0xb8] sm:$0xff] %v9536
        %9582 = vst [vmem:[%s838 + $0xc0] sm:$0xff] %v9539
        %9583 = vst [vmem:[%s838 + $0xc8] sm:$0xff] %v9541
        %9584 = vst [vmem:[%s838 + $0xd0] sm:$0xff] %v9544
        %9585 = vst [vmem:[%s838 + $0xd8] sm:$0xff] %v9546
        %9586 = vst [vmem:[%s838 + $0xe0] sm:$0xff] %v9549
        %9587 = vst [vmem:[%s838 + $0xe8] sm:$0xff] %v9551
        %9588 = vst [vmem:[%s838 + $0xf0] sm:$0xff] %v9554
        %9589 = vst [vmem:[%s838 + $0xf8] sm:$0xff] %v9556
        %p9590 = scmp.lt.s32.totalorder %s38, 1
        %s9591 = scalar_select %p9590, %s38, 1
        %s9592 = smul.addr %s9591, 32
        %s9593 = smul.addr %s9592, 8
        %s9594 = scalar_lea.vmem %s21, %s9593
        // Predicated region
        $region149: #{deeplab_forward.1} parent=103 // pred_check
          %p9595 = pneg %p502
        $region150: #{deeplab_forward.1} parent=103 // pred_check_branch
          %9597 = sbr.rel (%p9595) target = $region152
        $region151: #{deeplab_forward.1} parent=103 // pred_region
          _
        $region152: #{deeplab_forward.1} parent=103 // pred_fallthru
          _
      $region104: #{deeplab_forward.1} parent=5 // pred_fallthru
        _
      %p9598 = scmp.le.s32.totalorder 2, %s33
      // Predicated region
      $region153: #{deeplab_forward.1} parent=5 // pred_check
        %p9599 = pneg %p9598
      $region154: #{deeplab_forward.1} parent=5 // pred_check_branch
        %9601 = sbr.rel (%p9599) target = $region156
      $region155: #{deeplab_forward.1} parent=5 // pred_region
        %s9602 = ssub.s32 %s33, 2
        // Predicated region
        $region157: #{deeplab_forward.1} parent=155 // pred_check
          %p9603 = pneg %p508
        $region158: #{deeplab_forward.1} parent=155 // pred_check_branch
          %9605 = sbr.rel (%p9603) target = $region160
        $region159: #{deeplab_forward.1} parent=155 // pred_region
          %p9606 = scmp.lt.s32.totalorder %s39, 1
          %s9607 = scalar_select %p9606, %s39, 1
          %s9608 = smul.addr %s9607, 32
          %s9609 = smul.addr %s9608, 8
          %s9610 = scalar_lea.vmem %s21, %s9609
        $region160: #{deeplab_forward.1} parent=155 // pred_fallthru
          _
      $region156: #{deeplab_forward.1} parent=5 // pred_fallthru
        _
    $region6: #{deeplab_forward.1} parent=1 // loop_footer
      %s37 = sadd.s32 1, %s33
    $region7: #{deeplab_forward.1} parent=1 // loop_footer_branch
      %32 = sbr.rel target = $region3
    $region8: #{deeplab_forward.1} parent=1 // loop_exit
      _
    %9611 = vsyncpa [#allocation3], 1
    %s9612 = scalar_lea.sflag [#allocation3], 1
    %9613 = vsyncpa %s9612, 1
    %9614 = vsyncpa [#allocation5], 1
    %9615 = vsyncpa [#allocation8], 1
    %9616 = vsyncpa [#allocation11], 1
    %9617 = vsyncpa [#allocation14], 1
    %9618 = vsyncpa [#allocation17], 1

</llo_original>
